<compile_context>
chip_gen: v6e
topology: v6e:2x2x1
jax: 0.10.0
libtpu: 0.0.40
codegen_flags: <defaults>
</compile_context>

<pallas_src>
import functools

import jax
import jax.numpy as jnp
from jax.experimental import pallas as pl
from jax.experimental.pallas import tpu as pltpu


def _round_up(v, m):
    return (v + m - 1) // m * m


# Whole-array VMEM resident (loaded once, not part of the windowed pipeline).
_VMEM_OPERAND = pl.BlockSpec(memory_space=pltpu.MemorySpace.VMEM)


# ----------------------------- Pallas kernel ------------------------------- #

def _cnn_mnist_kernel(xb_ref, a1_ref, b1_ref, a2_ref, b2_ref,
                      wf1_ref, bf1_ref, wf2_ref, bf2_ref,
                      o_ref, h1_ref, feat_ref):
    """Whole CNNMnist forward for one batch tile; all intermediates stay in VMEM.

    xb_ref  : (12, BN, 168) bf16  the 12 overlapping 6-row image bands
    a1_ref  : (168, 512)    bf16  banded conv1+pool operator, 4 pool blocks x 128
    b1_ref  : (1, 128)      f32   conv1 bias tiled (col = j*10+co), zero padded
    a2_ref  : (768, 512)    bf16  banded conv2+pool operator, 4 pool blocks x 128
    b2_ref  : (1, 128)      f32   conv2 bias tiled (col = co*4+j), zero padded
    wf1_ref : (512, 128)    bf16  fc1 weight, rows permuted to feat layout, padded
    bf1_ref : (1, 128)      f32
    wf2_ref : (128, 128)    bf16  fc2 weight, zero padded
    bf2_ref : (1, 128)      f32
    o_ref   : (BN, 128)     f32   logits (first 10 columns real)
    h1_ref  : (BN, 1536)    bf16  scratch: relu(pool(conv1)), 12 row blocks of 128
    feat_ref: (BN, 512)     bf16  scratch: relu(pool(conv2)), 4 row blocks of 128
    """
    f32 = jnp.float32

    # conv1 -> max_pool2d(2) -> relu, banded over the 12 pooled output rows.
    # Each "half" is a 256-wide MXU panel holding two of the four 2x2-pool positions;
    # max / bias / relu are fused per panel (no wide f32 intermediate).
    for i in range(12):
        xi = xb_ref[i]                                              # (BN, 168) bf16
        m = None
        for half in range(2):
            part = jnp.dot(xi, a1_ref[:, half * 256:(half + 1) * 256],
                           preferred_element_type=f32)              # (BN, 256)
            pm = jnp.maximum(part[:, :128], part[:, 128:])
            m = pm if m is None else jnp.maximum(m, pm)
        h1_ref[:, i * 128:(i + 1) * 128] = jnp.maximum(
            m + b1_ref[...], 0.0).astype(h1_ref.dtype)

    # conv2 -> Dropout2d (identity) -> max_pool2d(2) -> relu, banded over the 4 pooled
    # output rows.  Band b consumes pooled-conv1 rows 2b..2b+5 = h1 column blocks
    # 2b..2b+5 (a 128-aligned, 768-wide slice).
    # TODO(synk): Dropout2d / F.dropout are identity (inference / model.eval() parity).
    for b in range(4):
        hb = h1_ref[:, b * 256:b * 256 + 768]                       # (BN, 768) bf16
        m = None
        for half in range(2):
            part = jnp.dot(hb, a2_ref[:, half * 256:(half + 1) * 256],
                           preferred_element_type=f32)              # (BN, 256)
            pm = jnp.maximum(part[:, :128], part[:, 128:])
            m = pm if m is None else jnp.maximum(m, pm)
        feat_ref[:, b * 128:(b + 1) * 128] = jnp.maximum(
            m + b2_ref[...], 0.0).astype(feat_ref.dtype)

    # fc1 -> relu -> dropout (identity) -> fc2.
    h = jnp.maximum(jnp.dot(feat_ref[...], wf1_ref[...],
                            preferred_element_type=f32) + bf1_ref[...], 0.0)
    o_ref[...] = jnp.dot(h.astype(wf2_ref.dtype), wf2_ref[...],
                         preferred_element_type=f32) + bf2_ref[...]


# ------------------------- host-side weight lowering ----------------------- #

def _conv1_band_operator(W1):
    """(168, 512): maps a 6x28 image band (row-major flatten) to 4 pool positions x
    (12 pooled cols x 10 channels, padded to 128).  Identical for every pooled row."""
    basis = jnp.eye(6 * 28, dtype=jnp.float32).reshape(168, 1, 6, 28)          # NCHW
    resp = jax.lax.conv_general_dilated(
        basis, W1.astype(jnp.float32), (1, 1), "VALID",
        dimension_numbers=("NCHW", "OIHW", "NCHW"))                            # (168, 10, 2, 24)
    blocks = []
    for pi in range(2):
        for pj in range(2):
            sub = resp[:, :, pi, pj::2]                                        # (168, 10, 12)
            sub = jnp.transpose(sub, (0, 2, 1)).reshape(168, 120)              # col = j*10+co
            blocks.append(jnp.pad(sub, ((0, 0), (0, 128 - 120))))
    return jnp.concatenate(blocks, axis=1)                                     # (168, 512)


def _conv2_band_operator(W2):
    """(768, 512): maps 6 pooled-conv1 row blocks (each 12 cols x 10 ch + 8 zero pad
    = 128) to 4 pool positions x (20 channels x 4 pooled cols, padded to 128)."""
    eye = jnp.eye(6 * 128, dtype=jnp.float32).reshape(768, 6, 128)
    basis = eye[:, :, :120].reshape(768, 6, 12, 10)                            # (k, r, j, co)
    basis = jnp.transpose(basis, (0, 3, 1, 2))                                 # NCHW (k,10,6,12)
    resp = jax.lax.conv_general_dilated(
        basis, W2.astype(jnp.float32), (1, 1), "VALID",
        dimension_numbers=("NCHW", "OIHW", "NCHW"))                            # (768, 20, 2, 8)
    blocks = []
    for pi in range(2):
        for pj in range(2):
            sub = resp[:, :, pi, pj::2].reshape(768, 80)                       # col = co*4+j
            blocks.append(jnp.pad(sub, ((0, 0), (0, 128 - 80))))
    return jnp.concatenate(blocks, axis=1)                                     # (768, 512)


def prepare_params(params, mxu_dtype=jnp.bfloat16):
    """One-time lowering of PyTorch-shaped parameters into kernel operands (~1.1 MB)."""
    W1, b1, W2, b2, Wf1, bf1, Wf2, bf2 = params

    a1b = _conv1_band_operator(W1)                                  # (168, 512)
    a2b = _conv2_band_operator(W2)                                  # (768, 512)
    b1row = jnp.pad(jnp.tile(b1, 12), (0, 8)).reshape(1, 128)       # j*10+co layout
    b2row = jnp.pad(jnp.repeat(b2, 4), (0, 48)).reshape(1, 128)     # co*4+j layout

    # fc1: permute PyTorch's NCHW flatten index (co*16 + i*4 + j) into the kernel's
    # feat layout (i*128 + co*4 + j); pad hidden/output dims to one 128-lane tile.
    co, pi_, pj_ = jnp.meshgrid(jnp.arange(20), jnp.arange(4), jnp.arange(4),
                                indexing="ij")
    src = (co * 16 + pi_ * 4 + pj_).reshape(-1)
    dst = (pi_ * 128 + co * 4 + pj_).reshape(-1)
    perm = jnp.zeros((512, 320), jnp.float32).at[dst, src].set(1.0)
    wf1p = jnp.zeros((512, 128), jnp.float32).at[:, :Wf1.shape[0]].set(perm @ Wf1.T)
    bf1p = jnp.zeros((1, 128), jnp.float32).at[0, :bf1.shape[0]].set(bf1)
    wf2p = jnp.zeros((128, 128), jnp.float32).at[:Wf2.shape[1], :Wf2.shape[0]].set(Wf2.T)
    bf2p = jnp.zeros((1, 128), jnp.float32).at[0, :bf2.shape[0]].set(bf2)

    return (a1b.astype(mxu_dtype), b1row.astype(jnp.float32),
            a2b.astype(mxu_dtype), b2row.astype(jnp.float32),
            wf1p.astype(mxu_dtype), bf1p, wf2p.astype(mxu_dtype), bf2p)


# --------------------- generation-aware launch parameters ------------------ #

def _tensorcores_per_chip():
    try:
        info = pltpu.get_tpu_info()
        for name in ("num_cores", "core_count", "num_tensorcores", "tensorcores_per_chip"):
            v = getattr(info, name, None)
            if isinstance(v, int) and v > 0:
                return v
    except Exception:
        pass
    try:
        if "v7" in jax.devices()[0].device_kind.lower():
            return 2
    except Exception:
        pass
    return 1


def _vmem_limit_bytes():
    # ~80 MiB on 128-MiB-VMEM parts (v5e/v6e), ~48 MiB on 64-MiB parts (v7x).
    # (Actual per-step usage is only ~6-10 MiB after the banded-operator shrink.)
    try:
        cap = int(pltpu.get_tpu_info().vmem_capacity_bytes)
        return 80 * 2**20 if cap >= 100 * 2**20 else 48 * 2**20
    except Exception:
        return 48 * 2**20


def _pick_block_n(n):
    npad8 = _round_up(max(n, 1), 8)
    bn = min(256, npad8)                     # 256 rows fill the v6e/v7x 256x256 MXU M dim
    tc = _tensorcores_per_chip()
    if tc > 1:                               # v7x: keep >= tc grid steps so both TCs work
        per_core = _round_up(-(-npad8 // tc), 8)
        bn = max(8, min(bn, per_core))
    return bn


# ------------------------------- forward pass ------------------------------ #

@functools.partial(jax.jit, static_argnames=("block_n",))
def cnn_mnist_forward(x_nchw, lowered, block_n=None):
    """Forward pass matching CNNMnist.forward (eval mode). x: (N, 1, 28, 28) f32."""
    a1b, b1row, a2b, b2row, wf1p, bf1p, wf2p, bf2p = lowered
    n = x_nchw.shape[0]
    if block_n is None:
        block_n = _pick_block_n(n)
    npad = _round_up(max(n, 1), block_n)

    # Pre-split the image into the 12 overlapping 6-row bands consumed by the banded
    # conv1 operator (4 KB/sample bf16; keeps all in-kernel slicing 128-lane aligned).
    img = x_nchw.reshape(n, 28, 28).astype(a1b.dtype)
    xb = jnp.stack([img[:, 2 * i:2 * i + 6, :].reshape(n, 168) for i in range(12)],
                   axis=0)                                          # (12, N, 168)
    xb = jnp.pad(xb, ((0, 0), (0, npad - n), (0, 0)))

    out = pl.pallas_call(
        _cnn_mnist_kernel,
        out_shape=jax.ShapeDtypeStruct((npad, 128), jnp.float32),
        grid=(npad // block_n,),
        in_specs=[pl.BlockSpec((12, block_n, 168), lambda b: (0, b, 0))]
                 + [_VMEM_OPERAND] * 8,
        out_specs=pl.BlockSpec((block_n, 128), lambda b: (b, 0)),
        scratch_shapes=[pltpu.VMEM((block_n, 12 * 128), jnp.bfloat16),   # h1
                        pltpu.VMEM((block_n, 4 * 128), jnp.bfloat16)],   # feat
        compiler_params=pltpu.CompilerParams(
            dimension_semantics=("parallel",),
            vmem_limit_bytes=_vmem_limit_bytes()),
    )(xb, a1b, b1row, a2b, b2row, wf1p, bf1p, wf2p, bf2p)

    return out[:n, :10]


# ------------------------------ reference & test ---------------------------- #

@jax.jit
def _reference_forward(x, params):
    """Pure-JAX f32 reference matching CNNMnist.forward in eval mode."""
    W1, b1, W2, b2, Wf1, bf1, Wf2, bf2 = params

    def conv(v, w, b):
        y = jax.lax.conv_general_dilated(v, w, (1, 1), "VALID",
                                         dimension_numbers=("NCHW", "OIHW", "NCHW"))
        return y + b[None, :, None, None]

    def pool2(v):
        return jax.lax.reduce_window(v, -jnp.inf, jax.lax.max,
                                     (1, 1, 2, 2), (1, 1, 2, 2), "VALID")

    y = jnp.maximum(pool2(conv(x, W1, b1)), 0.0)
    y = jnp.maximum(pool2(conv(y, W2, b2)), 0.0)
    y = y.reshape(y.shape[0], -1)                                   # NCHW flatten (320)
    y = jnp.maximum(y @ Wf1.T + bf1, 0.0)
    return y @ Wf2.T + bf2


def init_params(key):
    """Deterministic synthetic parameters with PyTorch module shapes."""
    ks = jax.random.split(key, 8)
    W1 = 0.1 * jax.random.normal(ks[0], (10, 1, 5, 5), jnp.float32)    # conv1.weight
    b1 = 0.1 * jax.random.normal(ks[1], (10,), jnp.float32)            # conv1.bias
    W2 = 0.1 * jax.random.normal(ks[2], (20, 10, 5, 5), jnp.float32)   # conv2.weight
    b2 = 0.1 * jax.random.normal(ks[3], (20,), jnp.float32)            # conv2.bias
    Wf1 = 0.1 * jax.random.normal(ks[4], (50, 320), jnp.float32)       # fc1.weight
    bf1 = 0.1 * jax.random.normal(ks[5], (50,), jnp.float32)           # fc1.bias
    Wf2 = 0.1 * jax.random.normal(ks[6], (10, 50), jnp.float32)        # fc2.weight
    bf2 = 0.1 * jax.random.normal(ks[7], (10,), jnp.float32)           # fc2.bias
    return (W1, b1, W2, b2, Wf1, bf1, Wf2, bf2)


if __name__ == "__main__":
    key = jax.random.PRNGKey(0)
    xkey, pkey = jax.random.split(key)
    # MNIST-shaped input (the 320-d flatten forces 1x28x28), small batch of 2.
    x = jax.random.normal(xkey, (2, 1, 28, 28), jnp.float32)
    params = init_params(pkey)
    lowered = prepare_params(params)          # one-time host-side weight lowering

    logits = jax.block_until_ready(cnn_mnist_forward(x, lowered))
    assert logits.shape == (2, 10) and logits.dtype == jnp.float32

    ref = jax.block_until_ready(_reference_forward(x, params))
    err = float(jnp.max(jnp.abs(logits - ref)))
    assert jnp.allclose(logits, ref, rtol=0.1, atol=0.25), f"max abs err = {err}"

    print("KERNEL_OK")
</pallas_src>

<mosaic_0001>
module attributes {stable_mosaic.version = 11 : i64} {
  func.func @_cnn_mnist_kernel(%arg0: i32, %arg1: memref<12x8x168xbf16, #tpu.memory_space<vmem>>, %arg2: memref<168x512xbf16, #tpu.memory_space<vmem>>, %arg3: memref<1x128xf32, #tpu.memory_space<vmem>>, %arg4: memref<768x512xbf16, #tpu.memory_space<vmem>>, %arg5: memref<1x128xf32, #tpu.memory_space<vmem>>, %arg6: memref<512x128xbf16, #tpu.memory_space<vmem>>, %arg7: memref<1x128xf32, #tpu.memory_space<vmem>>, %arg8: memref<128x128xbf16, #tpu.memory_space<vmem>>, %arg9: memref<1x128xf32, #tpu.memory_space<vmem>>, %arg10: memref<8x128xf32, #tpu.memory_space<vmem>>, %arg11: memref<8x1536xbf16, #tpu.memory_space<vmem>>, %arg12: memref<8x512xbf16, #tpu.memory_space<vmem>>) attributes {dimension_semantics = [#tpu.dimension_semantics<parallel>], iteration_bounds = array<i64: 1>, scalar_prefetch = 0 : i64, scratch_operands = 2 : i64, tpu.core_type = #tpu.core_type<tc>, window_params = [{transform_indices = @transform_0, window_bounds = array<i64: 12, 8, 168>}, {pipeline_mode = #tpu.pipeline_mode<synchronous>, transform_indices = @transform_1, window_bounds = array<i64: 168, 512>}, {pipeline_mode = #tpu.pipeline_mode<synchronous>, transform_indices = @transform_2, window_bounds = array<i64: 1, 128>}, {pipeline_mode = #tpu.pipeline_mode<synchronous>, transform_indices = @transform_3, window_bounds = array<i64: 768, 512>}, {pipeline_mode = #tpu.pipeline_mode<synchronous>, transform_indices = @transform_4, window_bounds = array<i64: 1, 128>}, {pipeline_mode = #tpu.pipeline_mode<synchronous>, transform_indices = @transform_5, window_bounds = array<i64: 512, 128>}, {pipeline_mode = #tpu.pipeline_mode<synchronous>, transform_indices = @transform_6, window_bounds = array<i64: 1, 128>}, {pipeline_mode = #tpu.pipeline_mode<synchronous>, transform_indices = @transform_7, window_bounds = array<i64: 128, 128>}, {pipeline_mode = #tpu.pipeline_mode<synchronous>, transform_indices = @transform_8, window_bounds = array<i64: 1, 128>}, {transform_indices = @transform_9, window_bounds = array<i64: 8, 128>}]} {
    %c0 = arith.constant 0 : index
    %c0_0 = arith.constant 0 : index
    %c0_1 = arith.constant 0 : index
    %0 = vector.load %arg1[%c0, %c0_0, %c0_1] : memref<12x8x168xbf16, #tpu.memory_space<vmem>>, vector<1x8x168xbf16>
    %1 = vector.shape_cast %0 : vector<1x8x168xbf16> to vector<8x168xbf16>
    %c0_2 = arith.constant 0 : index
    %c0_3 = arith.constant 0 : index
    %2 = vector.load %arg2[%c0_2, %c0_3] : memref<168x512xbf16, #tpu.memory_space<vmem>>, vector<168x256xbf16>
    %cst = arith.constant dense<0.000000e+00> : vector<8x256xf32>
    %3 = tpu.matmul %1, %2, %cst {dimension_numbers = #tpu.dot_dimension_numbers<[1], [0], [0], [1], [0, 0, 1, 1], [], []>} : vector<8x168xbf16>, vector<168x256xbf16>, vector<8x256xf32> -> vector<8x256xf32>
    %4 = vector.extract_strided_slice %3 {offsets = [0, 0], sizes = [8, 128], strides = [1, 1]} : vector<8x256xf32> to vector<8x128xf32>
    %5 = vector.extract_strided_slice %3 {offsets = [0, 128], sizes = [8, 128], strides = [1, 1]} : vector<8x256xf32> to vector<8x128xf32>
    %6 = arith.maximumf %4, %5 : vector<8x128xf32>
    %c0_4 = arith.constant 0 : index
    %c256 = arith.constant 256 : index
    %7 = vector.load %arg2[%c0_4, %c256] : memref<168x512xbf16, #tpu.memory_space<vmem>>, vector<168x256xbf16>
    %cst_5 = arith.constant dense<0.000000e+00> : vector<8x256xf32>
    %8 = tpu.matmul %1, %7, %cst_5 {dimension_numbers = #tpu.dot_dimension_numbers<[1], [0], [0], [1], [0, 0, 1, 1], [], []>} : vector<8x168xbf16>, vector<168x256xbf16>, vector<8x256xf32> -> vector<8x256xf32>
    %9 = vector.extract_strided_slice %8 {offsets = [0, 0], sizes = [8, 128], strides = [1, 1]} : vector<8x256xf32> to vector<8x128xf32>
    %10 = vector.extract_strided_slice %8 {offsets = [0, 128], sizes = [8, 128], strides = [1, 1]} : vector<8x256xf32> to vector<8x128xf32>
    %11 = arith.maximumf %9, %10 : vector<8x128xf32>
    %12 = arith.maximumf %6, %11 : vector<8x128xf32>
    %c0_6 = arith.constant 0 : index
    %c0_7 = arith.constant 0 : index
    %13 = vector.load %arg3[%c0_6, %c0_7] : memref<1x128xf32, #tpu.memory_space<vmem>>, vector<1x128xf32>
    %14 = vector.broadcast %13 : vector<1x128xf32> to vector<8x128xf32>
    %15 = arith.addf %12, %14 : vector<8x128xf32>
    %cst_8 = arith.constant 0.000000e+00 : f32
    %16 = vector.broadcast %cst_8 : f32 to vector<8x128xf32>
    %17 = arith.maximumf %15, %16 : vector<8x128xf32>
    %18 = arith.truncf %17 : vector<8x128xf32> to vector<8x128xbf16>
    %c0_9 = arith.constant 0 : index
    %c0_10 = arith.constant 0 : index
    %19 = vector.load %arg11[%c0_9, %c0_10] : memref<8x1536xbf16, #tpu.memory_space<vmem>>, vector<8x128xbf16>
    tpu.vector_store %arg11[%c0_9, %c0_10], %18 {strides = array<i32>} : memref<8x1536xbf16, #tpu.memory_space<vmem>>, vector<8x128xbf16>,
    %c1 = arith.constant 1 : index
    %c0_11 = arith.constant 0 : index
    %c0_12 = arith.constant 0 : index
    %20 = vector.load %arg1[%c1, %c0_11, %c0_12] : memref<12x8x168xbf16, #tpu.memory_space<vmem>>, vector<1x8x168xbf16>
    %21 = vector.shape_cast %20 : vector<1x8x168xbf16> to vector<8x168xbf16>
    %c0_13 = arith.constant 0 : index
    %c0_14 = arith.constant 0 : index
    %22 = vector.load %arg2[%c0_13, %c0_14] : memref<168x512xbf16, #tpu.memory_space<vmem>>, vector<168x256xbf16>
    %cst_15 = arith.constant dense<0.000000e+00> : vector<8x256xf32>
    %23 = tpu.matmul %21, %22, %cst_15 {dimension_numbers = #tpu.dot_dimension_numbers<[1], [0], [0], [1], [0, 0, 1, 1], [], []>} : vector<8x168xbf16>, vector<168x256xbf16>, vector<8x256xf32> -> vector<8x256xf32>
    %24 = vector.extract_strided_slice %23 {offsets = [0, 0], sizes = [8, 128], strides = [1, 1]} : vector<8x256xf32> to vector<8x128xf32>
    %25 = vector.extract_strided_slice %23 {offsets = [0, 128], sizes = [8, 128], strides = [1, 1]} : vector<8x256xf32> to vector<8x128xf32>
    %26 = arith.maximumf %24, %25 : vector<8x128xf32>
    %c0_16 = arith.constant 0 : index
    %c256_17 = arith.constant 256 : index
    %27 = vector.load %arg2[%c0_16, %c256_17] : memref<168x512xbf16, #tpu.memory_space<vmem>>, vector<168x256xbf16>
    %cst_18 = arith.constant dense<0.000000e+00> : vector<8x256xf32>
    %28 = tpu.matmul %21, %27, %cst_18 {dimension_numbers = #tpu.dot_dimension_numbers<[1], [0], [0], [1], [0, 0, 1, 1], [], []>} : vector<8x168xbf16>, vector<168x256xbf16>, vector<8x256xf32> -> vector<8x256xf32>
    %29 = vector.extract_strided_slice %28 {offsets = [0, 0], sizes = [8, 128], strides = [1, 1]} : vector<8x256xf32> to vector<8x128xf32>
    %30 = vector.extract_strided_slice %28 {offsets = [0, 128], sizes = [8, 128], strides = [1, 1]} : vector<8x256xf32> to vector<8x128xf32>
    %31 = arith.maximumf %29, %30 : vector<8x128xf32>
    %32 = arith.maximumf %26, %31 : vector<8x128xf32>
    %c0_19 = arith.constant 0 : index
    %c0_20 = arith.constant 0 : index
    %33 = vector.load %arg3[%c0_19, %c0_20] : memref<1x128xf32, #tpu.memory_space<vmem>>, vector<1x128xf32>
    %34 = vector.broadcast %33 : vector<1x128xf32> to vector<8x128xf32>
    %35 = arith.addf %32, %34 : vector<8x128xf32>
    %cst_21 = arith.constant 0.000000e+00 : f32
    %36 = vector.broadcast %cst_21 : f32 to vector<8x128xf32>
    %37 = arith.maximumf %35, %36 : vector<8x128xf32>
    %38 = arith.truncf %37 : vector<8x128xf32> to vector<8x128xbf16>
    %c0_22 = arith.constant 0 : index
    %c128 = arith.constant 128 : index
    %39 = vector.load %arg11[%c0_22, %c128] : memref<8x1536xbf16, #tpu.memory_space<vmem>>, vector<8x128xbf16>
    tpu.vector_store %arg11[%c0_22, %c128], %38 {strides = array<i32>} : memref<8x1536xbf16, #tpu.memory_space<vmem>>, vector<8x128xbf16>,
    %c2 = arith.constant 2 : index
    %c0_23 = arith.constant 0 : index
    %c0_24 = arith.constant 0 : index
    %40 = vector.load %arg1[%c2, %c0_23, %c0_24] : memref<12x8x168xbf16, #tpu.memory_space<vmem>>, vector<1x8x168xbf16>
    %41 = vector.shape_cast %40 : vector<1x8x168xbf16> to vector<8x168xbf16>
    %c0_25 = arith.constant 0 : index
    %c0_26 = arith.constant 0 : index
    %42 = vector.load %arg2[%c0_25, %c0_26] : memref<168x512xbf16, #tpu.memory_space<vmem>>, vector<168x256xbf16>
    %cst_27 = arith.constant dense<0.000000e+00> : vector<8x256xf32>
    %43 = tpu.matmul %41, %42, %cst_27 {dimension_numbers = #tpu.dot_dimension_numbers<[1], [0], [0], [1], [0, 0, 1, 1], [], []>} : vector<8x168xbf16>, vector<168x256xbf16>, vector<8x256xf32> -> vector<8x256xf32>
    %44 = vector.extract_strided_slice %43 {offsets = [0, 0], sizes = [8, 128], strides = [1, 1]} : vector<8x256xf32> to vector<8x128xf32>
    %45 = vector.extract_strided_slice %43 {offsets = [0, 128], sizes = [8, 128], strides = [1, 1]} : vector<8x256xf32> to vector<8x128xf32>
    %46 = arith.maximumf %44, %45 : vector<8x128xf32>
    %c0_28 = arith.constant 0 : index
    %c256_29 = arith.constant 256 : index
    %47 = vector.load %arg2[%c0_28, %c256_29] : memref<168x512xbf16, #tpu.memory_space<vmem>>, vector<168x256xbf16>
    %cst_30 = arith.constant dense<0.000000e+00> : vector<8x256xf32>
    %48 = tpu.matmul %41, %47, %cst_30 {dimension_numbers = #tpu.dot_dimension_numbers<[1], [0], [0], [1], [0, 0, 1, 1], [], []>} : vector<8x168xbf16>, vector<168x256xbf16>, vector<8x256xf32> -> vector<8x256xf32>
    %49 = vector.extract_strided_slice %48 {offsets = [0, 0], sizes = [8, 128], strides = [1, 1]} : vector<8x256xf32> to vector<8x128xf32>
    %50 = vector.extract_strided_slice %48 {offsets = [0, 128], sizes = [8, 128], strides = [1, 1]} : vector<8x256xf32> to vector<8x128xf32>
    %51 = arith.maximumf %49, %50 : vector<8x128xf32>
    %52 = arith.maximumf %46, %51 : vector<8x128xf32>
    %c0_31 = arith.constant 0 : index
    %c0_32 = arith.constant 0 : index
    %53 = vector.load %arg3[%c0_31, %c0_32] : memref<1x128xf32, #tpu.memory_space<vmem>>, vector<1x128xf32>
    %54 = vector.broadcast %53 : vector<1x128xf32> to vector<8x128xf32>
    %55 = arith.addf %52, %54 : vector<8x128xf32>
    %cst_33 = arith.constant 0.000000e+00 : f32
    %56 = vector.broadcast %cst_33 : f32 to vector<8x128xf32>
    %57 = arith.maximumf %55, %56 : vector<8x128xf32>
    %58 = arith.truncf %57 : vector<8x128xf32> to vector<8x128xbf16>
    %c0_34 = arith.constant 0 : index
    %c256_35 = arith.constant 256 : index
    %59 = vector.load %arg11[%c0_34, %c256_35] : memref<8x1536xbf16, #tpu.memory_space<vmem>>, vector<8x128xbf16>
    tpu.vector_store %arg11[%c0_34, %c256_35], %58 {strides = array<i32>} : memref<8x1536xbf16, #tpu.memory_space<vmem>>, vector<8x128xbf16>,
    %c3 = arith.constant 3 : index
    %c0_36 = arith.constant 0 : index
    %c0_37 = arith.constant 0 : index
    %60 = vector.load %arg1[%c3, %c0_36, %c0_37] : memref<12x8x168xbf16, #tpu.memory_space<vmem>>, vector<1x8x168xbf16>
    %61 = vector.shape_cast %60 : vector<1x8x168xbf16> to vector<8x168xbf16>
    %c0_38 = arith.constant 0 : index
    %c0_39 = arith.constant 0 : index
    %62 = vector.load %arg2[%c0_38, %c0_39] : memref<168x512xbf16, #tpu.memory_space<vmem>>, vector<168x256xbf16>
    %cst_40 = arith.constant dense<0.000000e+00> : vector<8x256xf32>
    %63 = tpu.matmul %61, %62, %cst_40 {dimension_numbers = #tpu.dot_dimension_numbers<[1], [0], [0], [1], [0, 0, 1, 1], [], []>} : vector<8x168xbf16>, vector<168x256xbf16>, vector<8x256xf32> -> vector<8x256xf32>
    %64 = vector.extract_strided_slice %63 {offsets = [0, 0], sizes = [8, 128], strides = [1, 1]} : vector<8x256xf32> to vector<8x128xf32>
    %65 = vector.extract_strided_slice %63 {offsets = [0, 128], sizes = [8, 128], strides = [1, 1]} : vector<8x256xf32> to vector<8x128xf32>
    %66 = arith.maximumf %64, %65 : vector<8x128xf32>
    %c0_41 = arith.constant 0 : index
    %c256_42 = arith.constant 256 : index
    %67 = vector.load %arg2[%c0_41, %c256_42] : memref<168x512xbf16, #tpu.memory_space<vmem>>, vector<168x256xbf16>
    %cst_43 = arith.constant dense<0.000000e+00> : vector<8x256xf32>
    %68 = tpu.matmul %61, %67, %cst_43 {dimension_numbers = #tpu.dot_dimension_numbers<[1], [0], [0], [1], [0, 0, 1, 1], [], []>} : vector<8x168xbf16>, vector<168x256xbf16>, vector<8x256xf32> -> vector<8x256xf32>
    %69 = vector.extract_strided_slice %68 {offsets = [0, 0], sizes = [8, 128], strides = [1, 1]} : vector<8x256xf32> to vector<8x128xf32>
    %70 = vector.extract_strided_slice %68 {offsets = [0, 128], sizes = [8, 128], strides = [1, 1]} : vector<8x256xf32> to vector<8x128xf32>
    %71 = arith.maximumf %69, %70 : vector<8x128xf32>
    %72 = arith.maximumf %66, %71 : vector<8x128xf32>
    %c0_44 = arith.constant 0 : index
    %c0_45 = arith.constant 0 : index
    %73 = vector.load %arg3[%c0_44, %c0_45] : memref<1x128xf32, #tpu.memory_space<vmem>>, vector<1x128xf32>
    %74 = vector.broadcast %73 : vector<1x128xf32> to vector<8x128xf32>
    %75 = arith.addf %72, %74 : vector<8x128xf32>
    %cst_46 = arith.constant 0.000000e+00 : f32
    %76 = vector.broadcast %cst_46 : f32 to vector<8x128xf32>
    %77 = arith.maximumf %75, %76 : vector<8x128xf32>
    %78 = arith.truncf %77 : vector<8x128xf32> to vector<8x128xbf16>
    %c0_47 = arith.constant 0 : index
    %c384 = arith.constant 384 : index
    %79 = vector.load %arg11[%c0_47, %c384] : memref<8x1536xbf16, #tpu.memory_space<vmem>>, vector<8x128xbf16>
    tpu.vector_store %arg11[%c0_47, %c384], %78 {strides = array<i32>} : memref<8x1536xbf16, #tpu.memory_space<vmem>>, vector<8x128xbf16>,
    %c4 = arith.constant 4 : index
    %c0_48 = arith.constant 0 : index
    %c0_49 = arith.constant 0 : index
    %80 = vector.load %arg1[%c4, %c0_48, %c0_49] : memref<12x8x168xbf16, #tpu.memory_space<vmem>>, vector<1x8x168xbf16>
    %81 = vector.shape_cast %80 : vector<1x8x168xbf16> to vector<8x168xbf16>
    %c0_50 = arith.constant 0 : index
    %c0_51 = arith.constant 0 : index
    %82 = vector.load %arg2[%c0_50, %c0_51] : memref<168x512xbf16, #tpu.memory_space<vmem>>, vector<168x256xbf16>
    %cst_52 = arith.constant dense<0.000000e+00> : vector<8x256xf32>
    %83 = tpu.matmul %81, %82, %cst_52 {dimension_numbers = #tpu.dot_dimension_numbers<[1], [0], [0], [1], [0, 0, 1, 1], [], []>} : vector<8x168xbf16>, vector<168x256xbf16>, vector<8x256xf32> -> vector<8x256xf32>
    %84 = vector.extract_strided_slice %83 {offsets = [0, 0], sizes = [8, 128], strides = [1, 1]} : vector<8x256xf32> to vector<8x128xf32>
    %85 = vector.extract_strided_slice %83 {offsets = [0, 128], sizes = [8, 128], strides = [1, 1]} : vector<8x256xf32> to vector<8x128xf32>
    %86 = arith.maximumf %84, %85 : vector<8x128xf32>
    %c0_53 = arith.constant 0 : index
    %c256_54 = arith.constant 256 : index
    %87 = vector.load %arg2[%c0_53, %c256_54] : memref<168x512xbf16, #tpu.memory_space<vmem>>, vector<168x256xbf16>
    %cst_55 = arith.constant dense<0.000000e+00> : vector<8x256xf32>
    %88 = tpu.matmul %81, %87, %cst_55 {dimension_numbers = #tpu.dot_dimension_numbers<[1], [0], [0], [1], [0, 0, 1, 1], [], []>} : vector<8x168xbf16>, vector<168x256xbf16>, vector<8x256xf32> -> vector<8x256xf32>
    %89 = vector.extract_strided_slice %88 {offsets = [0, 0], sizes = [8, 128], strides = [1, 1]} : vector<8x256xf32> to vector<8x128xf32>
    %90 = vector.extract_strided_slice %88 {offsets = [0, 128], sizes = [8, 128], strides = [1, 1]} : vector<8x256xf32> to vector<8x128xf32>
    %91 = arith.maximumf %89, %90 : vector<8x128xf32>
    %92 = arith.maximumf %86, %91 : vector<8x128xf32>
    %c0_56 = arith.constant 0 : index
    %c0_57 = arith.constant 0 : index
    %93 = vector.load %arg3[%c0_56, %c0_57] : memref<1x128xf32, #tpu.memory_space<vmem>>, vector<1x128xf32>
    %94 = vector.broadcast %93 : vector<1x128xf32> to vector<8x128xf32>
    %95 = arith.addf %92, %94 : vector<8x128xf32>
    %cst_58 = arith.constant 0.000000e+00 : f32
    %96 = vector.broadcast %cst_58 : f32 to vector<8x128xf32>
    %97 = arith.maximumf %95, %96 : vector<8x128xf32>
    %98 = arith.truncf %97 : vector<8x128xf32> to vector<8x128xbf16>
    %c0_59 = arith.constant 0 : index
    %c512 = arith.constant 512 : index
    %99 = vector.load %arg11[%c0_59, %c512] : memref<8x1536xbf16, #tpu.memory_space<vmem>>, vector<8x128xbf16>
    tpu.vector_store %arg11[%c0_59, %c512], %98 {strides = array<i32>} : memref<8x1536xbf16, #tpu.memory_space<vmem>>, vector<8x128xbf16>,
    %c5 = arith.constant 5 : index
    %c0_60 = arith.constant 0 : index
    %c0_61 = arith.constant 0 : index
    %100 = vector.load %arg1[%c5, %c0_60, %c0_61] : memref<12x8x168xbf16, #tpu.memory_space<vmem>>, vector<1x8x168xbf16>
    %101 = vector.shape_cast %100 : vector<1x8x168xbf16> to vector<8x168xbf16>
    %c0_62 = arith.constant 0 : index
    %c0_63 = arith.constant 0 : index
    %102 = vector.load %arg2[%c0_62, %c0_63] : memref<168x512xbf16, #tpu.memory_space<vmem>>, vector<168x256xbf16>
    %cst_64 = arith.constant dense<0.000000e+00> : vector<8x256xf32>
    %103 = tpu.matmul %101, %102, %cst_64 {dimension_numbers = #tpu.dot_dimension_numbers<[1], [0], [0], [1], [0, 0, 1, 1], [], []>} : vector<8x168xbf16>, vector<168x256xbf16>, vector<8x256xf32> -> vector<8x256xf32>
    %104 = vector.extract_strided_slice %103 {offsets = [0, 0], sizes = [8, 128], strides = [1, 1]} : vector<8x256xf32> to vector<8x128xf32>
    %105 = vector.extract_strided_slice %103 {offsets = [0, 128], sizes = [8, 128], strides = [1, 1]} : vector<8x256xf32> to vector<8x128xf32>
    %106 = arith.maximumf %104, %105 : vector<8x128xf32>
    %c0_65 = arith.constant 0 : index
    %c256_66 = arith.constant 256 : index
    %107 = vector.load %arg2[%c0_65, %c256_66] : memref<168x512xbf16, #tpu.memory_space<vmem>>, vector<168x256xbf16>
    %cst_67 = arith.constant dense<0.000000e+00> : vector<8x256xf32>
    %108 = tpu.matmul %101, %107, %cst_67 {dimension_numbers = #tpu.dot_dimension_numbers<[1], [0], [0], [1], [0, 0, 1, 1], [], []>} : vector<8x168xbf16>, vector<168x256xbf16>, vector<8x256xf32> -> vector<8x256xf32>
    %109 = vector.extract_strided_slice %108 {offsets = [0, 0], sizes = [8, 128], strides = [1, 1]} : vector<8x256xf32> to vector<8x128xf32>
    %110 = vector.extract_strided_slice %108 {offsets = [0, 128], sizes = [8, 128], strides = [1, 1]} : vector<8x256xf32> to vector<8x128xf32>
    %111 = arith.maximumf %109, %110 : vector<8x128xf32>
    %112 = arith.maximumf %106, %111 : vector<8x128xf32>
    %c0_68 = arith.constant 0 : index
    %c0_69 = arith.constant 0 : index
    %113 = vector.load %arg3[%c0_68, %c0_69] : memref<1x128xf32, #tpu.memory_space<vmem>>, vector<1x128xf32>
    %114 = vector.broadcast %113 : vector<1x128xf32> to vector<8x128xf32>
    %115 = arith.addf %112, %114 : vector<8x128xf32>
    %cst_70 = arith.constant 0.000000e+00 : f32
    %116 = vector.broadcast %cst_70 : f32 to vector<8x128xf32>
    %117 = arith.maximumf %115, %116 : vector<8x128xf32>
    %118 = arith.truncf %117 : vector<8x128xf32> to vector<8x128xbf16>
    %c0_71 = arith.constant 0 : index
    %c640 = arith.constant 640 : index
    %119 = vector.load %arg11[%c0_71, %c640] : memref<8x1536xbf16, #tpu.memory_space<vmem>>, vector<8x128xbf16>
    tpu.vector_store %arg11[%c0_71, %c640], %118 {strides = array<i32>} : memref<8x1536xbf16, #tpu.memory_space<vmem>>, vector<8x128xbf16>,
    %c6 = arith.constant 6 : index
    %c0_72 = arith.constant 0 : index
    %c0_73 = arith.constant 0 : index
    %120 = vector.load %arg1[%c6, %c0_72, %c0_73] : memref<12x8x168xbf16, #tpu.memory_space<vmem>>, vector<1x8x168xbf16>
    %121 = vector.shape_cast %120 : vector<1x8x168xbf16> to vector<8x168xbf16>
    %c0_74 = arith.constant 0 : index
    %c0_75 = arith.constant 0 : index
    %122 = vector.load %arg2[%c0_74, %c0_75] : memref<168x512xbf16, #tpu.memory_space<vmem>>, vector<168x256xbf16>
    %cst_76 = arith.constant dense<0.000000e+00> : vector<8x256xf32>
    %123 = tpu.matmul %121, %122, %cst_76 {dimension_numbers = #tpu.dot_dimension_numbers<[1], [0], [0], [1], [0, 0, 1, 1], [], []>} : vector<8x168xbf16>, vector<168x256xbf16>, vector<8x256xf32> -> vector<8x256xf32>
    %124 = vector.extract_strided_slice %123 {offsets = [0, 0], sizes = [8, 128], strides = [1, 1]} : vector<8x256xf32> to vector<8x128xf32>
    %125 = vector.extract_strided_slice %123 {offsets = [0, 128], sizes = [8, 128], strides = [1, 1]} : vector<8x256xf32> to vector<8x128xf32>
    %126 = arith.maximumf %124, %125 : vector<8x128xf32>
    %c0_77 = arith.constant 0 : index
    %c256_78 = arith.constant 256 : index
    %127 = vector.load %arg2[%c0_77, %c256_78] : memref<168x512xbf16, #tpu.memory_space<vmem>>, vector<168x256xbf16>
    %cst_79 = arith.constant dense<0.000000e+00> : vector<8x256xf32>
    %128 = tpu.matmul %121, %127, %cst_79 {dimension_numbers = #tpu.dot_dimension_numbers<[1], [0], [0], [1], [0, 0, 1, 1], [], []>} : vector<8x168xbf16>, vector<168x256xbf16>, vector<8x256xf32> -> vector<8x256xf32>
    %129 = vector.extract_strided_slice %128 {offsets = [0, 0], sizes = [8, 128], strides = [1, 1]} : vector<8x256xf32> to vector<8x128xf32>
    %130 = vector.extract_strided_slice %128 {offsets = [0, 128], sizes = [8, 128], strides = [1, 1]} : vector<8x256xf32> to vector<8x128xf32>
    %131 = arith.maximumf %129, %130 : vector<8x128xf32>
    %132 = arith.maximumf %126, %131 : vector<8x128xf32>
    %c0_80 = arith.constant 0 : index
    %c0_81 = arith.constant 0 : index
    %133 = vector.load %arg3[%c0_80, %c0_81] : memref<1x128xf32, #tpu.memory_space<vmem>>, vector<1x128xf32>
    %134 = vector.broadcast %133 : vector<1x128xf32> to vector<8x128xf32>
    %135 = arith.addf %132, %134 : vector<8x128xf32>
    %cst_82 = arith.constant 0.000000e+00 : f32
    %136 = vector.broadcast %cst_82 : f32 to vector<8x128xf32>
    %137 = arith.maximumf %135, %136 : vector<8x128xf32>
    %138 = arith.truncf %137 : vector<8x128xf32> to vector<8x128xbf16>
    %c0_83 = arith.constant 0 : index
    %c768 = arith.constant 768 : index
    %139 = vector.load %arg11[%c0_83, %c768] : memref<8x1536xbf16, #tpu.memory_space<vmem>>, vector<8x128xbf16>
    tpu.vector_store %arg11[%c0_83, %c768], %138 {strides = array<i32>} : memref<8x1536xbf16, #tpu.memory_space<vmem>>, vector<8x128xbf16>,
    %c7 = arith.constant 7 : index
    %c0_84 = arith.constant 0 : index
    %c0_85 = arith.constant 0 : index
    %140 = vector.load %arg1[%c7, %c0_84, %c0_85] : memref<12x8x168xbf16, #tpu.memory_space<vmem>>, vector<1x8x168xbf16>
    %141 = vector.shape_cast %140 : vector<1x8x168xbf16> to vector<8x168xbf16>
    %c0_86 = arith.constant 0 : index
    %c0_87 = arith.constant 0 : index
    %142 = vector.load %arg2[%c0_86, %c0_87] : memref<168x512xbf16, #tpu.memory_space<vmem>>, vector<168x256xbf16>
    %cst_88 = arith.constant dense<0.000000e+00> : vector<8x256xf32>
    %143 = tpu.matmul %141, %142, %cst_88 {dimension_numbers = #tpu.dot_dimension_numbers<[1], [0], [0], [1], [0, 0, 1, 1], [], []>} : vector<8x168xbf16>, vector<168x256xbf16>, vector<8x256xf32> -> vector<8x256xf32>
    %144 = vector.extract_strided_slice %143 {offsets = [0, 0], sizes = [8, 128], strides = [1, 1]} : vector<8x256xf32> to vector<8x128xf32>
    %145 = vector.extract_strided_slice %143 {offsets = [0, 128], sizes = [8, 128], strides = [1, 1]} : vector<8x256xf32> to vector<8x128xf32>
    %146 = arith.maximumf %144, %145 : vector<8x128xf32>
    %c0_89 = arith.constant 0 : index
    %c256_90 = arith.constant 256 : index
    %147 = vector.load %arg2[%c0_89, %c256_90] : memref<168x512xbf16, #tpu.memory_space<vmem>>, vector<168x256xbf16>
    %cst_91 = arith.constant dense<0.000000e+00> : vector<8x256xf32>
    %148 = tpu.matmul %141, %147, %cst_91 {dimension_numbers = #tpu.dot_dimension_numbers<[1], [0], [0], [1], [0, 0, 1, 1], [], []>} : vector<8x168xbf16>, vector<168x256xbf16>, vector<8x256xf32> -> vector<8x256xf32>
    %149 = vector.extract_strided_slice %148 {offsets = [0, 0], sizes = [8, 128], strides = [1, 1]} : vector<8x256xf32> to vector<8x128xf32>
    %150 = vector.extract_strided_slice %148 {offsets = [0, 128], sizes = [8, 128], strides = [1, 1]} : vector<8x256xf32> to vector<8x128xf32>
    %151 = arith.maximumf %149, %150 : vector<8x128xf32>
    %152 = arith.maximumf %146, %151 : vector<8x128xf32>
    %c0_92 = arith.constant 0 : index
    %c0_93 = arith.constant 0 : index
    %153 = vector.load %arg3[%c0_92, %c0_93] : memref<1x128xf32, #tpu.memory_space<vmem>>, vector<1x128xf32>
    %154 = vector.broadcast %153 : vector<1x128xf32> to vector<8x128xf32>
    %155 = arith.addf %152, %154 : vector<8x128xf32>
    %cst_94 = arith.constant 0.000000e+00 : f32
    %156 = vector.broadcast %cst_94 : f32 to vector<8x128xf32>
    %157 = arith.maximumf %155, %156 : vector<8x128xf32>
    %158 = arith.truncf %157 : vector<8x128xf32> to vector<8x128xbf16>
    %c0_95 = arith.constant 0 : index
    %c896 = arith.constant 896 : index
    %159 = vector.load %arg11[%c0_95, %c896] : memref<8x1536xbf16, #tpu.memory_space<vmem>>, vector<8x128xbf16>
    tpu.vector_store %arg11[%c0_95, %c896], %158 {strides = array<i32>} : memref<8x1536xbf16, #tpu.memory_space<vmem>>, vector<8x128xbf16>,
    %c8 = arith.constant 8 : index
    %c0_96 = arith.constant 0 : index
    %c0_97 = arith.constant 0 : index
    %160 = vector.load %arg1[%c8, %c0_96, %c0_97] : memref<12x8x168xbf16, #tpu.memory_space<vmem>>, vector<1x8x168xbf16>
    %161 = vector.shape_cast %160 : vector<1x8x168xbf16> to vector<8x168xbf16>
    %c0_98 = arith.constant 0 : index
    %c0_99 = arith.constant 0 : index
    %162 = vector.load %arg2[%c0_98, %c0_99] : memref<168x512xbf16, #tpu.memory_space<vmem>>, vector<168x256xbf16>
    %cst_100 = arith.constant dense<0.000000e+00> : vector<8x256xf32>
    %163 = tpu.matmul %161, %162, %cst_100 {dimension_numbers = #tpu.dot_dimension_numbers<[1], [0], [0], [1], [0, 0, 1, 1], [], []>} : vector<8x168xbf16>, vector<168x256xbf16>, vector<8x256xf32> -> vector<8x256xf32>
    %164 = vector.extract_strided_slice %163 {offsets = [0, 0], sizes = [8, 128], strides = [1, 1]} : vector<8x256xf32> to vector<8x128xf32>
    %165 = vector.extract_strided_slice %163 {offsets = [0, 128], sizes = [8, 128], strides = [1, 1]} : vector<8x256xf32> to vector<8x128xf32>
    %166 = arith.maximumf %164, %165 : vector<8x128xf32>
    %c0_101 = arith.constant 0 : index
    %c256_102 = arith.constant 256 : index
    %167 = vector.load %arg2[%c0_101, %c256_102] : memref<168x512xbf16, #tpu.memory_space<vmem>>, vector<168x256xbf16>
    %cst_103 = arith.constant dense<0.000000e+00> : vector<8x256xf32>
    %168 = tpu.matmul %161, %167, %cst_103 {dimension_numbers = #tpu.dot_dimension_numbers<[1], [0], [0], [1], [0, 0, 1, 1], [], []>} : vector<8x168xbf16>, vector<168x256xbf16>, vector<8x256xf32> -> vector<8x256xf32>
    %169 = vector.extract_strided_slice %168 {offsets = [0, 0], sizes = [8, 128], strides = [1, 1]} : vector<8x256xf32> to vector<8x128xf32>
    %170 = vector.extract_strided_slice %168 {offsets = [0, 128], sizes = [8, 128], strides = [1, 1]} : vector<8x256xf32> to vector<8x128xf32>
    %171 = arith.maximumf %169, %170 : vector<8x128xf32>
    %172 = arith.maximumf %166, %171 : vector<8x128xf32>
    %c0_104 = arith.constant 0 : index
    %c0_105 = arith.constant 0 : index
    %173 = vector.load %arg3[%c0_104, %c0_105] : memref<1x128xf32, #tpu.memory_space<vmem>>, vector<1x128xf32>
    %174 = vector.broadcast %173 : vector<1x128xf32> to vector<8x128xf32>
    %175 = arith.addf %172, %174 : vector<8x128xf32>
    %cst_106 = arith.constant 0.000000e+00 : f32
    %176 = vector.broadcast %cst_106 : f32 to vector<8x128xf32>
    %177 = arith.maximumf %175, %176 : vector<8x128xf32>
    %178 = arith.truncf %177 : vector<8x128xf32> to vector<8x128xbf16>
    %c0_107 = arith.constant 0 : index
    %c1024 = arith.constant 1024 : index
    %179 = vector.load %arg11[%c0_107, %c1024] : memref<8x1536xbf16, #tpu.memory_space<vmem>>, vector<8x128xbf16>
    tpu.vector_store %arg11[%c0_107, %c1024], %178 {strides = array<i32>} : memref<8x1536xbf16, #tpu.memory_space<vmem>>, vector<8x128xbf16>,
    %c9 = arith.constant 9 : index
    %c0_108 = arith.constant 0 : index
    %c0_109 = arith.constant 0 : index
    %180 = vector.load %arg1[%c9, %c0_108, %c0_109] : memref<12x8x168xbf16, #tpu.memory_space<vmem>>, vector<1x8x168xbf16>
    %181 = vector.shape_cast %180 : vector<1x8x168xbf16> to vector<8x168xbf16>
    %c0_110 = arith.constant 0 : index
    %c0_111 = arith.constant 0 : index
    %182 = vector.load %arg2[%c0_110, %c0_111] : memref<168x512xbf16, #tpu.memory_space<vmem>>, vector<168x256xbf16>
    %cst_112 = arith.constant dense<0.000000e+00> : vector<8x256xf32>
    %183 = tpu.matmul %181, %182, %cst_112 {dimension_numbers = #tpu.dot_dimension_numbers<[1], [0], [0], [1], [0, 0, 1, 1], [], []>} : vector<8x168xbf16>, vector<168x256xbf16>, vector<8x256xf32> -> vector<8x256xf32>
    %184 = vector.extract_strided_slice %183 {offsets = [0, 0], sizes = [8, 128], strides = [1, 1]} : vector<8x256xf32> to vector<8x128xf32>
    %185 = vector.extract_strided_slice %183 {offsets = [0, 128], sizes = [8, 128], strides = [1, 1]} : vector<8x256xf32> to vector<8x128xf32>
    %186 = arith.maximumf %184, %185 : vector<8x128xf32>
    %c0_113 = arith.constant 0 : index
    %c256_114 = arith.constant 256 : index
    %187 = vector.load %arg2[%c0_113, %c256_114] : memref<168x512xbf16, #tpu.memory_space<vmem>>, vector<168x256xbf16>
    %cst_115 = arith.constant dense<0.000000e+00> : vector<8x256xf32>
    %188 = tpu.matmul %181, %187, %cst_115 {dimension_numbers = #tpu.dot_dimension_numbers<[1], [0], [0], [1], [0, 0, 1, 1], [], []>} : vector<8x168xbf16>, vector<168x256xbf16>, vector<8x256xf32> -> vector<8x256xf32>
    %189 = vector.extract_strided_slice %188 {offsets = [0, 0], sizes = [8, 128], strides = [1, 1]} : vector<8x256xf32> to vector<8x128xf32>
    %190 = vector.extract_strided_slice %188 {offsets = [0, 128], sizes = [8, 128], strides = [1, 1]} : vector<8x256xf32> to vector<8x128xf32>
    %191 = arith.maximumf %189, %190 : vector<8x128xf32>
    %192 = arith.maximumf %186, %191 : vector<8x128xf32>
    %c0_116 = arith.constant 0 : index
    %c0_117 = arith.constant 0 : index
    %193 = vector.load %arg3[%c0_116, %c0_117] : memref<1x128xf32, #tpu.memory_space<vmem>>, vector<1x128xf32>
    %194 = vector.broadcast %193 : vector<1x128xf32> to vector<8x128xf32>
    %195 = arith.addf %192, %194 : vector<8x128xf32>
    %cst_118 = arith.constant 0.000000e+00 : f32
    %196 = vector.broadcast %cst_118 : f32 to vector<8x128xf32>
    %197 = arith.maximumf %195, %196 : vector<8x128xf32>
    %198 = arith.truncf %197 : vector<8x128xf32> to vector<8x128xbf16>
    %c0_119 = arith.constant 0 : index
    %c1152 = arith.constant 1152 : index
    %199 = vector.load %arg11[%c0_119, %c1152] : memref<8x1536xbf16, #tpu.memory_space<vmem>>, vector<8x128xbf16>
    tpu.vector_store %arg11[%c0_119, %c1152], %198 {strides = array<i32>} : memref<8x1536xbf16, #tpu.memory_space<vmem>>, vector<8x128xbf16>,
    %c10 = arith.constant 10 : index
    %c0_120 = arith.constant 0 : index
    %c0_121 = arith.constant 0 : index
    %200 = vector.load %arg1[%c10, %c0_120, %c0_121] : memref<12x8x168xbf16, #tpu.memory_space<vmem>>, vector<1x8x168xbf16>
    %201 = vector.shape_cast %200 : vector<1x8x168xbf16> to vector<8x168xbf16>
    %c0_122 = arith.constant 0 : index
    %c0_123 = arith.constant 0 : index
    %202 = vector.load %arg2[%c0_122, %c0_123] : memref<168x512xbf16, #tpu.memory_space<vmem>>, vector<168x256xbf16>
    %cst_124 = arith.constant dense<0.000000e+00> : vector<8x256xf32>
    %203 = tpu.matmul %201, %202, %cst_124 {dimension_numbers = #tpu.dot_dimension_numbers<[1], [0], [0], [1], [0, 0, 1, 1], [], []>} : vector<8x168xbf16>, vector<168x256xbf16>, vector<8x256xf32> -> vector<8x256xf32>
    %204 = vector.extract_strided_slice %203 {offsets = [0, 0], sizes = [8, 128], strides = [1, 1]} : vector<8x256xf32> to vector<8x128xf32>
    %205 = vector.extract_strided_slice %203 {offsets = [0, 128], sizes = [8, 128], strides = [1, 1]} : vector<8x256xf32> to vector<8x128xf32>
    %206 = arith.maximumf %204, %205 : vector<8x128xf32>
    %c0_125 = arith.constant 0 : index
    %c256_126 = arith.constant 256 : index
    %207 = vector.load %arg2[%c0_125, %c256_126] : memref<168x512xbf16, #tpu.memory_space<vmem>>, vector<168x256xbf16>
    %cst_127 = arith.constant dense<0.000000e+00> : vector<8x256xf32>
    %208 = tpu.matmul %201, %207, %cst_127 {dimension_numbers = #tpu.dot_dimension_numbers<[1], [0], [0], [1], [0, 0, 1, 1], [], []>} : vector<8x168xbf16>, vector<168x256xbf16>, vector<8x256xf32> -> vector<8x256xf32>
    %209 = vector.extract_strided_slice %208 {offsets = [0, 0], sizes = [8, 128], strides = [1, 1]} : vector<8x256xf32> to vector<8x128xf32>
    %210 = vector.extract_strided_slice %208 {offsets = [0, 128], sizes = [8, 128], strides = [1, 1]} : vector<8x256xf32> to vector<8x128xf32>
    %211 = arith.maximumf %209, %210 : vector<8x128xf32>
    %212 = arith.maximumf %206, %211 : vector<8x128xf32>
    %c0_128 = arith.constant 0 : index
    %c0_129 = arith.constant 0 : index
    %213 = vector.load %arg3[%c0_128, %c0_129] : memref<1x128xf32, #tpu.memory_space<vmem>>, vector<1x128xf32>
    %214 = vector.broadcast %213 : vector<1x128xf32> to vector<8x128xf32>
    %215 = arith.addf %212, %214 : vector<8x128xf32>
    %cst_130 = arith.constant 0.000000e+00 : f32
    %216 = vector.broadcast %cst_130 : f32 to vector<8x128xf32>
    %217 = arith.maximumf %215, %216 : vector<8x128xf32>
    %218 = arith.truncf %217 : vector<8x128xf32> to vector<8x128xbf16>
    %c0_131 = arith.constant 0 : index
    %c1280 = arith.constant 1280 : index
    %219 = vector.load %arg11[%c0_131, %c1280] : memref<8x1536xbf16, #tpu.memory_space<vmem>>, vector<8x128xbf16>
    tpu.vector_store %arg11[%c0_131, %c1280], %218 {strides = array<i32>} : memref<8x1536xbf16, #tpu.memory_space<vmem>>, vector<8x128xbf16>,
    %c11 = arith.constant 11 : index
    %c0_132 = arith.constant 0 : index
    %c0_133 = arith.constant 0 : index
    %220 = vector.load %arg1[%c11, %c0_132, %c0_133] : memref<12x8x168xbf16, #tpu.memory_space<vmem>>, vector<1x8x168xbf16>
    %221 = vector.shape_cast %220 : vector<1x8x168xbf16> to vector<8x168xbf16>
    %c0_134 = arith.constant 0 : index
    %c0_135 = arith.constant 0 : index
    %222 = vector.load %arg2[%c0_134, %c0_135] : memref<168x512xbf16, #tpu.memory_space<vmem>>, vector<168x256xbf16>
    %cst_136 = arith.constant dense<0.000000e+00> : vector<8x256xf32>
    %223 = tpu.matmul %221, %222, %cst_136 {dimension_numbers = #tpu.dot_dimension_numbers<[1], [0], [0], [1], [0, 0, 1, 1], [], []>} : vector<8x168xbf16>, vector<168x256xbf16>, vector<8x256xf32> -> vector<8x256xf32>
    %224 = vector.extract_strided_slice %223 {offsets = [0, 0], sizes = [8, 128], strides = [1, 1]} : vector<8x256xf32> to vector<8x128xf32>
    %225 = vector.extract_strided_slice %223 {offsets = [0, 128], sizes = [8, 128], strides = [1, 1]} : vector<8x256xf32> to vector<8x128xf32>
    %226 = arith.maximumf %224, %225 : vector<8x128xf32>
    %c0_137 = arith.constant 0 : index
    %c256_138 = arith.constant 256 : index
    %227 = vector.load %arg2[%c0_137, %c256_138] : memref<168x512xbf16, #tpu.memory_space<vmem>>, vector<168x256xbf16>
    %cst_139 = arith.constant dense<0.000000e+00> : vector<8x256xf32>
    %228 = tpu.matmul %221, %227, %cst_139 {dimension_numbers = #tpu.dot_dimension_numbers<[1], [0], [0], [1], [0, 0, 1, 1], [], []>} : vector<8x168xbf16>, vector<168x256xbf16>, vector<8x256xf32> -> vector<8x256xf32>
    %229 = vector.extract_strided_slice %228 {offsets = [0, 0], sizes = [8, 128], strides = [1, 1]} : vector<8x256xf32> to vector<8x128xf32>
    %230 = vector.extract_strided_slice %228 {offsets = [0, 128], sizes = [8, 128], strides = [1, 1]} : vector<8x256xf32> to vector<8x128xf32>
    %231 = arith.maximumf %229, %230 : vector<8x128xf32>
    %232 = arith.maximumf %226, %231 : vector<8x128xf32>
    %c0_140 = arith.constant 0 : index
    %c0_141 = arith.constant 0 : index
    %233 = vector.load %arg3[%c0_140, %c0_141] : memref<1x128xf32, #tpu.memory_space<vmem>>, vector<1x128xf32>
    %234 = vector.broadcast %233 : vector<1x128xf32> to vector<8x128xf32>
    %235 = arith.addf %232, %234 : vector<8x128xf32>
    %cst_142 = arith.constant 0.000000e+00 : f32
    %236 = vector.broadcast %cst_142 : f32 to vector<8x128xf32>
    %237 = arith.maximumf %235, %236 : vector<8x128xf32>
    %238 = arith.truncf %237 : vector<8x128xf32> to vector<8x128xbf16>
    %c0_143 = arith.constant 0 : index
    %c1408 = arith.constant 1408 : index
    %239 = vector.load %arg11[%c0_143, %c1408] : memref<8x1536xbf16, #tpu.memory_space<vmem>>, vector<8x128xbf16>
    tpu.vector_store %arg11[%c0_143, %c1408], %238 {strides = array<i32>} : memref<8x1536xbf16, #tpu.memory_space<vmem>>, vector<8x128xbf16>,
    %c0_144 = arith.constant 0 : index
    %c0_145 = arith.constant 0 : index
    %240 = vector.load %arg11[%c0_144, %c0_145] : memref<8x1536xbf16, #tpu.memory_space<vmem>>, vector<8x768xbf16>
    %c0_146 = arith.constant 0 : index
    %c0_147 = arith.constant 0 : index
    %241 = vector.load %arg4[%c0_146, %c0_147] : memref<768x512xbf16, #tpu.memory_space<vmem>>, vector<768x256xbf16>
    %cst_148 = arith.constant dense<0.000000e+00> : vector<8x256xf32>
    %242 = tpu.matmul %240, %241, %cst_148 {dimension_numbers = #tpu.dot_dimension_numbers<[1], [0], [0], [1], [0, 0, 1, 1], [], []>} : vector<8x768xbf16>, vector<768x256xbf16>, vector<8x256xf32> -> vector<8x256xf32>
    %243 = vector.extract_strided_slice %242 {offsets = [0, 0], sizes = [8, 128], strides = [1, 1]} : vector<8x256xf32> to vector<8x128xf32>
    %244 = vector.extract_strided_slice %242 {offsets = [0, 128], sizes = [8, 128], strides = [1, 1]} : vector<8x256xf32> to vector<8x128xf32>
    %245 = arith.maximumf %243, %244 : vector<8x128xf32>
    %c0_149 = arith.constant 0 : index
    %c256_150 = arith.constant 256 : index
    %246 = vector.load %arg4[%c0_149, %c256_150] : memref<768x512xbf16, #tpu.memory_space<vmem>>, vector<768x256xbf16>
    %cst_151 = arith.constant dense<0.000000e+00> : vector<8x256xf32>
    %247 = tpu.matmul %240, %246, %cst_151 {dimension_numbers = #tpu.dot_dimension_numbers<[1], [0], [0], [1], [0, 0, 1, 1], [], []>} : vector<8x768xbf16>, vector<768x256xbf16>, vector<8x256xf32> -> vector<8x256xf32>
    %248 = vector.extract_strided_slice %247 {offsets = [0, 0], sizes = [8, 128], strides = [1, 1]} : vector<8x256xf32> to vector<8x128xf32>
    %249 = vector.extract_strided_slice %247 {offsets = [0, 128], sizes = [8, 128], strides = [1, 1]} : vector<8x256xf32> to vector<8x128xf32>
    %250 = arith.maximumf %248, %249 : vector<8x128xf32>
    %251 = arith.maximumf %245, %250 : vector<8x128xf32>
    %c0_152 = arith.constant 0 : index
    %c0_153 = arith.constant 0 : index
    %252 = vector.load %arg5[%c0_152, %c0_153] : memref<1x128xf32, #tpu.memory_space<vmem>>, vector<1x128xf32>
    %253 = vector.broadcast %252 : vector<1x128xf32> to vector<8x128xf32>
    %254 = arith.addf %251, %253 : vector<8x128xf32>
    %cst_154 = arith.constant 0.000000e+00 : f32
    %255 = vector.broadcast %cst_154 : f32 to vector<8x128xf32>
    %256 = arith.maximumf %254, %255 : vector<8x128xf32>
    %257 = arith.truncf %256 : vector<8x128xf32> to vector<8x128xbf16>
    %c0_155 = arith.constant 0 : index
    %c0_156 = arith.constant 0 : index
    %258 = vector.load %arg12[%c0_155, %c0_156] : memref<8x512xbf16, #tpu.memory_space<vmem>>, vector<8x128xbf16>
    tpu.vector_store %arg12[%c0_155, %c0_156], %257 {strides = array<i32>} : memref<8x512xbf16, #tpu.memory_space<vmem>>, vector<8x128xbf16>,
    %c0_157 = arith.constant 0 : index
    %c256_158 = arith.constant 256 : index
    %259 = vector.load %arg11[%c0_157, %c256_158] : memref<8x1536xbf16, #tpu.memory_space<vmem>>, vector<8x768xbf16>
    %c0_159 = arith.constant 0 : index
    %c0_160 = arith.constant 0 : index
    %260 = vector.load %arg4[%c0_159, %c0_160] : memref<768x512xbf16, #tpu.memory_space<vmem>>, vector<768x256xbf16>
    %cst_161 = arith.constant dense<0.000000e+00> : vector<8x256xf32>
    %261 = tpu.matmul %259, %260, %cst_161 {dimension_numbers = #tpu.dot_dimension_numbers<[1], [0], [0], [1], [0, 0, 1, 1], [], []>} : vector<8x768xbf16>, vector<768x256xbf16>, vector<8x256xf32> -> vector<8x256xf32>
    %262 = vector.extract_strided_slice %261 {offsets = [0, 0], sizes = [8, 128], strides = [1, 1]} : vector<8x256xf32> to vector<8x128xf32>
    %263 = vector.extract_strided_slice %261 {offsets = [0, 128], sizes = [8, 128], strides = [1, 1]} : vector<8x256xf32> to vector<8x128xf32>
    %264 = arith.maximumf %262, %263 : vector<8x128xf32>
    %c0_162 = arith.constant 0 : index
    %c256_163 = arith.constant 256 : index
    %265 = vector.load %arg4[%c0_162, %c256_163] : memref<768x512xbf16, #tpu.memory_space<vmem>>, vector<768x256xbf16>
    %cst_164 = arith.constant dense<0.000000e+00> : vector<8x256xf32>
    %266 = tpu.matmul %259, %265, %cst_164 {dimension_numbers = #tpu.dot_dimension_numbers<[1], [0], [0], [1], [0, 0, 1, 1], [], []>} : vector<8x768xbf16>, vector<768x256xbf16>, vector<8x256xf32> -> vector<8x256xf32>
    %267 = vector.extract_strided_slice %266 {offsets = [0, 0], sizes = [8, 128], strides = [1, 1]} : vector<8x256xf32> to vector<8x128xf32>
    %268 = vector.extract_strided_slice %266 {offsets = [0, 128], sizes = [8, 128], strides = [1, 1]} : vector<8x256xf32> to vector<8x128xf32>
    %269 = arith.maximumf %267, %268 : vector<8x128xf32>
    %270 = arith.maximumf %264, %269 : vector<8x128xf32>
    %c0_165 = arith.constant 0 : index
    %c0_166 = arith.constant 0 : index
    %271 = vector.load %arg5[%c0_165, %c0_166] : memref<1x128xf32, #tpu.memory_space<vmem>>, vector<1x128xf32>
    %272 = vector.broadcast %271 : vector<1x128xf32> to vector<8x128xf32>
    %273 = arith.addf %270, %272 : vector<8x128xf32>
    %cst_167 = arith.constant 0.000000e+00 : f32
    %274 = vector.broadcast %cst_167 : f32 to vector<8x128xf32>
    %275 = arith.maximumf %273, %274 : vector<8x128xf32>
    %276 = arith.truncf %275 : vector<8x128xf32> to vector<8x128xbf16>
    %c0_168 = arith.constant 0 : index
    %c128_169 = arith.constant 128 : index
    %277 = vector.load %arg12[%c0_168, %c128_169] : memref<8x512xbf16, #tpu.memory_space<vmem>>, vector<8x128xbf16>
    tpu.vector_store %arg12[%c0_168, %c128_169], %276 {strides = array<i32>} : memref<8x512xbf16, #tpu.memory_space<vmem>>, vector<8x128xbf16>,
    %c0_170 = arith.constant 0 : index
    %c512_171 = arith.constant 512 : index
    %278 = vector.load %arg11[%c0_170, %c512_171] : memref<8x1536xbf16, #tpu.memory_space<vmem>>, vector<8x768xbf16>
    %c0_172 = arith.constant 0 : index
    %c0_173 = arith.constant 0 : index
    %279 = vector.load %arg4[%c0_172, %c0_173] : memref<768x512xbf16, #tpu.memory_space<vmem>>, vector<768x256xbf16>
    %cst_174 = arith.constant dense<0.000000e+00> : vector<8x256xf32>
    %280 = tpu.matmul %278, %279, %cst_174 {dimension_numbers = #tpu.dot_dimension_numbers<[1], [0], [0], [1], [0, 0, 1, 1], [], []>} : vector<8x768xbf16>, vector<768x256xbf16>, vector<8x256xf32> -> vector<8x256xf32>
    %281 = vector.extract_strided_slice %280 {offsets = [0, 0], sizes = [8, 128], strides = [1, 1]} : vector<8x256xf32> to vector<8x128xf32>
    %282 = vector.extract_strided_slice %280 {offsets = [0, 128], sizes = [8, 128], strides = [1, 1]} : vector<8x256xf32> to vector<8x128xf32>
    %283 = arith.maximumf %281, %282 : vector<8x128xf32>
    %c0_175 = arith.constant 0 : index
    %c256_176 = arith.constant 256 : index
    %284 = vector.load %arg4[%c0_175, %c256_176] : memref<768x512xbf16, #tpu.memory_space<vmem>>, vector<768x256xbf16>
    %cst_177 = arith.constant dense<0.000000e+00> : vector<8x256xf32>
    %285 = tpu.matmul %278, %284, %cst_177 {dimension_numbers = #tpu.dot_dimension_numbers<[1], [0], [0], [1], [0, 0, 1, 1], [], []>} : vector<8x768xbf16>, vector<768x256xbf16>, vector<8x256xf32> -> vector<8x256xf32>
    %286 = vector.extract_strided_slice %285 {offsets = [0, 0], sizes = [8, 128], strides = [1, 1]} : vector<8x256xf32> to vector<8x128xf32>
    %287 = vector.extract_strided_slice %285 {offsets = [0, 128], sizes = [8, 128], strides = [1, 1]} : vector<8x256xf32> to vector<8x128xf32>
    %288 = arith.maximumf %286, %287 : vector<8x128xf32>
    %289 = arith.maximumf %283, %288 : vector<8x128xf32>
    %c0_178 = arith.constant 0 : index
    %c0_179 = arith.constant 0 : index
    %290 = vector.load %arg5[%c0_178, %c0_179] : memref<1x128xf32, #tpu.memory_space<vmem>>, vector<1x128xf32>
    %291 = vector.broadcast %290 : vector<1x128xf32> to vector<8x128xf32>
    %292 = arith.addf %289, %291 : vector<8x128xf32>
    %cst_180 = arith.constant 0.000000e+00 : f32
    %293 = vector.broadcast %cst_180 : f32 to vector<8x128xf32>
    %294 = arith.maximumf %292, %293 : vector<8x128xf32>
    %295 = arith.truncf %294 : vector<8x128xf32> to vector<8x128xbf16>
    %c0_181 = arith.constant 0 : index
    %c256_182 = arith.constant 256 : index
    %296 = vector.load %arg12[%c0_181, %c256_182] : memref<8x512xbf16, #tpu.memory_space<vmem>>, vector<8x128xbf16>
    tpu.vector_store %arg12[%c0_181, %c256_182], %295 {strides = array<i32>} : memref<8x512xbf16, #tpu.memory_space<vmem>>, vector<8x128xbf16>,
    %c0_183 = arith.constant 0 : index
    %c768_184 = arith.constant 768 : index
    %297 = vector.load %arg11[%c0_183, %c768_184] : memref<8x1536xbf16, #tpu.memory_space<vmem>>, vector<8x768xbf16>
    %c0_185 = arith.constant 0 : index
    %c0_186 = arith.constant 0 : index
    %298 = vector.load %arg4[%c0_185, %c0_186] : memref<768x512xbf16, #tpu.memory_space<vmem>>, vector<768x256xbf16>
    %cst_187 = arith.constant dense<0.000000e+00> : vector<8x256xf32>
    %299 = tpu.matmul %297, %298, %cst_187 {dimension_numbers = #tpu.dot_dimension_numbers<[1], [0], [0], [1], [0, 0, 1, 1], [], []>} : vector<8x768xbf16>, vector<768x256xbf16>, vector<8x256xf32> -> vector<8x256xf32>
    %300 = vector.extract_strided_slice %299 {offsets = [0, 0], sizes = [8, 128], strides = [1, 1]} : vector<8x256xf32> to vector<8x128xf32>
    %301 = vector.extract_strided_slice %299 {offsets = [0, 128], sizes = [8, 128], strides = [1, 1]} : vector<8x256xf32> to vector<8x128xf32>
    %302 = arith.maximumf %300, %301 : vector<8x128xf32>
    %c0_188 = arith.constant 0 : index
    %c256_189 = arith.constant 256 : index
    %303 = vector.load %arg4[%c0_188, %c256_189] : memref<768x512xbf16, #tpu.memory_space<vmem>>, vector<768x256xbf16>
    %cst_190 = arith.constant dense<0.000000e+00> : vector<8x256xf32>
    %304 = tpu.matmul %297, %303, %cst_190 {dimension_numbers = #tpu.dot_dimension_numbers<[1], [0], [0], [1], [0, 0, 1, 1], [], []>} : vector<8x768xbf16>, vector<768x256xbf16>, vector<8x256xf32> -> vector<8x256xf32>
    %305 = vector.extract_strided_slice %304 {offsets = [0, 0], sizes = [8, 128], strides = [1, 1]} : vector<8x256xf32> to vector<8x128xf32>
    %306 = vector.extract_strided_slice %304 {offsets = [0, 128], sizes = [8, 128], strides = [1, 1]} : vector<8x256xf32> to vector<8x128xf32>
    %307 = arith.maximumf %305, %306 : vector<8x128xf32>
    %308 = arith.maximumf %302, %307 : vector<8x128xf32>
    %c0_191 = arith.constant 0 : index
    %c0_192 = arith.constant 0 : index
    %309 = vector.load %arg5[%c0_191, %c0_192] : memref<1x128xf32, #tpu.memory_space<vmem>>, vector<1x128xf32>
    %310 = vector.broadcast %309 : vector<1x128xf32> to vector<8x128xf32>
    %311 = arith.addf %308, %310 : vector<8x128xf32>
    %cst_193 = arith.constant 0.000000e+00 : f32
    %312 = vector.broadcast %cst_193 : f32 to vector<8x128xf32>
    %313 = arith.maximumf %311, %312 : vector<8x128xf32>
    %314 = arith.truncf %313 : vector<8x128xf32> to vector<8x128xbf16>
    %c0_194 = arith.constant 0 : index
    %c384_195 = arith.constant 384 : index
    %315 = vector.load %arg12[%c0_194, %c384_195] : memref<8x512xbf16, #tpu.memory_space<vmem>>, vector<8x128xbf16>
    tpu.vector_store %arg12[%c0_194, %c384_195], %314 {strides = array<i32>} : memref<8x512xbf16, #tpu.memory_space<vmem>>, vector<8x128xbf16>,
    %c0_196 = arith.constant 0 : index
    %c0_197 = arith.constant 0 : index
    %316 = vector.load %arg12[%c0_196, %c0_197] : memref<8x512xbf16, #tpu.memory_space<vmem>>, vector<8x512xbf16>
    %c0_198 = arith.constant 0 : index
    %c0_199 = arith.constant 0 : index
    %317 = vector.load %arg6[%c0_198, %c0_199] : memref<512x128xbf16, #tpu.memory_space<vmem>>, vector<512x128xbf16>
    %cst_200 = arith.constant dense<0.000000e+00> : vector<8x128xf32>
    %318 = tpu.matmul %316, %317, %cst_200 {dimension_numbers = #tpu.dot_dimension_numbers<[1], [0], [0], [1], [0, 0, 1, 1], [], []>} : vector<8x512xbf16>, vector<512x128xbf16>, vector<8x128xf32> -> vector<8x128xf32>
    %c0_201 = arith.constant 0 : index
    %c0_202 = arith.constant 0 : index
    %319 = vector.load %arg7[%c0_201, %c0_202] : memref<1x128xf32, #tpu.memory_space<vmem>>, vector<1x128xf32>
    %320 = vector.broadcast %319 : vector<1x128xf32> to vector<8x128xf32>
    %321 = arith.addf %318, %320 : vector<8x128xf32>
    %cst_203 = arith.constant 0.000000e+00 : f32
    %322 = vector.broadcast %cst_203 : f32 to vector<8x128xf32>
    %323 = arith.maximumf %321, %322 : vector<8x128xf32>
    %324 = arith.truncf %323 : vector<8x128xf32> to vector<8x128xbf16>
    %c0_204 = arith.constant 0 : index
    %c0_205 = arith.constant 0 : index
    %325 = vector.load %arg8[%c0_204, %c0_205] : memref<128x128xbf16, #tpu.memory_space<vmem>>, vector<128x128xbf16>
    %cst_206 = arith.constant dense<0.000000e+00> : vector<8x128xf32>
    %326 = tpu.matmul %324, %325, %cst_206 {dimension_numbers = #tpu.dot_dimension_numbers<[1], [0], [0], [1], [0, 0, 1, 1], [], []>} : vector<8x128xbf16>, vector<128x128xbf16>, vector<8x128xf32> -> vector<8x128xf32>
    %c0_207 = arith.constant 0 : index
    %c0_208 = arith.constant 0 : index
    %327 = vector.load %arg9[%c0_207, %c0_208] : memref<1x128xf32, #tpu.memory_space<vmem>>, vector<1x128xf32>
    %328 = vector.broadcast %327 : vector<1x128xf32> to vector<8x128xf32>
    %329 = arith.addf %326, %328 : vector<8x128xf32>
    %c0_209 = arith.constant 0 : index
    %c0_210 = arith.constant 0 : index
    %330 = vector.load %arg10[%c0_209, %c0_210] : memref<8x128xf32, #tpu.memory_space<vmem>>, vector<8x128xf32>
    tpu.vector_store %arg10[%c0_209, %c0_210], %329 {strides = array<i32>} : memref<8x128xf32, #tpu.memory_space<vmem>>, vector<8x128xf32>,
    return
  }
  func.func @transform_0(%arg0: i32) -> (i32, i32, i32) {
    %c0_i32 = arith.constant 0 : i32
    %c0_i32_0 = arith.constant 0 : i32
    %c0_i32_1 = arith.constant 0 : i32
    return %c0_i32, %arg0, %c0_i32_0 : i32, i32, i32
  }
  func.func @transform_1(%arg0: i32) -> (i32, i32) {
    %c0_i32 = arith.constant 0 : i32
    %c0_i32_0 = arith.constant 0 : i32
    %c0_i32_1 = arith.constant 0 : i32
    return %c0_i32, %c0_i32_0 : i32, i32
  }
  func.func @transform_2(%arg0: i32) -> (i32, i32) {
    %c0_i32 = arith.constant 0 : i32
    %c0_i32_0 = arith.constant 0 : i32
    %c0_i32_1 = arith.constant 0 : i32
    return %c0_i32, %c0_i32_0 : i32, i32
  }
  func.func @transform_3(%arg0: i32) -> (i32, i32) {
    %c0_i32 = arith.constant 0 : i32
    %c0_i32_0 = arith.constant 0 : i32
    %c0_i32_1 = arith.constant 0 : i32
    return %c0_i32, %c0_i32_0 : i32, i32
  }
  func.func @transform_4(%arg0: i32) -> (i32, i32) {
    %c0_i32 = arith.constant 0 : i32
    %c0_i32_0 = arith.constant 0 : i32
    %c0_i32_1 = arith.constant 0 : i32
    return %c0_i32, %c0_i32_0 : i32, i32
  }
  func.func @transform_5(%arg0: i32) -> (i32, i32) {
    %c0_i32 = arith.constant 0 : i32
    %c0_i32_0 = arith.constant 0 : i32
    %c0_i32_1 = arith.constant 0 : i32
    return %c0_i32, %c0_i32_0 : i32, i32
  }
  func.func @transform_6(%arg0: i32) -> (i32, i32) {
    %c0_i32 = arith.constant 0 : i32
    %c0_i32_0 = arith.constant 0 : i32
    %c0_i32_1 = arith.constant 0 : i32
    return %c0_i32, %c0_i32_0 : i32, i32
  }
  func.func @transform_7(%arg0: i32) -> (i32, i32) {
    %c0_i32 = arith.constant 0 : i32
    %c0_i32_0 = arith.constant 0 : i32
    %c0_i32_1 = arith.constant 0 : i32
    return %c0_i32, %c0_i32_0 : i32, i32
  }
  func.func @transform_8(%arg0: i32) -> (i32, i32) {
    %c0_i32 = arith.constant 0 : i32
    %c0_i32_0 = arith.constant 0 : i32
    %c0_i32_1 = arith.constant 0 : i32
    return %c0_i32, %c0_i32_0 : i32, i32
  }
  func.func @transform_9(%arg0: i32) -> (i32, i32) {
    %c0_i32 = arith.constant 0 : i32
    %c0_i32_0 = arith.constant 0 : i32
    return %arg0, %c0_i32 : i32, i32
  }
}

</mosaic_0001>

<llo_original>
// kernel: cnn_mnist_forward.1
$region0: #{cnn_mnist_forward.1}
  #allocation0 [shape = 'u32[]', space=smem, size = 0x4, offset = 0x4, fixed_abs, tag = 'smem constant byte address 0x4 - core index']
  #allocation1 [shape = 'u32[144,128]{1,0:T(1,128)}', space=vmem, size = 0x12000, scoped, tag = 'internal scratch']
  #allocation2 [shape = 'bf16[8,1536]{1,0:T(8,128)(2,1)}', space=vmem, size = 0x6000, scoped, tag = 'scratch operand']
  #allocation3 [shape = 'bf16[8,512]{1,0:T(8,128)(2,1)}', space=vmem, size = 0x2000, scoped, tag = 'scratch operand']
  %s0 = inlined_call_operand.vmem [shape: bf16[12,8,168], index: 0, kind: input, shape index: {}]
  %s1 = inlined_call_operand.vmem [shape: bf16[168,512], index: 1, kind: input, shape index: {}]
  %s2 = inlined_call_operand.vmem [shape: f32[1,128], index: 2, kind: input, shape index: {}]
  %s3 = inlined_call_operand.hbm [shape: bf16[768,512], index: 3, kind: input, shape index: {}]
  %s4 = inlined_call_operand.vmem [shape: f32[1,128], index: 4, kind: input, shape index: {}]
  %s5 = inlined_call_operand.vmem [shape: bf16[512,128], index: 5, kind: input, shape index: {}]
  %s6 = inlined_call_operand.vmem [shape: f32[1,128], index: 6, kind: input, shape index: {}]
  %s7 = inlined_call_operand.vmem [shape: bf16[128,128], index: 7, kind: input, shape index: {}]
  %s8 = inlined_call_operand.vmem [shape: f32[1,128], index: 8, kind: input, shape index: {}]
  %s9 = inlined_call_operand.vmem [shape: f32[8,128], index: 9, kind: output, shape index: {}]
  %s10 = sld [smem:[#allocation0]]
  $region50: #{cnn_mnist_forward.1} parent=0
    _
  %s12 = ssub.s32 1, %s10
  %s13 = scalar_select 0, %s12, %s10
  $region1: #{cnn_mnist_forward.1} parent=0
    #allocation4 [shape = 'u8[786432]{0}', space=vmem, size = 0xc0000, scoped, tag = 'input window, operand 3, single buffered']
    #allocation5 [shape = 's32[1]{0}', space=sflag, size = 0x4, scoped, tag = 'scoped memory for cnn_mnist_forward.1']
    %14 = vsyncpa [#allocation5], 0
    // Predicated region
    $region2: #{cnn_mnist_forward.1} parent=1 // pred_check
      _
    $region3: #{cnn_mnist_forward.1} parent=1 // pred_check_branch
      %16 = sbr.rel (0) target = $region5
    $region4: #{cnn_mnist_forward.1} parent=1 // pred_region
      _
    $region5: #{cnn_mnist_forward.1} parent=1 // pred_fallthru
      _
    // Predicated region
    $region6: #{cnn_mnist_forward.1} parent=1 // pred_check
      _
    $region7: #{cnn_mnist_forward.1} parent=1 // pred_check_branch
      %18 = sbr.rel (0) target = $region9
    $region8: #{cnn_mnist_forward.1} parent=1 // pred_region
      _
    $region9: #{cnn_mnist_forward.1} parent=1 // pred_fallthru
      _
    // Predicated region
    $region10: #{cnn_mnist_forward.1} parent=1 // pred_check
      _
    $region11: #{cnn_mnist_forward.1} parent=1 // pred_check_branch
      %20 = sbr.rel (0) target = $region13
    $region12: #{cnn_mnist_forward.1} parent=1 // pred_region
      _
    $region13: #{cnn_mnist_forward.1} parent=1 // pred_fallthru
      _
    // Predicated region
    $region14: #{cnn_mnist_forward.1} parent=1 // pred_check
      _
    $region15: #{cnn_mnist_forward.1} parent=1 // pred_check_branch
      %22 = sbr.rel (0) target = $region17
    $region16: #{cnn_mnist_forward.1} parent=1 // pred_region
      %s24 = ssub.s32 24576, 24576
      %25 = vsyncadd [#allocation5], %s24
      %s26 = sshll.u32 [#allocation4], 4
      %s27 = int_to_ptr.vmem [resolvable:$true] %s26
      %32 = dma.hbm_to_vmem [thread:$0]  %s3, 24576, %s27, [#allocation5], 256, 256, 16
    $region17: #{cnn_mnist_forward.1} parent=1 // pred_fallthru
      _
    // Predicated region
    $region18: #{cnn_mnist_forward.1} parent=1 // pred_check
      _
    $region19: #{cnn_mnist_forward.1} parent=1 // pred_check_branch
      %34 = sbr.rel (0) target = $region21
    $region20: #{cnn_mnist_forward.1} parent=1 // pred_region
      _
    $region21: #{cnn_mnist_forward.1} parent=1 // pred_fallthru
      _
    // Predicated region
    $region22: #{cnn_mnist_forward.1} parent=1 // pred_check
      _
    $region23: #{cnn_mnist_forward.1} parent=1 // pred_check_branch
      %36 = sbr.rel (0) target = $region25
    $region24: #{cnn_mnist_forward.1} parent=1 // pred_region
      _
    $region25: #{cnn_mnist_forward.1} parent=1 // pred_fallthru
      _
    // Predicated region
    $region26: #{cnn_mnist_forward.1} parent=1 // pred_check
      _
    $region27: #{cnn_mnist_forward.1} parent=1 // pred_check_branch
      %38 = sbr.rel (0) target = $region29
    $region28: #{cnn_mnist_forward.1} parent=1 // pred_region
      _
    $region29: #{cnn_mnist_forward.1} parent=1 // pred_fallthru
      _
    // Predicated region
    $region30: #{cnn_mnist_forward.1} parent=1 // pred_check
      _
    $region31: #{cnn_mnist_forward.1} parent=1 // pred_check_branch
      %40 = sbr.rel (0) target = $region33
    $region32: #{cnn_mnist_forward.1} parent=1 // pred_region
      _
    $region33: #{cnn_mnist_forward.1} parent=1 // pred_fallthru
      _
    // Predicated region
    $region34: #{cnn_mnist_forward.1} parent=1 // pred_check
      _
    $region35: #{cnn_mnist_forward.1} parent=1 // pred_check_branch
      %42 = sbr.rel (0) target = $region37
    $region36: #{cnn_mnist_forward.1} parent=1 // pred_region
      _
    $region37: #{cnn_mnist_forward.1} parent=1 // pred_fallthru
      _
    // Predicated region
    $region38: #{cnn_mnist_forward.1} parent=1 // pred_check
      _
    $region39: #{cnn_mnist_forward.1} parent=1 // pred_check_branch
      %44 = sbr.rel (0) target = $region41
    $region40: #{cnn_mnist_forward.1} parent=1 // pred_region
      %45 = dma.done [#allocation5], 24576
    $region41: #{cnn_mnist_forward.1} parent=1 // pred_fallthru
      _
    %v47 = vld [vmem:[%s0] sm:$0xff]
    %v48 = vld [vmem:[%s1] sm:$0xff]
    %v49 = vld [vmem:[%s1 + $0x10] sm:$0xff]
    %v50 = vld [vmem:[%s1 + $0x20] sm:$0xff]
    %v51 = vld [vmem:[%s1 + $0x30] sm:$0xff]
    %v52 = vld [vmem:[%s1 + $0x40] sm:$0xff]
    %v53 = vld [vmem:[%s1 + $0x50] sm:$0xff]
    %v54 = vld [vmem:[%s1 + $0x60] sm:$0xff]
    %v55 = vld [vmem:[%s1 + $0x70] sm:$0xff]
    %v56 = vld [vmem:[%s1 + $0x80] sm:$0xff]
    %v57 = vld [vmem:[%s1 + $0x90] sm:$0xff]
    %v58 = vld [vmem:[%s1 + $0xa0] sm:$0xff]
    %v59 = vld [vmem:[%s1 + $0xb0] sm:$0xff]
    %v60 = vld [vmem:[%s1 + $0xc0] sm:$0xff]
    %v61 = vld [vmem:[%s1 + $0xd0] sm:$0xff]
    %v62 = vld [vmem:[%s1 + $0xe0] sm:$0xff]
    %v63 = vld [vmem:[%s1 + $0xf0] sm:$0xff]
    %v64 = vld [vmem:[%s1 + $0x100] sm:$0xff]
    %v65 = vld [vmem:[%s1 + $0x110] sm:$0xff]
    %v66 = vld [vmem:[%s1 + $0x120] sm:$0xff]
    %v67 = vld [vmem:[%s1 + $0x130] sm:$0xff]
    %v68 = vld [vmem:[%s1 + $0x140] sm:$0xff]
    %v70 = vunpack.c.l.b16 %v47
    %v71 = vunpack.c.h.b16 %v47
    %v72 = vpack.c.b16 %v70, %v70
    %v73 = vpack.c.b16 %v71, %v71
    %v96 = vunpack.c.l.b16 %v48
    %v97 = vunpack.c.h.b16 %v48
    %v98 = vunpack.c.l.b16 %v49
    %v99 = vunpack.c.h.b16 %v49
    %v100 = vunpack.c.l.b16 %v50
    %v101 = vunpack.c.h.b16 %v50
    %v102 = vunpack.c.l.b16 %v51
    %v103 = vunpack.c.h.b16 %v51
    %v104 = vunpack.c.l.b16 %v52
    %v105 = vunpack.c.h.b16 %v52
    %v106 = vunpack.c.l.b16 %v53
    %v107 = vunpack.c.h.b16 %v53
    %v108 = vunpack.c.l.b16 %v54
    %v109 = vunpack.c.h.b16 %v54
    %v110 = vunpack.c.l.b16 %v55
    %v111 = vunpack.c.h.b16 %v55
    %v112 = vunpack.c.l.b16 %v56
    %v113 = vunpack.c.h.b16 %v56
    %v114 = vunpack.c.l.b16 %v57
    %v115 = vunpack.c.h.b16 %v57
    %v116 = vunpack.c.l.b16 %v58
    %v117 = vunpack.c.h.b16 %v58
    %v118 = vunpack.c.l.b16 %v59
    %v119 = vunpack.c.h.b16 %v59
    %v120 = vunpack.c.l.b16 %v60
    %v121 = vunpack.c.h.b16 %v60
    %v122 = vunpack.c.l.b16 %v61
    %v123 = vunpack.c.h.b16 %v61
    %v124 = vunpack.c.l.b16 %v62
    %v125 = vunpack.c.h.b16 %v62
    %v126 = vunpack.c.l.b16 %v63
    %v127 = vunpack.c.h.b16 %v63
    %v128 = vunpack.c.l.b16 %v64
    %v129 = vunpack.c.h.b16 %v64
    %v130 = vunpack.c.l.b16 %v65
    %v131 = vunpack.c.h.b16 %v65
    %v132 = vunpack.c.l.b16 %v66
    %v133 = vunpack.c.h.b16 %v66
    %v134 = vunpack.c.l.b16 %v67
    %v135 = vunpack.c.h.b16 %v67
    %v136 = vunpack.c.l.b16 %v68
    %v137 = vunpack.c.h.b16 %v68
    %v138 = vpack.c.b16 %v98, %v96
    %v139 = vpack.c.b16 %v99, %v97
    %v140 = vpack.c.b16 %v102, %v100
    %v141 = vpack.c.b16 %v103, %v101
    %v142 = vpack.c.b16 %v106, %v104
    %v143 = vpack.c.b16 %v107, %v105
    %v144 = vpack.c.b16 %v110, %v108
    %v145 = vpack.c.b16 %v111, %v109
    %v146 = vpack.c.b16 %v114, %v112
    %v147 = vpack.c.b16 %v115, %v113
    %v148 = vpack.c.b16 %v118, %v116
    %v149 = vpack.c.b16 %v119, %v117
    %v150 = vpack.c.b16 %v122, %v120
    %v151 = vpack.c.b16 %v123, %v121
    %v152 = vpack.c.b16 %v126, %v124
    %v153 = vpack.c.b16 %v127, %v125
    %v154 = vpack.c.b16 %v130, %v128
    %v155 = vpack.c.b16 %v131, %v129
    %v156 = vpack.c.b16 %v134, %v132
    %v157 = vpack.c.b16 %v135, %v133
    %v158 = vpack.c.b16 %v136, %v136
    %v159 = vpack.c.b16 %v137, %v137
    %vm180 = vcmask 326656
    %v182 = vsel %vm180, %v73, 0
    %vm184 = vcmask 1043456
    %v186 = vsel %vm184, %v158, 0
    %v189 = vsel %vm184, %v159, 0
    %191 = vmatprep.subr.bf16.mxu0 %v153
    %192 = vmatpush1.bf16.msra.mxu0 %v152
    %193 = vmatprep.subr.bf16.mxu0 %v151
    %194 = vmatpush1.bf16.msra.mxu0 %v150
    %195 = vmatprep.subr.bf16.mxu0 %v149
    %196 = vmatpush1.bf16.msra.mxu0 %v148
    %197 = vmatprep.subr.bf16.mxu0 %v147
    %198 = vmatpush1.bf16.msra.mxu0 %v146
    %199 = vmatprep.subr.bf16.mxu0 %v145
    %200 = vmatpush1.bf16.msra.mxu0 %v144
    %201 = vmatprep.subr.bf16.mxu0 %v143
    %202 = vmatpush1.bf16.msra.mxu0 %v142
    %203 = vmatprep.subr.bf16.mxu0 %v141
    %204 = vmatpush1.bf16.msra.mxu0 %v140
    %205 = vmatprep.subr.bf16.mxu0 %v139
    %206 = vmatpush1.bf16.msra.mxu0 %v138
    %207 = vmatprep.subr.bf16.mxu0 0
    %208 = vmatpush2.bf16.msra.mxu0 0
    %209 = vmatprep.subr.bf16.mxu0 0
    %210 = vmatpush2.bf16.msra.mxu0 0
    %211 = vmatprep.subr.bf16.mxu0 0
    %212 = vmatpush2.bf16.msra.mxu0 0
    %213 = vmatprep.subr.bf16.mxu0 0
    %214 = vmatpush2.bf16.msra.mxu0 0
    %215 = vmatprep.subr.bf16.mxu0 0
    %216 = vmatpush2.bf16.msra.mxu0 0
    %217 = vmatprep.subr.bf16.mxu0 %v189
    %218 = vmatpush2.bf16.msra.mxu0 %v186
    %219 = vmatprep.subr.bf16.mxu0 %v157
    %220 = vmatpush2.bf16.msra.mxu0 %v156
    %221 = vmatprep.subr.bf16.mxu0 %v155
    %222 = vmatpush2.bf16.msra.mxu0 %v154
    %223 = vmatprep.mubr.bf16.mxu0 %v182
    %224 = vmatmul.mubr.bf16.gmra.mxu0 %v72
    %v225 = vpop.f32.mrf.mxu0
    %v226 = vadd.f32 0.0, %v225
    %v227 = vpop.f32.mrf.mxu0
    %v228 = vadd.f32 0.0, %v227
    %v229 = vpop.f32.mrf.mxu0
    %v230 = vpop.f32.mrf.mxu0
    %231 = vdwg.mxu0
    %v232 = vmax.f32 %v226, %v228
    %v233 = vld [vmem:[%s1 + $0x8] sm:$0xff]
    %v234 = vld [vmem:[%s1 + $0x18] sm:$0xff]
    %v235 = vld [vmem:[%s1 + $0x28] sm:$0xff]
    %v236 = vld [vmem:[%s1 + $0x38] sm:$0xff]
    %v237 = vld [vmem:[%s1 + $0x48] sm:$0xff]
    %v238 = vld [vmem:[%s1 + $0x58] sm:$0xff]
    %v239 = vld [vmem:[%s1 + $0x68] sm:$0xff]
    %v240 = vld [vmem:[%s1 + $0x78] sm:$0xff]
    %v241 = vld [vmem:[%s1 + $0x88] sm:$0xff]
    %v242 = vld [vmem:[%s1 + $0x98] sm:$0xff]
    %v243 = vld [vmem:[%s1 + $0xa8] sm:$0xff]
    %v244 = vld [vmem:[%s1 + $0xb8] sm:$0xff]
    %v245 = vld [vmem:[%s1 + $0xc8] sm:$0xff]
    %v246 = vld [vmem:[%s1 + $0xd8] sm:$0xff]
    %v247 = vld [vmem:[%s1 + $0xe8] sm:$0xff]
    %v248 = vld [vmem:[%s1 + $0xf8] sm:$0xff]
    %v249 = vld [vmem:[%s1 + $0x108] sm:$0xff]
    %v250 = vld [vmem:[%s1 + $0x118] sm:$0xff]
    %v251 = vld [vmem:[%s1 + $0x128] sm:$0xff]
    %v252 = vld [vmem:[%s1 + $0x138] sm:$0xff]
    %v253 = vld [vmem:[%s1 + $0x148] sm:$0xff]
    %v275 = vunpack.c.l.b16 %v233
    %v276 = vunpack.c.h.b16 %v233
    %v277 = vunpack.c.l.b16 %v234
    %v278 = vunpack.c.h.b16 %v234
    %v279 = vunpack.c.l.b16 %v235
    %v280 = vunpack.c.h.b16 %v235
    %v281 = vunpack.c.l.b16 %v236
    %v282 = vunpack.c.h.b16 %v236
    %v283 = vunpack.c.l.b16 %v237
    %v284 = vunpack.c.h.b16 %v237
    %v285 = vunpack.c.l.b16 %v238
    %v286 = vunpack.c.h.b16 %v238
    %v287 = vunpack.c.l.b16 %v239
    %v288 = vunpack.c.h.b16 %v239
    %v289 = vunpack.c.l.b16 %v240
    %v290 = vunpack.c.h.b16 %v240
    %v291 = vunpack.c.l.b16 %v241
    %v292 = vunpack.c.h.b16 %v241
    %v293 = vunpack.c.l.b16 %v242
    %v294 = vunpack.c.h.b16 %v242
    %v295 = vunpack.c.l.b16 %v243
    %v296 = vunpack.c.h.b16 %v243
    %v297 = vunpack.c.l.b16 %v244
    %v298 = vunpack.c.h.b16 %v244
    %v299 = vunpack.c.l.b16 %v245
    %v300 = vunpack.c.h.b16 %v245
    %v301 = vunpack.c.l.b16 %v246
    %v302 = vunpack.c.h.b16 %v246
    %v303 = vunpack.c.l.b16 %v247
    %v304 = vunpack.c.h.b16 %v247
    %v305 = vunpack.c.l.b16 %v248
    %v306 = vunpack.c.h.b16 %v248
    %v307 = vunpack.c.l.b16 %v249
    %v308 = vunpack.c.h.b16 %v249
    %v309 = vunpack.c.l.b16 %v250
    %v310 = vunpack.c.h.b16 %v250
    %v311 = vunpack.c.l.b16 %v251
    %v312 = vunpack.c.h.b16 %v251
    %v313 = vunpack.c.l.b16 %v252
    %v314 = vunpack.c.h.b16 %v252
    %v315 = vunpack.c.l.b16 %v253
    %v316 = vunpack.c.h.b16 %v253
    %v317 = vpack.c.b16 %v277, %v275
    %v318 = vpack.c.b16 %v278, %v276
    %v319 = vpack.c.b16 %v281, %v279
    %v320 = vpack.c.b16 %v282, %v280
    %v321 = vpack.c.b16 %v285, %v283
    %v322 = vpack.c.b16 %v286, %v284
    %v323 = vpack.c.b16 %v289, %v287
    %v324 = vpack.c.b16 %v290, %v288
    %v325 = vpack.c.b16 %v293, %v291
    %v326 = vpack.c.b16 %v294, %v292
    %v327 = vpack.c.b16 %v297, %v295
    %v328 = vpack.c.b16 %v298, %v296
    %v329 = vpack.c.b16 %v301, %v299
    %v330 = vpack.c.b16 %v302, %v300
    %v331 = vpack.c.b16 %v305, %v303
    %v332 = vpack.c.b16 %v306, %v304
    %v333 = vpack.c.b16 %v309, %v307
    %v334 = vpack.c.b16 %v310, %v308
    %v335 = vpack.c.b16 %v313, %v311
    %v336 = vpack.c.b16 %v314, %v312
    %v337 = vpack.c.b16 %v315, %v315
    %v338 = vpack.c.b16 %v316, %v316
    %v360 = vsel %vm184, %v337, 0
    %v363 = vsel %vm184, %v338, 0
    %365 = vmatprep.subr.bf16.mxu0 %v332
    %366 = vmatpush1.bf16.msra.mxu0 %v331
    %367 = vmatprep.subr.bf16.mxu0 %v330
    %368 = vmatpush1.bf16.msra.mxu0 %v329
    %369 = vmatprep.subr.bf16.mxu0 %v328
    %370 = vmatpush1.bf16.msra.mxu0 %v327
    %371 = vmatprep.subr.bf16.mxu0 %v326
    %372 = vmatpush1.bf16.msra.mxu0 %v325
    %373 = vmatprep.subr.bf16.mxu0 %v324
    %374 = vmatpush1.bf16.msra.mxu0 %v323
    %375 = vmatprep.subr.bf16.mxu0 %v322
    %376 = vmatpush1.bf16.msra.mxu0 %v321
    %377 = vmatprep.subr.bf16.mxu0 %v320
    %378 = vmatpush1.bf16.msra.mxu0 %v319
    %379 = vmatprep.subr.bf16.mxu0 %v318
    %380 = vmatpush1.bf16.msra.mxu0 %v317
    %381 = vmatprep.subr.bf16.mxu0 0
    %382 = vmatpush2.bf16.msra.mxu0 0
    %383 = vmatprep.subr.bf16.mxu0 0
    %384 = vmatpush2.bf16.msra.mxu0 0
    %385 = vmatprep.subr.bf16.mxu0 0
    %386 = vmatpush2.bf16.msra.mxu0 0
    %387 = vmatprep.subr.bf16.mxu0 0
    %388 = vmatpush2.bf16.msra.mxu0 0
    %389 = vmatprep.subr.bf16.mxu0 0
    %390 = vmatpush2.bf16.msra.mxu0 0
    %391 = vmatprep.subr.bf16.mxu0 %v363
    %392 = vmatpush2.bf16.msra.mxu0 %v360
    %393 = vmatprep.subr.bf16.mxu0 %v336
    %394 = vmatpush2.bf16.msra.mxu0 %v335
    %395 = vmatprep.subr.bf16.mxu0 %v334
    %396 = vmatpush2.bf16.msra.mxu0 %v333
    %397 = vmatprep.mubr.bf16.mxu0 %v182
    %398 = vmatmul.mubr.bf16.gmra.mxu0 %v72
    %v399 = vpop.f32.mrf.mxu0
    %v400 = vadd.f32 0.0, %v399
    %v401 = vpop.f32.mrf.mxu0
    %v402 = vadd.f32 0.0, %v401
    %v403 = vpop.f32.mrf.mxu0
    %v404 = vpop.f32.mrf.mxu0
    %405 = vdwg.mxu0
    %v406 = vmax.f32 %v400, %v402
    %v407 = vmax.f32 %v232, %v406
    %v408 = vld [vmem:[%s2] sm:$0x1]
    %v410 = vlaneseq
    %v411 = vshrl.u32 %v410, 7
    %v412 = vsub.s32 0, %v411
    %v413 = vrot.slane %v408, %v412
    %v415 = vadd.f32 %v407, %v413
    %v416 = vmax.f32 %v415, 0.0
    %v417 = vpack.c.bf16 %v416, %v416
    %418 = vst [vmem:[#allocation2] sm:$0xf] %v417
    %s419 = scalar_lea.vmem %s0, 8
    %v420 = vld [vmem:[%s419] sm:$0xff]
    %v421 = vld [vmem:[%s1] sm:$0xff]
    %v422 = vld [vmem:[%s1 + $0x10] sm:$0xff]
    %v423 = vld [vmem:[%s1 + $0x20] sm:$0xff]
    %v424 = vld [vmem:[%s1 + $0x30] sm:$0xff]
    %v425 = vld [vmem:[%s1 + $0x40] sm:$0xff]
    %v426 = vld [vmem:[%s1 + $0x50] sm:$0xff]
    %v427 = vld [vmem:[%s1 + $0x60] sm:$0xff]
    %v428 = vld [vmem:[%s1 + $0x70] sm:$0xff]
    %v429 = vld [vmem:[%s1 + $0x80] sm:$0xff]
    %v430 = vld [vmem:[%s1 + $0x90] sm:$0xff]
    %v431 = vld [vmem:[%s1 + $0xa0] sm:$0xff]
    %v432 = vld [vmem:[%s1 + $0xb0] sm:$0xff]
    %v433 = vld [vmem:[%s1 + $0xc0] sm:$0xff]
    %v434 = vld [vmem:[%s1 + $0xd0] sm:$0xff]
    %v435 = vld [vmem:[%s1 + $0xe0] sm:$0xff]
    %v436 = vld [vmem:[%s1 + $0xf0] sm:$0xff]
    %v437 = vld [vmem:[%s1 + $0x100] sm:$0xff]
    %v438 = vld [vmem:[%s1 + $0x110] sm:$0xff]
    %v439 = vld [vmem:[%s1 + $0x120] sm:$0xff]
    %v440 = vld [vmem:[%s1 + $0x130] sm:$0xff]
    %v441 = vld [vmem:[%s1 + $0x140] sm:$0xff]
    %v443 = vunpack.c.l.b16 %v420
    %v444 = vunpack.c.h.b16 %v420
    %v445 = vpack.c.b16 %v443, %v443
    %v446 = vpack.c.b16 %v444, %v444
    %v469 = vunpack.c.l.b16 %v421
    %v470 = vunpack.c.h.b16 %v421
    %v471 = vunpack.c.l.b16 %v422
    %v472 = vunpack.c.h.b16 %v422
    %v473 = vunpack.c.l.b16 %v423
    %v474 = vunpack.c.h.b16 %v423
    %v475 = vunpack.c.l.b16 %v424
    %v476 = vunpack.c.h.b16 %v424
    %v477 = vunpack.c.l.b16 %v425
    %v478 = vunpack.c.h.b16 %v425
    %v479 = vunpack.c.l.b16 %v426
    %v480 = vunpack.c.h.b16 %v426
    %v481 = vunpack.c.l.b16 %v427
    %v482 = vunpack.c.h.b16 %v427
    %v483 = vunpack.c.l.b16 %v428
    %v484 = vunpack.c.h.b16 %v428
    %v485 = vunpack.c.l.b16 %v429
    %v486 = vunpack.c.h.b16 %v429
    %v487 = vunpack.c.l.b16 %v430
    %v488 = vunpack.c.h.b16 %v430
    %v489 = vunpack.c.l.b16 %v431
    %v490 = vunpack.c.h.b16 %v431
    %v491 = vunpack.c.l.b16 %v432
    %v492 = vunpack.c.h.b16 %v432
    %v493 = vunpack.c.l.b16 %v433
    %v494 = vunpack.c.h.b16 %v433
    %v495 = vunpack.c.l.b16 %v434
    %v496 = vunpack.c.h.b16 %v434
    %v497 = vunpack.c.l.b16 %v435
    %v498 = vunpack.c.h.b16 %v435
    %v499 = vunpack.c.l.b16 %v436
    %v500 = vunpack.c.h.b16 %v436
    %v501 = vunpack.c.l.b16 %v437
    %v502 = vunpack.c.h.b16 %v437
    %v503 = vunpack.c.l.b16 %v438
    %v504 = vunpack.c.h.b16 %v438
    %v505 = vunpack.c.l.b16 %v439
    %v506 = vunpack.c.h.b16 %v439
    %v507 = vunpack.c.l.b16 %v440
    %v508 = vunpack.c.h.b16 %v440
    %v509 = vunpack.c.l.b16 %v441
    %v510 = vunpack.c.h.b16 %v441
    %v511 = vpack.c.b16 %v471, %v469
    %v512 = vpack.c.b16 %v472, %v470
    %v513 = vpack.c.b16 %v475, %v473
    %v514 = vpack.c.b16 %v476, %v474
    %v515 = vpack.c.b16 %v479, %v477
    %v516 = vpack.c.b16 %v480, %v478
    %v517 = vpack.c.b16 %v483, %v481
    %v518 = vpack.c.b16 %v484, %v482
    %v519 = vpack.c.b16 %v487, %v485
    %v520 = vpack.c.b16 %v488, %v486
    %v521 = vpack.c.b16 %v491, %v489
    %v522 = vpack.c.b16 %v492, %v490
    %v523 = vpack.c.b16 %v495, %v493
    %v524 = vpack.c.b16 %v496, %v494
    %v525 = vpack.c.b16 %v499, %v497
    %v526 = vpack.c.b16 %v500, %v498
    %v527 = vpack.c.b16 %v503, %v501
    %v528 = vpack.c.b16 %v504, %v502
    %v529 = vpack.c.b16 %v507, %v505
    %v530 = vpack.c.b16 %v508, %v506
    %v531 = vpack.c.b16 %v509, %v509
    %v532 = vpack.c.b16 %v510, %v510
    %v554 = vsel %vm180, %v446, 0
    %v557 = vsel %vm184, %v531, 0
    %v560 = vsel %vm184, %v532, 0
    %562 = vmatprep.subr.bf16.mxu0 %v526
    %563 = vmatpush1.bf16.msra.mxu0 %v525
    %564 = vmatprep.subr.bf16.mxu0 %v524
    %565 = vmatpush1.bf16.msra.mxu0 %v523
    %566 = vmatprep.subr.bf16.mxu0 %v522
    %567 = vmatpush1.bf16.msra.mxu0 %v521
    %568 = vmatprep.subr.bf16.mxu0 %v520
    %569 = vmatpush1.bf16.msra.mxu0 %v519
    %570 = vmatprep.subr.bf16.mxu0 %v518
    %571 = vmatpush1.bf16.msra.mxu0 %v517
    %572 = vmatprep.subr.bf16.mxu0 %v516
    %573 = vmatpush1.bf16.msra.mxu0 %v515
    %574 = vmatprep.subr.bf16.mxu0 %v514
    %575 = vmatpush1.bf16.msra.mxu0 %v513
    %576 = vmatprep.subr.bf16.mxu0 %v512
    %577 = vmatpush1.bf16.msra.mxu0 %v511
    %578 = vmatprep.subr.bf16.mxu0 0
    %579 = vmatpush2.bf16.msra.mxu0 0
    %580 = vmatprep.subr.bf16.mxu0 0
    %581 = vmatpush2.bf16.msra.mxu0 0
    %582 = vmatprep.subr.bf16.mxu0 0
    %583 = vmatpush2.bf16.msra.mxu0 0
    %584 = vmatprep.subr.bf16.mxu0 0
    %585 = vmatpush2.bf16.msra.mxu0 0
    %586 = vmatprep.subr.bf16.mxu0 0
    %587 = vmatpush2.bf16.msra.mxu0 0
    %588 = vmatprep.subr.bf16.mxu0 %v560
    %589 = vmatpush2.bf16.msra.mxu0 %v557
    %590 = vmatprep.subr.bf16.mxu0 %v530
    %591 = vmatpush2.bf16.msra.mxu0 %v529
    %592 = vmatprep.subr.bf16.mxu0 %v528
    %593 = vmatpush2.bf16.msra.mxu0 %v527
    %594 = vmatprep.mubr.bf16.mxu0 %v554
    %595 = vmatmul.mubr.bf16.gmra.mxu0 %v445
    %v596 = vpop.f32.mrf.mxu0
    %v597 = vadd.f32 0.0, %v596
    %v598 = vpop.f32.mrf.mxu0
    %v599 = vadd.f32 0.0, %v598
    %v600 = vpop.f32.mrf.mxu0
    %v601 = vpop.f32.mrf.mxu0
    %602 = vdwg.mxu0
    %v603 = vmax.f32 %v597, %v599
    %v604 = vld [vmem:[%s1 + $0x8] sm:$0xff]
    %v605 = vld [vmem:[%s1 + $0x18] sm:$0xff]
    %v606 = vld [vmem:[%s1 + $0x28] sm:$0xff]
    %v607 = vld [vmem:[%s1 + $0x38] sm:$0xff]
    %v608 = vld [vmem:[%s1 + $0x48] sm:$0xff]
    %v609 = vld [vmem:[%s1 + $0x58] sm:$0xff]
    %v610 = vld [vmem:[%s1 + $0x68] sm:$0xff]
    %v611 = vld [vmem:[%s1 + $0x78] sm:$0xff]
    %v612 = vld [vmem:[%s1 + $0x88] sm:$0xff]
    %v613 = vld [vmem:[%s1 + $0x98] sm:$0xff]
    %v614 = vld [vmem:[%s1 + $0xa8] sm:$0xff]
    %v615 = vld [vmem:[%s1 + $0xb8] sm:$0xff]
    %v616 = vld [vmem:[%s1 + $0xc8] sm:$0xff]
    %v617 = vld [vmem:[%s1 + $0xd8] sm:$0xff]
    %v618 = vld [vmem:[%s1 + $0xe8] sm:$0xff]
    %v619 = vld [vmem:[%s1 + $0xf8] sm:$0xff]
    %v620 = vld [vmem:[%s1 + $0x108] sm:$0xff]
    %v621 = vld [vmem:[%s1 + $0x118] sm:$0xff]
    %v622 = vld [vmem:[%s1 + $0x128] sm:$0xff]
    %v623 = vld [vmem:[%s1 + $0x138] sm:$0xff]
    %v624 = vld [vmem:[%s1 + $0x148] sm:$0xff]
    %v646 = vunpack.c.l.b16 %v604
    %v647 = vunpack.c.h.b16 %v604
    %v648 = vunpack.c.l.b16 %v605
    %v649 = vunpack.c.h.b16 %v605
    %v650 = vunpack.c.l.b16 %v606
    %v651 = vunpack.c.h.b16 %v606
    %v652 = vunpack.c.l.b16 %v607
    %v653 = vunpack.c.h.b16 %v607
    %v654 = vunpack.c.l.b16 %v608
    %v655 = vunpack.c.h.b16 %v608
    %v656 = vunpack.c.l.b16 %v609
    %v657 = vunpack.c.h.b16 %v609
    %v658 = vunpack.c.l.b16 %v610
    %v659 = vunpack.c.h.b16 %v610
    %v660 = vunpack.c.l.b16 %v611
    %v661 = vunpack.c.h.b16 %v611
    %v662 = vunpack.c.l.b16 %v612
    %v663 = vunpack.c.h.b16 %v612
    %v664 = vunpack.c.l.b16 %v613
    %v665 = vunpack.c.h.b16 %v613
    %v666 = vunpack.c.l.b16 %v614
    %v667 = vunpack.c.h.b16 %v614
    %v668 = vunpack.c.l.b16 %v615
    %v669 = vunpack.c.h.b16 %v615
    %v670 = vunpack.c.l.b16 %v616
    %v671 = vunpack.c.h.b16 %v616
    %v672 = vunpack.c.l.b16 %v617
    %v673 = vunpack.c.h.b16 %v617
    %v674 = vunpack.c.l.b16 %v618
    %v675 = vunpack.c.h.b16 %v618
    %v676 = vunpack.c.l.b16 %v619
    %v677 = vunpack.c.h.b16 %v619
    %v678 = vunpack.c.l.b16 %v620
    %v679 = vunpack.c.h.b16 %v620
    %v680 = vunpack.c.l.b16 %v621
    %v681 = vunpack.c.h.b16 %v621
    %v682 = vunpack.c.l.b16 %v622
    %v683 = vunpack.c.h.b16 %v622
    %v684 = vunpack.c.l.b16 %v623
    %v685 = vunpack.c.h.b16 %v623
    %v686 = vunpack.c.l.b16 %v624
    %v687 = vunpack.c.h.b16 %v624
    %v688 = vpack.c.b16 %v648, %v646
    %v689 = vpack.c.b16 %v649, %v647
    %v690 = vpack.c.b16 %v652, %v650
    %v691 = vpack.c.b16 %v653, %v651
    %v692 = vpack.c.b16 %v656, %v654
    %v693 = vpack.c.b16 %v657, %v655
    %v694 = vpack.c.b16 %v660, %v658
    %v695 = vpack.c.b16 %v661, %v659
    %v696 = vpack.c.b16 %v664, %v662
    %v697 = vpack.c.b16 %v665, %v663
    %v698 = vpack.c.b16 %v668, %v666
    %v699 = vpack.c.b16 %v669, %v667
    %v700 = vpack.c.b16 %v672, %v670
    %v701 = vpack.c.b16 %v673, %v671
    %v702 = vpack.c.b16 %v676, %v674
    %v703 = vpack.c.b16 %v677, %v675
    %v704 = vpack.c.b16 %v680, %v678
    %v705 = vpack.c.b16 %v681, %v679
    %v706 = vpack.c.b16 %v684, %v682
    %v707 = vpack.c.b16 %v685, %v683
    %v708 = vpack.c.b16 %v686, %v686
    %v709 = vpack.c.b16 %v687, %v687
    %v731 = vsel %vm184, %v708, 0
    %v734 = vsel %vm184, %v709, 0
    %736 = vmatprep.subr.bf16.mxu0 %v703
    %737 = vmatpush1.bf16.msra.mxu0 %v702
    %738 = vmatprep.subr.bf16.mxu0 %v701
    %739 = vmatpush1.bf16.msra.mxu0 %v700
    %740 = vmatprep.subr.bf16.mxu0 %v699
    %741 = vmatpush1.bf16.msra.mxu0 %v698
    %742 = vmatprep.subr.bf16.mxu0 %v697
    %743 = vmatpush1.bf16.msra.mxu0 %v696
    %744 = vmatprep.subr.bf16.mxu0 %v695
    %745 = vmatpush1.bf16.msra.mxu0 %v694
    %746 = vmatprep.subr.bf16.mxu0 %v693
    %747 = vmatpush1.bf16.msra.mxu0 %v692
    %748 = vmatprep.subr.bf16.mxu0 %v691
    %749 = vmatpush1.bf16.msra.mxu0 %v690
    %750 = vmatprep.subr.bf16.mxu0 %v689
    %751 = vmatpush1.bf16.msra.mxu0 %v688
    %752 = vmatprep.subr.bf16.mxu0 0
    %753 = vmatpush2.bf16.msra.mxu0 0
    %754 = vmatprep.subr.bf16.mxu0 0
    %755 = vmatpush2.bf16.msra.mxu0 0
    %756 = vmatprep.subr.bf16.mxu0 0
    %757 = vmatpush2.bf16.msra.mxu0 0
    %758 = vmatprep.subr.bf16.mxu0 0
    %759 = vmatpush2.bf16.msra.mxu0 0
    %760 = vmatprep.subr.bf16.mxu0 0
    %761 = vmatpush2.bf16.msra.mxu0 0
    %762 = vmatprep.subr.bf16.mxu0 %v734
    %763 = vmatpush2.bf16.msra.mxu0 %v731
    %764 = vmatprep.subr.bf16.mxu0 %v707
    %765 = vmatpush2.bf16.msra.mxu0 %v706
    %766 = vmatprep.subr.bf16.mxu0 %v705
    %767 = vmatpush2.bf16.msra.mxu0 %v704
    %768 = vmatprep.mubr.bf16.mxu0 %v554
    %769 = vmatmul.mubr.bf16.gmra.mxu0 %v445
    %v770 = vpop.f32.mrf.mxu0
    %v771 = vadd.f32 0.0, %v770
    %v772 = vpop.f32.mrf.mxu0
    %v773 = vadd.f32 0.0, %v772
    %v774 = vpop.f32.mrf.mxu0
    %v775 = vpop.f32.mrf.mxu0
    %776 = vdwg.mxu0
    %v777 = vmax.f32 %v771, %v773
    %v778 = vmax.f32 %v603, %v777
    %v779 = vld [vmem:[%s2] sm:$0x1]
    %v781 = vlaneseq
    %v782 = vshrl.u32 %v781, 7
    %v783 = vsub.s32 0, %v782
    %v784 = vrot.slane %v779, %v783
    %v786 = vadd.f32 %v778, %v784
    %v787 = vmax.f32 %v786, 0.0
    %v788 = vpack.c.bf16 %v787, %v787
    %789 = vst [vmem:[#allocation2 + $0x4] sm:$0xf] %v788
    %s790 = scalar_lea.vmem %s0, 16
    %v791 = vld [vmem:[%s790] sm:$0xff]
    %v792 = vld [vmem:[%s1] sm:$0xff]
    %v793 = vld [vmem:[%s1 + $0x10] sm:$0xff]
    %v794 = vld [vmem:[%s1 + $0x20] sm:$0xff]
    %v795 = vld [vmem:[%s1 + $0x30] sm:$0xff]
    %v796 = vld [vmem:[%s1 + $0x40] sm:$0xff]
    %v797 = vld [vmem:[%s1 + $0x50] sm:$0xff]
    %v798 = vld [vmem:[%s1 + $0x60] sm:$0xff]
    %v799 = vld [vmem:[%s1 + $0x70] sm:$0xff]
    %v800 = vld [vmem:[%s1 + $0x80] sm:$0xff]
    %v801 = vld [vmem:[%s1 + $0x90] sm:$0xff]
    %v802 = vld [vmem:[%s1 + $0xa0] sm:$0xff]
    %v803 = vld [vmem:[%s1 + $0xb0] sm:$0xff]
    %v804 = vld [vmem:[%s1 + $0xc0] sm:$0xff]
    %v805 = vld [vmem:[%s1 + $0xd0] sm:$0xff]
    %v806 = vld [vmem:[%s1 + $0xe0] sm:$0xff]
    %v807 = vld [vmem:[%s1 + $0xf0] sm:$0xff]
    %v808 = vld [vmem:[%s1 + $0x100] sm:$0xff]
    %v809 = vld [vmem:[%s1 + $0x110] sm:$0xff]
    %v810 = vld [vmem:[%s1 + $0x120] sm:$0xff]
    %v811 = vld [vmem:[%s1 + $0x130] sm:$0xff]
    %v812 = vld [vmem:[%s1 + $0x140] sm:$0xff]
    %v814 = vunpack.c.l.b16 %v791
    %v815 = vunpack.c.h.b16 %v791
    %v816 = vpack.c.b16 %v814, %v814
    %v817 = vpack.c.b16 %v815, %v815
    %v840 = vunpack.c.l.b16 %v792
    %v841 = vunpack.c.h.b16 %v792
    %v842 = vunpack.c.l.b16 %v793
    %v843 = vunpack.c.h.b16 %v793
    %v844 = vunpack.c.l.b16 %v794
    %v845 = vunpack.c.h.b16 %v794
    %v846 = vunpack.c.l.b16 %v795
    %v847 = vunpack.c.h.b16 %v795
    %v848 = vunpack.c.l.b16 %v796
    %v849 = vunpack.c.h.b16 %v796
    %v850 = vunpack.c.l.b16 %v797
    %v851 = vunpack.c.h.b16 %v797
    %v852 = vunpack.c.l.b16 %v798
    %v853 = vunpack.c.h.b16 %v798
    %v854 = vunpack.c.l.b16 %v799
    %v855 = vunpack.c.h.b16 %v799
    %v856 = vunpack.c.l.b16 %v800
    %v857 = vunpack.c.h.b16 %v800
    %v858 = vunpack.c.l.b16 %v801
    %v859 = vunpack.c.h.b16 %v801
    %v860 = vunpack.c.l.b16 %v802
    %v861 = vunpack.c.h.b16 %v802
    %v862 = vunpack.c.l.b16 %v803
    %v863 = vunpack.c.h.b16 %v803
    %v864 = vunpack.c.l.b16 %v804
    %v865 = vunpack.c.h.b16 %v804
    %v866 = vunpack.c.l.b16 %v805
    %v867 = vunpack.c.h.b16 %v805
    %v868 = vunpack.c.l.b16 %v806
    %v869 = vunpack.c.h.b16 %v806
    %v870 = vunpack.c.l.b16 %v807
    %v871 = vunpack.c.h.b16 %v807
    %v872 = vunpack.c.l.b16 %v808
    %v873 = vunpack.c.h.b16 %v808
    %v874 = vunpack.c.l.b16 %v809
    %v875 = vunpack.c.h.b16 %v809
    %v876 = vunpack.c.l.b16 %v810
    %v877 = vunpack.c.h.b16 %v810
    %v878 = vunpack.c.l.b16 %v811
    %v879 = vunpack.c.h.b16 %v811
    %v880 = vunpack.c.l.b16 %v812
    %v881 = vunpack.c.h.b16 %v812
    %v882 = vpack.c.b16 %v842, %v840
    %v883 = vpack.c.b16 %v843, %v841
    %v884 = vpack.c.b16 %v846, %v844
    %v885 = vpack.c.b16 %v847, %v845
    %v886 = vpack.c.b16 %v850, %v848
    %v887 = vpack.c.b16 %v851, %v849
    %v888 = vpack.c.b16 %v854, %v852
    %v889 = vpack.c.b16 %v855, %v853
    %v890 = vpack.c.b16 %v858, %v856
    %v891 = vpack.c.b16 %v859, %v857
    %v892 = vpack.c.b16 %v862, %v860
    %v893 = vpack.c.b16 %v863, %v861
    %v894 = vpack.c.b16 %v866, %v864
    %v895 = vpack.c.b16 %v867, %v865
    %v896 = vpack.c.b16 %v870, %v868
    %v897 = vpack.c.b16 %v871, %v869
    %v898 = vpack.c.b16 %v874, %v872
    %v899 = vpack.c.b16 %v875, %v873
    %v900 = vpack.c.b16 %v878, %v876
    %v901 = vpack.c.b16 %v879, %v877
    %v902 = vpack.c.b16 %v880, %v880
    %v903 = vpack.c.b16 %v881, %v881
    %v925 = vsel %vm180, %v817, 0
    %v928 = vsel %vm184, %v902, 0
    %v931 = vsel %vm184, %v903, 0
    %933 = vmatprep.subr.bf16.mxu0 %v897
    %934 = vmatpush1.bf16.msra.mxu0 %v896
    %935 = vmatprep.subr.bf16.mxu0 %v895
    %936 = vmatpush1.bf16.msra.mxu0 %v894
    %937 = vmatprep.subr.bf16.mxu0 %v893
    %938 = vmatpush1.bf16.msra.mxu0 %v892
    %939 = vmatprep.subr.bf16.mxu0 %v891
    %940 = vmatpush1.bf16.msra.mxu0 %v890
    %941 = vmatprep.subr.bf16.mxu0 %v889
    %942 = vmatpush1.bf16.msra.mxu0 %v888
    %943 = vmatprep.subr.bf16.mxu0 %v887
    %944 = vmatpush1.bf16.msra.mxu0 %v886
    %945 = vmatprep.subr.bf16.mxu0 %v885
    %946 = vmatpush1.bf16.msra.mxu0 %v884
    %947 = vmatprep.subr.bf16.mxu0 %v883
    %948 = vmatpush1.bf16.msra.mxu0 %v882
    %949 = vmatprep.subr.bf16.mxu0 0
    %950 = vmatpush2.bf16.msra.mxu0 0
    %951 = vmatprep.subr.bf16.mxu0 0
    %952 = vmatpush2.bf16.msra.mxu0 0
    %953 = vmatprep.subr.bf16.mxu0 0
    %954 = vmatpush2.bf16.msra.mxu0 0
    %955 = vmatprep.subr.bf16.mxu0 0
    %956 = vmatpush2.bf16.msra.mxu0 0
    %957 = vmatprep.subr.bf16.mxu0 0
    %958 = vmatpush2.bf16.msra.mxu0 0
    %959 = vmatprep.subr.bf16.mxu0 %v931
    %960 = vmatpush2.bf16.msra.mxu0 %v928
    %961 = vmatprep.subr.bf16.mxu0 %v901
    %962 = vmatpush2.bf16.msra.mxu0 %v900
    %963 = vmatprep.subr.bf16.mxu0 %v899
    %964 = vmatpush2.bf16.msra.mxu0 %v898
    %965 = vmatprep.mubr.bf16.mxu0 %v925
    %966 = vmatmul.mubr.bf16.gmra.mxu0 %v816
    %v967 = vpop.f32.mrf.mxu0
    %v968 = vadd.f32 0.0, %v967
    %v969 = vpop.f32.mrf.mxu0
    %v970 = vadd.f32 0.0, %v969
    %v971 = vpop.f32.mrf.mxu0
    %v972 = vpop.f32.mrf.mxu0
    %973 = vdwg.mxu0
    %v974 = vmax.f32 %v968, %v970
    %v975 = vld [vmem:[%s1 + $0x8] sm:$0xff]
    %v976 = vld [vmem:[%s1 + $0x18] sm:$0xff]
    %v977 = vld [vmem:[%s1 + $0x28] sm:$0xff]
    %v978 = vld [vmem:[%s1 + $0x38] sm:$0xff]
    %v979 = vld [vmem:[%s1 + $0x48] sm:$0xff]
    %v980 = vld [vmem:[%s1 + $0x58] sm:$0xff]
    %v981 = vld [vmem:[%s1 + $0x68] sm:$0xff]
    %v982 = vld [vmem:[%s1 + $0x78] sm:$0xff]
    %v983 = vld [vmem:[%s1 + $0x88] sm:$0xff]
    %v984 = vld [vmem:[%s1 + $0x98] sm:$0xff]
    %v985 = vld [vmem:[%s1 + $0xa8] sm:$0xff]
    %v986 = vld [vmem:[%s1 + $0xb8] sm:$0xff]
    %v987 = vld [vmem:[%s1 + $0xc8] sm:$0xff]
    %v988 = vld [vmem:[%s1 + $0xd8] sm:$0xff]
    %v989 = vld [vmem:[%s1 + $0xe8] sm:$0xff]
    %v990 = vld [vmem:[%s1 + $0xf8] sm:$0xff]
    %v991 = vld [vmem:[%s1 + $0x108] sm:$0xff]
    %v992 = vld [vmem:[%s1 + $0x118] sm:$0xff]
    %v993 = vld [vmem:[%s1 + $0x128] sm:$0xff]
    %v994 = vld [vmem:[%s1 + $0x138] sm:$0xff]
    %v995 = vld [vmem:[%s1 + $0x148] sm:$0xff]
    %v1017 = vunpack.c.l.b16 %v975
    %v1018 = vunpack.c.h.b16 %v975
    %v1019 = vunpack.c.l.b16 %v976
    %v1020 = vunpack.c.h.b16 %v976
    %v1021 = vunpack.c.l.b16 %v977
    %v1022 = vunpack.c.h.b16 %v977
    %v1023 = vunpack.c.l.b16 %v978
    %v1024 = vunpack.c.h.b16 %v978
    %v1025 = vunpack.c.l.b16 %v979
    %v1026 = vunpack.c.h.b16 %v979
    %v1027 = vunpack.c.l.b16 %v980
    %v1028 = vunpack.c.h.b16 %v980
    %v1029 = vunpack.c.l.b16 %v981
    %v1030 = vunpack.c.h.b16 %v981
    %v1031 = vunpack.c.l.b16 %v982
    %v1032 = vunpack.c.h.b16 %v982
    %v1033 = vunpack.c.l.b16 %v983
    %v1034 = vunpack.c.h.b16 %v983
    %v1035 = vunpack.c.l.b16 %v984
    %v1036 = vunpack.c.h.b16 %v984
    %v1037 = vunpack.c.l.b16 %v985
    %v1038 = vunpack.c.h.b16 %v985
    %v1039 = vunpack.c.l.b16 %v986
    %v1040 = vunpack.c.h.b16 %v986
    %v1041 = vunpack.c.l.b16 %v987
    %v1042 = vunpack.c.h.b16 %v987
    %v1043 = vunpack.c.l.b16 %v988
    %v1044 = vunpack.c.h.b16 %v988
    %v1045 = vunpack.c.l.b16 %v989
    %v1046 = vunpack.c.h.b16 %v989
    %v1047 = vunpack.c.l.b16 %v990
    %v1048 = vunpack.c.h.b16 %v990
    %v1049 = vunpack.c.l.b16 %v991
    %v1050 = vunpack.c.h.b16 %v991
    %v1051 = vunpack.c.l.b16 %v992
    %v1052 = vunpack.c.h.b16 %v992
    %v1053 = vunpack.c.l.b16 %v993
    %v1054 = vunpack.c.h.b16 %v993
    %v1055 = vunpack.c.l.b16 %v994
    %v1056 = vunpack.c.h.b16 %v994
    %v1057 = vunpack.c.l.b16 %v995
    %v1058 = vunpack.c.h.b16 %v995
    %v1059 = vpack.c.b16 %v1019, %v1017
    %v1060 = vpack.c.b16 %v1020, %v1018
    %v1061 = vpack.c.b16 %v1023, %v1021
    %v1062 = vpack.c.b16 %v1024, %v1022
    %v1063 = vpack.c.b16 %v1027, %v1025
    %v1064 = vpack.c.b16 %v1028, %v1026
    %v1065 = vpack.c.b16 %v1031, %v1029
    %v1066 = vpack.c.b16 %v1032, %v1030
    %v1067 = vpack.c.b16 %v1035, %v1033
    %v1068 = vpack.c.b16 %v1036, %v1034
    %v1069 = vpack.c.b16 %v1039, %v1037
    %v1070 = vpack.c.b16 %v1040, %v1038
    %v1071 = vpack.c.b16 %v1043, %v1041
    %v1072 = vpack.c.b16 %v1044, %v1042
    %v1073 = vpack.c.b16 %v1047, %v1045
    %v1074 = vpack.c.b16 %v1048, %v1046
    %v1075 = vpack.c.b16 %v1051, %v1049
    %v1076 = vpack.c.b16 %v1052, %v1050
    %v1077 = vpack.c.b16 %v1055, %v1053
    %v1078 = vpack.c.b16 %v1056, %v1054
    %v1079 = vpack.c.b16 %v1057, %v1057
    %v1080 = vpack.c.b16 %v1058, %v1058
    %v1102 = vsel %vm184, %v1079, 0
    %v1105 = vsel %vm184, %v1080, 0
    %1107 = vmatprep.subr.bf16.mxu0 %v1074
    %1108 = vmatpush1.bf16.msra.mxu0 %v1073
    %1109 = vmatprep.subr.bf16.mxu0 %v1072
    %1110 = vmatpush1.bf16.msra.mxu0 %v1071
    %1111 = vmatprep.subr.bf16.mxu0 %v1070
    %1112 = vmatpush1.bf16.msra.mxu0 %v1069
    %1113 = vmatprep.subr.bf16.mxu0 %v1068
    %1114 = vmatpush1.bf16.msra.mxu0 %v1067
    %1115 = vmatprep.subr.bf16.mxu0 %v1066
    %1116 = vmatpush1.bf16.msra.mxu0 %v1065
    %1117 = vmatprep.subr.bf16.mxu0 %v1064
    %1118 = vmatpush1.bf16.msra.mxu0 %v1063
    %1119 = vmatprep.subr.bf16.mxu0 %v1062
    %1120 = vmatpush1.bf16.msra.mxu0 %v1061
    %1121 = vmatprep.subr.bf16.mxu0 %v1060
    %1122 = vmatpush1.bf16.msra.mxu0 %v1059
    %1123 = vmatprep.subr.bf16.mxu0 0
    %1124 = vmatpush2.bf16.msra.mxu0 0
    %1125 = vmatprep.subr.bf16.mxu0 0
    %1126 = vmatpush2.bf16.msra.mxu0 0
    %1127 = vmatprep.subr.bf16.mxu0 0
    %1128 = vmatpush2.bf16.msra.mxu0 0
    %1129 = vmatprep.subr.bf16.mxu0 0
    %1130 = vmatpush2.bf16.msra.mxu0 0
    %1131 = vmatprep.subr.bf16.mxu0 0
    %1132 = vmatpush2.bf16.msra.mxu0 0
    %1133 = vmatprep.subr.bf16.mxu0 %v1105
    %1134 = vmatpush2.bf16.msra.mxu0 %v1102
    %1135 = vmatprep.subr.bf16.mxu0 %v1078
    %1136 = vmatpush2.bf16.msra.mxu0 %v1077
    %1137 = vmatprep.subr.bf16.mxu0 %v1076
    %1138 = vmatpush2.bf16.msra.mxu0 %v1075
    %1139 = vmatprep.mubr.bf16.mxu0 %v925
    %1140 = vmatmul.mubr.bf16.gmra.mxu0 %v816
    %v1141 = vpop.f32.mrf.mxu0
    %v1142 = vadd.f32 0.0, %v1141
    %v1143 = vpop.f32.mrf.mxu0
    %v1144 = vadd.f32 0.0, %v1143
    %v1145 = vpop.f32.mrf.mxu0
    %v1146 = vpop.f32.mrf.mxu0
    %1147 = vdwg.mxu0
    %v1148 = vmax.f32 %v1142, %v1144
    %v1149 = vmax.f32 %v974, %v1148
    %v1150 = vld [vmem:[%s2] sm:$0x1]
    %v1152 = vlaneseq
    %v1153 = vshrl.u32 %v1152, 7
    %v1154 = vsub.s32 0, %v1153
    %v1155 = vrot.slane %v1150, %v1154
    %v1157 = vadd.f32 %v1149, %v1155
    %v1158 = vmax.f32 %v1157, 0.0
    %v1159 = vpack.c.bf16 %v1158, %v1158
    %1160 = vst [vmem:[#allocation2 + $0x8] sm:$0xf] %v1159
    %s1161 = scalar_lea.vmem %s0, 24
    %v1162 = vld [vmem:[%s1161] sm:$0xff]
    %v1163 = vld [vmem:[%s1] sm:$0xff]
    %v1164 = vld [vmem:[%s1 + $0x10] sm:$0xff]
    %v1165 = vld [vmem:[%s1 + $0x20] sm:$0xff]
    %v1166 = vld [vmem:[%s1 + $0x30] sm:$0xff]
    %v1167 = vld [vmem:[%s1 + $0x40] sm:$0xff]
    %v1168 = vld [vmem:[%s1 + $0x50] sm:$0xff]
    %v1169 = vld [vmem:[%s1 + $0x60] sm:$0xff]
    %v1170 = vld [vmem:[%s1 + $0x70] sm:$0xff]
    %v1171 = vld [vmem:[%s1 + $0x80] sm:$0xff]
    %v1172 = vld [vmem:[%s1 + $0x90] sm:$0xff]
    %v1173 = vld [vmem:[%s1 + $0xa0] sm:$0xff]
    %v1174 = vld [vmem:[%s1 + $0xb0] sm:$0xff]
    %v1175 = vld [vmem:[%s1 + $0xc0] sm:$0xff]
    %v1176 = vld [vmem:[%s1 + $0xd0] sm:$0xff]
    %v1177 = vld [vmem:[%s1 + $0xe0] sm:$0xff]
    %v1178 = vld [vmem:[%s1 + $0xf0] sm:$0xff]
    %v1179 = vld [vmem:[%s1 + $0x100] sm:$0xff]
    %v1180 = vld [vmem:[%s1 + $0x110] sm:$0xff]
    %v1181 = vld [vmem:[%s1 + $0x120] sm:$0xff]
    %v1182 = vld [vmem:[%s1 + $0x130] sm:$0xff]
    %v1183 = vld [vmem:[%s1 + $0x140] sm:$0xff]
    %v1185 = vunpack.c.l.b16 %v1162
    %v1186 = vunpack.c.h.b16 %v1162
    %v1187 = vpack.c.b16 %v1185, %v1185
    %v1188 = vpack.c.b16 %v1186, %v1186
    %v1211 = vunpack.c.l.b16 %v1163
    %v1212 = vunpack.c.h.b16 %v1163
    %v1213 = vunpack.c.l.b16 %v1164
    %v1214 = vunpack.c.h.b16 %v1164
    %v1215 = vunpack.c.l.b16 %v1165
    %v1216 = vunpack.c.h.b16 %v1165
    %v1217 = vunpack.c.l.b16 %v1166
    %v1218 = vunpack.c.h.b16 %v1166
    %v1219 = vunpack.c.l.b16 %v1167
    %v1220 = vunpack.c.h.b16 %v1167
    %v1221 = vunpack.c.l.b16 %v1168
    %v1222 = vunpack.c.h.b16 %v1168
    %v1223 = vunpack.c.l.b16 %v1169
    %v1224 = vunpack.c.h.b16 %v1169
    %v1225 = vunpack.c.l.b16 %v1170
    %v1226 = vunpack.c.h.b16 %v1170
    %v1227 = vunpack.c.l.b16 %v1171
    %v1228 = vunpack.c.h.b16 %v1171
    %v1229 = vunpack.c.l.b16 %v1172
    %v1230 = vunpack.c.h.b16 %v1172
    %v1231 = vunpack.c.l.b16 %v1173
    %v1232 = vunpack.c.h.b16 %v1173
    %v1233 = vunpack.c.l.b16 %v1174
    %v1234 = vunpack.c.h.b16 %v1174
    %v1235 = vunpack.c.l.b16 %v1175
    %v1236 = vunpack.c.h.b16 %v1175
    %v1237 = vunpack.c.l.b16 %v1176
    %v1238 = vunpack.c.h.b16 %v1176
    %v1239 = vunpack.c.l.b16 %v1177
    %v1240 = vunpack.c.h.b16 %v1177
    %v1241 = vunpack.c.l.b16 %v1178
    %v1242 = vunpack.c.h.b16 %v1178
    %v1243 = vunpack.c.l.b16 %v1179
    %v1244 = vunpack.c.h.b16 %v1179
    %v1245 = vunpack.c.l.b16 %v1180
    %v1246 = vunpack.c.h.b16 %v1180
    %v1247 = vunpack.c.l.b16 %v1181
    %v1248 = vunpack.c.h.b16 %v1181
    %v1249 = vunpack.c.l.b16 %v1182
    %v1250 = vunpack.c.h.b16 %v1182
    %v1251 = vunpack.c.l.b16 %v1183
    %v1252 = vunpack.c.h.b16 %v1183
    %v1253 = vpack.c.b16 %v1213, %v1211
    %v1254 = vpack.c.b16 %v1214, %v1212
    %v1255 = vpack.c.b16 %v1217, %v1215
    %v1256 = vpack.c.b16 %v1218, %v1216
    %v1257 = vpack.c.b16 %v1221, %v1219
    %v1258 = vpack.c.b16 %v1222, %v1220
    %v1259 = vpack.c.b16 %v1225, %v1223
    %v1260 = vpack.c.b16 %v1226, %v1224
    %v1261 = vpack.c.b16 %v1229, %v1227
    %v1262 = vpack.c.b16 %v1230, %v1228
    %v1263 = vpack.c.b16 %v1233, %v1231
    %v1264 = vpack.c.b16 %v1234, %v1232
    %v1265 = vpack.c.b16 %v1237, %v1235
    %v1266 = vpack.c.b16 %v1238, %v1236
    %v1267 = vpack.c.b16 %v1241, %v1239
    %v1268 = vpack.c.b16 %v1242, %v1240
    %v1269 = vpack.c.b16 %v1245, %v1243
    %v1270 = vpack.c.b16 %v1246, %v1244
    %v1271 = vpack.c.b16 %v1249, %v1247
    %v1272 = vpack.c.b16 %v1250, %v1248
    %v1273 = vpack.c.b16 %v1251, %v1251
    %v1274 = vpack.c.b16 %v1252, %v1252
    %v1296 = vsel %vm180, %v1188, 0
    %v1299 = vsel %vm184, %v1273, 0
    %v1302 = vsel %vm184, %v1274, 0
    %1304 = vmatprep.subr.bf16.mxu0 %v1268
    %1305 = vmatpush1.bf16.msra.mxu0 %v1267
    %1306 = vmatprep.subr.bf16.mxu0 %v1266
    %1307 = vmatpush1.bf16.msra.mxu0 %v1265
    %1308 = vmatprep.subr.bf16.mxu0 %v1264
    %1309 = vmatpush1.bf16.msra.mxu0 %v1263
    %1310 = vmatprep.subr.bf16.mxu0 %v1262
    %1311 = vmatpush1.bf16.msra.mxu0 %v1261
    %1312 = vmatprep.subr.bf16.mxu0 %v1260
    %1313 = vmatpush1.bf16.msra.mxu0 %v1259
    %1314 = vmatprep.subr.bf16.mxu0 %v1258
    %1315 = vmatpush1.bf16.msra.mxu0 %v1257
    %1316 = vmatprep.subr.bf16.mxu0 %v1256
    %1317 = vmatpush1.bf16.msra.mxu0 %v1255
    %1318 = vmatprep.subr.bf16.mxu0 %v1254
    %1319 = vmatpush1.bf16.msra.mxu0 %v1253
    %1320 = vmatprep.subr.bf16.mxu0 0
    %1321 = vmatpush2.bf16.msra.mxu0 0
    %1322 = vmatprep.subr.bf16.mxu0 0
    %1323 = vmatpush2.bf16.msra.mxu0 0
    %1324 = vmatprep.subr.bf16.mxu0 0
    %1325 = vmatpush2.bf16.msra.mxu0 0
    %1326 = vmatprep.subr.bf16.mxu0 0
    %1327 = vmatpush2.bf16.msra.mxu0 0
    %1328 = vmatprep.subr.bf16.mxu0 0
    %1329 = vmatpush2.bf16.msra.mxu0 0
    %1330 = vmatprep.subr.bf16.mxu0 %v1302
    %1331 = vmatpush2.bf16.msra.mxu0 %v1299
    %1332 = vmatprep.subr.bf16.mxu0 %v1272
    %1333 = vmatpush2.bf16.msra.mxu0 %v1271
    %1334 = vmatprep.subr.bf16.mxu0 %v1270
    %1335 = vmatpush2.bf16.msra.mxu0 %v1269
    %1336 = vmatprep.mubr.bf16.mxu0 %v1296
    %1337 = vmatmul.mubr.bf16.gmra.mxu0 %v1187
    %v1338 = vpop.f32.mrf.mxu0
    %v1339 = vadd.f32 0.0, %v1338
    %v1340 = vpop.f32.mrf.mxu0
    %v1341 = vadd.f32 0.0, %v1340
    %v1342 = vpop.f32.mrf.mxu0
    %v1343 = vpop.f32.mrf.mxu0
    %1344 = vdwg.mxu0
    %v1345 = vmax.f32 %v1339, %v1341
    %v1346 = vld [vmem:[%s1 + $0x8] sm:$0xff]
    %v1347 = vld [vmem:[%s1 + $0x18] sm:$0xff]
    %v1348 = vld [vmem:[%s1 + $0x28] sm:$0xff]
    %v1349 = vld [vmem:[%s1 + $0x38] sm:$0xff]
    %v1350 = vld [vmem:[%s1 + $0x48] sm:$0xff]
    %v1351 = vld [vmem:[%s1 + $0x58] sm:$0xff]
    %v1352 = vld [vmem:[%s1 + $0x68] sm:$0xff]
    %v1353 = vld [vmem:[%s1 + $0x78] sm:$0xff]
    %v1354 = vld [vmem:[%s1 + $0x88] sm:$0xff]
    %v1355 = vld [vmem:[%s1 + $0x98] sm:$0xff]
    %v1356 = vld [vmem:[%s1 + $0xa8] sm:$0xff]
    %v1357 = vld [vmem:[%s1 + $0xb8] sm:$0xff]
    %v1358 = vld [vmem:[%s1 + $0xc8] sm:$0xff]
    %v1359 = vld [vmem:[%s1 + $0xd8] sm:$0xff]
    %v1360 = vld [vmem:[%s1 + $0xe8] sm:$0xff]
    %v1361 = vld [vmem:[%s1 + $0xf8] sm:$0xff]
    %v1362 = vld [vmem:[%s1 + $0x108] sm:$0xff]
    %v1363 = vld [vmem:[%s1 + $0x118] sm:$0xff]
    %v1364 = vld [vmem:[%s1 + $0x128] sm:$0xff]
    %v1365 = vld [vmem:[%s1 + $0x138] sm:$0xff]
    %v1366 = vld [vmem:[%s1 + $0x148] sm:$0xff]
    %v1388 = vunpack.c.l.b16 %v1346
    %v1389 = vunpack.c.h.b16 %v1346
    %v1390 = vunpack.c.l.b16 %v1347
    %v1391 = vunpack.c.h.b16 %v1347
    %v1392 = vunpack.c.l.b16 %v1348
    %v1393 = vunpack.c.h.b16 %v1348
    %v1394 = vunpack.c.l.b16 %v1349
    %v1395 = vunpack.c.h.b16 %v1349
    %v1396 = vunpack.c.l.b16 %v1350
    %v1397 = vunpack.c.h.b16 %v1350
    %v1398 = vunpack.c.l.b16 %v1351
    %v1399 = vunpack.c.h.b16 %v1351
    %v1400 = vunpack.c.l.b16 %v1352
    %v1401 = vunpack.c.h.b16 %v1352
    %v1402 = vunpack.c.l.b16 %v1353
    %v1403 = vunpack.c.h.b16 %v1353
    %v1404 = vunpack.c.l.b16 %v1354
    %v1405 = vunpack.c.h.b16 %v1354
    %v1406 = vunpack.c.l.b16 %v1355
    %v1407 = vunpack.c.h.b16 %v1355
    %v1408 = vunpack.c.l.b16 %v1356
    %v1409 = vunpack.c.h.b16 %v1356
    %v1410 = vunpack.c.l.b16 %v1357
    %v1411 = vunpack.c.h.b16 %v1357
    %v1412 = vunpack.c.l.b16 %v1358
    %v1413 = vunpack.c.h.b16 %v1358
    %v1414 = vunpack.c.l.b16 %v1359
    %v1415 = vunpack.c.h.b16 %v1359
    %v1416 = vunpack.c.l.b16 %v1360
    %v1417 = vunpack.c.h.b16 %v1360
    %v1418 = vunpack.c.l.b16 %v1361
    %v1419 = vunpack.c.h.b16 %v1361
    %v1420 = vunpack.c.l.b16 %v1362
    %v1421 = vunpack.c.h.b16 %v1362
    %v1422 = vunpack.c.l.b16 %v1363
    %v1423 = vunpack.c.h.b16 %v1363
    %v1424 = vunpack.c.l.b16 %v1364
    %v1425 = vunpack.c.h.b16 %v1364
    %v1426 = vunpack.c.l.b16 %v1365
    %v1427 = vunpack.c.h.b16 %v1365
    %v1428 = vunpack.c.l.b16 %v1366
    %v1429 = vunpack.c.h.b16 %v1366
    %v1430 = vpack.c.b16 %v1390, %v1388
    %v1431 = vpack.c.b16 %v1391, %v1389
    %v1432 = vpack.c.b16 %v1394, %v1392
    %v1433 = vpack.c.b16 %v1395, %v1393
    %v1434 = vpack.c.b16 %v1398, %v1396
    %v1435 = vpack.c.b16 %v1399, %v1397
    %v1436 = vpack.c.b16 %v1402, %v1400
    %v1437 = vpack.c.b16 %v1403, %v1401
    %v1438 = vpack.c.b16 %v1406, %v1404
    %v1439 = vpack.c.b16 %v1407, %v1405
    %v1440 = vpack.c.b16 %v1410, %v1408
    %v1441 = vpack.c.b16 %v1411, %v1409
    %v1442 = vpack.c.b16 %v1414, %v1412
    %v1443 = vpack.c.b16 %v1415, %v1413
    %v1444 = vpack.c.b16 %v1418, %v1416
    %v1445 = vpack.c.b16 %v1419, %v1417
    %v1446 = vpack.c.b16 %v1422, %v1420
    %v1447 = vpack.c.b16 %v1423, %v1421
    %v1448 = vpack.c.b16 %v1426, %v1424
    %v1449 = vpack.c.b16 %v1427, %v1425
    %v1450 = vpack.c.b16 %v1428, %v1428
    %v1451 = vpack.c.b16 %v1429, %v1429
    %v1473 = vsel %vm184, %v1450, 0
    %v1476 = vsel %vm184, %v1451, 0
    %1478 = vmatprep.subr.bf16.mxu0 %v1445
    %1479 = vmatpush1.bf16.msra.mxu0 %v1444
    %1480 = vmatprep.subr.bf16.mxu0 %v1443
    %1481 = vmatpush1.bf16.msra.mxu0 %v1442
    %1482 = vmatprep.subr.bf16.mxu0 %v1441
    %1483 = vmatpush1.bf16.msra.mxu0 %v1440
    %1484 = vmatprep.subr.bf16.mxu0 %v1439
    %1485 = vmatpush1.bf16.msra.mxu0 %v1438
    %1486 = vmatprep.subr.bf16.mxu0 %v1437
    %1487 = vmatpush1.bf16.msra.mxu0 %v1436
    %1488 = vmatprep.subr.bf16.mxu0 %v1435
    %1489 = vmatpush1.bf16.msra.mxu0 %v1434
    %1490 = vmatprep.subr.bf16.mxu0 %v1433
    %1491 = vmatpush1.bf16.msra.mxu0 %v1432
    %1492 = vmatprep.subr.bf16.mxu0 %v1431
    %1493 = vmatpush1.bf16.msra.mxu0 %v1430
    %1494 = vmatprep.subr.bf16.mxu0 0
    %1495 = vmatpush2.bf16.msra.mxu0 0
    %1496 = vmatprep.subr.bf16.mxu0 0
    %1497 = vmatpush2.bf16.msra.mxu0 0
    %1498 = vmatprep.subr.bf16.mxu0 0
    %1499 = vmatpush2.bf16.msra.mxu0 0
    %1500 = vmatprep.subr.bf16.mxu0 0
    %1501 = vmatpush2.bf16.msra.mxu0 0
    %1502 = vmatprep.subr.bf16.mxu0 0
    %1503 = vmatpush2.bf16.msra.mxu0 0
    %1504 = vmatprep.subr.bf16.mxu0 %v1476
    %1505 = vmatpush2.bf16.msra.mxu0 %v1473
    %1506 = vmatprep.subr.bf16.mxu0 %v1449
    %1507 = vmatpush2.bf16.msra.mxu0 %v1448
    %1508 = vmatprep.subr.bf16.mxu0 %v1447
    %1509 = vmatpush2.bf16.msra.mxu0 %v1446
    %1510 = vmatprep.mubr.bf16.mxu0 %v1296
    %1511 = vmatmul.mubr.bf16.gmra.mxu0 %v1187
    %v1512 = vpop.f32.mrf.mxu0
    %v1513 = vadd.f32 0.0, %v1512
    %v1514 = vpop.f32.mrf.mxu0
    %v1515 = vadd.f32 0.0, %v1514
    %v1516 = vpop.f32.mrf.mxu0
    %v1517 = vpop.f32.mrf.mxu0
    %1518 = vdwg.mxu0
    %v1519 = vmax.f32 %v1513, %v1515
    %v1520 = vmax.f32 %v1345, %v1519
    %v1521 = vld [vmem:[%s2] sm:$0x1]
    %v1523 = vlaneseq
    %v1524 = vshrl.u32 %v1523, 7
    %v1525 = vsub.s32 0, %v1524
    %v1526 = vrot.slane %v1521, %v1525
    %v1528 = vadd.f32 %v1520, %v1526
    %v1529 = vmax.f32 %v1528, 0.0
    %v1530 = vpack.c.bf16 %v1529, %v1529
    %1531 = vst [vmem:[#allocation2 + $0xc] sm:$0xf] %v1530
    %s1532 = scalar_lea.vmem %s0, 32
    %v1533 = vld [vmem:[%s1532] sm:$0xff]
    %v1534 = vld [vmem:[%s1] sm:$0xff]
    %v1535 = vld [vmem:[%s1 + $0x10] sm:$0xff]
    %v1536 = vld [vmem:[%s1 + $0x20] sm:$0xff]
    %v1537 = vld [vmem:[%s1 + $0x30] sm:$0xff]
    %v1538 = vld [vmem:[%s1 + $0x40] sm:$0xff]
    %v1539 = vld [vmem:[%s1 + $0x50] sm:$0xff]
    %v1540 = vld [vmem:[%s1 + $0x60] sm:$0xff]
    %v1541 = vld [vmem:[%s1 + $0x70] sm:$0xff]
    %v1542 = vld [vmem:[%s1 + $0x80] sm:$0xff]
    %v1543 = vld [vmem:[%s1 + $0x90] sm:$0xff]
    %v1544 = vld [vmem:[%s1 + $0xa0] sm:$0xff]
    %v1545 = vld [vmem:[%s1 + $0xb0] sm:$0xff]
    %v1546 = vld [vmem:[%s1 + $0xc0] sm:$0xff]
    %v1547 = vld [vmem:[%s1 + $0xd0] sm:$0xff]
    %v1548 = vld [vmem:[%s1 + $0xe0] sm:$0xff]
    %v1549 = vld [vmem:[%s1 + $0xf0] sm:$0xff]
    %v1550 = vld [vmem:[%s1 + $0x100] sm:$0xff]
    %v1551 = vld [vmem:[%s1 + $0x110] sm:$0xff]
    %v1552 = vld [vmem:[%s1 + $0x120] sm:$0xff]
    %v1553 = vld [vmem:[%s1 + $0x130] sm:$0xff]
    %v1554 = vld [vmem:[%s1 + $0x140] sm:$0xff]
    %v1556 = vunpack.c.l.b16 %v1533
    %v1557 = vunpack.c.h.b16 %v1533
    %v1558 = vpack.c.b16 %v1556, %v1556
    %v1559 = vpack.c.b16 %v1557, %v1557
    %v1582 = vunpack.c.l.b16 %v1534
    %v1583 = vunpack.c.h.b16 %v1534
    %v1584 = vunpack.c.l.b16 %v1535
    %v1585 = vunpack.c.h.b16 %v1535
    %v1586 = vunpack.c.l.b16 %v1536
    %v1587 = vunpack.c.h.b16 %v1536
    %v1588 = vunpack.c.l.b16 %v1537
    %v1589 = vunpack.c.h.b16 %v1537
    %v1590 = vunpack.c.l.b16 %v1538
    %v1591 = vunpack.c.h.b16 %v1538
    %v1592 = vunpack.c.l.b16 %v1539
    %v1593 = vunpack.c.h.b16 %v1539
    %v1594 = vunpack.c.l.b16 %v1540
    %v1595 = vunpack.c.h.b16 %v1540
    %v1596 = vunpack.c.l.b16 %v1541
    %v1597 = vunpack.c.h.b16 %v1541
    %v1598 = vunpack.c.l.b16 %v1542
    %v1599 = vunpack.c.h.b16 %v1542
    %v1600 = vunpack.c.l.b16 %v1543
    %v1601 = vunpack.c.h.b16 %v1543
    %v1602 = vunpack.c.l.b16 %v1544
    %v1603 = vunpack.c.h.b16 %v1544
    %v1604 = vunpack.c.l.b16 %v1545
    %v1605 = vunpack.c.h.b16 %v1545
    %v1606 = vunpack.c.l.b16 %v1546
    %v1607 = vunpack.c.h.b16 %v1546
    %v1608 = vunpack.c.l.b16 %v1547
    %v1609 = vunpack.c.h.b16 %v1547
    %v1610 = vunpack.c.l.b16 %v1548
    %v1611 = vunpack.c.h.b16 %v1548
    %v1612 = vunpack.c.l.b16 %v1549
    %v1613 = vunpack.c.h.b16 %v1549
    %v1614 = vunpack.c.l.b16 %v1550
    %v1615 = vunpack.c.h.b16 %v1550
    %v1616 = vunpack.c.l.b16 %v1551
    %v1617 = vunpack.c.h.b16 %v1551
    %v1618 = vunpack.c.l.b16 %v1552
    %v1619 = vunpack.c.h.b16 %v1552
    %v1620 = vunpack.c.l.b16 %v1553
    %v1621 = vunpack.c.h.b16 %v1553
    %v1622 = vunpack.c.l.b16 %v1554
    %v1623 = vunpack.c.h.b16 %v1554
    %v1624 = vpack.c.b16 %v1584, %v1582
    %v1625 = vpack.c.b16 %v1585, %v1583
    %v1626 = vpack.c.b16 %v1588, %v1586
    %v1627 = vpack.c.b16 %v1589, %v1587
    %v1628 = vpack.c.b16 %v1592, %v1590
    %v1629 = vpack.c.b16 %v1593, %v1591
    %v1630 = vpack.c.b16 %v1596, %v1594
    %v1631 = vpack.c.b16 %v1597, %v1595
    %v1632 = vpack.c.b16 %v1600, %v1598
    %v1633 = vpack.c.b16 %v1601, %v1599
    %v1634 = vpack.c.b16 %v1604, %v1602
    %v1635 = vpack.c.b16 %v1605, %v1603
    %v1636 = vpack.c.b16 %v1608, %v1606
    %v1637 = vpack.c.b16 %v1609, %v1607
    %v1638 = vpack.c.b16 %v1612, %v1610
    %v1639 = vpack.c.b16 %v1613, %v1611
    %v1640 = vpack.c.b16 %v1616, %v1614
    %v1641 = vpack.c.b16 %v1617, %v1615
    %v1642 = vpack.c.b16 %v1620, %v1618
    %v1643 = vpack.c.b16 %v1621, %v1619
    %v1644 = vpack.c.b16 %v1622, %v1622
    %v1645 = vpack.c.b16 %v1623, %v1623
    %v1667 = vsel %vm180, %v1559, 0
    %v1670 = vsel %vm184, %v1644, 0
    %v1673 = vsel %vm184, %v1645, 0
    %1675 = vmatprep.subr.bf16.mxu0 %v1639
    %1676 = vmatpush1.bf16.msra.mxu0 %v1638
    %1677 = vmatprep.subr.bf16.mxu0 %v1637
    %1678 = vmatpush1.bf16.msra.mxu0 %v1636
    %1679 = vmatprep.subr.bf16.mxu0 %v1635
    %1680 = vmatpush1.bf16.msra.mxu0 %v1634
    %1681 = vmatprep.subr.bf16.mxu0 %v1633
    %1682 = vmatpush1.bf16.msra.mxu0 %v1632
    %1683 = vmatprep.subr.bf16.mxu0 %v1631
    %1684 = vmatpush1.bf16.msra.mxu0 %v1630
    %1685 = vmatprep.subr.bf16.mxu0 %v1629
    %1686 = vmatpush1.bf16.msra.mxu0 %v1628
    %1687 = vmatprep.subr.bf16.mxu0 %v1627
    %1688 = vmatpush1.bf16.msra.mxu0 %v1626
    %1689 = vmatprep.subr.bf16.mxu0 %v1625
    %1690 = vmatpush1.bf16.msra.mxu0 %v1624
    %1691 = vmatprep.subr.bf16.mxu0 0
    %1692 = vmatpush2.bf16.msra.mxu0 0
    %1693 = vmatprep.subr.bf16.mxu0 0
    %1694 = vmatpush2.bf16.msra.mxu0 0
    %1695 = vmatprep.subr.bf16.mxu0 0
    %1696 = vmatpush2.bf16.msra.mxu0 0
    %1697 = vmatprep.subr.bf16.mxu0 0
    %1698 = vmatpush2.bf16.msra.mxu0 0
    %1699 = vmatprep.subr.bf16.mxu0 0
    %1700 = vmatpush2.bf16.msra.mxu0 0
    %1701 = vmatprep.subr.bf16.mxu0 %v1673
    %1702 = vmatpush2.bf16.msra.mxu0 %v1670
    %1703 = vmatprep.subr.bf16.mxu0 %v1643
    %1704 = vmatpush2.bf16.msra.mxu0 %v1642
    %1705 = vmatprep.subr.bf16.mxu0 %v1641
    %1706 = vmatpush2.bf16.msra.mxu0 %v1640
    %1707 = vmatprep.mubr.bf16.mxu0 %v1667
    %1708 = vmatmul.mubr.bf16.gmra.mxu0 %v1558
    %v1709 = vpop.f32.mrf.mxu0
    %v1710 = vadd.f32 0.0, %v1709
    %v1711 = vpop.f32.mrf.mxu0
    %v1712 = vadd.f32 0.0, %v1711
    %v1713 = vpop.f32.mrf.mxu0
    %v1714 = vpop.f32.mrf.mxu0
    %1715 = vdwg.mxu0
    %v1716 = vmax.f32 %v1710, %v1712
    %v1717 = vld [vmem:[%s1 + $0x8] sm:$0xff]
    %v1718 = vld [vmem:[%s1 + $0x18] sm:$0xff]
    %v1719 = vld [vmem:[%s1 + $0x28] sm:$0xff]
    %v1720 = vld [vmem:[%s1 + $0x38] sm:$0xff]
    %v1721 = vld [vmem:[%s1 + $0x48] sm:$0xff]
    %v1722 = vld [vmem:[%s1 + $0x58] sm:$0xff]
    %v1723 = vld [vmem:[%s1 + $0x68] sm:$0xff]
    %v1724 = vld [vmem:[%s1 + $0x78] sm:$0xff]
    %v1725 = vld [vmem:[%s1 + $0x88] sm:$0xff]
    %v1726 = vld [vmem:[%s1 + $0x98] sm:$0xff]
    %v1727 = vld [vmem:[%s1 + $0xa8] sm:$0xff]
    %v1728 = vld [vmem:[%s1 + $0xb8] sm:$0xff]
    %v1729 = vld [vmem:[%s1 + $0xc8] sm:$0xff]
    %v1730 = vld [vmem:[%s1 + $0xd8] sm:$0xff]
    %v1731 = vld [vmem:[%s1 + $0xe8] sm:$0xff]
    %v1732 = vld [vmem:[%s1 + $0xf8] sm:$0xff]
    %v1733 = vld [vmem:[%s1 + $0x108] sm:$0xff]
    %v1734 = vld [vmem:[%s1 + $0x118] sm:$0xff]
    %v1735 = vld [vmem:[%s1 + $0x128] sm:$0xff]
    %v1736 = vld [vmem:[%s1 + $0x138] sm:$0xff]
    %v1737 = vld [vmem:[%s1 + $0x148] sm:$0xff]
    %v1759 = vunpack.c.l.b16 %v1717
    %v1760 = vunpack.c.h.b16 %v1717
    %v1761 = vunpack.c.l.b16 %v1718
    %v1762 = vunpack.c.h.b16 %v1718
    %v1763 = vunpack.c.l.b16 %v1719
    %v1764 = vunpack.c.h.b16 %v1719
    %v1765 = vunpack.c.l.b16 %v1720
    %v1766 = vunpack.c.h.b16 %v1720
    %v1767 = vunpack.c.l.b16 %v1721
    %v1768 = vunpack.c.h.b16 %v1721
    %v1769 = vunpack.c.l.b16 %v1722
    %v1770 = vunpack.c.h.b16 %v1722
    %v1771 = vunpack.c.l.b16 %v1723
    %v1772 = vunpack.c.h.b16 %v1723
    %v1773 = vunpack.c.l.b16 %v1724
    %v1774 = vunpack.c.h.b16 %v1724
    %v1775 = vunpack.c.l.b16 %v1725
    %v1776 = vunpack.c.h.b16 %v1725
    %v1777 = vunpack.c.l.b16 %v1726
    %v1778 = vunpack.c.h.b16 %v1726
    %v1779 = vunpack.c.l.b16 %v1727
    %v1780 = vunpack.c.h.b16 %v1727
    %v1781 = vunpack.c.l.b16 %v1728
    %v1782 = vunpack.c.h.b16 %v1728
    %v1783 = vunpack.c.l.b16 %v1729
    %v1784 = vunpack.c.h.b16 %v1729
    %v1785 = vunpack.c.l.b16 %v1730
    %v1786 = vunpack.c.h.b16 %v1730
    %v1787 = vunpack.c.l.b16 %v1731
    %v1788 = vunpack.c.h.b16 %v1731
    %v1789 = vunpack.c.l.b16 %v1732
    %v1790 = vunpack.c.h.b16 %v1732
    %v1791 = vunpack.c.l.b16 %v1733
    %v1792 = vunpack.c.h.b16 %v1733
    %v1793 = vunpack.c.l.b16 %v1734
    %v1794 = vunpack.c.h.b16 %v1734
    %v1795 = vunpack.c.l.b16 %v1735
    %v1796 = vunpack.c.h.b16 %v1735
    %v1797 = vunpack.c.l.b16 %v1736
    %v1798 = vunpack.c.h.b16 %v1736
    %v1799 = vunpack.c.l.b16 %v1737
    %v1800 = vunpack.c.h.b16 %v1737
    %v1801 = vpack.c.b16 %v1761, %v1759
    %v1802 = vpack.c.b16 %v1762, %v1760
    %v1803 = vpack.c.b16 %v1765, %v1763
    %v1804 = vpack.c.b16 %v1766, %v1764
    %v1805 = vpack.c.b16 %v1769, %v1767
    %v1806 = vpack.c.b16 %v1770, %v1768
    %v1807 = vpack.c.b16 %v1773, %v1771
    %v1808 = vpack.c.b16 %v1774, %v1772
    %v1809 = vpack.c.b16 %v1777, %v1775
    %v1810 = vpack.c.b16 %v1778, %v1776
    %v1811 = vpack.c.b16 %v1781, %v1779
    %v1812 = vpack.c.b16 %v1782, %v1780
    %v1813 = vpack.c.b16 %v1785, %v1783
    %v1814 = vpack.c.b16 %v1786, %v1784
    %v1815 = vpack.c.b16 %v1789, %v1787
    %v1816 = vpack.c.b16 %v1790, %v1788
    %v1817 = vpack.c.b16 %v1793, %v1791
    %v1818 = vpack.c.b16 %v1794, %v1792
    %v1819 = vpack.c.b16 %v1797, %v1795
    %v1820 = vpack.c.b16 %v1798, %v1796
    %v1821 = vpack.c.b16 %v1799, %v1799
    %v1822 = vpack.c.b16 %v1800, %v1800
    %v1844 = vsel %vm184, %v1821, 0
    %v1847 = vsel %vm184, %v1822, 0
    %1849 = vmatprep.subr.bf16.mxu0 %v1816
    %1850 = vmatpush1.bf16.msra.mxu0 %v1815
    %1851 = vmatprep.subr.bf16.mxu0 %v1814
    %1852 = vmatpush1.bf16.msra.mxu0 %v1813
    %1853 = vmatprep.subr.bf16.mxu0 %v1812
    %1854 = vmatpush1.bf16.msra.mxu0 %v1811
    %1855 = vmatprep.subr.bf16.mxu0 %v1810
    %1856 = vmatpush1.bf16.msra.mxu0 %v1809
    %1857 = vmatprep.subr.bf16.mxu0 %v1808
    %1858 = vmatpush1.bf16.msra.mxu0 %v1807
    %1859 = vmatprep.subr.bf16.mxu0 %v1806
    %1860 = vmatpush1.bf16.msra.mxu0 %v1805
    %1861 = vmatprep.subr.bf16.mxu0 %v1804
    %1862 = vmatpush1.bf16.msra.mxu0 %v1803
    %1863 = vmatprep.subr.bf16.mxu0 %v1802
    %1864 = vmatpush1.bf16.msra.mxu0 %v1801
    %1865 = vmatprep.subr.bf16.mxu0 0
    %1866 = vmatpush2.bf16.msra.mxu0 0
    %1867 = vmatprep.subr.bf16.mxu0 0
    %1868 = vmatpush2.bf16.msra.mxu0 0
    %1869 = vmatprep.subr.bf16.mxu0 0
    %1870 = vmatpush2.bf16.msra.mxu0 0
    %1871 = vmatprep.subr.bf16.mxu0 0
    %1872 = vmatpush2.bf16.msra.mxu0 0
    %1873 = vmatprep.subr.bf16.mxu0 0
    %1874 = vmatpush2.bf16.msra.mxu0 0
    %1875 = vmatprep.subr.bf16.mxu0 %v1847
    %1876 = vmatpush2.bf16.msra.mxu0 %v1844
    %1877 = vmatprep.subr.bf16.mxu0 %v1820
    %1878 = vmatpush2.bf16.msra.mxu0 %v1819
    %1879 = vmatprep.subr.bf16.mxu0 %v1818
    %1880 = vmatpush2.bf16.msra.mxu0 %v1817
    %1881 = vmatprep.mubr.bf16.mxu0 %v1667
    %1882 = vmatmul.mubr.bf16.gmra.mxu0 %v1558
    %v1883 = vpop.f32.mrf.mxu0
    %v1884 = vadd.f32 0.0, %v1883
    %v1885 = vpop.f32.mrf.mxu0
    %v1886 = vadd.f32 0.0, %v1885
    %v1887 = vpop.f32.mrf.mxu0
    %v1888 = vpop.f32.mrf.mxu0
    %1889 = vdwg.mxu0
    %v1890 = vmax.f32 %v1884, %v1886
    %v1891 = vmax.f32 %v1716, %v1890
    %v1892 = vld [vmem:[%s2] sm:$0x1]
    %v1894 = vlaneseq
    %v1895 = vshrl.u32 %v1894, 7
    %v1896 = vsub.s32 0, %v1895
    %v1897 = vrot.slane %v1892, %v1896
    %v1899 = vadd.f32 %v1891, %v1897
    %v1900 = vmax.f32 %v1899, 0.0
    %v1901 = vpack.c.bf16 %v1900, %v1900
    %1902 = vst [vmem:[#allocation2 + $0x10] sm:$0xf] %v1901
    %s1903 = scalar_lea.vmem %s0, 40
    %v1904 = vld [vmem:[%s1903] sm:$0xff]
    %v1905 = vld [vmem:[%s1] sm:$0xff]
    %v1906 = vld [vmem:[%s1 + $0x10] sm:$0xff]
    %v1907 = vld [vmem:[%s1 + $0x20] sm:$0xff]
    %v1908 = vld [vmem:[%s1 + $0x30] sm:$0xff]
    %v1909 = vld [vmem:[%s1 + $0x40] sm:$0xff]
    %v1910 = vld [vmem:[%s1 + $0x50] sm:$0xff]
    %v1911 = vld [vmem:[%s1 + $0x60] sm:$0xff]
    %v1912 = vld [vmem:[%s1 + $0x70] sm:$0xff]
    %v1913 = vld [vmem:[%s1 + $0x80] sm:$0xff]
    %v1914 = vld [vmem:[%s1 + $0x90] sm:$0xff]
    %v1915 = vld [vmem:[%s1 + $0xa0] sm:$0xff]
    %v1916 = vld [vmem:[%s1 + $0xb0] sm:$0xff]
    %v1917 = vld [vmem:[%s1 + $0xc0] sm:$0xff]
    %v1918 = vld [vmem:[%s1 + $0xd0] sm:$0xff]
    %v1919 = vld [vmem:[%s1 + $0xe0] sm:$0xff]
    %v1920 = vld [vmem:[%s1 + $0xf0] sm:$0xff]
    %v1921 = vld [vmem:[%s1 + $0x100] sm:$0xff]
    %v1922 = vld [vmem:[%s1 + $0x110] sm:$0xff]
    %v1923 = vld [vmem:[%s1 + $0x120] sm:$0xff]
    %v1924 = vld [vmem:[%s1 + $0x130] sm:$0xff]
    %v1925 = vld [vmem:[%s1 + $0x140] sm:$0xff]
    %v1927 = vunpack.c.l.b16 %v1904
    %v1928 = vunpack.c.h.b16 %v1904
    %v1929 = vpack.c.b16 %v1927, %v1927
    %v1930 = vpack.c.b16 %v1928, %v1928
    %v1953 = vunpack.c.l.b16 %v1905
    %v1954 = vunpack.c.h.b16 %v1905
    %v1955 = vunpack.c.l.b16 %v1906
    %v1956 = vunpack.c.h.b16 %v1906
    %v1957 = vunpack.c.l.b16 %v1907
    %v1958 = vunpack.c.h.b16 %v1907
    %v1959 = vunpack.c.l.b16 %v1908
    %v1960 = vunpack.c.h.b16 %v1908
    %v1961 = vunpack.c.l.b16 %v1909
    %v1962 = vunpack.c.h.b16 %v1909
    %v1963 = vunpack.c.l.b16 %v1910
    %v1964 = vunpack.c.h.b16 %v1910
    %v1965 = vunpack.c.l.b16 %v1911
    %v1966 = vunpack.c.h.b16 %v1911
    %v1967 = vunpack.c.l.b16 %v1912
    %v1968 = vunpack.c.h.b16 %v1912
    %v1969 = vunpack.c.l.b16 %v1913
    %v1970 = vunpack.c.h.b16 %v1913
    %v1971 = vunpack.c.l.b16 %v1914
    %v1972 = vunpack.c.h.b16 %v1914
    %v1973 = vunpack.c.l.b16 %v1915
    %v1974 = vunpack.c.h.b16 %v1915
    %v1975 = vunpack.c.l.b16 %v1916
    %v1976 = vunpack.c.h.b16 %v1916
    %v1977 = vunpack.c.l.b16 %v1917
    %v1978 = vunpack.c.h.b16 %v1917
    %v1979 = vunpack.c.l.b16 %v1918
    %v1980 = vunpack.c.h.b16 %v1918
    %v1981 = vunpack.c.l.b16 %v1919
    %v1982 = vunpack.c.h.b16 %v1919
    %v1983 = vunpack.c.l.b16 %v1920
    %v1984 = vunpack.c.h.b16 %v1920
    %v1985 = vunpack.c.l.b16 %v1921
    %v1986 = vunpack.c.h.b16 %v1921
    %v1987 = vunpack.c.l.b16 %v1922
    %v1988 = vunpack.c.h.b16 %v1922
    %v1989 = vunpack.c.l.b16 %v1923
    %v1990 = vunpack.c.h.b16 %v1923
    %v1991 = vunpack.c.l.b16 %v1924
    %v1992 = vunpack.c.h.b16 %v1924
    %v1993 = vunpack.c.l.b16 %v1925
    %v1994 = vunpack.c.h.b16 %v1925
    %v1995 = vpack.c.b16 %v1955, %v1953
    %v1996 = vpack.c.b16 %v1956, %v1954
    %v1997 = vpack.c.b16 %v1959, %v1957
    %v1998 = vpack.c.b16 %v1960, %v1958
    %v1999 = vpack.c.b16 %v1963, %v1961
    %v2000 = vpack.c.b16 %v1964, %v1962
    %v2001 = vpack.c.b16 %v1967, %v1965
    %v2002 = vpack.c.b16 %v1968, %v1966
    %v2003 = vpack.c.b16 %v1971, %v1969
    %v2004 = vpack.c.b16 %v1972, %v1970
    %v2005 = vpack.c.b16 %v1975, %v1973
    %v2006 = vpack.c.b16 %v1976, %v1974
    %v2007 = vpack.c.b16 %v1979, %v1977
    %v2008 = vpack.c.b16 %v1980, %v1978
    %v2009 = vpack.c.b16 %v1983, %v1981
    %v2010 = vpack.c.b16 %v1984, %v1982
    %v2011 = vpack.c.b16 %v1987, %v1985
    %v2012 = vpack.c.b16 %v1988, %v1986
    %v2013 = vpack.c.b16 %v1991, %v1989
    %v2014 = vpack.c.b16 %v1992, %v1990
    %v2015 = vpack.c.b16 %v1993, %v1993
    %v2016 = vpack.c.b16 %v1994, %v1994
    %v2038 = vsel %vm180, %v1930, 0
    %v2041 = vsel %vm184, %v2015, 0
    %v2044 = vsel %vm184, %v2016, 0
    %2046 = vmatprep.subr.bf16.mxu0 %v2010
    %2047 = vmatpush1.bf16.msra.mxu0 %v2009
    %2048 = vmatprep.subr.bf16.mxu0 %v2008
    %2049 = vmatpush1.bf16.msra.mxu0 %v2007
    %2050 = vmatprep.subr.bf16.mxu0 %v2006
    %2051 = vmatpush1.bf16.msra.mxu0 %v2005
    %2052 = vmatprep.subr.bf16.mxu0 %v2004
    %2053 = vmatpush1.bf16.msra.mxu0 %v2003
    %2054 = vmatprep.subr.bf16.mxu0 %v2002
    %2055 = vmatpush1.bf16.msra.mxu0 %v2001
    %2056 = vmatprep.subr.bf16.mxu0 %v2000
    %2057 = vmatpush1.bf16.msra.mxu0 %v1999
    %2058 = vmatprep.subr.bf16.mxu0 %v1998
    %2059 = vmatpush1.bf16.msra.mxu0 %v1997
    %2060 = vmatprep.subr.bf16.mxu0 %v1996
    %2061 = vmatpush1.bf16.msra.mxu0 %v1995
    %2062 = vmatprep.subr.bf16.mxu0 0
    %2063 = vmatpush2.bf16.msra.mxu0 0
    %2064 = vmatprep.subr.bf16.mxu0 0
    %2065 = vmatpush2.bf16.msra.mxu0 0
    %2066 = vmatprep.subr.bf16.mxu0 0
    %2067 = vmatpush2.bf16.msra.mxu0 0
    %2068 = vmatprep.subr.bf16.mxu0 0
    %2069 = vmatpush2.bf16.msra.mxu0 0
    %2070 = vmatprep.subr.bf16.mxu0 0
    %2071 = vmatpush2.bf16.msra.mxu0 0
    %2072 = vmatprep.subr.bf16.mxu0 %v2044
    %2073 = vmatpush2.bf16.msra.mxu0 %v2041
    %2074 = vmatprep.subr.bf16.mxu0 %v2014
    %2075 = vmatpush2.bf16.msra.mxu0 %v2013
    %2076 = vmatprep.subr.bf16.mxu0 %v2012
    %2077 = vmatpush2.bf16.msra.mxu0 %v2011
    %2078 = vmatprep.mubr.bf16.mxu0 %v2038
    %2079 = vmatmul.mubr.bf16.gmra.mxu0 %v1929
    %v2080 = vpop.f32.mrf.mxu0
    %v2081 = vadd.f32 0.0, %v2080
    %v2082 = vpop.f32.mrf.mxu0
    %v2083 = vadd.f32 0.0, %v2082
    %v2084 = vpop.f32.mrf.mxu0
    %v2085 = vpop.f32.mrf.mxu0
    %2086 = vdwg.mxu0
    %v2087 = vmax.f32 %v2081, %v2083
    %v2088 = vld [vmem:[%s1 + $0x8] sm:$0xff]
    %v2089 = vld [vmem:[%s1 + $0x18] sm:$0xff]
    %v2090 = vld [vmem:[%s1 + $0x28] sm:$0xff]
    %v2091 = vld [vmem:[%s1 + $0x38] sm:$0xff]
    %v2092 = vld [vmem:[%s1 + $0x48] sm:$0xff]
    %v2093 = vld [vmem:[%s1 + $0x58] sm:$0xff]
    %v2094 = vld [vmem:[%s1 + $0x68] sm:$0xff]
    %v2095 = vld [vmem:[%s1 + $0x78] sm:$0xff]
    %v2096 = vld [vmem:[%s1 + $0x88] sm:$0xff]
    %v2097 = vld [vmem:[%s1 + $0x98] sm:$0xff]
    %v2098 = vld [vmem:[%s1 + $0xa8] sm:$0xff]
    %v2099 = vld [vmem:[%s1 + $0xb8] sm:$0xff]
    %v2100 = vld [vmem:[%s1 + $0xc8] sm:$0xff]
    %v2101 = vld [vmem:[%s1 + $0xd8] sm:$0xff]
    %v2102 = vld [vmem:[%s1 + $0xe8] sm:$0xff]
    %v2103 = vld [vmem:[%s1 + $0xf8] sm:$0xff]
    %v2104 = vld [vmem:[%s1 + $0x108] sm:$0xff]
    %v2105 = vld [vmem:[%s1 + $0x118] sm:$0xff]
    %v2106 = vld [vmem:[%s1 + $0x128] sm:$0xff]
    %v2107 = vld [vmem:[%s1 + $0x138] sm:$0xff]
    %v2108 = vld [vmem:[%s1 + $0x148] sm:$0xff]
    %v2130 = vunpack.c.l.b16 %v2088
    %v2131 = vunpack.c.h.b16 %v2088
    %v2132 = vunpack.c.l.b16 %v2089
    %v2133 = vunpack.c.h.b16 %v2089
    %v2134 = vunpack.c.l.b16 %v2090
    %v2135 = vunpack.c.h.b16 %v2090
    %v2136 = vunpack.c.l.b16 %v2091
    %v2137 = vunpack.c.h.b16 %v2091
    %v2138 = vunpack.c.l.b16 %v2092
    %v2139 = vunpack.c.h.b16 %v2092
    %v2140 = vunpack.c.l.b16 %v2093
    %v2141 = vunpack.c.h.b16 %v2093
    %v2142 = vunpack.c.l.b16 %v2094
    %v2143 = vunpack.c.h.b16 %v2094
    %v2144 = vunpack.c.l.b16 %v2095
    %v2145 = vunpack.c.h.b16 %v2095
    %v2146 = vunpack.c.l.b16 %v2096
    %v2147 = vunpack.c.h.b16 %v2096
    %v2148 = vunpack.c.l.b16 %v2097
    %v2149 = vunpack.c.h.b16 %v2097
    %v2150 = vunpack.c.l.b16 %v2098
    %v2151 = vunpack.c.h.b16 %v2098
    %v2152 = vunpack.c.l.b16 %v2099
    %v2153 = vunpack.c.h.b16 %v2099
    %v2154 = vunpack.c.l.b16 %v2100
    %v2155 = vunpack.c.h.b16 %v2100
    %v2156 = vunpack.c.l.b16 %v2101
    %v2157 = vunpack.c.h.b16 %v2101
    %v2158 = vunpack.c.l.b16 %v2102
    %v2159 = vunpack.c.h.b16 %v2102
    %v2160 = vunpack.c.l.b16 %v2103
    %v2161 = vunpack.c.h.b16 %v2103
    %v2162 = vunpack.c.l.b16 %v2104
    %v2163 = vunpack.c.h.b16 %v2104
    %v2164 = vunpack.c.l.b16 %v2105
    %v2165 = vunpack.c.h.b16 %v2105
    %v2166 = vunpack.c.l.b16 %v2106
    %v2167 = vunpack.c.h.b16 %v2106
    %v2168 = vunpack.c.l.b16 %v2107
    %v2169 = vunpack.c.h.b16 %v2107
    %v2170 = vunpack.c.l.b16 %v2108
    %v2171 = vunpack.c.h.b16 %v2108
    %v2172 = vpack.c.b16 %v2132, %v2130
    %v2173 = vpack.c.b16 %v2133, %v2131
    %v2174 = vpack.c.b16 %v2136, %v2134
    %v2175 = vpack.c.b16 %v2137, %v2135
    %v2176 = vpack.c.b16 %v2140, %v2138
    %v2177 = vpack.c.b16 %v2141, %v2139
    %v2178 = vpack.c.b16 %v2144, %v2142
    %v2179 = vpack.c.b16 %v2145, %v2143
    %v2180 = vpack.c.b16 %v2148, %v2146
    %v2181 = vpack.c.b16 %v2149, %v2147
    %v2182 = vpack.c.b16 %v2152, %v2150
    %v2183 = vpack.c.b16 %v2153, %v2151
    %v2184 = vpack.c.b16 %v2156, %v2154
    %v2185 = vpack.c.b16 %v2157, %v2155
    %v2186 = vpack.c.b16 %v2160, %v2158
    %v2187 = vpack.c.b16 %v2161, %v2159
    %v2188 = vpack.c.b16 %v2164, %v2162
    %v2189 = vpack.c.b16 %v2165, %v2163
    %v2190 = vpack.c.b16 %v2168, %v2166
    %v2191 = vpack.c.b16 %v2169, %v2167
    %v2192 = vpack.c.b16 %v2170, %v2170
    %v2193 = vpack.c.b16 %v2171, %v2171
    %v2215 = vsel %vm184, %v2192, 0
    %v2218 = vsel %vm184, %v2193, 0
    %2220 = vmatprep.subr.bf16.mxu0 %v2187
    %2221 = vmatpush1.bf16.msra.mxu0 %v2186
    %2222 = vmatprep.subr.bf16.mxu0 %v2185
    %2223 = vmatpush1.bf16.msra.mxu0 %v2184
    %2224 = vmatprep.subr.bf16.mxu0 %v2183
    %2225 = vmatpush1.bf16.msra.mxu0 %v2182
    %2226 = vmatprep.subr.bf16.mxu0 %v2181
    %2227 = vmatpush1.bf16.msra.mxu0 %v2180
    %2228 = vmatprep.subr.bf16.mxu0 %v2179
    %2229 = vmatpush1.bf16.msra.mxu0 %v2178
    %2230 = vmatprep.subr.bf16.mxu0 %v2177
    %2231 = vmatpush1.bf16.msra.mxu0 %v2176
    %2232 = vmatprep.subr.bf16.mxu0 %v2175
    %2233 = vmatpush1.bf16.msra.mxu0 %v2174
    %2234 = vmatprep.subr.bf16.mxu0 %v2173
    %2235 = vmatpush1.bf16.msra.mxu0 %v2172
    %2236 = vmatprep.subr.bf16.mxu0 0
    %2237 = vmatpush2.bf16.msra.mxu0 0
    %2238 = vmatprep.subr.bf16.mxu0 0
    %2239 = vmatpush2.bf16.msra.mxu0 0
    %2240 = vmatprep.subr.bf16.mxu0 0
    %2241 = vmatpush2.bf16.msra.mxu0 0
    %2242 = vmatprep.subr.bf16.mxu0 0
    %2243 = vmatpush2.bf16.msra.mxu0 0
    %2244 = vmatprep.subr.bf16.mxu0 0
    %2245 = vmatpush2.bf16.msra.mxu0 0
    %2246 = vmatprep.subr.bf16.mxu0 %v2218
    %2247 = vmatpush2.bf16.msra.mxu0 %v2215
    %2248 = vmatprep.subr.bf16.mxu0 %v2191
    %2249 = vmatpush2.bf16.msra.mxu0 %v2190
    %2250 = vmatprep.subr.bf16.mxu0 %v2189
    %2251 = vmatpush2.bf16.msra.mxu0 %v2188
    %2252 = vmatprep.mubr.bf16.mxu0 %v2038
    %2253 = vmatmul.mubr.bf16.gmra.mxu0 %v1929
    %v2254 = vpop.f32.mrf.mxu0
    %v2255 = vadd.f32 0.0, %v2254
    %v2256 = vpop.f32.mrf.mxu0
    %v2257 = vadd.f32 0.0, %v2256
    %v2258 = vpop.f32.mrf.mxu0
    %v2259 = vpop.f32.mrf.mxu0
    %2260 = vdwg.mxu0
    %v2261 = vmax.f32 %v2255, %v2257
    %v2262 = vmax.f32 %v2087, %v2261
    %v2263 = vld [vmem:[%s2] sm:$0x1]
    %v2265 = vlaneseq
    %v2266 = vshrl.u32 %v2265, 7
    %v2267 = vsub.s32 0, %v2266
    %v2268 = vrot.slane %v2263, %v2267
    %v2270 = vadd.f32 %v2262, %v2268
    %v2271 = vmax.f32 %v2270, 0.0
    %v2272 = vpack.c.bf16 %v2271, %v2271
    %2273 = vst [vmem:[#allocation2 + $0x14] sm:$0xf] %v2272
    %s2274 = scalar_lea.vmem %s0, 48
    %v2275 = vld [vmem:[%s2274] sm:$0xff]
    %v2276 = vld [vmem:[%s1] sm:$0xff]
    %v2277 = vld [vmem:[%s1 + $0x10] sm:$0xff]
    %v2278 = vld [vmem:[%s1 + $0x20] sm:$0xff]
    %v2279 = vld [vmem:[%s1 + $0x30] sm:$0xff]
    %v2280 = vld [vmem:[%s1 + $0x40] sm:$0xff]
    %v2281 = vld [vmem:[%s1 + $0x50] sm:$0xff]
    %v2282 = vld [vmem:[%s1 + $0x60] sm:$0xff]
    %v2283 = vld [vmem:[%s1 + $0x70] sm:$0xff]
    %v2284 = vld [vmem:[%s1 + $0x80] sm:$0xff]
    %v2285 = vld [vmem:[%s1 + $0x90] sm:$0xff]
    %v2286 = vld [vmem:[%s1 + $0xa0] sm:$0xff]
    %v2287 = vld [vmem:[%s1 + $0xb0] sm:$0xff]
    %v2288 = vld [vmem:[%s1 + $0xc0] sm:$0xff]
    %v2289 = vld [vmem:[%s1 + $0xd0] sm:$0xff]
    %v2290 = vld [vmem:[%s1 + $0xe0] sm:$0xff]
    %v2291 = vld [vmem:[%s1 + $0xf0] sm:$0xff]
    %v2292 = vld [vmem:[%s1 + $0x100] sm:$0xff]
    %v2293 = vld [vmem:[%s1 + $0x110] sm:$0xff]
    %v2294 = vld [vmem:[%s1 + $0x120] sm:$0xff]
    %v2295 = vld [vmem:[%s1 + $0x130] sm:$0xff]
    %v2296 = vld [vmem:[%s1 + $0x140] sm:$0xff]
    %v2298 = vunpack.c.l.b16 %v2275
    %v2299 = vunpack.c.h.b16 %v2275
    %v2300 = vpack.c.b16 %v2298, %v2298
    %v2301 = vpack.c.b16 %v2299, %v2299
    %v2324 = vunpack.c.l.b16 %v2276
    %v2325 = vunpack.c.h.b16 %v2276
    %v2326 = vunpack.c.l.b16 %v2277
    %v2327 = vunpack.c.h.b16 %v2277
    %v2328 = vunpack.c.l.b16 %v2278
    %v2329 = vunpack.c.h.b16 %v2278
    %v2330 = vunpack.c.l.b16 %v2279
    %v2331 = vunpack.c.h.b16 %v2279
    %v2332 = vunpack.c.l.b16 %v2280
    %v2333 = vunpack.c.h.b16 %v2280
    %v2334 = vunpack.c.l.b16 %v2281
    %v2335 = vunpack.c.h.b16 %v2281
    %v2336 = vunpack.c.l.b16 %v2282
    %v2337 = vunpack.c.h.b16 %v2282
    %v2338 = vunpack.c.l.b16 %v2283
    %v2339 = vunpack.c.h.b16 %v2283
    %v2340 = vunpack.c.l.b16 %v2284
    %v2341 = vunpack.c.h.b16 %v2284
    %v2342 = vunpack.c.l.b16 %v2285
    %v2343 = vunpack.c.h.b16 %v2285
    %v2344 = vunpack.c.l.b16 %v2286
    %v2345 = vunpack.c.h.b16 %v2286
    %v2346 = vunpack.c.l.b16 %v2287
    %v2347 = vunpack.c.h.b16 %v2287
    %v2348 = vunpack.c.l.b16 %v2288
    %v2349 = vunpack.c.h.b16 %v2288
    %v2350 = vunpack.c.l.b16 %v2289
    %v2351 = vunpack.c.h.b16 %v2289
    %v2352 = vunpack.c.l.b16 %v2290
    %v2353 = vunpack.c.h.b16 %v2290
    %v2354 = vunpack.c.l.b16 %v2291
    %v2355 = vunpack.c.h.b16 %v2291
    %v2356 = vunpack.c.l.b16 %v2292
    %v2357 = vunpack.c.h.b16 %v2292
    %v2358 = vunpack.c.l.b16 %v2293
    %v2359 = vunpack.c.h.b16 %v2293
    %v2360 = vunpack.c.l.b16 %v2294
    %v2361 = vunpack.c.h.b16 %v2294
    %v2362 = vunpack.c.l.b16 %v2295
    %v2363 = vunpack.c.h.b16 %v2295
    %v2364 = vunpack.c.l.b16 %v2296
    %v2365 = vunpack.c.h.b16 %v2296
    %v2366 = vpack.c.b16 %v2326, %v2324
    %v2367 = vpack.c.b16 %v2327, %v2325
    %v2368 = vpack.c.b16 %v2330, %v2328
    %v2369 = vpack.c.b16 %v2331, %v2329
    %v2370 = vpack.c.b16 %v2334, %v2332
    %v2371 = vpack.c.b16 %v2335, %v2333
    %v2372 = vpack.c.b16 %v2338, %v2336
    %v2373 = vpack.c.b16 %v2339, %v2337
    %v2374 = vpack.c.b16 %v2342, %v2340
    %v2375 = vpack.c.b16 %v2343, %v2341
    %v2376 = vpack.c.b16 %v2346, %v2344
    %v2377 = vpack.c.b16 %v2347, %v2345
    %v2378 = vpack.c.b16 %v2350, %v2348
    %v2379 = vpack.c.b16 %v2351, %v2349
    %v2380 = vpack.c.b16 %v2354, %v2352
    %v2381 = vpack.c.b16 %v2355, %v2353
    %v2382 = vpack.c.b16 %v2358, %v2356
    %v2383 = vpack.c.b16 %v2359, %v2357
    %v2384 = vpack.c.b16 %v2362, %v2360
    %v2385 = vpack.c.b16 %v2363, %v2361
    %v2386 = vpack.c.b16 %v2364, %v2364
    %v2387 = vpack.c.b16 %v2365, %v2365
    %v2409 = vsel %vm180, %v2301, 0
    %v2412 = vsel %vm184, %v2386, 0
    %v2415 = vsel %vm184, %v2387, 0
    %2417 = vmatprep.subr.bf16.mxu0 %v2381
    %2418 = vmatpush1.bf16.msra.mxu0 %v2380
    %2419 = vmatprep.subr.bf16.mxu0 %v2379
    %2420 = vmatpush1.bf16.msra.mxu0 %v2378
    %2421 = vmatprep.subr.bf16.mxu0 %v2377
    %2422 = vmatpush1.bf16.msra.mxu0 %v2376
    %2423 = vmatprep.subr.bf16.mxu0 %v2375
    %2424 = vmatpush1.bf16.msra.mxu0 %v2374
    %2425 = vmatprep.subr.bf16.mxu0 %v2373
    %2426 = vmatpush1.bf16.msra.mxu0 %v2372
    %2427 = vmatprep.subr.bf16.mxu0 %v2371
    %2428 = vmatpush1.bf16.msra.mxu0 %v2370
    %2429 = vmatprep.subr.bf16.mxu0 %v2369
    %2430 = vmatpush1.bf16.msra.mxu0 %v2368
    %2431 = vmatprep.subr.bf16.mxu0 %v2367
    %2432 = vmatpush1.bf16.msra.mxu0 %v2366
    %2433 = vmatprep.subr.bf16.mxu0 0
    %2434 = vmatpush2.bf16.msra.mxu0 0
    %2435 = vmatprep.subr.bf16.mxu0 0
    %2436 = vmatpush2.bf16.msra.mxu0 0
    %2437 = vmatprep.subr.bf16.mxu0 0
    %2438 = vmatpush2.bf16.msra.mxu0 0
    %2439 = vmatprep.subr.bf16.mxu0 0
    %2440 = vmatpush2.bf16.msra.mxu0 0
    %2441 = vmatprep.subr.bf16.mxu0 0
    %2442 = vmatpush2.bf16.msra.mxu0 0
    %2443 = vmatprep.subr.bf16.mxu0 %v2415
    %2444 = vmatpush2.bf16.msra.mxu0 %v2412
    %2445 = vmatprep.subr.bf16.mxu0 %v2385
    %2446 = vmatpush2.bf16.msra.mxu0 %v2384
    %2447 = vmatprep.subr.bf16.mxu0 %v2383
    %2448 = vmatpush2.bf16.msra.mxu0 %v2382
    %2449 = vmatprep.mubr.bf16.mxu0 %v2409
    %2450 = vmatmul.mubr.bf16.gmra.mxu0 %v2300
    %v2451 = vpop.f32.mrf.mxu0
    %v2452 = vadd.f32 0.0, %v2451
    %v2453 = vpop.f32.mrf.mxu0
    %v2454 = vadd.f32 0.0, %v2453
    %v2455 = vpop.f32.mrf.mxu0
    %v2456 = vpop.f32.mrf.mxu0
    %2457 = vdwg.mxu0
    %v2458 = vmax.f32 %v2452, %v2454
    %v2459 = vld [vmem:[%s1 + $0x8] sm:$0xff]
    %v2460 = vld [vmem:[%s1 + $0x18] sm:$0xff]
    %v2461 = vld [vmem:[%s1 + $0x28] sm:$0xff]
    %v2462 = vld [vmem:[%s1 + $0x38] sm:$0xff]
    %v2463 = vld [vmem:[%s1 + $0x48] sm:$0xff]
    %v2464 = vld [vmem:[%s1 + $0x58] sm:$0xff]
    %v2465 = vld [vmem:[%s1 + $0x68] sm:$0xff]
    %v2466 = vld [vmem:[%s1 + $0x78] sm:$0xff]
    %v2467 = vld [vmem:[%s1 + $0x88] sm:$0xff]
    %v2468 = vld [vmem:[%s1 + $0x98] sm:$0xff]
    %v2469 = vld [vmem:[%s1 + $0xa8] sm:$0xff]
    %v2470 = vld [vmem:[%s1 + $0xb8] sm:$0xff]
    %v2471 = vld [vmem:[%s1 + $0xc8] sm:$0xff]
    %v2472 = vld [vmem:[%s1 + $0xd8] sm:$0xff]
    %v2473 = vld [vmem:[%s1 + $0xe8] sm:$0xff]
    %v2474 = vld [vmem:[%s1 + $0xf8] sm:$0xff]
    %v2475 = vld [vmem:[%s1 + $0x108] sm:$0xff]
    %v2476 = vld [vmem:[%s1 + $0x118] sm:$0xff]
    %v2477 = vld [vmem:[%s1 + $0x128] sm:$0xff]
    %v2478 = vld [vmem:[%s1 + $0x138] sm:$0xff]
    %v2479 = vld [vmem:[%s1 + $0x148] sm:$0xff]
    %v2501 = vunpack.c.l.b16 %v2459
    %v2502 = vunpack.c.h.b16 %v2459
    %v2503 = vunpack.c.l.b16 %v2460
    %v2504 = vunpack.c.h.b16 %v2460
    %v2505 = vunpack.c.l.b16 %v2461
    %v2506 = vunpack.c.h.b16 %v2461
    %v2507 = vunpack.c.l.b16 %v2462
    %v2508 = vunpack.c.h.b16 %v2462
    %v2509 = vunpack.c.l.b16 %v2463
    %v2510 = vunpack.c.h.b16 %v2463
    %v2511 = vunpack.c.l.b16 %v2464
    %v2512 = vunpack.c.h.b16 %v2464
    %v2513 = vunpack.c.l.b16 %v2465
    %v2514 = vunpack.c.h.b16 %v2465
    %v2515 = vunpack.c.l.b16 %v2466
    %v2516 = vunpack.c.h.b16 %v2466
    %v2517 = vunpack.c.l.b16 %v2467
    %v2518 = vunpack.c.h.b16 %v2467
    %v2519 = vunpack.c.l.b16 %v2468
    %v2520 = vunpack.c.h.b16 %v2468
    %v2521 = vunpack.c.l.b16 %v2469
    %v2522 = vunpack.c.h.b16 %v2469
    %v2523 = vunpack.c.l.b16 %v2470
    %v2524 = vunpack.c.h.b16 %v2470
    %v2525 = vunpack.c.l.b16 %v2471
    %v2526 = vunpack.c.h.b16 %v2471
    %v2527 = vunpack.c.l.b16 %v2472
    %v2528 = vunpack.c.h.b16 %v2472
    %v2529 = vunpack.c.l.b16 %v2473
    %v2530 = vunpack.c.h.b16 %v2473
    %v2531 = vunpack.c.l.b16 %v2474
    %v2532 = vunpack.c.h.b16 %v2474
    %v2533 = vunpack.c.l.b16 %v2475
    %v2534 = vunpack.c.h.b16 %v2475
    %v2535 = vunpack.c.l.b16 %v2476
    %v2536 = vunpack.c.h.b16 %v2476
    %v2537 = vunpack.c.l.b16 %v2477
    %v2538 = vunpack.c.h.b16 %v2477
    %v2539 = vunpack.c.l.b16 %v2478
    %v2540 = vunpack.c.h.b16 %v2478
    %v2541 = vunpack.c.l.b16 %v2479
    %v2542 = vunpack.c.h.b16 %v2479
    %v2543 = vpack.c.b16 %v2503, %v2501
    %v2544 = vpack.c.b16 %v2504, %v2502
    %v2545 = vpack.c.b16 %v2507, %v2505
    %v2546 = vpack.c.b16 %v2508, %v2506
    %v2547 = vpack.c.b16 %v2511, %v2509
    %v2548 = vpack.c.b16 %v2512, %v2510
    %v2549 = vpack.c.b16 %v2515, %v2513
    %v2550 = vpack.c.b16 %v2516, %v2514
    %v2551 = vpack.c.b16 %v2519, %v2517
    %v2552 = vpack.c.b16 %v2520, %v2518
    %v2553 = vpack.c.b16 %v2523, %v2521
    %v2554 = vpack.c.b16 %v2524, %v2522
    %v2555 = vpack.c.b16 %v2527, %v2525
    %v2556 = vpack.c.b16 %v2528, %v2526
    %v2557 = vpack.c.b16 %v2531, %v2529
    %v2558 = vpack.c.b16 %v2532, %v2530
    %v2559 = vpack.c.b16 %v2535, %v2533
    %v2560 = vpack.c.b16 %v2536, %v2534
    %v2561 = vpack.c.b16 %v2539, %v2537
    %v2562 = vpack.c.b16 %v2540, %v2538
    %v2563 = vpack.c.b16 %v2541, %v2541
    %v2564 = vpack.c.b16 %v2542, %v2542
    %v2586 = vsel %vm184, %v2563, 0
    %v2589 = vsel %vm184, %v2564, 0
    %2591 = vmatprep.subr.bf16.mxu0 %v2558
    %2592 = vmatpush1.bf16.msra.mxu0 %v2557
    %2593 = vmatprep.subr.bf16.mxu0 %v2556
    %2594 = vmatpush1.bf16.msra.mxu0 %v2555
    %2595 = vmatprep.subr.bf16.mxu0 %v2554
    %2596 = vmatpush1.bf16.msra.mxu0 %v2553
    %2597 = vmatprep.subr.bf16.mxu0 %v2552
    %2598 = vmatpush1.bf16.msra.mxu0 %v2551
    %2599 = vmatprep.subr.bf16.mxu0 %v2550
    %2600 = vmatpush1.bf16.msra.mxu0 %v2549
    %2601 = vmatprep.subr.bf16.mxu0 %v2548
    %2602 = vmatpush1.bf16.msra.mxu0 %v2547
    %2603 = vmatprep.subr.bf16.mxu0 %v2546
    %2604 = vmatpush1.bf16.msra.mxu0 %v2545
    %2605 = vmatprep.subr.bf16.mxu0 %v2544
    %2606 = vmatpush1.bf16.msra.mxu0 %v2543
    %2607 = vmatprep.subr.bf16.mxu0 0
    %2608 = vmatpush2.bf16.msra.mxu0 0
    %2609 = vmatprep.subr.bf16.mxu0 0
    %2610 = vmatpush2.bf16.msra.mxu0 0
    %2611 = vmatprep.subr.bf16.mxu0 0
    %2612 = vmatpush2.bf16.msra.mxu0 0
    %2613 = vmatprep.subr.bf16.mxu0 0
    %2614 = vmatpush2.bf16.msra.mxu0 0
    %2615 = vmatprep.subr.bf16.mxu0 0
    %2616 = vmatpush2.bf16.msra.mxu0 0
    %2617 = vmatprep.subr.bf16.mxu0 %v2589
    %2618 = vmatpush2.bf16.msra.mxu0 %v2586
    %2619 = vmatprep.subr.bf16.mxu0 %v2562
    %2620 = vmatpush2.bf16.msra.mxu0 %v2561
    %2621 = vmatprep.subr.bf16.mxu0 %v2560
    %2622 = vmatpush2.bf16.msra.mxu0 %v2559
    %2623 = vmatprep.mubr.bf16.mxu0 %v2409
    %2624 = vmatmul.mubr.bf16.gmra.mxu0 %v2300
    %v2625 = vpop.f32.mrf.mxu0
    %v2626 = vadd.f32 0.0, %v2625
    %v2627 = vpop.f32.mrf.mxu0
    %v2628 = vadd.f32 0.0, %v2627
    %v2629 = vpop.f32.mrf.mxu0
    %v2630 = vpop.f32.mrf.mxu0
    %2631 = vdwg.mxu0
    %v2632 = vmax.f32 %v2626, %v2628
    %v2633 = vmax.f32 %v2458, %v2632
    %v2634 = vld [vmem:[%s2] sm:$0x1]
    %v2636 = vlaneseq
    %v2637 = vshrl.u32 %v2636, 7
    %v2638 = vsub.s32 0, %v2637
    %v2639 = vrot.slane %v2634, %v2638
    %v2641 = vadd.f32 %v2633, %v2639
    %v2642 = vmax.f32 %v2641, 0.0
    %v2643 = vpack.c.bf16 %v2642, %v2642
    %2644 = vst [vmem:[#allocation2 + $0x18] sm:$0xf] %v2643
    %s2645 = scalar_lea.vmem %s0, 56
    %v2646 = vld [vmem:[%s2645] sm:$0xff]
    %v2647 = vld [vmem:[%s1] sm:$0xff]
    %v2648 = vld [vmem:[%s1 + $0x10] sm:$0xff]
    %v2649 = vld [vmem:[%s1 + $0x20] sm:$0xff]
    %v2650 = vld [vmem:[%s1 + $0x30] sm:$0xff]
    %v2651 = vld [vmem:[%s1 + $0x40] sm:$0xff]
    %v2652 = vld [vmem:[%s1 + $0x50] sm:$0xff]
    %v2653 = vld [vmem:[%s1 + $0x60] sm:$0xff]
    %v2654 = vld [vmem:[%s1 + $0x70] sm:$0xff]
    %v2655 = vld [vmem:[%s1 + $0x80] sm:$0xff]
    %v2656 = vld [vmem:[%s1 + $0x90] sm:$0xff]
    %v2657 = vld [vmem:[%s1 + $0xa0] sm:$0xff]
    %v2658 = vld [vmem:[%s1 + $0xb0] sm:$0xff]
    %v2659 = vld [vmem:[%s1 + $0xc0] sm:$0xff]
    %v2660 = vld [vmem:[%s1 + $0xd0] sm:$0xff]
    %v2661 = vld [vmem:[%s1 + $0xe0] sm:$0xff]
    %v2662 = vld [vmem:[%s1 + $0xf0] sm:$0xff]
    %v2663 = vld [vmem:[%s1 + $0x100] sm:$0xff]
    %v2664 = vld [vmem:[%s1 + $0x110] sm:$0xff]
    %v2665 = vld [vmem:[%s1 + $0x120] sm:$0xff]
    %v2666 = vld [vmem:[%s1 + $0x130] sm:$0xff]
    %v2667 = vld [vmem:[%s1 + $0x140] sm:$0xff]
    %v2669 = vunpack.c.l.b16 %v2646
    %v2670 = vunpack.c.h.b16 %v2646
    %v2671 = vpack.c.b16 %v2669, %v2669
    %v2672 = vpack.c.b16 %v2670, %v2670
    %v2695 = vunpack.c.l.b16 %v2647
    %v2696 = vunpack.c.h.b16 %v2647
    %v2697 = vunpack.c.l.b16 %v2648
    %v2698 = vunpack.c.h.b16 %v2648
    %v2699 = vunpack.c.l.b16 %v2649
    %v2700 = vunpack.c.h.b16 %v2649
    %v2701 = vunpack.c.l.b16 %v2650
    %v2702 = vunpack.c.h.b16 %v2650
    %v2703 = vunpack.c.l.b16 %v2651
    %v2704 = vunpack.c.h.b16 %v2651
    %v2705 = vunpack.c.l.b16 %v2652
    %v2706 = vunpack.c.h.b16 %v2652
    %v2707 = vunpack.c.l.b16 %v2653
    %v2708 = vunpack.c.h.b16 %v2653
    %v2709 = vunpack.c.l.b16 %v2654
    %v2710 = vunpack.c.h.b16 %v2654
    %v2711 = vunpack.c.l.b16 %v2655
    %v2712 = vunpack.c.h.b16 %v2655
    %v2713 = vunpack.c.l.b16 %v2656
    %v2714 = vunpack.c.h.b16 %v2656
    %v2715 = vunpack.c.l.b16 %v2657
    %v2716 = vunpack.c.h.b16 %v2657
    %v2717 = vunpack.c.l.b16 %v2658
    %v2718 = vunpack.c.h.b16 %v2658
    %v2719 = vunpack.c.l.b16 %v2659
    %v2720 = vunpack.c.h.b16 %v2659
    %v2721 = vunpack.c.l.b16 %v2660
    %v2722 = vunpack.c.h.b16 %v2660
    %v2723 = vunpack.c.l.b16 %v2661
    %v2724 = vunpack.c.h.b16 %v2661
    %v2725 = vunpack.c.l.b16 %v2662
    %v2726 = vunpack.c.h.b16 %v2662
    %v2727 = vunpack.c.l.b16 %v2663
    %v2728 = vunpack.c.h.b16 %v2663
    %v2729 = vunpack.c.l.b16 %v2664
    %v2730 = vunpack.c.h.b16 %v2664
    %v2731 = vunpack.c.l.b16 %v2665
    %v2732 = vunpack.c.h.b16 %v2665
    %v2733 = vunpack.c.l.b16 %v2666
    %v2734 = vunpack.c.h.b16 %v2666
    %v2735 = vunpack.c.l.b16 %v2667
    %v2736 = vunpack.c.h.b16 %v2667
    %v2737 = vpack.c.b16 %v2697, %v2695
    %v2738 = vpack.c.b16 %v2698, %v2696
    %v2739 = vpack.c.b16 %v2701, %v2699
    %v2740 = vpack.c.b16 %v2702, %v2700
    %v2741 = vpack.c.b16 %v2705, %v2703
    %v2742 = vpack.c.b16 %v2706, %v2704
    %v2743 = vpack.c.b16 %v2709, %v2707
    %v2744 = vpack.c.b16 %v2710, %v2708
    %v2745 = vpack.c.b16 %v2713, %v2711
    %v2746 = vpack.c.b16 %v2714, %v2712
    %v2747 = vpack.c.b16 %v2717, %v2715
    %v2748 = vpack.c.b16 %v2718, %v2716
    %v2749 = vpack.c.b16 %v2721, %v2719
    %v2750 = vpack.c.b16 %v2722, %v2720
    %v2751 = vpack.c.b16 %v2725, %v2723
    %v2752 = vpack.c.b16 %v2726, %v2724
    %v2753 = vpack.c.b16 %v2729, %v2727
    %v2754 = vpack.c.b16 %v2730, %v2728
    %v2755 = vpack.c.b16 %v2733, %v2731
    %v2756 = vpack.c.b16 %v2734, %v2732
    %v2757 = vpack.c.b16 %v2735, %v2735
    %v2758 = vpack.c.b16 %v2736, %v2736
    %v2780 = vsel %vm180, %v2672, 0
    %v2783 = vsel %vm184, %v2757, 0
    %v2786 = vsel %vm184, %v2758, 0
    %2788 = vmatprep.subr.bf16.mxu0 %v2752
    %2789 = vmatpush1.bf16.msra.mxu0 %v2751
    %2790 = vmatprep.subr.bf16.mxu0 %v2750
    %2791 = vmatpush1.bf16.msra.mxu0 %v2749
    %2792 = vmatprep.subr.bf16.mxu0 %v2748
    %2793 = vmatpush1.bf16.msra.mxu0 %v2747
    %2794 = vmatprep.subr.bf16.mxu0 %v2746
    %2795 = vmatpush1.bf16.msra.mxu0 %v2745
    %2796 = vmatprep.subr.bf16.mxu0 %v2744
    %2797 = vmatpush1.bf16.msra.mxu0 %v2743
    %2798 = vmatprep.subr.bf16.mxu0 %v2742
    %2799 = vmatpush1.bf16.msra.mxu0 %v2741
    %2800 = vmatprep.subr.bf16.mxu0 %v2740
    %2801 = vmatpush1.bf16.msra.mxu0 %v2739
    %2802 = vmatprep.subr.bf16.mxu0 %v2738
    %2803 = vmatpush1.bf16.msra.mxu0 %v2737
    %2804 = vmatprep.subr.bf16.mxu0 0
    %2805 = vmatpush2.bf16.msra.mxu0 0
    %2806 = vmatprep.subr.bf16.mxu0 0
    %2807 = vmatpush2.bf16.msra.mxu0 0
    %2808 = vmatprep.subr.bf16.mxu0 0
    %2809 = vmatpush2.bf16.msra.mxu0 0
    %2810 = vmatprep.subr.bf16.mxu0 0
    %2811 = vmatpush2.bf16.msra.mxu0 0
    %2812 = vmatprep.subr.bf16.mxu0 0
    %2813 = vmatpush2.bf16.msra.mxu0 0
    %2814 = vmatprep.subr.bf16.mxu0 %v2786
    %2815 = vmatpush2.bf16.msra.mxu0 %v2783
    %2816 = vmatprep.subr.bf16.mxu0 %v2756
    %2817 = vmatpush2.bf16.msra.mxu0 %v2755
    %2818 = vmatprep.subr.bf16.mxu0 %v2754
    %2819 = vmatpush2.bf16.msra.mxu0 %v2753
    %2820 = vmatprep.mubr.bf16.mxu0 %v2780
    %2821 = vmatmul.mubr.bf16.gmra.mxu0 %v2671
    %v2822 = vpop.f32.mrf.mxu0
    %v2823 = vadd.f32 0.0, %v2822
    %v2824 = vpop.f32.mrf.mxu0
    %v2825 = vadd.f32 0.0, %v2824
    %v2826 = vpop.f32.mrf.mxu0
    %v2827 = vpop.f32.mrf.mxu0
    %2828 = vdwg.mxu0
    %v2829 = vmax.f32 %v2823, %v2825
    %v2830 = vld [vmem:[%s1 + $0x8] sm:$0xff]
    %v2831 = vld [vmem:[%s1 + $0x18] sm:$0xff]
    %v2832 = vld [vmem:[%s1 + $0x28] sm:$0xff]
    %v2833 = vld [vmem:[%s1 + $0x38] sm:$0xff]
    %v2834 = vld [vmem:[%s1 + $0x48] sm:$0xff]
    %v2835 = vld [vmem:[%s1 + $0x58] sm:$0xff]
    %v2836 = vld [vmem:[%s1 + $0x68] sm:$0xff]
    %v2837 = vld [vmem:[%s1 + $0x78] sm:$0xff]
    %v2838 = vld [vmem:[%s1 + $0x88] sm:$0xff]
    %v2839 = vld [vmem:[%s1 + $0x98] sm:$0xff]
    %v2840 = vld [vmem:[%s1 + $0xa8] sm:$0xff]
    %v2841 = vld [vmem:[%s1 + $0xb8] sm:$0xff]
    %v2842 = vld [vmem:[%s1 + $0xc8] sm:$0xff]
    %v2843 = vld [vmem:[%s1 + $0xd8] sm:$0xff]
    %v2844 = vld [vmem:[%s1 + $0xe8] sm:$0xff]
    %v2845 = vld [vmem:[%s1 + $0xf8] sm:$0xff]
    %v2846 = vld [vmem:[%s1 + $0x108] sm:$0xff]
    %v2847 = vld [vmem:[%s1 + $0x118] sm:$0xff]
    %v2848 = vld [vmem:[%s1 + $0x128] sm:$0xff]
    %v2849 = vld [vmem:[%s1 + $0x138] sm:$0xff]
    %v2850 = vld [vmem:[%s1 + $0x148] sm:$0xff]
    %v2872 = vunpack.c.l.b16 %v2830
    %v2873 = vunpack.c.h.b16 %v2830
    %v2874 = vunpack.c.l.b16 %v2831
    %v2875 = vunpack.c.h.b16 %v2831
    %v2876 = vunpack.c.l.b16 %v2832
    %v2877 = vunpack.c.h.b16 %v2832
    %v2878 = vunpack.c.l.b16 %v2833
    %v2879 = vunpack.c.h.b16 %v2833
    %v2880 = vunpack.c.l.b16 %v2834
    %v2881 = vunpack.c.h.b16 %v2834
    %v2882 = vunpack.c.l.b16 %v2835
    %v2883 = vunpack.c.h.b16 %v2835
    %v2884 = vunpack.c.l.b16 %v2836
    %v2885 = vunpack.c.h.b16 %v2836
    %v2886 = vunpack.c.l.b16 %v2837
    %v2887 = vunpack.c.h.b16 %v2837
    %v2888 = vunpack.c.l.b16 %v2838
    %v2889 = vunpack.c.h.b16 %v2838
    %v2890 = vunpack.c.l.b16 %v2839
    %v2891 = vunpack.c.h.b16 %v2839
    %v2892 = vunpack.c.l.b16 %v2840
    %v2893 = vunpack.c.h.b16 %v2840
    %v2894 = vunpack.c.l.b16 %v2841
    %v2895 = vunpack.c.h.b16 %v2841
    %v2896 = vunpack.c.l.b16 %v2842
    %v2897 = vunpack.c.h.b16 %v2842
    %v2898 = vunpack.c.l.b16 %v2843
    %v2899 = vunpack.c.h.b16 %v2843
    %v2900 = vunpack.c.l.b16 %v2844
    %v2901 = vunpack.c.h.b16 %v2844
    %v2902 = vunpack.c.l.b16 %v2845
    %v2903 = vunpack.c.h.b16 %v2845
    %v2904 = vunpack.c.l.b16 %v2846
    %v2905 = vunpack.c.h.b16 %v2846
    %v2906 = vunpack.c.l.b16 %v2847
    %v2907 = vunpack.c.h.b16 %v2847
    %v2908 = vunpack.c.l.b16 %v2848
    %v2909 = vunpack.c.h.b16 %v2848
    %v2910 = vunpack.c.l.b16 %v2849
    %v2911 = vunpack.c.h.b16 %v2849
    %v2912 = vunpack.c.l.b16 %v2850
    %v2913 = vunpack.c.h.b16 %v2850
    %v2914 = vpack.c.b16 %v2874, %v2872
    %v2915 = vpack.c.b16 %v2875, %v2873
    %v2916 = vpack.c.b16 %v2878, %v2876
    %v2917 = vpack.c.b16 %v2879, %v2877
    %v2918 = vpack.c.b16 %v2882, %v2880
    %v2919 = vpack.c.b16 %v2883, %v2881
    %v2920 = vpack.c.b16 %v2886, %v2884
    %v2921 = vpack.c.b16 %v2887, %v2885
    %v2922 = vpack.c.b16 %v2890, %v2888
    %v2923 = vpack.c.b16 %v2891, %v2889
    %v2924 = vpack.c.b16 %v2894, %v2892
    %v2925 = vpack.c.b16 %v2895, %v2893
    %v2926 = vpack.c.b16 %v2898, %v2896
    %v2927 = vpack.c.b16 %v2899, %v2897
    %v2928 = vpack.c.b16 %v2902, %v2900
    %v2929 = vpack.c.b16 %v2903, %v2901
    %v2930 = vpack.c.b16 %v2906, %v2904
    %v2931 = vpack.c.b16 %v2907, %v2905
    %v2932 = vpack.c.b16 %v2910, %v2908
    %v2933 = vpack.c.b16 %v2911, %v2909
    %v2934 = vpack.c.b16 %v2912, %v2912
    %v2935 = vpack.c.b16 %v2913, %v2913
    %v2957 = vsel %vm184, %v2934, 0
    %v2960 = vsel %vm184, %v2935, 0
    %2962 = vmatprep.subr.bf16.mxu0 %v2929
    %2963 = vmatpush1.bf16.msra.mxu0 %v2928
    %2964 = vmatprep.subr.bf16.mxu0 %v2927
    %2965 = vmatpush1.bf16.msra.mxu0 %v2926
    %2966 = vmatprep.subr.bf16.mxu0 %v2925
    %2967 = vmatpush1.bf16.msra.mxu0 %v2924
    %2968 = vmatprep.subr.bf16.mxu0 %v2923
    %2969 = vmatpush1.bf16.msra.mxu0 %v2922
    %2970 = vmatprep.subr.bf16.mxu0 %v2921
    %2971 = vmatpush1.bf16.msra.mxu0 %v2920
    %2972 = vmatprep.subr.bf16.mxu0 %v2919
    %2973 = vmatpush1.bf16.msra.mxu0 %v2918
    %2974 = vmatprep.subr.bf16.mxu0 %v2917
    %2975 = vmatpush1.bf16.msra.mxu0 %v2916
    %2976 = vmatprep.subr.bf16.mxu0 %v2915
    %2977 = vmatpush1.bf16.msra.mxu0 %v2914
    %2978 = vmatprep.subr.bf16.mxu0 0
    %2979 = vmatpush2.bf16.msra.mxu0 0
    %2980 = vmatprep.subr.bf16.mxu0 0
    %2981 = vmatpush2.bf16.msra.mxu0 0
    %2982 = vmatprep.subr.bf16.mxu0 0
    %2983 = vmatpush2.bf16.msra.mxu0 0
    %2984 = vmatprep.subr.bf16.mxu0 0
    %2985 = vmatpush2.bf16.msra.mxu0 0
    %2986 = vmatprep.subr.bf16.mxu0 0
    %2987 = vmatpush2.bf16.msra.mxu0 0
    %2988 = vmatprep.subr.bf16.mxu0 %v2960
    %2989 = vmatpush2.bf16.msra.mxu0 %v2957
    %2990 = vmatprep.subr.bf16.mxu0 %v2933
    %2991 = vmatpush2.bf16.msra.mxu0 %v2932
    %2992 = vmatprep.subr.bf16.mxu0 %v2931
    %2993 = vmatpush2.bf16.msra.mxu0 %v2930
    %2994 = vmatprep.mubr.bf16.mxu0 %v2780
    %2995 = vmatmul.mubr.bf16.gmra.mxu0 %v2671
    %v2996 = vpop.f32.mrf.mxu0
    %v2997 = vadd.f32 0.0, %v2996
    %v2998 = vpop.f32.mrf.mxu0
    %v2999 = vadd.f32 0.0, %v2998
    %v3000 = vpop.f32.mrf.mxu0
    %v3001 = vpop.f32.mrf.mxu0
    %3002 = vdwg.mxu0
    %v3003 = vmax.f32 %v2997, %v2999
    %v3004 = vmax.f32 %v2829, %v3003
    %v3005 = vld [vmem:[%s2] sm:$0x1]
    %v3007 = vlaneseq
    %v3008 = vshrl.u32 %v3007, 7
    %v3009 = vsub.s32 0, %v3008
    %v3010 = vrot.slane %v3005, %v3009
    %v3012 = vadd.f32 %v3004, %v3010
    %v3013 = vmax.f32 %v3012, 0.0
    %v3014 = vpack.c.bf16 %v3013, %v3013
    %3015 = vst [vmem:[#allocation2 + $0x1c] sm:$0xf] %v3014
    %s3016 = scalar_lea.vmem %s0, 64
    %v3017 = vld [vmem:[%s3016] sm:$0xff]
    %v3018 = vld [vmem:[%s1] sm:$0xff]
    %v3019 = vld [vmem:[%s1 + $0x10] sm:$0xff]
    %v3020 = vld [vmem:[%s1 + $0x20] sm:$0xff]
    %v3021 = vld [vmem:[%s1 + $0x30] sm:$0xff]
    %v3022 = vld [vmem:[%s1 + $0x40] sm:$0xff]
    %v3023 = vld [vmem:[%s1 + $0x50] sm:$0xff]
    %v3024 = vld [vmem:[%s1 + $0x60] sm:$0xff]
    %v3025 = vld [vmem:[%s1 + $0x70] sm:$0xff]
    %v3026 = vld [vmem:[%s1 + $0x80] sm:$0xff]
    %v3027 = vld [vmem:[%s1 + $0x90] sm:$0xff]
    %v3028 = vld [vmem:[%s1 + $0xa0] sm:$0xff]
    %v3029 = vld [vmem:[%s1 + $0xb0] sm:$0xff]
    %v3030 = vld [vmem:[%s1 + $0xc0] sm:$0xff]
    %v3031 = vld [vmem:[%s1 + $0xd0] sm:$0xff]
    %v3032 = vld [vmem:[%s1 + $0xe0] sm:$0xff]
    %v3033 = vld [vmem:[%s1 + $0xf0] sm:$0xff]
    %v3034 = vld [vmem:[%s1 + $0x100] sm:$0xff]
    %v3035 = vld [vmem:[%s1 + $0x110] sm:$0xff]
    %v3036 = vld [vmem:[%s1 + $0x120] sm:$0xff]
    %v3037 = vld [vmem:[%s1 + $0x130] sm:$0xff]
    %v3038 = vld [vmem:[%s1 + $0x140] sm:$0xff]
    %v3040 = vunpack.c.l.b16 %v3017
    %v3041 = vunpack.c.h.b16 %v3017
    %v3042 = vpack.c.b16 %v3040, %v3040
    %v3043 = vpack.c.b16 %v3041, %v3041
    %v3066 = vunpack.c.l.b16 %v3018
    %v3067 = vunpack.c.h.b16 %v3018
    %v3068 = vunpack.c.l.b16 %v3019
    %v3069 = vunpack.c.h.b16 %v3019
    %v3070 = vunpack.c.l.b16 %v3020
    %v3071 = vunpack.c.h.b16 %v3020
    %v3072 = vunpack.c.l.b16 %v3021
    %v3073 = vunpack.c.h.b16 %v3021
    %v3074 = vunpack.c.l.b16 %v3022
    %v3075 = vunpack.c.h.b16 %v3022
    %v3076 = vunpack.c.l.b16 %v3023
    %v3077 = vunpack.c.h.b16 %v3023
    %v3078 = vunpack.c.l.b16 %v3024
    %v3079 = vunpack.c.h.b16 %v3024
    %v3080 = vunpack.c.l.b16 %v3025
    %v3081 = vunpack.c.h.b16 %v3025
    %v3082 = vunpack.c.l.b16 %v3026
    %v3083 = vunpack.c.h.b16 %v3026
    %v3084 = vunpack.c.l.b16 %v3027
    %v3085 = vunpack.c.h.b16 %v3027
    %v3086 = vunpack.c.l.b16 %v3028
    %v3087 = vunpack.c.h.b16 %v3028
    %v3088 = vunpack.c.l.b16 %v3029
    %v3089 = vunpack.c.h.b16 %v3029
    %v3090 = vunpack.c.l.b16 %v3030
    %v3091 = vunpack.c.h.b16 %v3030
    %v3092 = vunpack.c.l.b16 %v3031
    %v3093 = vunpack.c.h.b16 %v3031
    %v3094 = vunpack.c.l.b16 %v3032
    %v3095 = vunpack.c.h.b16 %v3032
    %v3096 = vunpack.c.l.b16 %v3033
    %v3097 = vunpack.c.h.b16 %v3033
    %v3098 = vunpack.c.l.b16 %v3034
    %v3099 = vunpack.c.h.b16 %v3034
    %v3100 = vunpack.c.l.b16 %v3035
    %v3101 = vunpack.c.h.b16 %v3035
    %v3102 = vunpack.c.l.b16 %v3036
    %v3103 = vunpack.c.h.b16 %v3036
    %v3104 = vunpack.c.l.b16 %v3037
    %v3105 = vunpack.c.h.b16 %v3037
    %v3106 = vunpack.c.l.b16 %v3038
    %v3107 = vunpack.c.h.b16 %v3038
    %v3108 = vpack.c.b16 %v3068, %v3066
    %v3109 = vpack.c.b16 %v3069, %v3067
    %v3110 = vpack.c.b16 %v3072, %v3070
    %v3111 = vpack.c.b16 %v3073, %v3071
    %v3112 = vpack.c.b16 %v3076, %v3074
    %v3113 = vpack.c.b16 %v3077, %v3075
    %v3114 = vpack.c.b16 %v3080, %v3078
    %v3115 = vpack.c.b16 %v3081, %v3079
    %v3116 = vpack.c.b16 %v3084, %v3082
    %v3117 = vpack.c.b16 %v3085, %v3083
    %v3118 = vpack.c.b16 %v3088, %v3086
    %v3119 = vpack.c.b16 %v3089, %v3087
    %v3120 = vpack.c.b16 %v3092, %v3090
    %v3121 = vpack.c.b16 %v3093, %v3091
    %v3122 = vpack.c.b16 %v3096, %v3094
    %v3123 = vpack.c.b16 %v3097, %v3095
    %v3124 = vpack.c.b16 %v3100, %v3098
    %v3125 = vpack.c.b16 %v3101, %v3099
    %v3126 = vpack.c.b16 %v3104, %v3102
    %v3127 = vpack.c.b16 %v3105, %v3103
    %v3128 = vpack.c.b16 %v3106, %v3106
    %v3129 = vpack.c.b16 %v3107, %v3107
    %v3151 = vsel %vm180, %v3043, 0
    %v3154 = vsel %vm184, %v3128, 0
    %v3157 = vsel %vm184, %v3129, 0
    %3159 = vmatprep.subr.bf16.mxu0 %v3123
    %3160 = vmatpush1.bf16.msra.mxu0 %v3122
    %3161 = vmatprep.subr.bf16.mxu0 %v3121
    %3162 = vmatpush1.bf16.msra.mxu0 %v3120
    %3163 = vmatprep.subr.bf16.mxu0 %v3119
    %3164 = vmatpush1.bf16.msra.mxu0 %v3118
    %3165 = vmatprep.subr.bf16.mxu0 %v3117
    %3166 = vmatpush1.bf16.msra.mxu0 %v3116
    %3167 = vmatprep.subr.bf16.mxu0 %v3115
    %3168 = vmatpush1.bf16.msra.mxu0 %v3114
    %3169 = vmatprep.subr.bf16.mxu0 %v3113
    %3170 = vmatpush1.bf16.msra.mxu0 %v3112
    %3171 = vmatprep.subr.bf16.mxu0 %v3111
    %3172 = vmatpush1.bf16.msra.mxu0 %v3110
    %3173 = vmatprep.subr.bf16.mxu0 %v3109
    %3174 = vmatpush1.bf16.msra.mxu0 %v3108
    %3175 = vmatprep.subr.bf16.mxu0 0
    %3176 = vmatpush2.bf16.msra.mxu0 0
    %3177 = vmatprep.subr.bf16.mxu0 0
    %3178 = vmatpush2.bf16.msra.mxu0 0
    %3179 = vmatprep.subr.bf16.mxu0 0
    %3180 = vmatpush2.bf16.msra.mxu0 0
    %3181 = vmatprep.subr.bf16.mxu0 0
    %3182 = vmatpush2.bf16.msra.mxu0 0
    %3183 = vmatprep.subr.bf16.mxu0 0
    %3184 = vmatpush2.bf16.msra.mxu0 0
    %3185 = vmatprep.subr.bf16.mxu0 %v3157
    %3186 = vmatpush2.bf16.msra.mxu0 %v3154
    %3187 = vmatprep.subr.bf16.mxu0 %v3127
    %3188 = vmatpush2.bf16.msra.mxu0 %v3126
    %3189 = vmatprep.subr.bf16.mxu0 %v3125
    %3190 = vmatpush2.bf16.msra.mxu0 %v3124
    %3191 = vmatprep.mubr.bf16.mxu0 %v3151
    %3192 = vmatmul.mubr.bf16.gmra.mxu0 %v3042
    %v3193 = vpop.f32.mrf.mxu0
    %v3194 = vadd.f32 0.0, %v3193
    %v3195 = vpop.f32.mrf.mxu0
    %v3196 = vadd.f32 0.0, %v3195
    %v3197 = vpop.f32.mrf.mxu0
    %v3198 = vpop.f32.mrf.mxu0
    %3199 = vdwg.mxu0
    %v3200 = vmax.f32 %v3194, %v3196
    %v3201 = vld [vmem:[%s1 + $0x8] sm:$0xff]
    %v3202 = vld [vmem:[%s1 + $0x18] sm:$0xff]
    %v3203 = vld [vmem:[%s1 + $0x28] sm:$0xff]
    %v3204 = vld [vmem:[%s1 + $0x38] sm:$0xff]
    %v3205 = vld [vmem:[%s1 + $0x48] sm:$0xff]
    %v3206 = vld [vmem:[%s1 + $0x58] sm:$0xff]
    %v3207 = vld [vmem:[%s1 + $0x68] sm:$0xff]
    %v3208 = vld [vmem:[%s1 + $0x78] sm:$0xff]
    %v3209 = vld [vmem:[%s1 + $0x88] sm:$0xff]
    %v3210 = vld [vmem:[%s1 + $0x98] sm:$0xff]
    %v3211 = vld [vmem:[%s1 + $0xa8] sm:$0xff]
    %v3212 = vld [vmem:[%s1 + $0xb8] sm:$0xff]
    %v3213 = vld [vmem:[%s1 + $0xc8] sm:$0xff]
    %v3214 = vld [vmem:[%s1 + $0xd8] sm:$0xff]
    %v3215 = vld [vmem:[%s1 + $0xe8] sm:$0xff]
    %v3216 = vld [vmem:[%s1 + $0xf8] sm:$0xff]
    %v3217 = vld [vmem:[%s1 + $0x108] sm:$0xff]
    %v3218 = vld [vmem:[%s1 + $0x118] sm:$0xff]
    %v3219 = vld [vmem:[%s1 + $0x128] sm:$0xff]
    %v3220 = vld [vmem:[%s1 + $0x138] sm:$0xff]
    %v3221 = vld [vmem:[%s1 + $0x148] sm:$0xff]
    %v3243 = vunpack.c.l.b16 %v3201
    %v3244 = vunpack.c.h.b16 %v3201
    %v3245 = vunpack.c.l.b16 %v3202
    %v3246 = vunpack.c.h.b16 %v3202
    %v3247 = vunpack.c.l.b16 %v3203
    %v3248 = vunpack.c.h.b16 %v3203
    %v3249 = vunpack.c.l.b16 %v3204
    %v3250 = vunpack.c.h.b16 %v3204
    %v3251 = vunpack.c.l.b16 %v3205
    %v3252 = vunpack.c.h.b16 %v3205
    %v3253 = vunpack.c.l.b16 %v3206
    %v3254 = vunpack.c.h.b16 %v3206
    %v3255 = vunpack.c.l.b16 %v3207
    %v3256 = vunpack.c.h.b16 %v3207
    %v3257 = vunpack.c.l.b16 %v3208
    %v3258 = vunpack.c.h.b16 %v3208
    %v3259 = vunpack.c.l.b16 %v3209
    %v3260 = vunpack.c.h.b16 %v3209
    %v3261 = vunpack.c.l.b16 %v3210
    %v3262 = vunpack.c.h.b16 %v3210
    %v3263 = vunpack.c.l.b16 %v3211
    %v3264 = vunpack.c.h.b16 %v3211
    %v3265 = vunpack.c.l.b16 %v3212
    %v3266 = vunpack.c.h.b16 %v3212
    %v3267 = vunpack.c.l.b16 %v3213
    %v3268 = vunpack.c.h.b16 %v3213
    %v3269 = vunpack.c.l.b16 %v3214
    %v3270 = vunpack.c.h.b16 %v3214
    %v3271 = vunpack.c.l.b16 %v3215
    %v3272 = vunpack.c.h.b16 %v3215
    %v3273 = vunpack.c.l.b16 %v3216
    %v3274 = vunpack.c.h.b16 %v3216
    %v3275 = vunpack.c.l.b16 %v3217
    %v3276 = vunpack.c.h.b16 %v3217
    %v3277 = vunpack.c.l.b16 %v3218
    %v3278 = vunpack.c.h.b16 %v3218
    %v3279 = vunpack.c.l.b16 %v3219
    %v3280 = vunpack.c.h.b16 %v3219
    %v3281 = vunpack.c.l.b16 %v3220
    %v3282 = vunpack.c.h.b16 %v3220
    %v3283 = vunpack.c.l.b16 %v3221
    %v3284 = vunpack.c.h.b16 %v3221
    %v3285 = vpack.c.b16 %v3245, %v3243
    %v3286 = vpack.c.b16 %v3246, %v3244
    %v3287 = vpack.c.b16 %v3249, %v3247
    %v3288 = vpack.c.b16 %v3250, %v3248
    %v3289 = vpack.c.b16 %v3253, %v3251
    %v3290 = vpack.c.b16 %v3254, %v3252
    %v3291 = vpack.c.b16 %v3257, %v3255
    %v3292 = vpack.c.b16 %v3258, %v3256
    %v3293 = vpack.c.b16 %v3261, %v3259
    %v3294 = vpack.c.b16 %v3262, %v3260
    %v3295 = vpack.c.b16 %v3265, %v3263
    %v3296 = vpack.c.b16 %v3266, %v3264
    %v3297 = vpack.c.b16 %v3269, %v3267
    %v3298 = vpack.c.b16 %v3270, %v3268
    %v3299 = vpack.c.b16 %v3273, %v3271
    %v3300 = vpack.c.b16 %v3274, %v3272
    %v3301 = vpack.c.b16 %v3277, %v3275
    %v3302 = vpack.c.b16 %v3278, %v3276
    %v3303 = vpack.c.b16 %v3281, %v3279
    %v3304 = vpack.c.b16 %v3282, %v3280
    %v3305 = vpack.c.b16 %v3283, %v3283
    %v3306 = vpack.c.b16 %v3284, %v3284
    %v3328 = vsel %vm184, %v3305, 0
    %v3331 = vsel %vm184, %v3306, 0
    %3333 = vmatprep.subr.bf16.mxu0 %v3300
    %3334 = vmatpush1.bf16.msra.mxu0 %v3299
    %3335 = vmatprep.subr.bf16.mxu0 %v3298
    %3336 = vmatpush1.bf16.msra.mxu0 %v3297
    %3337 = vmatprep.subr.bf16.mxu0 %v3296
    %3338 = vmatpush1.bf16.msra.mxu0 %v3295
    %3339 = vmatprep.subr.bf16.mxu0 %v3294
    %3340 = vmatpush1.bf16.msra.mxu0 %v3293
    %3341 = vmatprep.subr.bf16.mxu0 %v3292
    %3342 = vmatpush1.bf16.msra.mxu0 %v3291
    %3343 = vmatprep.subr.bf16.mxu0 %v3290
    %3344 = vmatpush1.bf16.msra.mxu0 %v3289
    %3345 = vmatprep.subr.bf16.mxu0 %v3288
    %3346 = vmatpush1.bf16.msra.mxu0 %v3287
    %3347 = vmatprep.subr.bf16.mxu0 %v3286
    %3348 = vmatpush1.bf16.msra.mxu0 %v3285
    %3349 = vmatprep.subr.bf16.mxu0 0
    %3350 = vmatpush2.bf16.msra.mxu0 0
    %3351 = vmatprep.subr.bf16.mxu0 0
    %3352 = vmatpush2.bf16.msra.mxu0 0
    %3353 = vmatprep.subr.bf16.mxu0 0
    %3354 = vmatpush2.bf16.msra.mxu0 0
    %3355 = vmatprep.subr.bf16.mxu0 0
    %3356 = vmatpush2.bf16.msra.mxu0 0
    %3357 = vmatprep.subr.bf16.mxu0 0
    %3358 = vmatpush2.bf16.msra.mxu0 0
    %3359 = vmatprep.subr.bf16.mxu0 %v3331
    %3360 = vmatpush2.bf16.msra.mxu0 %v3328
    %3361 = vmatprep.subr.bf16.mxu0 %v3304
    %3362 = vmatpush2.bf16.msra.mxu0 %v3303
    %3363 = vmatprep.subr.bf16.mxu0 %v3302
    %3364 = vmatpush2.bf16.msra.mxu0 %v3301
    %3365 = vmatprep.mubr.bf16.mxu0 %v3151
    %3366 = vmatmul.mubr.bf16.gmra.mxu0 %v3042
    %v3367 = vpop.f32.mrf.mxu0
    %v3368 = vadd.f32 0.0, %v3367
    %v3369 = vpop.f32.mrf.mxu0
    %v3370 = vadd.f32 0.0, %v3369
    %v3371 = vpop.f32.mrf.mxu0
    %v3372 = vpop.f32.mrf.mxu0
    %3373 = vdwg.mxu0
    %v3374 = vmax.f32 %v3368, %v3370
    %v3375 = vmax.f32 %v3200, %v3374
    %v3376 = vld [vmem:[%s2] sm:$0x1]
    %v3378 = vlaneseq
    %v3379 = vshrl.u32 %v3378, 7
    %v3380 = vsub.s32 0, %v3379
    %v3381 = vrot.slane %v3376, %v3380
    %v3383 = vadd.f32 %v3375, %v3381
    %v3384 = vmax.f32 %v3383, 0.0
    %v3385 = vpack.c.bf16 %v3384, %v3384
    %3386 = vst [vmem:[#allocation2 + $0x20] sm:$0xf] %v3385
    %s3387 = scalar_lea.vmem %s0, 72
    %v3388 = vld [vmem:[%s3387] sm:$0xff]
    %v3389 = vld [vmem:[%s1] sm:$0xff]
    %v3390 = vld [vmem:[%s1 + $0x10] sm:$0xff]
    %v3391 = vld [vmem:[%s1 + $0x20] sm:$0xff]
    %v3392 = vld [vmem:[%s1 + $0x30] sm:$0xff]
    %v3393 = vld [vmem:[%s1 + $0x40] sm:$0xff]
    %v3394 = vld [vmem:[%s1 + $0x50] sm:$0xff]
    %v3395 = vld [vmem:[%s1 + $0x60] sm:$0xff]
    %v3396 = vld [vmem:[%s1 + $0x70] sm:$0xff]
    %v3397 = vld [vmem:[%s1 + $0x80] sm:$0xff]
    %v3398 = vld [vmem:[%s1 + $0x90] sm:$0xff]
    %v3399 = vld [vmem:[%s1 + $0xa0] sm:$0xff]
    %v3400 = vld [vmem:[%s1 + $0xb0] sm:$0xff]
    %v3401 = vld [vmem:[%s1 + $0xc0] sm:$0xff]
    %v3402 = vld [vmem:[%s1 + $0xd0] sm:$0xff]
    %v3403 = vld [vmem:[%s1 + $0xe0] sm:$0xff]
    %v3404 = vld [vmem:[%s1 + $0xf0] sm:$0xff]
    %v3405 = vld [vmem:[%s1 + $0x100] sm:$0xff]
    %v3406 = vld [vmem:[%s1 + $0x110] sm:$0xff]
    %v3407 = vld [vmem:[%s1 + $0x120] sm:$0xff]
    %v3408 = vld [vmem:[%s1 + $0x130] sm:$0xff]
    %v3409 = vld [vmem:[%s1 + $0x140] sm:$0xff]
    %v3411 = vunpack.c.l.b16 %v3388
    %v3412 = vunpack.c.h.b16 %v3388
    %v3413 = vpack.c.b16 %v3411, %v3411
    %v3414 = vpack.c.b16 %v3412, %v3412
    %v3437 = vunpack.c.l.b16 %v3389
    %v3438 = vunpack.c.h.b16 %v3389
    %v3439 = vunpack.c.l.b16 %v3390
    %v3440 = vunpack.c.h.b16 %v3390
    %v3441 = vunpack.c.l.b16 %v3391
    %v3442 = vunpack.c.h.b16 %v3391
    %v3443 = vunpack.c.l.b16 %v3392
    %v3444 = vunpack.c.h.b16 %v3392
    %v3445 = vunpack.c.l.b16 %v3393
    %v3446 = vunpack.c.h.b16 %v3393
    %v3447 = vunpack.c.l.b16 %v3394
    %v3448 = vunpack.c.h.b16 %v3394
    %v3449 = vunpack.c.l.b16 %v3395
    %v3450 = vunpack.c.h.b16 %v3395
    %v3451 = vunpack.c.l.b16 %v3396
    %v3452 = vunpack.c.h.b16 %v3396
    %v3453 = vunpack.c.l.b16 %v3397
    %v3454 = vunpack.c.h.b16 %v3397
    %v3455 = vunpack.c.l.b16 %v3398
    %v3456 = vunpack.c.h.b16 %v3398
    %v3457 = vunpack.c.l.b16 %v3399
    %v3458 = vunpack.c.h.b16 %v3399
    %v3459 = vunpack.c.l.b16 %v3400
    %v3460 = vunpack.c.h.b16 %v3400
    %v3461 = vunpack.c.l.b16 %v3401
    %v3462 = vunpack.c.h.b16 %v3401
    %v3463 = vunpack.c.l.b16 %v3402
    %v3464 = vunpack.c.h.b16 %v3402
    %v3465 = vunpack.c.l.b16 %v3403
    %v3466 = vunpack.c.h.b16 %v3403
    %v3467 = vunpack.c.l.b16 %v3404
    %v3468 = vunpack.c.h.b16 %v3404
    %v3469 = vunpack.c.l.b16 %v3405
    %v3470 = vunpack.c.h.b16 %v3405
    %v3471 = vunpack.c.l.b16 %v3406
    %v3472 = vunpack.c.h.b16 %v3406
    %v3473 = vunpack.c.l.b16 %v3407
    %v3474 = vunpack.c.h.b16 %v3407
    %v3475 = vunpack.c.l.b16 %v3408
    %v3476 = vunpack.c.h.b16 %v3408
    %v3477 = vunpack.c.l.b16 %v3409
    %v3478 = vunpack.c.h.b16 %v3409
    %v3479 = vpack.c.b16 %v3439, %v3437
    %v3480 = vpack.c.b16 %v3440, %v3438
    %v3481 = vpack.c.b16 %v3443, %v3441
    %v3482 = vpack.c.b16 %v3444, %v3442
    %v3483 = vpack.c.b16 %v3447, %v3445
    %v3484 = vpack.c.b16 %v3448, %v3446
    %v3485 = vpack.c.b16 %v3451, %v3449
    %v3486 = vpack.c.b16 %v3452, %v3450
    %v3487 = vpack.c.b16 %v3455, %v3453
    %v3488 = vpack.c.b16 %v3456, %v3454
    %v3489 = vpack.c.b16 %v3459, %v3457
    %v3490 = vpack.c.b16 %v3460, %v3458
    %v3491 = vpack.c.b16 %v3463, %v3461
    %v3492 = vpack.c.b16 %v3464, %v3462
    %v3493 = vpack.c.b16 %v3467, %v3465
    %v3494 = vpack.c.b16 %v3468, %v3466
    %v3495 = vpack.c.b16 %v3471, %v3469
    %v3496 = vpack.c.b16 %v3472, %v3470
    %v3497 = vpack.c.b16 %v3475, %v3473
    %v3498 = vpack.c.b16 %v3476, %v3474
    %v3499 = vpack.c.b16 %v3477, %v3477
    %v3500 = vpack.c.b16 %v3478, %v3478
    %v3522 = vsel %vm180, %v3414, 0
    %v3525 = vsel %vm184, %v3499, 0
    %v3528 = vsel %vm184, %v3500, 0
    %3530 = vmatprep.subr.bf16.mxu0 %v3494
    %3531 = vmatpush1.bf16.msra.mxu0 %v3493
    %3532 = vmatprep.subr.bf16.mxu0 %v3492
    %3533 = vmatpush1.bf16.msra.mxu0 %v3491
    %3534 = vmatprep.subr.bf16.mxu0 %v3490
    %3535 = vmatpush1.bf16.msra.mxu0 %v3489
    %3536 = vmatprep.subr.bf16.mxu0 %v3488
    %3537 = vmatpush1.bf16.msra.mxu0 %v3487
    %3538 = vmatprep.subr.bf16.mxu0 %v3486
    %3539 = vmatpush1.bf16.msra.mxu0 %v3485
    %3540 = vmatprep.subr.bf16.mxu0 %v3484
    %3541 = vmatpush1.bf16.msra.mxu0 %v3483
    %3542 = vmatprep.subr.bf16.mxu0 %v3482
    %3543 = vmatpush1.bf16.msra.mxu0 %v3481
    %3544 = vmatprep.subr.bf16.mxu0 %v3480
    %3545 = vmatpush1.bf16.msra.mxu0 %v3479
    %3546 = vmatprep.subr.bf16.mxu0 0
    %3547 = vmatpush2.bf16.msra.mxu0 0
    %3548 = vmatprep.subr.bf16.mxu0 0
    %3549 = vmatpush2.bf16.msra.mxu0 0
    %3550 = vmatprep.subr.bf16.mxu0 0
    %3551 = vmatpush2.bf16.msra.mxu0 0
    %3552 = vmatprep.subr.bf16.mxu0 0
    %3553 = vmatpush2.bf16.msra.mxu0 0
    %3554 = vmatprep.subr.bf16.mxu0 0
    %3555 = vmatpush2.bf16.msra.mxu0 0
    %3556 = vmatprep.subr.bf16.mxu0 %v3528
    %3557 = vmatpush2.bf16.msra.mxu0 %v3525
    %3558 = vmatprep.subr.bf16.mxu0 %v3498
    %3559 = vmatpush2.bf16.msra.mxu0 %v3497
    %3560 = vmatprep.subr.bf16.mxu0 %v3496
    %3561 = vmatpush2.bf16.msra.mxu0 %v3495
    %3562 = vmatprep.mubr.bf16.mxu0 %v3522
    %3563 = vmatmul.mubr.bf16.gmra.mxu0 %v3413
    %v3564 = vpop.f32.mrf.mxu0
    %v3565 = vadd.f32 0.0, %v3564
    %v3566 = vpop.f32.mrf.mxu0
    %v3567 = vadd.f32 0.0, %v3566
    %v3568 = vpop.f32.mrf.mxu0
    %v3569 = vpop.f32.mrf.mxu0
    %3570 = vdwg.mxu0
    %v3571 = vmax.f32 %v3565, %v3567
    %v3572 = vld [vmem:[%s1 + $0x8] sm:$0xff]
    %v3573 = vld [vmem:[%s1 + $0x18] sm:$0xff]
    %v3574 = vld [vmem:[%s1 + $0x28] sm:$0xff]
    %v3575 = vld [vmem:[%s1 + $0x38] sm:$0xff]
    %v3576 = vld [vmem:[%s1 + $0x48] sm:$0xff]
    %v3577 = vld [vmem:[%s1 + $0x58] sm:$0xff]
    %v3578 = vld [vmem:[%s1 + $0x68] sm:$0xff]
    %v3579 = vld [vmem:[%s1 + $0x78] sm:$0xff]
    %v3580 = vld [vmem:[%s1 + $0x88] sm:$0xff]
    %v3581 = vld [vmem:[%s1 + $0x98] sm:$0xff]
    %v3582 = vld [vmem:[%s1 + $0xa8] sm:$0xff]
    %v3583 = vld [vmem:[%s1 + $0xb8] sm:$0xff]
    %v3584 = vld [vmem:[%s1 + $0xc8] sm:$0xff]
    %v3585 = vld [vmem:[%s1 + $0xd8] sm:$0xff]
    %v3586 = vld [vmem:[%s1 + $0xe8] sm:$0xff]
    %v3587 = vld [vmem:[%s1 + $0xf8] sm:$0xff]
    %v3588 = vld [vmem:[%s1 + $0x108] sm:$0xff]
    %v3589 = vld [vmem:[%s1 + $0x118] sm:$0xff]
    %v3590 = vld [vmem:[%s1 + $0x128] sm:$0xff]
    %v3591 = vld [vmem:[%s1 + $0x138] sm:$0xff]
    %v3592 = vld [vmem:[%s1 + $0x148] sm:$0xff]
    %v3614 = vunpack.c.l.b16 %v3572
    %v3615 = vunpack.c.h.b16 %v3572
    %v3616 = vunpack.c.l.b16 %v3573
    %v3617 = vunpack.c.h.b16 %v3573
    %v3618 = vunpack.c.l.b16 %v3574
    %v3619 = vunpack.c.h.b16 %v3574
    %v3620 = vunpack.c.l.b16 %v3575
    %v3621 = vunpack.c.h.b16 %v3575
    %v3622 = vunpack.c.l.b16 %v3576
    %v3623 = vunpack.c.h.b16 %v3576
    %v3624 = vunpack.c.l.b16 %v3577
    %v3625 = vunpack.c.h.b16 %v3577
    %v3626 = vunpack.c.l.b16 %v3578
    %v3627 = vunpack.c.h.b16 %v3578
    %v3628 = vunpack.c.l.b16 %v3579
    %v3629 = vunpack.c.h.b16 %v3579
    %v3630 = vunpack.c.l.b16 %v3580
    %v3631 = vunpack.c.h.b16 %v3580
    %v3632 = vunpack.c.l.b16 %v3581
    %v3633 = vunpack.c.h.b16 %v3581
    %v3634 = vunpack.c.l.b16 %v3582
    %v3635 = vunpack.c.h.b16 %v3582
    %v3636 = vunpack.c.l.b16 %v3583
    %v3637 = vunpack.c.h.b16 %v3583
    %v3638 = vunpack.c.l.b16 %v3584
    %v3639 = vunpack.c.h.b16 %v3584
    %v3640 = vunpack.c.l.b16 %v3585
    %v3641 = vunpack.c.h.b16 %v3585
    %v3642 = vunpack.c.l.b16 %v3586
    %v3643 = vunpack.c.h.b16 %v3586
    %v3644 = vunpack.c.l.b16 %v3587
    %v3645 = vunpack.c.h.b16 %v3587
    %v3646 = vunpack.c.l.b16 %v3588
    %v3647 = vunpack.c.h.b16 %v3588
    %v3648 = vunpack.c.l.b16 %v3589
    %v3649 = vunpack.c.h.b16 %v3589
    %v3650 = vunpack.c.l.b16 %v3590
    %v3651 = vunpack.c.h.b16 %v3590
    %v3652 = vunpack.c.l.b16 %v3591
    %v3653 = vunpack.c.h.b16 %v3591
    %v3654 = vunpack.c.l.b16 %v3592
    %v3655 = vunpack.c.h.b16 %v3592
    %v3656 = vpack.c.b16 %v3616, %v3614
    %v3657 = vpack.c.b16 %v3617, %v3615
    %v3658 = vpack.c.b16 %v3620, %v3618
    %v3659 = vpack.c.b16 %v3621, %v3619
    %v3660 = vpack.c.b16 %v3624, %v3622
    %v3661 = vpack.c.b16 %v3625, %v3623
    %v3662 = vpack.c.b16 %v3628, %v3626
    %v3663 = vpack.c.b16 %v3629, %v3627
    %v3664 = vpack.c.b16 %v3632, %v3630
    %v3665 = vpack.c.b16 %v3633, %v3631
    %v3666 = vpack.c.b16 %v3636, %v3634
    %v3667 = vpack.c.b16 %v3637, %v3635
    %v3668 = vpack.c.b16 %v3640, %v3638
    %v3669 = vpack.c.b16 %v3641, %v3639
    %v3670 = vpack.c.b16 %v3644, %v3642
    %v3671 = vpack.c.b16 %v3645, %v3643
    %v3672 = vpack.c.b16 %v3648, %v3646
    %v3673 = vpack.c.b16 %v3649, %v3647
    %v3674 = vpack.c.b16 %v3652, %v3650
    %v3675 = vpack.c.b16 %v3653, %v3651
    %v3676 = vpack.c.b16 %v3654, %v3654
    %v3677 = vpack.c.b16 %v3655, %v3655
    %v3699 = vsel %vm184, %v3676, 0
    %v3702 = vsel %vm184, %v3677, 0
    %3704 = vmatprep.subr.bf16.mxu0 %v3671
    %3705 = vmatpush1.bf16.msra.mxu0 %v3670
    %3706 = vmatprep.subr.bf16.mxu0 %v3669
    %3707 = vmatpush1.bf16.msra.mxu0 %v3668
    %3708 = vmatprep.subr.bf16.mxu0 %v3667
    %3709 = vmatpush1.bf16.msra.mxu0 %v3666
    %3710 = vmatprep.subr.bf16.mxu0 %v3665
    %3711 = vmatpush1.bf16.msra.mxu0 %v3664
    %3712 = vmatprep.subr.bf16.mxu0 %v3663
    %3713 = vmatpush1.bf16.msra.mxu0 %v3662
    %3714 = vmatprep.subr.bf16.mxu0 %v3661
    %3715 = vmatpush1.bf16.msra.mxu0 %v3660
    %3716 = vmatprep.subr.bf16.mxu0 %v3659
    %3717 = vmatpush1.bf16.msra.mxu0 %v3658
    %3718 = vmatprep.subr.bf16.mxu0 %v3657
    %3719 = vmatpush1.bf16.msra.mxu0 %v3656
    %3720 = vmatprep.subr.bf16.mxu0 0
    %3721 = vmatpush2.bf16.msra.mxu0 0
    %3722 = vmatprep.subr.bf16.mxu0 0
    %3723 = vmatpush2.bf16.msra.mxu0 0
    %3724 = vmatprep.subr.bf16.mxu0 0
    %3725 = vmatpush2.bf16.msra.mxu0 0
    %3726 = vmatprep.subr.bf16.mxu0 0
    %3727 = vmatpush2.bf16.msra.mxu0 0
    %3728 = vmatprep.subr.bf16.mxu0 0
    %3729 = vmatpush2.bf16.msra.mxu0 0
    %3730 = vmatprep.subr.bf16.mxu0 %v3702
    %3731 = vmatpush2.bf16.msra.mxu0 %v3699
    %3732 = vmatprep.subr.bf16.mxu0 %v3675
    %3733 = vmatpush2.bf16.msra.mxu0 %v3674
    %3734 = vmatprep.subr.bf16.mxu0 %v3673
    %3735 = vmatpush2.bf16.msra.mxu0 %v3672
    %3736 = vmatprep.mubr.bf16.mxu0 %v3522
    %3737 = vmatmul.mubr.bf16.gmra.mxu0 %v3413
    %v3738 = vpop.f32.mrf.mxu0
    %v3739 = vadd.f32 0.0, %v3738
    %v3740 = vpop.f32.mrf.mxu0
    %v3741 = vadd.f32 0.0, %v3740
    %v3742 = vpop.f32.mrf.mxu0
    %v3743 = vpop.f32.mrf.mxu0
    %3744 = vdwg.mxu0
    %v3745 = vmax.f32 %v3739, %v3741
    %v3746 = vmax.f32 %v3571, %v3745
    %v3747 = vld [vmem:[%s2] sm:$0x1]
    %v3749 = vlaneseq
    %v3750 = vshrl.u32 %v3749, 7
    %v3751 = vsub.s32 0, %v3750
    %v3752 = vrot.slane %v3747, %v3751
    %v3754 = vadd.f32 %v3746, %v3752
    %v3755 = vmax.f32 %v3754, 0.0
    %v3756 = vpack.c.bf16 %v3755, %v3755
    %3757 = vst [vmem:[#allocation2 + $0x24] sm:$0xf] %v3756
    %s3758 = scalar_lea.vmem %s0, 80
    %v3759 = vld [vmem:[%s3758] sm:$0xff]
    %v3760 = vld [vmem:[%s1] sm:$0xff]
    %v3761 = vld [vmem:[%s1 + $0x10] sm:$0xff]
    %v3762 = vld [vmem:[%s1 + $0x20] sm:$0xff]
    %v3763 = vld [vmem:[%s1 + $0x30] sm:$0xff]
    %v3764 = vld [vmem:[%s1 + $0x40] sm:$0xff]
    %v3765 = vld [vmem:[%s1 + $0x50] sm:$0xff]
    %v3766 = vld [vmem:[%s1 + $0x60] sm:$0xff]
    %v3767 = vld [vmem:[%s1 + $0x70] sm:$0xff]
    %v3768 = vld [vmem:[%s1 + $0x80] sm:$0xff]
    %v3769 = vld [vmem:[%s1 + $0x90] sm:$0xff]
    %v3770 = vld [vmem:[%s1 + $0xa0] sm:$0xff]
    %v3771 = vld [vmem:[%s1 + $0xb0] sm:$0xff]
    %v3772 = vld [vmem:[%s1 + $0xc0] sm:$0xff]
    %v3773 = vld [vmem:[%s1 + $0xd0] sm:$0xff]
    %v3774 = vld [vmem:[%s1 + $0xe0] sm:$0xff]
    %v3775 = vld [vmem:[%s1 + $0xf0] sm:$0xff]
    %v3776 = vld [vmem:[%s1 + $0x100] sm:$0xff]
    %v3777 = vld [vmem:[%s1 + $0x110] sm:$0xff]
    %v3778 = vld [vmem:[%s1 + $0x120] sm:$0xff]
    %v3779 = vld [vmem:[%s1 + $0x130] sm:$0xff]
    %v3780 = vld [vmem:[%s1 + $0x140] sm:$0xff]
    %v3782 = vunpack.c.l.b16 %v3759
    %v3783 = vunpack.c.h.b16 %v3759
    %v3784 = vpack.c.b16 %v3782, %v3782
    %v3785 = vpack.c.b16 %v3783, %v3783
    %v3808 = vunpack.c.l.b16 %v3760
    %v3809 = vunpack.c.h.b16 %v3760
    %v3810 = vunpack.c.l.b16 %v3761
    %v3811 = vunpack.c.h.b16 %v3761
    %v3812 = vunpack.c.l.b16 %v3762
    %v3813 = vunpack.c.h.b16 %v3762
    %v3814 = vunpack.c.l.b16 %v3763
    %v3815 = vunpack.c.h.b16 %v3763
    %v3816 = vunpack.c.l.b16 %v3764
    %v3817 = vunpack.c.h.b16 %v3764
    %v3818 = vunpack.c.l.b16 %v3765
    %v3819 = vunpack.c.h.b16 %v3765
    %v3820 = vunpack.c.l.b16 %v3766
    %v3821 = vunpack.c.h.b16 %v3766
    %v3822 = vunpack.c.l.b16 %v3767
    %v3823 = vunpack.c.h.b16 %v3767
    %v3824 = vunpack.c.l.b16 %v3768
    %v3825 = vunpack.c.h.b16 %v3768
    %v3826 = vunpack.c.l.b16 %v3769
    %v3827 = vunpack.c.h.b16 %v3769
    %v3828 = vunpack.c.l.b16 %v3770
    %v3829 = vunpack.c.h.b16 %v3770
    %v3830 = vunpack.c.l.b16 %v3771
    %v3831 = vunpack.c.h.b16 %v3771
    %v3832 = vunpack.c.l.b16 %v3772
    %v3833 = vunpack.c.h.b16 %v3772
    %v3834 = vunpack.c.l.b16 %v3773
    %v3835 = vunpack.c.h.b16 %v3773
    %v3836 = vunpack.c.l.b16 %v3774
    %v3837 = vunpack.c.h.b16 %v3774
    %v3838 = vunpack.c.l.b16 %v3775
    %v3839 = vunpack.c.h.b16 %v3775
    %v3840 = vunpack.c.l.b16 %v3776
    %v3841 = vunpack.c.h.b16 %v3776
    %v3842 = vunpack.c.l.b16 %v3777
    %v3843 = vunpack.c.h.b16 %v3777
    %v3844 = vunpack.c.l.b16 %v3778
    %v3845 = vunpack.c.h.b16 %v3778
    %v3846 = vunpack.c.l.b16 %v3779
    %v3847 = vunpack.c.h.b16 %v3779
    %v3848 = vunpack.c.l.b16 %v3780
    %v3849 = vunpack.c.h.b16 %v3780
    %v3850 = vpack.c.b16 %v3810, %v3808
    %v3851 = vpack.c.b16 %v3811, %v3809
    %v3852 = vpack.c.b16 %v3814, %v3812
    %v3853 = vpack.c.b16 %v3815, %v3813
    %v3854 = vpack.c.b16 %v3818, %v3816
    %v3855 = vpack.c.b16 %v3819, %v3817
    %v3856 = vpack.c.b16 %v3822, %v3820
    %v3857 = vpack.c.b16 %v3823, %v3821
    %v3858 = vpack.c.b16 %v3826, %v3824
    %v3859 = vpack.c.b16 %v3827, %v3825
    %v3860 = vpack.c.b16 %v3830, %v3828
    %v3861 = vpack.c.b16 %v3831, %v3829
    %v3862 = vpack.c.b16 %v3834, %v3832
    %v3863 = vpack.c.b16 %v3835, %v3833
    %v3864 = vpack.c.b16 %v3838, %v3836
    %v3865 = vpack.c.b16 %v3839, %v3837
    %v3866 = vpack.c.b16 %v3842, %v3840
    %v3867 = vpack.c.b16 %v3843, %v3841
    %v3868 = vpack.c.b16 %v3846, %v3844
    %v3869 = vpack.c.b16 %v3847, %v3845
    %v3870 = vpack.c.b16 %v3848, %v3848
    %v3871 = vpack.c.b16 %v3849, %v3849
    %v3893 = vsel %vm180, %v3785, 0
    %v3896 = vsel %vm184, %v3870, 0
    %v3899 = vsel %vm184, %v3871, 0
    %3901 = vmatprep.subr.bf16.mxu0 %v3865
    %3902 = vmatpush1.bf16.msra.mxu0 %v3864
    %3903 = vmatprep.subr.bf16.mxu0 %v3863
    %3904 = vmatpush1.bf16.msra.mxu0 %v3862
    %3905 = vmatprep.subr.bf16.mxu0 %v3861
    %3906 = vmatpush1.bf16.msra.mxu0 %v3860
    %3907 = vmatprep.subr.bf16.mxu0 %v3859
    %3908 = vmatpush1.bf16.msra.mxu0 %v3858
    %3909 = vmatprep.subr.bf16.mxu0 %v3857
    %3910 = vmatpush1.bf16.msra.mxu0 %v3856
    %3911 = vmatprep.subr.bf16.mxu0 %v3855
    %3912 = vmatpush1.bf16.msra.mxu0 %v3854
    %3913 = vmatprep.subr.bf16.mxu0 %v3853
    %3914 = vmatpush1.bf16.msra.mxu0 %v3852
    %3915 = vmatprep.subr.bf16.mxu0 %v3851
    %3916 = vmatpush1.bf16.msra.mxu0 %v3850
    %3917 = vmatprep.subr.bf16.mxu0 0
    %3918 = vmatpush2.bf16.msra.mxu0 0
    %3919 = vmatprep.subr.bf16.mxu0 0
    %3920 = vmatpush2.bf16.msra.mxu0 0
    %3921 = vmatprep.subr.bf16.mxu0 0
    %3922 = vmatpush2.bf16.msra.mxu0 0
    %3923 = vmatprep.subr.bf16.mxu0 0
    %3924 = vmatpush2.bf16.msra.mxu0 0
    %3925 = vmatprep.subr.bf16.mxu0 0
    %3926 = vmatpush2.bf16.msra.mxu0 0
    %3927 = vmatprep.subr.bf16.mxu0 %v3899
    %3928 = vmatpush2.bf16.msra.mxu0 %v3896
    %3929 = vmatprep.subr.bf16.mxu0 %v3869
    %3930 = vmatpush2.bf16.msra.mxu0 %v3868
    %3931 = vmatprep.subr.bf16.mxu0 %v3867
    %3932 = vmatpush2.bf16.msra.mxu0 %v3866
    %3933 = vmatprep.mubr.bf16.mxu0 %v3893
    %3934 = vmatmul.mubr.bf16.gmra.mxu0 %v3784
    %v3935 = vpop.f32.mrf.mxu0
    %v3936 = vadd.f32 0.0, %v3935
    %v3937 = vpop.f32.mrf.mxu0
    %v3938 = vadd.f32 0.0, %v3937
    %v3939 = vpop.f32.mrf.mxu0
    %v3940 = vpop.f32.mrf.mxu0
    %3941 = vdwg.mxu0
    %v3942 = vmax.f32 %v3936, %v3938
    %v3943 = vld [vmem:[%s1 + $0x8] sm:$0xff]
    %v3944 = vld [vmem:[%s1 + $0x18] sm:$0xff]
    %v3945 = vld [vmem:[%s1 + $0x28] sm:$0xff]
    %v3946 = vld [vmem:[%s1 + $0x38] sm:$0xff]
    %v3947 = vld [vmem:[%s1 + $0x48] sm:$0xff]
    %v3948 = vld [vmem:[%s1 + $0x58] sm:$0xff]
    %v3949 = vld [vmem:[%s1 + $0x68] sm:$0xff]
    %v3950 = vld [vmem:[%s1 + $0x78] sm:$0xff]
    %v3951 = vld [vmem:[%s1 + $0x88] sm:$0xff]
    %v3952 = vld [vmem:[%s1 + $0x98] sm:$0xff]
    %v3953 = vld [vmem:[%s1 + $0xa8] sm:$0xff]
    %v3954 = vld [vmem:[%s1 + $0xb8] sm:$0xff]
    %v3955 = vld [vmem:[%s1 + $0xc8] sm:$0xff]
    %v3956 = vld [vmem:[%s1 + $0xd8] sm:$0xff]
    %v3957 = vld [vmem:[%s1 + $0xe8] sm:$0xff]
    %v3958 = vld [vmem:[%s1 + $0xf8] sm:$0xff]
    %v3959 = vld [vmem:[%s1 + $0x108] sm:$0xff]
    %v3960 = vld [vmem:[%s1 + $0x118] sm:$0xff]
    %v3961 = vld [vmem:[%s1 + $0x128] sm:$0xff]
    %v3962 = vld [vmem:[%s1 + $0x138] sm:$0xff]
    %v3963 = vld [vmem:[%s1 + $0x148] sm:$0xff]
    %v3985 = vunpack.c.l.b16 %v3943
    %v3986 = vunpack.c.h.b16 %v3943
    %v3987 = vunpack.c.l.b16 %v3944
    %v3988 = vunpack.c.h.b16 %v3944
    %v3989 = vunpack.c.l.b16 %v3945
    %v3990 = vunpack.c.h.b16 %v3945
    %v3991 = vunpack.c.l.b16 %v3946
    %v3992 = vunpack.c.h.b16 %v3946
    %v3993 = vunpack.c.l.b16 %v3947
    %v3994 = vunpack.c.h.b16 %v3947
    %v3995 = vunpack.c.l.b16 %v3948
    %v3996 = vunpack.c.h.b16 %v3948
    %v3997 = vunpack.c.l.b16 %v3949
    %v3998 = vunpack.c.h.b16 %v3949
    %v3999 = vunpack.c.l.b16 %v3950
    %v4000 = vunpack.c.h.b16 %v3950
    %v4001 = vunpack.c.l.b16 %v3951
    %v4002 = vunpack.c.h.b16 %v3951
    %v4003 = vunpack.c.l.b16 %v3952
    %v4004 = vunpack.c.h.b16 %v3952
    %v4005 = vunpack.c.l.b16 %v3953
    %v4006 = vunpack.c.h.b16 %v3953
    %v4007 = vunpack.c.l.b16 %v3954
    %v4008 = vunpack.c.h.b16 %v3954
    %v4009 = vunpack.c.l.b16 %v3955
    %v4010 = vunpack.c.h.b16 %v3955
    %v4011 = vunpack.c.l.b16 %v3956
    %v4012 = vunpack.c.h.b16 %v3956
    %v4013 = vunpack.c.l.b16 %v3957
    %v4014 = vunpack.c.h.b16 %v3957
    %v4015 = vunpack.c.l.b16 %v3958
    %v4016 = vunpack.c.h.b16 %v3958
    %v4017 = vunpack.c.l.b16 %v3959
    %v4018 = vunpack.c.h.b16 %v3959
    %v4019 = vunpack.c.l.b16 %v3960
    %v4020 = vunpack.c.h.b16 %v3960
    %v4021 = vunpack.c.l.b16 %v3961
    %v4022 = vunpack.c.h.b16 %v3961
    %v4023 = vunpack.c.l.b16 %v3962
    %v4024 = vunpack.c.h.b16 %v3962
    %v4025 = vunpack.c.l.b16 %v3963
    %v4026 = vunpack.c.h.b16 %v3963
    %v4027 = vpack.c.b16 %v3987, %v3985
    %v4028 = vpack.c.b16 %v3988, %v3986
    %v4029 = vpack.c.b16 %v3991, %v3989
    %v4030 = vpack.c.b16 %v3992, %v3990
    %v4031 = vpack.c.b16 %v3995, %v3993
    %v4032 = vpack.c.b16 %v3996, %v3994
    %v4033 = vpack.c.b16 %v3999, %v3997
    %v4034 = vpack.c.b16 %v4000, %v3998
    %v4035 = vpack.c.b16 %v4003, %v4001
    %v4036 = vpack.c.b16 %v4004, %v4002
    %v4037 = vpack.c.b16 %v4007, %v4005
    %v4038 = vpack.c.b16 %v4008, %v4006
    %v4039 = vpack.c.b16 %v4011, %v4009
    %v4040 = vpack.c.b16 %v4012, %v4010
    %v4041 = vpack.c.b16 %v4015, %v4013
    %v4042 = vpack.c.b16 %v4016, %v4014
    %v4043 = vpack.c.b16 %v4019, %v4017
    %v4044 = vpack.c.b16 %v4020, %v4018
    %v4045 = vpack.c.b16 %v4023, %v4021
    %v4046 = vpack.c.b16 %v4024, %v4022
    %v4047 = vpack.c.b16 %v4025, %v4025
    %v4048 = vpack.c.b16 %v4026, %v4026
    %v4070 = vsel %vm184, %v4047, 0
    %v4073 = vsel %vm184, %v4048, 0
    %4075 = vmatprep.subr.bf16.mxu0 %v4042
    %4076 = vmatpush1.bf16.msra.mxu0 %v4041
    %4077 = vmatprep.subr.bf16.mxu0 %v4040
    %4078 = vmatpush1.bf16.msra.mxu0 %v4039
    %4079 = vmatprep.subr.bf16.mxu0 %v4038
    %4080 = vmatpush1.bf16.msra.mxu0 %v4037
    %4081 = vmatprep.subr.bf16.mxu0 %v4036
    %4082 = vmatpush1.bf16.msra.mxu0 %v4035
    %4083 = vmatprep.subr.bf16.mxu0 %v4034
    %4084 = vmatpush1.bf16.msra.mxu0 %v4033
    %4085 = vmatprep.subr.bf16.mxu0 %v4032
    %4086 = vmatpush1.bf16.msra.mxu0 %v4031
    %4087 = vmatprep.subr.bf16.mxu0 %v4030
    %4088 = vmatpush1.bf16.msra.mxu0 %v4029
    %4089 = vmatprep.subr.bf16.mxu0 %v4028
    %4090 = vmatpush1.bf16.msra.mxu0 %v4027
    %4091 = vmatprep.subr.bf16.mxu0 0
    %4092 = vmatpush2.bf16.msra.mxu0 0
    %4093 = vmatprep.subr.bf16.mxu0 0
    %4094 = vmatpush2.bf16.msra.mxu0 0
    %4095 = vmatprep.subr.bf16.mxu0 0
    %4096 = vmatpush2.bf16.msra.mxu0 0
    %4097 = vmatprep.subr.bf16.mxu0 0
    %4098 = vmatpush2.bf16.msra.mxu0 0
    %4099 = vmatprep.subr.bf16.mxu0 0
    %4100 = vmatpush2.bf16.msra.mxu0 0
    %4101 = vmatprep.subr.bf16.mxu0 %v4073
    %4102 = vmatpush2.bf16.msra.mxu0 %v4070
    %4103 = vmatprep.subr.bf16.mxu0 %v4046
    %4104 = vmatpush2.bf16.msra.mxu0 %v4045
    %4105 = vmatprep.subr.bf16.mxu0 %v4044
    %4106 = vmatpush2.bf16.msra.mxu0 %v4043
    %4107 = vmatprep.mubr.bf16.mxu0 %v3893
    %4108 = vmatmul.mubr.bf16.gmra.mxu0 %v3784
    %v4109 = vpop.f32.mrf.mxu0
    %v4110 = vadd.f32 0.0, %v4109
    %v4111 = vpop.f32.mrf.mxu0
    %v4112 = vadd.f32 0.0, %v4111
    %v4113 = vpop.f32.mrf.mxu0
    %v4114 = vpop.f32.mrf.mxu0
    %4115 = vdwg.mxu0
    %v4116 = vmax.f32 %v4110, %v4112
    %v4117 = vmax.f32 %v3942, %v4116
    %v4118 = vld [vmem:[%s2] sm:$0x1]
    %v4120 = vlaneseq
    %v4121 = vshrl.u32 %v4120, 7
    %v4122 = vsub.s32 0, %v4121
    %v4123 = vrot.slane %v4118, %v4122
    %v4125 = vadd.f32 %v4117, %v4123
    %v4126 = vmax.f32 %v4125, 0.0
    %v4127 = vpack.c.bf16 %v4126, %v4126
    %4128 = vst [vmem:[#allocation2 + $0x28] sm:$0xf] %v4127
    %s4129 = scalar_lea.vmem %s0, 88
    %v4130 = vld [vmem:[%s4129] sm:$0xff]
    %v4131 = vld [vmem:[%s1] sm:$0xff]
    %v4132 = vld [vmem:[%s1 + $0x10] sm:$0xff]
    %v4133 = vld [vmem:[%s1 + $0x20] sm:$0xff]
    %v4134 = vld [vmem:[%s1 + $0x30] sm:$0xff]
    %v4135 = vld [vmem:[%s1 + $0x40] sm:$0xff]
    %v4136 = vld [vmem:[%s1 + $0x50] sm:$0xff]
    %v4137 = vld [vmem:[%s1 + $0x60] sm:$0xff]
    %v4138 = vld [vmem:[%s1 + $0x70] sm:$0xff]
    %v4139 = vld [vmem:[%s1 + $0x80] sm:$0xff]
    %v4140 = vld [vmem:[%s1 + $0x90] sm:$0xff]
    %v4141 = vld [vmem:[%s1 + $0xa0] sm:$0xff]
    %v4142 = vld [vmem:[%s1 + $0xb0] sm:$0xff]
    %v4143 = vld [vmem:[%s1 + $0xc0] sm:$0xff]
    %v4144 = vld [vmem:[%s1 + $0xd0] sm:$0xff]
    %v4145 = vld [vmem:[%s1 + $0xe0] sm:$0xff]
    %v4146 = vld [vmem:[%s1 + $0xf0] sm:$0xff]
    %v4147 = vld [vmem:[%s1 + $0x100] sm:$0xff]
    %v4148 = vld [vmem:[%s1 + $0x110] sm:$0xff]
    %v4149 = vld [vmem:[%s1 + $0x120] sm:$0xff]
    %v4150 = vld [vmem:[%s1 + $0x130] sm:$0xff]
    %v4151 = vld [vmem:[%s1 + $0x140] sm:$0xff]
    %v4153 = vunpack.c.l.b16 %v4130
    %v4154 = vunpack.c.h.b16 %v4130
    %v4155 = vpack.c.b16 %v4153, %v4153
    %v4156 = vpack.c.b16 %v4154, %v4154
    %v4179 = vunpack.c.l.b16 %v4131
    %v4180 = vunpack.c.h.b16 %v4131
    %v4181 = vunpack.c.l.b16 %v4132
    %v4182 = vunpack.c.h.b16 %v4132
    %v4183 = vunpack.c.l.b16 %v4133
    %v4184 = vunpack.c.h.b16 %v4133
    %v4185 = vunpack.c.l.b16 %v4134
    %v4186 = vunpack.c.h.b16 %v4134
    %v4187 = vunpack.c.l.b16 %v4135
    %v4188 = vunpack.c.h.b16 %v4135
    %v4189 = vunpack.c.l.b16 %v4136
    %v4190 = vunpack.c.h.b16 %v4136
    %v4191 = vunpack.c.l.b16 %v4137
    %v4192 = vunpack.c.h.b16 %v4137
    %v4193 = vunpack.c.l.b16 %v4138
    %v4194 = vunpack.c.h.b16 %v4138
    %v4195 = vunpack.c.l.b16 %v4139
    %v4196 = vunpack.c.h.b16 %v4139
    %v4197 = vunpack.c.l.b16 %v4140
    %v4198 = vunpack.c.h.b16 %v4140
    %v4199 = vunpack.c.l.b16 %v4141
    %v4200 = vunpack.c.h.b16 %v4141
    %v4201 = vunpack.c.l.b16 %v4142
    %v4202 = vunpack.c.h.b16 %v4142
    %v4203 = vunpack.c.l.b16 %v4143
    %v4204 = vunpack.c.h.b16 %v4143
    %v4205 = vunpack.c.l.b16 %v4144
    %v4206 = vunpack.c.h.b16 %v4144
    %v4207 = vunpack.c.l.b16 %v4145
    %v4208 = vunpack.c.h.b16 %v4145
    %v4209 = vunpack.c.l.b16 %v4146
    %v4210 = vunpack.c.h.b16 %v4146
    %v4211 = vunpack.c.l.b16 %v4147
    %v4212 = vunpack.c.h.b16 %v4147
    %v4213 = vunpack.c.l.b16 %v4148
    %v4214 = vunpack.c.h.b16 %v4148
    %v4215 = vunpack.c.l.b16 %v4149
    %v4216 = vunpack.c.h.b16 %v4149
    %v4217 = vunpack.c.l.b16 %v4150
    %v4218 = vunpack.c.h.b16 %v4150
    %v4219 = vunpack.c.l.b16 %v4151
    %v4220 = vunpack.c.h.b16 %v4151
    %v4221 = vpack.c.b16 %v4181, %v4179
    %v4222 = vpack.c.b16 %v4182, %v4180
    %v4223 = vpack.c.b16 %v4185, %v4183
    %v4224 = vpack.c.b16 %v4186, %v4184
    %v4225 = vpack.c.b16 %v4189, %v4187
    %v4226 = vpack.c.b16 %v4190, %v4188
    %v4227 = vpack.c.b16 %v4193, %v4191
    %v4228 = vpack.c.b16 %v4194, %v4192
    %v4229 = vpack.c.b16 %v4197, %v4195
    %v4230 = vpack.c.b16 %v4198, %v4196
    %v4231 = vpack.c.b16 %v4201, %v4199
    %v4232 = vpack.c.b16 %v4202, %v4200
    %v4233 = vpack.c.b16 %v4205, %v4203
    %v4234 = vpack.c.b16 %v4206, %v4204
    %v4235 = vpack.c.b16 %v4209, %v4207
    %v4236 = vpack.c.b16 %v4210, %v4208
    %v4237 = vpack.c.b16 %v4213, %v4211
    %v4238 = vpack.c.b16 %v4214, %v4212
    %v4239 = vpack.c.b16 %v4217, %v4215
    %v4240 = vpack.c.b16 %v4218, %v4216
    %v4241 = vpack.c.b16 %v4219, %v4219
    %v4242 = vpack.c.b16 %v4220, %v4220
    %v4264 = vsel %vm180, %v4156, 0
    %v4267 = vsel %vm184, %v4241, 0
    %v4270 = vsel %vm184, %v4242, 0
    %4272 = vmatprep.subr.bf16.mxu0 %v4236
    %4273 = vmatpush1.bf16.msra.mxu0 %v4235
    %4274 = vmatprep.subr.bf16.mxu0 %v4234
    %4275 = vmatpush1.bf16.msra.mxu0 %v4233
    %4276 = vmatprep.subr.bf16.mxu0 %v4232
    %4277 = vmatpush1.bf16.msra.mxu0 %v4231
    %4278 = vmatprep.subr.bf16.mxu0 %v4230
    %4279 = vmatpush1.bf16.msra.mxu0 %v4229
    %4280 = vmatprep.subr.bf16.mxu0 %v4228
    %4281 = vmatpush1.bf16.msra.mxu0 %v4227
    %4282 = vmatprep.subr.bf16.mxu0 %v4226
    %4283 = vmatpush1.bf16.msra.mxu0 %v4225
    %4284 = vmatprep.subr.bf16.mxu0 %v4224
    %4285 = vmatpush1.bf16.msra.mxu0 %v4223
    %4286 = vmatprep.subr.bf16.mxu0 %v4222
    %4287 = vmatpush1.bf16.msra.mxu0 %v4221
    %4288 = vmatprep.subr.bf16.mxu0 0
    %4289 = vmatpush2.bf16.msra.mxu0 0
    %4290 = vmatprep.subr.bf16.mxu0 0
    %4291 = vmatpush2.bf16.msra.mxu0 0
    %4292 = vmatprep.subr.bf16.mxu0 0
    %4293 = vmatpush2.bf16.msra.mxu0 0
    %4294 = vmatprep.subr.bf16.mxu0 0
    %4295 = vmatpush2.bf16.msra.mxu0 0
    %4296 = vmatprep.subr.bf16.mxu0 0
    %4297 = vmatpush2.bf16.msra.mxu0 0
    %4298 = vmatprep.subr.bf16.mxu0 %v4270
    %4299 = vmatpush2.bf16.msra.mxu0 %v4267
    %4300 = vmatprep.subr.bf16.mxu0 %v4240
    %4301 = vmatpush2.bf16.msra.mxu0 %v4239
    %4302 = vmatprep.subr.bf16.mxu0 %v4238
    %4303 = vmatpush2.bf16.msra.mxu0 %v4237
    %4304 = vmatprep.mubr.bf16.mxu0 %v4264
    %4305 = vmatmul.mubr.bf16.gmra.mxu0 %v4155
    %v4306 = vpop.f32.mrf.mxu0
    %v4307 = vadd.f32 0.0, %v4306
    %v4308 = vpop.f32.mrf.mxu0
    %v4309 = vadd.f32 0.0, %v4308
    %v4310 = vpop.f32.mrf.mxu0
    %v4311 = vpop.f32.mrf.mxu0
    %4312 = vdwg.mxu0
    %v4313 = vmax.f32 %v4307, %v4309
    %v4314 = vld [vmem:[%s1 + $0x8] sm:$0xff]
    %v4315 = vld [vmem:[%s1 + $0x18] sm:$0xff]
    %v4316 = vld [vmem:[%s1 + $0x28] sm:$0xff]
    %v4317 = vld [vmem:[%s1 + $0x38] sm:$0xff]
    %v4318 = vld [vmem:[%s1 + $0x48] sm:$0xff]
    %v4319 = vld [vmem:[%s1 + $0x58] sm:$0xff]
    %v4320 = vld [vmem:[%s1 + $0x68] sm:$0xff]
    %v4321 = vld [vmem:[%s1 + $0x78] sm:$0xff]
    %v4322 = vld [vmem:[%s1 + $0x88] sm:$0xff]
    %v4323 = vld [vmem:[%s1 + $0x98] sm:$0xff]
    %v4324 = vld [vmem:[%s1 + $0xa8] sm:$0xff]
    %v4325 = vld [vmem:[%s1 + $0xb8] sm:$0xff]
    %v4326 = vld [vmem:[%s1 + $0xc8] sm:$0xff]
    %v4327 = vld [vmem:[%s1 + $0xd8] sm:$0xff]
    %v4328 = vld [vmem:[%s1 + $0xe8] sm:$0xff]
    %v4329 = vld [vmem:[%s1 + $0xf8] sm:$0xff]
    %v4330 = vld [vmem:[%s1 + $0x108] sm:$0xff]
    %v4331 = vld [vmem:[%s1 + $0x118] sm:$0xff]
    %v4332 = vld [vmem:[%s1 + $0x128] sm:$0xff]
    %v4333 = vld [vmem:[%s1 + $0x138] sm:$0xff]
    %v4334 = vld [vmem:[%s1 + $0x148] sm:$0xff]
    %v4356 = vunpack.c.l.b16 %v4314
    %v4357 = vunpack.c.h.b16 %v4314
    %v4358 = vunpack.c.l.b16 %v4315
    %v4359 = vunpack.c.h.b16 %v4315
    %v4360 = vunpack.c.l.b16 %v4316
    %v4361 = vunpack.c.h.b16 %v4316
    %v4362 = vunpack.c.l.b16 %v4317
    %v4363 = vunpack.c.h.b16 %v4317
    %v4364 = vunpack.c.l.b16 %v4318
    %v4365 = vunpack.c.h.b16 %v4318
    %v4366 = vunpack.c.l.b16 %v4319
    %v4367 = vunpack.c.h.b16 %v4319
    %v4368 = vunpack.c.l.b16 %v4320
    %v4369 = vunpack.c.h.b16 %v4320
    %v4370 = vunpack.c.l.b16 %v4321
    %v4371 = vunpack.c.h.b16 %v4321
    %v4372 = vunpack.c.l.b16 %v4322
    %v4373 = vunpack.c.h.b16 %v4322
    %v4374 = vunpack.c.l.b16 %v4323
    %v4375 = vunpack.c.h.b16 %v4323
    %v4376 = vunpack.c.l.b16 %v4324
    %v4377 = vunpack.c.h.b16 %v4324
    %v4378 = vunpack.c.l.b16 %v4325
    %v4379 = vunpack.c.h.b16 %v4325
    %v4380 = vunpack.c.l.b16 %v4326
    %v4381 = vunpack.c.h.b16 %v4326
    %v4382 = vunpack.c.l.b16 %v4327
    %v4383 = vunpack.c.h.b16 %v4327
    %v4384 = vunpack.c.l.b16 %v4328
    %v4385 = vunpack.c.h.b16 %v4328
    %v4386 = vunpack.c.l.b16 %v4329
    %v4387 = vunpack.c.h.b16 %v4329
    %v4388 = vunpack.c.l.b16 %v4330
    %v4389 = vunpack.c.h.b16 %v4330
    %v4390 = vunpack.c.l.b16 %v4331
    %v4391 = vunpack.c.h.b16 %v4331
    %v4392 = vunpack.c.l.b16 %v4332
    %v4393 = vunpack.c.h.b16 %v4332
    %v4394 = vunpack.c.l.b16 %v4333
    %v4395 = vunpack.c.h.b16 %v4333
    %v4396 = vunpack.c.l.b16 %v4334
    %v4397 = vunpack.c.h.b16 %v4334
    %v4398 = vpack.c.b16 %v4358, %v4356
    %v4399 = vpack.c.b16 %v4359, %v4357
    %v4400 = vpack.c.b16 %v4362, %v4360
    %v4401 = vpack.c.b16 %v4363, %v4361
    %v4402 = vpack.c.b16 %v4366, %v4364
    %v4403 = vpack.c.b16 %v4367, %v4365
    %v4404 = vpack.c.b16 %v4370, %v4368
    %v4405 = vpack.c.b16 %v4371, %v4369
    %v4406 = vpack.c.b16 %v4374, %v4372
    %v4407 = vpack.c.b16 %v4375, %v4373
    %v4408 = vpack.c.b16 %v4378, %v4376
    %v4409 = vpack.c.b16 %v4379, %v4377
    %v4410 = vpack.c.b16 %v4382, %v4380
    %v4411 = vpack.c.b16 %v4383, %v4381
    %v4412 = vpack.c.b16 %v4386, %v4384
    %v4413 = vpack.c.b16 %v4387, %v4385
    %v4414 = vpack.c.b16 %v4390, %v4388
    %v4415 = vpack.c.b16 %v4391, %v4389
    %v4416 = vpack.c.b16 %v4394, %v4392
    %v4417 = vpack.c.b16 %v4395, %v4393
    %v4418 = vpack.c.b16 %v4396, %v4396
    %v4419 = vpack.c.b16 %v4397, %v4397
    %v4441 = vsel %vm184, %v4418, 0
    %v4444 = vsel %vm184, %v4419, 0
    %4446 = vmatprep.subr.bf16.mxu0 %v4413
    %4447 = vmatpush1.bf16.msra.mxu0 %v4412
    %4448 = vmatprep.subr.bf16.mxu0 %v4411
    %4449 = vmatpush1.bf16.msra.mxu0 %v4410
    %4450 = vmatprep.subr.bf16.mxu0 %v4409
    %4451 = vmatpush1.bf16.msra.mxu0 %v4408
    %4452 = vmatprep.subr.bf16.mxu0 %v4407
    %4453 = vmatpush1.bf16.msra.mxu0 %v4406
    %4454 = vmatprep.subr.bf16.mxu0 %v4405
    %4455 = vmatpush1.bf16.msra.mxu0 %v4404
    %4456 = vmatprep.subr.bf16.mxu0 %v4403
    %4457 = vmatpush1.bf16.msra.mxu0 %v4402
    %4458 = vmatprep.subr.bf16.mxu0 %v4401
    %4459 = vmatpush1.bf16.msra.mxu0 %v4400
    %4460 = vmatprep.subr.bf16.mxu0 %v4399
    %4461 = vmatpush1.bf16.msra.mxu0 %v4398
    %4462 = vmatprep.subr.bf16.mxu0 0
    %4463 = vmatpush2.bf16.msra.mxu0 0
    %4464 = vmatprep.subr.bf16.mxu0 0
    %4465 = vmatpush2.bf16.msra.mxu0 0
    %4466 = vmatprep.subr.bf16.mxu0 0
    %4467 = vmatpush2.bf16.msra.mxu0 0
    %4468 = vmatprep.subr.bf16.mxu0 0
    %4469 = vmatpush2.bf16.msra.mxu0 0
    %4470 = vmatprep.subr.bf16.mxu0 0
    %4471 = vmatpush2.bf16.msra.mxu0 0
    %4472 = vmatprep.subr.bf16.mxu0 %v4444
    %4473 = vmatpush2.bf16.msra.mxu0 %v4441
    %4474 = vmatprep.subr.bf16.mxu0 %v4417
    %4475 = vmatpush2.bf16.msra.mxu0 %v4416
    %4476 = vmatprep.subr.bf16.mxu0 %v4415
    %4477 = vmatpush2.bf16.msra.mxu0 %v4414
    %4478 = vmatprep.mubr.bf16.mxu0 %v4264
    %4479 = vmatmul.mubr.bf16.gmra.mxu0 %v4155
    %v4480 = vpop.f32.mrf.mxu0
    %v4481 = vadd.f32 0.0, %v4480
    %v4482 = vpop.f32.mrf.mxu0
    %v4483 = vadd.f32 0.0, %v4482
    %v4484 = vpop.f32.mrf.mxu0
    %v4485 = vpop.f32.mrf.mxu0
    %4486 = vdwg.mxu0
    %v4487 = vmax.f32 %v4481, %v4483
    %v4488 = vmax.f32 %v4313, %v4487
    %v4489 = vld [vmem:[%s2] sm:$0x1]
    %v4491 = vlaneseq
    %v4492 = vshrl.u32 %v4491, 7
    %v4493 = vsub.s32 0, %v4492
    %v4494 = vrot.slane %v4489, %v4493
    %v4496 = vadd.f32 %v4488, %v4494
    %v4497 = vmax.f32 %v4496, 0.0
    %v4498 = vpack.c.bf16 %v4497, %v4497
    %4499 = vst [vmem:[#allocation2 + $0x2c] sm:$0xf] %v4498
    %v4500 = vld [vmem:[#allocation2] sm:$0xff]
    %v4501 = vld [vmem:[#allocation2 + $0x8] sm:$0xff]
    %v4502 = vld [vmem:[#allocation2 + $0x10] sm:$0xff]
    %v4503 = vld [vmem:[#allocation4] sm:$0xff]
    %v4504 = vld [vmem:[#allocation4 + $0x10] sm:$0xff]
    %v4505 = vld [vmem:[#allocation4 + $0x20] sm:$0xff]
    %v4506 = vld [vmem:[#allocation4 + $0x30] sm:$0xff]
    %v4507 = vld [vmem:[#allocation4 + $0x40] sm:$0xff]
    %v4508 = vld [vmem:[#allocation4 + $0x50] sm:$0xff]
    %v4509 = vld [vmem:[#allocation4 + $0x60] sm:$0xff]
    %v4510 = vld [vmem:[#allocation4 + $0x70] sm:$0xff]
    %v4511 = vld [vmem:[#allocation4 + $0x80] sm:$0xff]
    %v4512 = vld [vmem:[#allocation4 + $0x90] sm:$0xff]
    %v4513 = vld [vmem:[#allocation4 + $0xa0] sm:$0xff]
    %v4514 = vld [vmem:[#allocation4 + $0xb0] sm:$0xff]
    %v4515 = vld [vmem:[#allocation4 + $0xc0] sm:$0xff]
    %v4516 = vld [vmem:[#allocation4 + $0xd0] sm:$0xff]
    %v4517 = vld [vmem:[#allocation4 + $0xe0] sm:$0xff]
    %v4518 = vld [vmem:[#allocation4 + $0xf0] sm:$0xff]
    %v4519 = vld [vmem:[#allocation4 + $0x100] sm:$0xff]
    %v4520 = vld [vmem:[#allocation4 + $0x110] sm:$0xff]
    %v4521 = vld [vmem:[#allocation4 + $0x120] sm:$0xff]
    %v4522 = vld [vmem:[#allocation4 + $0x130] sm:$0xff]
    %v4523 = vld [vmem:[#allocation4 + $0x140] sm:$0xff]
    %v4524 = vld [vmem:[#allocation4 + $0x150] sm:$0xff]
    %v4525 = vld [vmem:[#allocation4 + $0x160] sm:$0xff]
    %v4526 = vld [vmem:[#allocation4 + $0x170] sm:$0xff]
    %v4527 = vld [vmem:[#allocation4 + $0x180] sm:$0xff]
    %v4528 = vld [vmem:[#allocation4 + $0x190] sm:$0xff]
    %v4529 = vld [vmem:[#allocation4 + $0x1a0] sm:$0xff]
    %v4530 = vld [vmem:[#allocation4 + $0x1b0] sm:$0xff]
    %v4531 = vld [vmem:[#allocation4 + $0x1c0] sm:$0xff]
    %v4532 = vld [vmem:[#allocation4 + $0x1d0] sm:$0xff]
    %v4533 = vld [vmem:[#allocation4 + $0x1e0] sm:$0xff]
    %v4534 = vld [vmem:[#allocation4 + $0x1f0] sm:$0xff]
    %v4535 = vld [vmem:[#allocation4 + $0x200] sm:$0xff]
    %v4536 = vld [vmem:[#allocation4 + $0x210] sm:$0xff]
    %v4537 = vld [vmem:[#allocation4 + $0x220] sm:$0xff]
    %v4538 = vld [vmem:[#allocation4 + $0x230] sm:$0xff]
    %v4539 = vld [vmem:[#allocation4 + $0x240] sm:$0xff]
    %v4540 = vld [vmem:[#allocation4 + $0x250] sm:$0xff]
    %v4541 = vld [vmem:[#allocation4 + $0x260] sm:$0xff]
    %v4542 = vld [vmem:[#allocation4 + $0x270] sm:$0xff]
    %v4543 = vld [vmem:[#allocation4 + $0x280] sm:$0xff]
    %v4544 = vld [vmem:[#allocation4 + $0x290] sm:$0xff]
    %v4545 = vld [vmem:[#allocation4 + $0x2a0] sm:$0xff]
    %v4546 = vld [vmem:[#allocation4 + $0x2b0] sm:$0xff]
    %v4547 = vld [vmem:[#allocation4 + $0x2c0] sm:$0xff]
    %v4548 = vld [vmem:[#allocation4 + $0x2d0] sm:$0xff]
    %v4549 = vld [vmem:[#allocation4 + $0x2e0] sm:$0xff]
    %v4550 = vld [vmem:[#allocation4 + $0x2f0] sm:$0xff]
    %v4551 = vld [vmem:[#allocation4 + $0x300] sm:$0xff]
    %v4552 = vld [vmem:[#allocation4 + $0x310] sm:$0xff]
    %v4553 = vld [vmem:[#allocation4 + $0x320] sm:$0xff]
    %v4554 = vld [vmem:[#allocation4 + $0x330] sm:$0xff]
    %v4555 = vld [vmem:[#allocation4 + $0x340] sm:$0xff]
    %v4556 = vld [vmem:[#allocation4 + $0x350] sm:$0xff]
    %v4557 = vld [vmem:[#allocation4 + $0x360] sm:$0xff]
    %v4558 = vld [vmem:[#allocation4 + $0x370] sm:$0xff]
    %v4559 = vld [vmem:[#allocation4 + $0x380] sm:$0xff]
    %v4560 = vld [vmem:[#allocation4 + $0x390] sm:$0xff]
    %v4561 = vld [vmem:[#allocation4 + $0x3a0] sm:$0xff]
    %v4562 = vld [vmem:[#allocation4 + $0x3b0] sm:$0xff]
    %v4563 = vld [vmem:[#allocation4 + $0x3c0] sm:$0xff]
    %v4564 = vld [vmem:[#allocation4 + $0x3d0] sm:$0xff]
    %v4565 = vld [vmem:[#allocation4 + $0x3e0] sm:$0xff]
    %v4566 = vld [vmem:[#allocation4 + $0x3f0] sm:$0xff]
    %v4567 = vld [vmem:[#allocation4 + $0x400] sm:$0xff]
    %v4568 = vld [vmem:[#allocation4 + $0x410] sm:$0xff]
    %v4569 = vld [vmem:[#allocation4 + $0x420] sm:$0xff]
    %v4570 = vld [vmem:[#allocation4 + $0x430] sm:$0xff]
    %v4571 = vld [vmem:[#allocation4 + $0x440] sm:$0xff]
    %v4572 = vld [vmem:[#allocation4 + $0x450] sm:$0xff]
    %v4573 = vld [vmem:[#allocation4 + $0x460] sm:$0xff]
    %v4574 = vld [vmem:[#allocation4 + $0x470] sm:$0xff]
    %v4575 = vld [vmem:[#allocation4 + $0x480] sm:$0xff]
    %v4576 = vld [vmem:[#allocation4 + $0x490] sm:$0xff]
    %v4577 = vld [vmem:[#allocation4 + $0x4a0] sm:$0xff]
    %v4578 = vld [vmem:[#allocation4 + $0x4b0] sm:$0xff]
    %v4579 = vld [vmem:[#allocation4 + $0x4c0] sm:$0xff]
    %v4580 = vld [vmem:[#allocation4 + $0x4d0] sm:$0xff]
    %v4581 = vld [vmem:[#allocation4 + $0x4e0] sm:$0xff]
    %v4582 = vld [vmem:[#allocation4 + $0x4f0] sm:$0xff]
    %v4583 = vld [vmem:[#allocation4 + $0x500] sm:$0xff]
    %v4584 = vld [vmem:[#allocation4 + $0x510] sm:$0xff]
    %v4585 = vld [vmem:[#allocation4 + $0x520] sm:$0xff]
    %v4586 = vld [vmem:[#allocation4 + $0x530] sm:$0xff]
    %v4587 = vld [vmem:[#allocation4 + $0x540] sm:$0xff]
    %v4588 = vld [vmem:[#allocation4 + $0x550] sm:$0xff]
    %v4589 = vld [vmem:[#allocation4 + $0x560] sm:$0xff]
    %v4590 = vld [vmem:[#allocation4 + $0x570] sm:$0xff]
    %v4591 = vld [vmem:[#allocation4 + $0x580] sm:$0xff]
    %v4592 = vld [vmem:[#allocation4 + $0x590] sm:$0xff]
    %v4593 = vld [vmem:[#allocation4 + $0x5a0] sm:$0xff]
    %v4594 = vld [vmem:[#allocation4 + $0x5b0] sm:$0xff]
    %v4595 = vld [vmem:[#allocation4 + $0x5c0] sm:$0xff]
    %v4596 = vld [vmem:[#allocation4 + $0x5d0] sm:$0xff]
    %v4597 = vld [vmem:[#allocation4 + $0x5e0] sm:$0xff]
    %v4598 = vld [vmem:[#allocation4 + $0x5f0] sm:$0xff]
    %v4602 = vunpack.c.l.b16 %v4500
    %v4603 = vunpack.c.h.b16 %v4500
    %v4604 = vunpack.c.l.b16 %v4501
    %v4605 = vunpack.c.h.b16 %v4501
    %v4606 = vunpack.c.l.b16 %v4502
    %v4607 = vunpack.c.h.b16 %v4502
    %v4608 = vpack.c.b16 %v4602, %v4602
    %v4609 = vpack.c.b16 %v4603, %v4603
    %v4610 = vpack.c.b16 %v4604, %v4604
    %v4611 = vpack.c.b16 %v4605, %v4605
    %v4612 = vpack.c.b16 %v4606, %v4606
    %v4613 = vpack.c.b16 %v4607, %v4607
    %v4716 = vunpack.c.l.b16 %v4503
    %v4717 = vunpack.c.h.b16 %v4503
    %v4718 = vunpack.c.l.b16 %v4504
    %v4719 = vunpack.c.h.b16 %v4504
    %v4720 = vunpack.c.l.b16 %v4505
    %v4721 = vunpack.c.h.b16 %v4505
    %v4722 = vunpack.c.l.b16 %v4506
    %v4723 = vunpack.c.h.b16 %v4506
    %v4724 = vunpack.c.l.b16 %v4507
    %v4725 = vunpack.c.h.b16 %v4507
    %v4726 = vunpack.c.l.b16 %v4508
    %v4727 = vunpack.c.h.b16 %v4508
    %v4728 = vunpack.c.l.b16 %v4509
    %v4729 = vunpack.c.h.b16 %v4509
    %v4730 = vunpack.c.l.b16 %v4510
    %v4731 = vunpack.c.h.b16 %v4510
    %v4732 = vunpack.c.l.b16 %v4511
    %v4733 = vunpack.c.h.b16 %v4511
    %v4734 = vunpack.c.l.b16 %v4512
    %v4735 = vunpack.c.h.b16 %v4512
    %v4736 = vunpack.c.l.b16 %v4513
    %v4737 = vunpack.c.h.b16 %v4513
    %v4738 = vunpack.c.l.b16 %v4514
    %v4739 = vunpack.c.h.b16 %v4514
    %v4740 = vunpack.c.l.b16 %v4515
    %v4741 = vunpack.c.h.b16 %v4515
    %v4742 = vunpack.c.l.b16 %v4516
    %v4743 = vunpack.c.h.b16 %v4516
    %v4744 = vunpack.c.l.b16 %v4517
    %v4745 = vunpack.c.h.b16 %v4517
    %v4746 = vunpack.c.l.b16 %v4518
    %v4747 = vunpack.c.h.b16 %v4518
    %v4748 = vunpack.c.l.b16 %v4519
    %v4749 = vunpack.c.h.b16 %v4519
    %v4750 = vunpack.c.l.b16 %v4520
    %v4751 = vunpack.c.h.b16 %v4520
    %v4752 = vunpack.c.l.b16 %v4521
    %v4753 = vunpack.c.h.b16 %v4521
    %v4754 = vunpack.c.l.b16 %v4522
    %v4755 = vunpack.c.h.b16 %v4522
    %v4756 = vunpack.c.l.b16 %v4523
    %v4757 = vunpack.c.h.b16 %v4523
    %v4758 = vunpack.c.l.b16 %v4524
    %v4759 = vunpack.c.h.b16 %v4524
    %v4760 = vunpack.c.l.b16 %v4525
    %v4761 = vunpack.c.h.b16 %v4525
    %v4762 = vunpack.c.l.b16 %v4526
    %v4763 = vunpack.c.h.b16 %v4526
    %v4764 = vunpack.c.l.b16 %v4527
    %v4765 = vunpack.c.h.b16 %v4527
    %v4766 = vunpack.c.l.b16 %v4528
    %v4767 = vunpack.c.h.b16 %v4528
    %v4768 = vunpack.c.l.b16 %v4529
    %v4769 = vunpack.c.h.b16 %v4529
    %v4770 = vunpack.c.l.b16 %v4530
    %v4771 = vunpack.c.h.b16 %v4530
    %v4772 = vunpack.c.l.b16 %v4531
    %v4773 = vunpack.c.h.b16 %v4531
    %v4774 = vunpack.c.l.b16 %v4532
    %v4775 = vunpack.c.h.b16 %v4532
    %v4776 = vunpack.c.l.b16 %v4533
    %v4777 = vunpack.c.h.b16 %v4533
    %v4778 = vunpack.c.l.b16 %v4534
    %v4779 = vunpack.c.h.b16 %v4534
    %v4780 = vunpack.c.l.b16 %v4535
    %v4781 = vunpack.c.h.b16 %v4535
    %v4782 = vunpack.c.l.b16 %v4536
    %v4783 = vunpack.c.h.b16 %v4536
    %v4784 = vunpack.c.l.b16 %v4537
    %v4785 = vunpack.c.h.b16 %v4537
    %v4786 = vunpack.c.l.b16 %v4538
    %v4787 = vunpack.c.h.b16 %v4538
    %v4788 = vunpack.c.l.b16 %v4539
    %v4789 = vunpack.c.h.b16 %v4539
    %v4790 = vunpack.c.l.b16 %v4540
    %v4791 = vunpack.c.h.b16 %v4540
    %v4792 = vunpack.c.l.b16 %v4541
    %v4793 = vunpack.c.h.b16 %v4541
    %v4794 = vunpack.c.l.b16 %v4542
    %v4795 = vunpack.c.h.b16 %v4542
    %v4796 = vunpack.c.l.b16 %v4543
    %v4797 = vunpack.c.h.b16 %v4543
    %v4798 = vunpack.c.l.b16 %v4544
    %v4799 = vunpack.c.h.b16 %v4544
    %v4800 = vunpack.c.l.b16 %v4545
    %v4801 = vunpack.c.h.b16 %v4545
    %v4802 = vunpack.c.l.b16 %v4546
    %v4803 = vunpack.c.h.b16 %v4546
    %v4804 = vunpack.c.l.b16 %v4547
    %v4805 = vunpack.c.h.b16 %v4547
    %v4806 = vunpack.c.l.b16 %v4548
    %v4807 = vunpack.c.h.b16 %v4548
    %v4808 = vunpack.c.l.b16 %v4549
    %v4809 = vunpack.c.h.b16 %v4549
    %v4810 = vunpack.c.l.b16 %v4550
    %v4811 = vunpack.c.h.b16 %v4550
    %v4812 = vunpack.c.l.b16 %v4551
    %v4813 = vunpack.c.h.b16 %v4551
    %v4814 = vunpack.c.l.b16 %v4552
    %v4815 = vunpack.c.h.b16 %v4552
    %v4816 = vunpack.c.l.b16 %v4553
    %v4817 = vunpack.c.h.b16 %v4553
    %v4818 = vunpack.c.l.b16 %v4554
    %v4819 = vunpack.c.h.b16 %v4554
    %v4820 = vunpack.c.l.b16 %v4555
    %v4821 = vunpack.c.h.b16 %v4555
    %v4822 = vunpack.c.l.b16 %v4556
    %v4823 = vunpack.c.h.b16 %v4556
    %v4824 = vunpack.c.l.b16 %v4557
    %v4825 = vunpack.c.h.b16 %v4557
    %v4826 = vunpack.c.l.b16 %v4558
    %v4827 = vunpack.c.h.b16 %v4558
    %v4828 = vunpack.c.l.b16 %v4559
    %v4829 = vunpack.c.h.b16 %v4559
    %v4830 = vunpack.c.l.b16 %v4560
    %v4831 = vunpack.c.h.b16 %v4560
    %v4832 = vunpack.c.l.b16 %v4561
    %v4833 = vunpack.c.h.b16 %v4561
    %v4834 = vunpack.c.l.b16 %v4562
    %v4835 = vunpack.c.h.b16 %v4562
    %v4836 = vunpack.c.l.b16 %v4563
    %v4837 = vunpack.c.h.b16 %v4563
    %v4838 = vunpack.c.l.b16 %v4564
    %v4839 = vunpack.c.h.b16 %v4564
    %v4840 = vunpack.c.l.b16 %v4565
    %v4841 = vunpack.c.h.b16 %v4565
    %v4842 = vunpack.c.l.b16 %v4566
    %v4843 = vunpack.c.h.b16 %v4566
    %v4844 = vunpack.c.l.b16 %v4567
    %v4845 = vunpack.c.h.b16 %v4567
    %v4846 = vunpack.c.l.b16 %v4568
    %v4847 = vunpack.c.h.b16 %v4568
    %v4848 = vunpack.c.l.b16 %v4569
    %v4849 = vunpack.c.h.b16 %v4569
    %v4850 = vunpack.c.l.b16 %v4570
    %v4851 = vunpack.c.h.b16 %v4570
    %v4852 = vunpack.c.l.b16 %v4571
    %v4853 = vunpack.c.h.b16 %v4571
    %v4854 = vunpack.c.l.b16 %v4572
    %v4855 = vunpack.c.h.b16 %v4572
    %v4856 = vunpack.c.l.b16 %v4573
    %v4857 = vunpack.c.h.b16 %v4573
    %v4858 = vunpack.c.l.b16 %v4574
    %v4859 = vunpack.c.h.b16 %v4574
    %v4860 = vunpack.c.l.b16 %v4575
    %v4861 = vunpack.c.h.b16 %v4575
    %v4862 = vunpack.c.l.b16 %v4576
    %v4863 = vunpack.c.h.b16 %v4576
    %v4864 = vunpack.c.l.b16 %v4577
    %v4865 = vunpack.c.h.b16 %v4577
    %v4866 = vunpack.c.l.b16 %v4578
    %v4867 = vunpack.c.h.b16 %v4578
    %v4868 = vunpack.c.l.b16 %v4579
    %v4869 = vunpack.c.h.b16 %v4579
    %v4870 = vunpack.c.l.b16 %v4580
    %v4871 = vunpack.c.h.b16 %v4580
    %v4872 = vunpack.c.l.b16 %v4581
    %v4873 = vunpack.c.h.b16 %v4581
    %v4874 = vunpack.c.l.b16 %v4582
    %v4875 = vunpack.c.h.b16 %v4582
    %v4876 = vunpack.c.l.b16 %v4583
    %v4877 = vunpack.c.h.b16 %v4583
    %v4878 = vunpack.c.l.b16 %v4584
    %v4879 = vunpack.c.h.b16 %v4584
    %v4880 = vunpack.c.l.b16 %v4585
    %v4881 = vunpack.c.h.b16 %v4585
    %v4882 = vunpack.c.l.b16 %v4586
    %v4883 = vunpack.c.h.b16 %v4586
    %v4884 = vunpack.c.l.b16 %v4587
    %v4885 = vunpack.c.h.b16 %v4587
    %v4886 = vunpack.c.l.b16 %v4588
    %v4887 = vunpack.c.h.b16 %v4588
    %v4888 = vunpack.c.l.b16 %v4589
    %v4889 = vunpack.c.h.b16 %v4589
    %v4890 = vunpack.c.l.b16 %v4590
    %v4891 = vunpack.c.h.b16 %v4590
    %v4892 = vunpack.c.l.b16 %v4591
    %v4893 = vunpack.c.h.b16 %v4591
    %v4894 = vunpack.c.l.b16 %v4592
    %v4895 = vunpack.c.h.b16 %v4592
    %v4896 = vunpack.c.l.b16 %v4593
    %v4897 = vunpack.c.h.b16 %v4593
    %v4898 = vunpack.c.l.b16 %v4594
    %v4899 = vunpack.c.h.b16 %v4594
    %v4900 = vunpack.c.l.b16 %v4595
    %v4901 = vunpack.c.h.b16 %v4595
    %v4902 = vunpack.c.l.b16 %v4596
    %v4903 = vunpack.c.h.b16 %v4596
    %v4904 = vunpack.c.l.b16 %v4597
    %v4905 = vunpack.c.h.b16 %v4597
    %v4906 = vunpack.c.l.b16 %v4598
    %v4907 = vunpack.c.h.b16 %v4598
    %v4908 = vpack.c.b16 %v4718, %v4716
    %v4909 = vpack.c.b16 %v4719, %v4717
    %v4910 = vpack.c.b16 %v4722, %v4720
    %v4911 = vpack.c.b16 %v4723, %v4721
    %v4912 = vpack.c.b16 %v4726, %v4724
    %v4913 = vpack.c.b16 %v4727, %v4725
    %v4914 = vpack.c.b16 %v4730, %v4728
    %v4915 = vpack.c.b16 %v4731, %v4729
    %v4916 = vpack.c.b16 %v4734, %v4732
    %v4917 = vpack.c.b16 %v4735, %v4733
    %v4918 = vpack.c.b16 %v4738, %v4736
    %v4919 = vpack.c.b16 %v4739, %v4737
    %v4920 = vpack.c.b16 %v4742, %v4740
    %v4921 = vpack.c.b16 %v4743, %v4741
    %v4922 = vpack.c.b16 %v4746, %v4744
    %v4923 = vpack.c.b16 %v4747, %v4745
    %v4924 = vpack.c.b16 %v4750, %v4748
    %v4925 = vpack.c.b16 %v4751, %v4749
    %v4926 = vpack.c.b16 %v4754, %v4752
    %v4927 = vpack.c.b16 %v4755, %v4753
    %v4928 = vpack.c.b16 %v4758, %v4756
    %v4929 = vpack.c.b16 %v4759, %v4757
    %v4930 = vpack.c.b16 %v4762, %v4760
    %v4931 = vpack.c.b16 %v4763, %v4761
    %v4932 = vpack.c.b16 %v4766, %v4764
    %v4933 = vpack.c.b16 %v4767, %v4765
    %v4934 = vpack.c.b16 %v4770, %v4768
    %v4935 = vpack.c.b16 %v4771, %v4769
    %v4936 = vpack.c.b16 %v4774, %v4772
    %v4937 = vpack.c.b16 %v4775, %v4773
    %v4938 = vpack.c.b16 %v4778, %v4776
    %v4939 = vpack.c.b16 %v4779, %v4777
    %v4940 = vpack.c.b16 %v4782, %v4780
    %v4941 = vpack.c.b16 %v4783, %v4781
    %v4942 = vpack.c.b16 %v4786, %v4784
    %v4943 = vpack.c.b16 %v4787, %v4785
    %v4944 = vpack.c.b16 %v4790, %v4788
    %v4945 = vpack.c.b16 %v4791, %v4789
    %v4946 = vpack.c.b16 %v4794, %v4792
    %v4947 = vpack.c.b16 %v4795, %v4793
    %v4948 = vpack.c.b16 %v4798, %v4796
    %v4949 = vpack.c.b16 %v4799, %v4797
    %v4950 = vpack.c.b16 %v4802, %v4800
    %v4951 = vpack.c.b16 %v4803, %v4801
    %v4952 = vpack.c.b16 %v4806, %v4804
    %v4953 = vpack.c.b16 %v4807, %v4805
    %v4954 = vpack.c.b16 %v4810, %v4808
    %v4955 = vpack.c.b16 %v4811, %v4809
    %v4956 = vpack.c.b16 %v4814, %v4812
    %v4957 = vpack.c.b16 %v4815, %v4813
    %v4958 = vpack.c.b16 %v4818, %v4816
    %v4959 = vpack.c.b16 %v4819, %v4817
    %v4960 = vpack.c.b16 %v4822, %v4820
    %v4961 = vpack.c.b16 %v4823, %v4821
    %v4962 = vpack.c.b16 %v4826, %v4824
    %v4963 = vpack.c.b16 %v4827, %v4825
    %v4964 = vpack.c.b16 %v4830, %v4828
    %v4965 = vpack.c.b16 %v4831, %v4829
    %v4966 = vpack.c.b16 %v4834, %v4832
    %v4967 = vpack.c.b16 %v4835, %v4833
    %v4968 = vpack.c.b16 %v4838, %v4836
    %v4969 = vpack.c.b16 %v4839, %v4837
    %v4970 = vpack.c.b16 %v4842, %v4840
    %v4971 = vpack.c.b16 %v4843, %v4841
    %v4972 = vpack.c.b16 %v4846, %v4844
    %v4973 = vpack.c.b16 %v4847, %v4845
    %v4974 = vpack.c.b16 %v4850, %v4848
    %v4975 = vpack.c.b16 %v4851, %v4849
    %v4976 = vpack.c.b16 %v4854, %v4852
    %v4977 = vpack.c.b16 %v4855, %v4853
    %v4978 = vpack.c.b16 %v4858, %v4856
    %v4979 = vpack.c.b16 %v4859, %v4857
    %v4980 = vpack.c.b16 %v4862, %v4860
    %v4981 = vpack.c.b16 %v4863, %v4861
    %v4982 = vpack.c.b16 %v4866, %v4864
    %v4983 = vpack.c.b16 %v4867, %v4865
    %v4984 = vpack.c.b16 %v4870, %v4868
    %v4985 = vpack.c.b16 %v4871, %v4869
    %v4986 = vpack.c.b16 %v4874, %v4872
    %v4987 = vpack.c.b16 %v4875, %v4873
    %v4988 = vpack.c.b16 %v4878, %v4876
    %v4989 = vpack.c.b16 %v4879, %v4877
    %v4990 = vpack.c.b16 %v4882, %v4880
    %v4991 = vpack.c.b16 %v4883, %v4881
    %v4992 = vpack.c.b16 %v4886, %v4884
    %v4993 = vpack.c.b16 %v4887, %v4885
    %v4994 = vpack.c.b16 %v4890, %v4888
    %v4995 = vpack.c.b16 %v4891, %v4889
    %v4996 = vpack.c.b16 %v4894, %v4892
    %v4997 = vpack.c.b16 %v4895, %v4893
    %v4998 = vpack.c.b16 %v4898, %v4896
    %v4999 = vpack.c.b16 %v4899, %v4897
    %v5000 = vpack.c.b16 %v4902, %v4900
    %v5001 = vpack.c.b16 %v4903, %v4901
    %v5002 = vpack.c.b16 %v4906, %v4904
    %v5003 = vpack.c.b16 %v4907, %v4905
    %5100 = vmatprep.subr.bf16.mxu0 %v4923
    %5101 = vmatpush1.bf16.msra.mxu0 %v4922
    %5102 = vmatprep.subr.bf16.mxu0 %v4921
    %5103 = vmatpush1.bf16.msra.mxu0 %v4920
    %5104 = vmatprep.subr.bf16.mxu0 %v4919
    %5105 = vmatpush1.bf16.msra.mxu0 %v4918
    %5106 = vmatprep.subr.bf16.mxu0 %v4917
    %5107 = vmatpush1.bf16.msra.mxu0 %v4916
    %5108 = vmatprep.subr.bf16.mxu0 %v4915
    %5109 = vmatpush1.bf16.msra.mxu0 %v4914
    %5110 = vmatprep.subr.bf16.mxu0 %v4913
    %5111 = vmatpush1.bf16.msra.mxu0 %v4912
    %5112 = vmatprep.subr.bf16.mxu0 %v4911
    %5113 = vmatpush1.bf16.msra.mxu0 %v4910
    %5114 = vmatprep.subr.bf16.mxu0 %v4909
    %5115 = vmatpush1.bf16.msra.mxu0 %v4908
    %5116 = vmatprep.subr.bf16.mxu0 %v4939
    %5117 = vmatpush2.bf16.msra.mxu0 %v4938
    %5118 = vmatprep.subr.bf16.mxu0 %v4937
    %5119 = vmatpush2.bf16.msra.mxu0 %v4936
    %5120 = vmatprep.subr.bf16.mxu0 %v4935
    %5121 = vmatpush2.bf16.msra.mxu0 %v4934
    %5122 = vmatprep.subr.bf16.mxu0 %v4933
    %5123 = vmatpush2.bf16.msra.mxu0 %v4932
    %5124 = vmatprep.subr.bf16.mxu0 %v4931
    %5125 = vmatpush2.bf16.msra.mxu0 %v4930
    %5126 = vmatprep.subr.bf16.mxu0 %v4929
    %5127 = vmatpush2.bf16.msra.mxu0 %v4928
    %5128 = vmatprep.subr.bf16.mxu0 %v4927
    %5129 = vmatpush2.bf16.msra.mxu0 %v4926
    %5130 = vmatprep.subr.bf16.mxu0 %v4925
    %5131 = vmatpush2.bf16.msra.mxu0 %v4924
    %5132 = vmatprep.mubr.bf16.mxu0 %v4609
    %5133 = vmatmul.mubr.bf16.gmra.mxu0 %v4608
    %v5134 = vpop.f32.mrf.mxu0
    %v5135 = vadd.f32 0.0, %v5134
    %v5136 = vpop.f32.mrf.mxu0
    %v5137 = vadd.f32 0.0, %v5136
    %v5138 = vpop.f32.mrf.mxu0
    %v5139 = vpop.f32.mrf.mxu0
    %5140 = vdwg.mxu0
    %5141 = vmatprep.subr.bf16.mxu0 %v4955
    %5142 = vmatpush1.bf16.msra.mxu0 %v4954
    %5143 = vmatprep.subr.bf16.mxu0 %v4953
    %5144 = vmatpush1.bf16.msra.mxu0 %v4952
    %5145 = vmatprep.subr.bf16.mxu0 %v4951
    %5146 = vmatpush1.bf16.msra.mxu0 %v4950
    %5147 = vmatprep.subr.bf16.mxu0 %v4949
    %5148 = vmatpush1.bf16.msra.mxu0 %v4948
    %5149 = vmatprep.subr.bf16.mxu0 %v4947
    %5150 = vmatpush1.bf16.msra.mxu0 %v4946
    %5151 = vmatprep.subr.bf16.mxu0 %v4945
    %5152 = vmatpush1.bf16.msra.mxu0 %v4944
    %5153 = vmatprep.subr.bf16.mxu0 %v4943
    %5154 = vmatpush1.bf16.msra.mxu0 %v4942
    %5155 = vmatprep.subr.bf16.mxu0 %v4941
    %5156 = vmatpush1.bf16.msra.mxu0 %v4940
    %5157 = vmatprep.subr.bf16.mxu0 %v4971
    %5158 = vmatpush2.bf16.msra.mxu0 %v4970
    %5159 = vmatprep.subr.bf16.mxu0 %v4969
    %5160 = vmatpush2.bf16.msra.mxu0 %v4968
    %5161 = vmatprep.subr.bf16.mxu0 %v4967
    %5162 = vmatpush2.bf16.msra.mxu0 %v4966
    %5163 = vmatprep.subr.bf16.mxu0 %v4965
    %5164 = vmatpush2.bf16.msra.mxu0 %v4964
    %5165 = vmatprep.subr.bf16.mxu0 %v4963
    %5166 = vmatpush2.bf16.msra.mxu0 %v4962
    %5167 = vmatprep.subr.bf16.mxu0 %v4961
    %5168 = vmatpush2.bf16.msra.mxu0 %v4960
    %5169 = vmatprep.subr.bf16.mxu0 %v4959
    %5170 = vmatpush2.bf16.msra.mxu0 %v4958
    %5171 = vmatprep.subr.bf16.mxu0 %v4957
    %5172 = vmatpush2.bf16.msra.mxu0 %v4956
    %5173 = vmatprep.mubr.bf16.mxu0 %v4611
    %5174 = vmatmul.mubr.bf16.gmra.mxu0 %v4610
    %v5175 = vpop.f32.mrf.mxu0
    %v5176 = vadd.f32 %v5135, %v5175
    %v5177 = vpop.f32.mrf.mxu0
    %v5178 = vadd.f32 %v5137, %v5177
    %v5179 = vpop.f32.mrf.mxu0
    %v5180 = vpop.f32.mrf.mxu0
    %5181 = vdwg.mxu0
    %5182 = vmatprep.subr.bf16.mxu0 %v4987
    %5183 = vmatpush1.bf16.msra.mxu0 %v4986
    %5184 = vmatprep.subr.bf16.mxu0 %v4985
    %5185 = vmatpush1.bf16.msra.mxu0 %v4984
    %5186 = vmatprep.subr.bf16.mxu0 %v4983
    %5187 = vmatpush1.bf16.msra.mxu0 %v4982
    %5188 = vmatprep.subr.bf16.mxu0 %v4981
    %5189 = vmatpush1.bf16.msra.mxu0 %v4980
    %5190 = vmatprep.subr.bf16.mxu0 %v4979
    %5191 = vmatpush1.bf16.msra.mxu0 %v4978
    %5192 = vmatprep.subr.bf16.mxu0 %v4977
    %5193 = vmatpush1.bf16.msra.mxu0 %v4976
    %5194 = vmatprep.subr.bf16.mxu0 %v4975
    %5195 = vmatpush1.bf16.msra.mxu0 %v4974
    %5196 = vmatprep.subr.bf16.mxu0 %v4973
    %5197 = vmatpush1.bf16.msra.mxu0 %v4972
    %5198 = vmatprep.subr.bf16.mxu0 %v5003
    %5199 = vmatpush2.bf16.msra.mxu0 %v5002
    %5200 = vmatprep.subr.bf16.mxu0 %v5001
    %5201 = vmatpush2.bf16.msra.mxu0 %v5000
    %5202 = vmatprep.subr.bf16.mxu0 %v4999
    %5203 = vmatpush2.bf16.msra.mxu0 %v4998
    %5204 = vmatprep.subr.bf16.mxu0 %v4997
    %5205 = vmatpush2.bf16.msra.mxu0 %v4996
    %5206 = vmatprep.subr.bf16.mxu0 %v4995
    %5207 = vmatpush2.bf16.msra.mxu0 %v4994
    %5208 = vmatprep.subr.bf16.mxu0 %v4993
    %5209 = vmatpush2.bf16.msra.mxu0 %v4992
    %5210 = vmatprep.subr.bf16.mxu0 %v4991
    %5211 = vmatpush2.bf16.msra.mxu0 %v4990
    %5212 = vmatprep.subr.bf16.mxu0 %v4989
    %5213 = vmatpush2.bf16.msra.mxu0 %v4988
    %5214 = vmatprep.mubr.bf16.mxu0 %v4613
    %5215 = vmatmul.mubr.bf16.gmra.mxu0 %v4612
    %v5216 = vpop.f32.mrf.mxu0
    %v5217 = vadd.f32 %v5176, %v5216
    %v5218 = vpop.f32.mrf.mxu0
    %v5219 = vadd.f32 %v5178, %v5218
    %v5220 = vpop.f32.mrf.mxu0
    %v5221 = vpop.f32.mrf.mxu0
    %5222 = vdwg.mxu0
    %v5223 = vmax.f32 %v5217, %v5219
    %v5224 = vld [vmem:[#allocation4 + $0x8] sm:$0xff]
    %v5225 = vld [vmem:[#allocation4 + $0x18] sm:$0xff]
    %v5226 = vld [vmem:[#allocation4 + $0x28] sm:$0xff]
    %v5227 = vld [vmem:[#allocation4 + $0x38] sm:$0xff]
    %v5228 = vld [vmem:[#allocation4 + $0x48] sm:$0xff]
    %v5229 = vld [vmem:[#allocation4 + $0x58] sm:$0xff]
    %v5230 = vld [vmem:[#allocation4 + $0x68] sm:$0xff]
    %v5231 = vld [vmem:[#allocation4 + $0x78] sm:$0xff]
    %v5232 = vld [vmem:[#allocation4 + $0x88] sm:$0xff]
    %v5233 = vld [vmem:[#allocation4 + $0x98] sm:$0xff]
    %v5234 = vld [vmem:[#allocation4 + $0xa8] sm:$0xff]
    %v5235 = vld [vmem:[#allocation4 + $0xb8] sm:$0xff]
    %v5236 = vld [vmem:[#allocation4 + $0xc8] sm:$0xff]
    %v5237 = vld [vmem:[#allocation4 + $0xd8] sm:$0xff]
    %v5238 = vld [vmem:[#allocation4 + $0xe8] sm:$0xff]
    %v5239 = vld [vmem:[#allocation4 + $0xf8] sm:$0xff]
    %v5240 = vld [vmem:[#allocation4 + $0x108] sm:$0xff]
    %v5241 = vld [vmem:[#allocation4 + $0x118] sm:$0xff]
    %v5242 = vld [vmem:[#allocation4 + $0x128] sm:$0xff]
    %v5243 = vld [vmem:[#allocation4 + $0x138] sm:$0xff]
    %v5244 = vld [vmem:[#allocation4 + $0x148] sm:$0xff]
    %v5245 = vld [vmem:[#allocation4 + $0x158] sm:$0xff]
    %v5246 = vld [vmem:[#allocation4 + $0x168] sm:$0xff]
    %v5247 = vld [vmem:[#allocation4 + $0x178] sm:$0xff]
    %v5248 = vld [vmem:[#allocation4 + $0x188] sm:$0xff]
    %v5249 = vld [vmem:[#allocation4 + $0x198] sm:$0xff]
    %v5250 = vld [vmem:[#allocation4 + $0x1a8] sm:$0xff]
    %v5251 = vld [vmem:[#allocation4 + $0x1b8] sm:$0xff]
    %v5252 = vld [vmem:[#allocation4 + $0x1c8] sm:$0xff]
    %v5253 = vld [vmem:[#allocation4 + $0x1d8] sm:$0xff]
    %v5254 = vld [vmem:[#allocation4 + $0x1e8] sm:$0xff]
    %v5255 = vld [vmem:[#allocation4 + $0x1f8] sm:$0xff]
    %v5256 = vld [vmem:[#allocation4 + $0x208] sm:$0xff]
    %v5257 = vld [vmem:[#allocation4 + $0x218] sm:$0xff]
    %v5258 = vld [vmem:[#allocation4 + $0x228] sm:$0xff]
    %v5259 = vld [vmem:[#allocation4 + $0x238] sm:$0xff]
    %v5260 = vld [vmem:[#allocation4 + $0x248] sm:$0xff]
    %v5261 = vld [vmem:[#allocation4 + $0x258] sm:$0xff]
    %v5262 = vld [vmem:[#allocation4 + $0x268] sm:$0xff]
    %v5263 = vld [vmem:[#allocation4 + $0x278] sm:$0xff]
    %v5264 = vld [vmem:[#allocation4 + $0x288] sm:$0xff]
    %v5265 = vld [vmem:[#allocation4 + $0x298] sm:$0xff]
    %v5266 = vld [vmem:[#allocation4 + $0x2a8] sm:$0xff]
    %v5267 = vld [vmem:[#allocation4 + $0x2b8] sm:$0xff]
    %v5268 = vld [vmem:[#allocation4 + $0x2c8] sm:$0xff]
    %v5269 = vld [vmem:[#allocation4 + $0x2d8] sm:$0xff]
    %v5270 = vld [vmem:[#allocation4 + $0x2e8] sm:$0xff]
    %v5271 = vld [vmem:[#allocation4 + $0x2f8] sm:$0xff]
    %v5272 = vld [vmem:[#allocation4 + $0x308] sm:$0xff]
    %v5273 = vld [vmem:[#allocation4 + $0x318] sm:$0xff]
    %v5274 = vld [vmem:[#allocation4 + $0x328] sm:$0xff]
    %v5275 = vld [vmem:[#allocation4 + $0x338] sm:$0xff]
    %v5276 = vld [vmem:[#allocation4 + $0x348] sm:$0xff]
    %v5277 = vld [vmem:[#allocation4 + $0x358] sm:$0xff]
    %v5278 = vld [vmem:[#allocation4 + $0x368] sm:$0xff]
    %v5279 = vld [vmem:[#allocation4 + $0x378] sm:$0xff]
    %v5280 = vld [vmem:[#allocation4 + $0x388] sm:$0xff]
    %v5281 = vld [vmem:[#allocation4 + $0x398] sm:$0xff]
    %v5282 = vld [vmem:[#allocation4 + $0x3a8] sm:$0xff]
    %v5283 = vld [vmem:[#allocation4 + $0x3b8] sm:$0xff]
    %v5284 = vld [vmem:[#allocation4 + $0x3c8] sm:$0xff]
    %v5285 = vld [vmem:[#allocation4 + $0x3d8] sm:$0xff]
    %v5286 = vld [vmem:[#allocation4 + $0x3e8] sm:$0xff]
    %v5287 = vld [vmem:[#allocation4 + $0x3f8] sm:$0xff]
    %v5288 = vld [vmem:[#allocation4 + $0x408] sm:$0xff]
    %v5289 = vld [vmem:[#allocation4 + $0x418] sm:$0xff]
    %v5290 = vld [vmem:[#allocation4 + $0x428] sm:$0xff]
    %v5291 = vld [vmem:[#allocation4 + $0x438] sm:$0xff]
    %v5292 = vld [vmem:[#allocation4 + $0x448] sm:$0xff]
    %v5293 = vld [vmem:[#allocation4 + $0x458] sm:$0xff]
    %v5294 = vld [vmem:[#allocation4 + $0x468] sm:$0xff]
    %v5295 = vld [vmem:[#allocation4 + $0x478] sm:$0xff]
    %v5296 = vld [vmem:[#allocation4 + $0x488] sm:$0xff]
    %v5297 = vld [vmem:[#allocation4 + $0x498] sm:$0xff]
    %v5298 = vld [vmem:[#allocation4 + $0x4a8] sm:$0xff]
    %v5299 = vld [vmem:[#allocation4 + $0x4b8] sm:$0xff]
    %v5300 = vld [vmem:[#allocation4 + $0x4c8] sm:$0xff]
    %v5301 = vld [vmem:[#allocation4 + $0x4d8] sm:$0xff]
    %v5302 = vld [vmem:[#allocation4 + $0x4e8] sm:$0xff]
    %v5303 = vld [vmem:[#allocation4 + $0x4f8] sm:$0xff]
    %v5304 = vld [vmem:[#allocation4 + $0x508] sm:$0xff]
    %v5305 = vld [vmem:[#allocation4 + $0x518] sm:$0xff]
    %v5306 = vld [vmem:[#allocation4 + $0x528] sm:$0xff]
    %v5307 = vld [vmem:[#allocation4 + $0x538] sm:$0xff]
    %v5308 = vld [vmem:[#allocation4 + $0x548] sm:$0xff]
    %v5309 = vld [vmem:[#allocation4 + $0x558] sm:$0xff]
    %v5310 = vld [vmem:[#allocation4 + $0x568] sm:$0xff]
    %v5311 = vld [vmem:[#allocation4 + $0x578] sm:$0xff]
    %v5312 = vld [vmem:[#allocation4 + $0x588] sm:$0xff]
    %v5313 = vld [vmem:[#allocation4 + $0x598] sm:$0xff]
    %v5314 = vld [vmem:[#allocation4 + $0x5a8] sm:$0xff]
    %v5315 = vld [vmem:[#allocation4 + $0x5b8] sm:$0xff]
    %v5316 = vld [vmem:[#allocation4 + $0x5c8] sm:$0xff]
    %v5317 = vld [vmem:[#allocation4 + $0x5d8] sm:$0xff]
    %v5318 = vld [vmem:[#allocation4 + $0x5e8] sm:$0xff]
    %v5319 = vld [vmem:[#allocation4 + $0x5f8] sm:$0xff]
    %v5416 = vunpack.c.l.b16 %v5224
    %v5417 = vunpack.c.h.b16 %v5224
    %v5418 = vunpack.c.l.b16 %v5225
    %v5419 = vunpack.c.h.b16 %v5225
    %v5420 = vunpack.c.l.b16 %v5226
    %v5421 = vunpack.c.h.b16 %v5226
    %v5422 = vunpack.c.l.b16 %v5227
    %v5423 = vunpack.c.h.b16 %v5227
    %v5424 = vunpack.c.l.b16 %v5228
    %v5425 = vunpack.c.h.b16 %v5228
    %v5426 = vunpack.c.l.b16 %v5229
    %v5427 = vunpack.c.h.b16 %v5229
    %v5428 = vunpack.c.l.b16 %v5230
    %v5429 = vunpack.c.h.b16 %v5230
    %v5430 = vunpack.c.l.b16 %v5231
    %v5431 = vunpack.c.h.b16 %v5231
    %v5432 = vunpack.c.l.b16 %v5232
    %v5433 = vunpack.c.h.b16 %v5232
    %v5434 = vunpack.c.l.b16 %v5233
    %v5435 = vunpack.c.h.b16 %v5233
    %v5436 = vunpack.c.l.b16 %v5234
    %v5437 = vunpack.c.h.b16 %v5234
    %v5438 = vunpack.c.l.b16 %v5235
    %v5439 = vunpack.c.h.b16 %v5235
    %v5440 = vunpack.c.l.b16 %v5236
    %v5441 = vunpack.c.h.b16 %v5236
    %v5442 = vunpack.c.l.b16 %v5237
    %v5443 = vunpack.c.h.b16 %v5237
    %v5444 = vunpack.c.l.b16 %v5238
    %v5445 = vunpack.c.h.b16 %v5238
    %v5446 = vunpack.c.l.b16 %v5239
    %v5447 = vunpack.c.h.b16 %v5239
    %v5448 = vunpack.c.l.b16 %v5240
    %v5449 = vunpack.c.h.b16 %v5240
    %v5450 = vunpack.c.l.b16 %v5241
    %v5451 = vunpack.c.h.b16 %v5241
    %v5452 = vunpack.c.l.b16 %v5242
    %v5453 = vunpack.c.h.b16 %v5242
    %v5454 = vunpack.c.l.b16 %v5243
    %v5455 = vunpack.c.h.b16 %v5243
    %v5456 = vunpack.c.l.b16 %v5244
    %v5457 = vunpack.c.h.b16 %v5244
    %v5458 = vunpack.c.l.b16 %v5245
    %v5459 = vunpack.c.h.b16 %v5245
    %v5460 = vunpack.c.l.b16 %v5246
    %v5461 = vunpack.c.h.b16 %v5246
    %v5462 = vunpack.c.l.b16 %v5247
    %v5463 = vunpack.c.h.b16 %v5247
    %v5464 = vunpack.c.l.b16 %v5248
    %v5465 = vunpack.c.h.b16 %v5248
    %v5466 = vunpack.c.l.b16 %v5249
    %v5467 = vunpack.c.h.b16 %v5249
    %v5468 = vunpack.c.l.b16 %v5250
    %v5469 = vunpack.c.h.b16 %v5250
    %v5470 = vunpack.c.l.b16 %v5251
    %v5471 = vunpack.c.h.b16 %v5251
    %v5472 = vunpack.c.l.b16 %v5252
    %v5473 = vunpack.c.h.b16 %v5252
    %v5474 = vunpack.c.l.b16 %v5253
    %v5475 = vunpack.c.h.b16 %v5253
    %v5476 = vunpack.c.l.b16 %v5254
    %v5477 = vunpack.c.h.b16 %v5254
    %v5478 = vunpack.c.l.b16 %v5255
    %v5479 = vunpack.c.h.b16 %v5255
    %v5480 = vunpack.c.l.b16 %v5256
    %v5481 = vunpack.c.h.b16 %v5256
    %v5482 = vunpack.c.l.b16 %v5257
    %v5483 = vunpack.c.h.b16 %v5257
    %v5484 = vunpack.c.l.b16 %v5258
    %v5485 = vunpack.c.h.b16 %v5258
    %v5486 = vunpack.c.l.b16 %v5259
    %v5487 = vunpack.c.h.b16 %v5259
    %v5488 = vunpack.c.l.b16 %v5260
    %v5489 = vunpack.c.h.b16 %v5260
    %v5490 = vunpack.c.l.b16 %v5261
    %v5491 = vunpack.c.h.b16 %v5261
    %v5492 = vunpack.c.l.b16 %v5262
    %v5493 = vunpack.c.h.b16 %v5262
    %v5494 = vunpack.c.l.b16 %v5263
    %v5495 = vunpack.c.h.b16 %v5263
    %v5496 = vunpack.c.l.b16 %v5264
    %v5497 = vunpack.c.h.b16 %v5264
    %v5498 = vunpack.c.l.b16 %v5265
    %v5499 = vunpack.c.h.b16 %v5265
    %v5500 = vunpack.c.l.b16 %v5266
    %v5501 = vunpack.c.h.b16 %v5266
    %v5502 = vunpack.c.l.b16 %v5267
    %v5503 = vunpack.c.h.b16 %v5267
    %v5504 = vunpack.c.l.b16 %v5268
    %v5505 = vunpack.c.h.b16 %v5268
    %v5506 = vunpack.c.l.b16 %v5269
    %v5507 = vunpack.c.h.b16 %v5269
    %v5508 = vunpack.c.l.b16 %v5270
    %v5509 = vunpack.c.h.b16 %v5270
    %v5510 = vunpack.c.l.b16 %v5271
    %v5511 = vunpack.c.h.b16 %v5271
    %v5512 = vunpack.c.l.b16 %v5272
    %v5513 = vunpack.c.h.b16 %v5272
    %v5514 = vunpack.c.l.b16 %v5273
    %v5515 = vunpack.c.h.b16 %v5273
    %v5516 = vunpack.c.l.b16 %v5274
    %v5517 = vunpack.c.h.b16 %v5274
    %v5518 = vunpack.c.l.b16 %v5275
    %v5519 = vunpack.c.h.b16 %v5275
    %v5520 = vunpack.c.l.b16 %v5276
    %v5521 = vunpack.c.h.b16 %v5276
    %v5522 = vunpack.c.l.b16 %v5277
    %v5523 = vunpack.c.h.b16 %v5277
    %v5524 = vunpack.c.l.b16 %v5278
    %v5525 = vunpack.c.h.b16 %v5278
    %v5526 = vunpack.c.l.b16 %v5279
    %v5527 = vunpack.c.h.b16 %v5279
    %v5528 = vunpack.c.l.b16 %v5280
    %v5529 = vunpack.c.h.b16 %v5280
    %v5530 = vunpack.c.l.b16 %v5281
    %v5531 = vunpack.c.h.b16 %v5281
    %v5532 = vunpack.c.l.b16 %v5282
    %v5533 = vunpack.c.h.b16 %v5282
    %v5534 = vunpack.c.l.b16 %v5283
    %v5535 = vunpack.c.h.b16 %v5283
    %v5536 = vunpack.c.l.b16 %v5284
    %v5537 = vunpack.c.h.b16 %v5284
    %v5538 = vunpack.c.l.b16 %v5285
    %v5539 = vunpack.c.h.b16 %v5285
    %v5540 = vunpack.c.l.b16 %v5286
    %v5541 = vunpack.c.h.b16 %v5286
    %v5542 = vunpack.c.l.b16 %v5287
    %v5543 = vunpack.c.h.b16 %v5287
    %v5544 = vunpack.c.l.b16 %v5288
    %v5545 = vunpack.c.h.b16 %v5288
    %v5546 = vunpack.c.l.b16 %v5289
    %v5547 = vunpack.c.h.b16 %v5289
    %v5548 = vunpack.c.l.b16 %v5290
    %v5549 = vunpack.c.h.b16 %v5290
    %v5550 = vunpack.c.l.b16 %v5291
    %v5551 = vunpack.c.h.b16 %v5291
    %v5552 = vunpack.c.l.b16 %v5292
    %v5553 = vunpack.c.h.b16 %v5292
    %v5554 = vunpack.c.l.b16 %v5293
    %v5555 = vunpack.c.h.b16 %v5293
    %v5556 = vunpack.c.l.b16 %v5294
    %v5557 = vunpack.c.h.b16 %v5294
    %v5558 = vunpack.c.l.b16 %v5295
    %v5559 = vunpack.c.h.b16 %v5295
    %v5560 = vunpack.c.l.b16 %v5296
    %v5561 = vunpack.c.h.b16 %v5296
    %v5562 = vunpack.c.l.b16 %v5297
    %v5563 = vunpack.c.h.b16 %v5297
    %v5564 = vunpack.c.l.b16 %v5298
    %v5565 = vunpack.c.h.b16 %v5298
    %v5566 = vunpack.c.l.b16 %v5299
    %v5567 = vunpack.c.h.b16 %v5299
    %v5568 = vunpack.c.l.b16 %v5300
    %v5569 = vunpack.c.h.b16 %v5300
    %v5570 = vunpack.c.l.b16 %v5301
    %v5571 = vunpack.c.h.b16 %v5301
    %v5572 = vunpack.c.l.b16 %v5302
    %v5573 = vunpack.c.h.b16 %v5302
    %v5574 = vunpack.c.l.b16 %v5303
    %v5575 = vunpack.c.h.b16 %v5303
    %v5576 = vunpack.c.l.b16 %v5304
    %v5577 = vunpack.c.h.b16 %v5304
    %v5578 = vunpack.c.l.b16 %v5305
    %v5579 = vunpack.c.h.b16 %v5305
    %v5580 = vunpack.c.l.b16 %v5306
    %v5581 = vunpack.c.h.b16 %v5306
    %v5582 = vunpack.c.l.b16 %v5307
    %v5583 = vunpack.c.h.b16 %v5307
    %v5584 = vunpack.c.l.b16 %v5308
    %v5585 = vunpack.c.h.b16 %v5308
    %v5586 = vunpack.c.l.b16 %v5309
    %v5587 = vunpack.c.h.b16 %v5309
    %v5588 = vunpack.c.l.b16 %v5310
    %v5589 = vunpack.c.h.b16 %v5310
    %v5590 = vunpack.c.l.b16 %v5311
    %v5591 = vunpack.c.h.b16 %v5311
    %v5592 = vunpack.c.l.b16 %v5312
    %v5593 = vunpack.c.h.b16 %v5312
    %v5594 = vunpack.c.l.b16 %v5313
    %v5595 = vunpack.c.h.b16 %v5313
    %v5596 = vunpack.c.l.b16 %v5314
    %v5597 = vunpack.c.h.b16 %v5314
    %v5598 = vunpack.c.l.b16 %v5315
    %v5599 = vunpack.c.h.b16 %v5315
    %v5600 = vunpack.c.l.b16 %v5316
    %v5601 = vunpack.c.h.b16 %v5316
    %v5602 = vunpack.c.l.b16 %v5317
    %v5603 = vunpack.c.h.b16 %v5317
    %v5604 = vunpack.c.l.b16 %v5318
    %v5605 = vunpack.c.h.b16 %v5318
    %v5606 = vunpack.c.l.b16 %v5319
    %v5607 = vunpack.c.h.b16 %v5319
    %v5608 = vpack.c.b16 %v5418, %v5416
    %v5609 = vpack.c.b16 %v5419, %v5417
    %v5610 = vpack.c.b16 %v5422, %v5420
    %v5611 = vpack.c.b16 %v5423, %v5421
    %v5612 = vpack.c.b16 %v5426, %v5424
    %v5613 = vpack.c.b16 %v5427, %v5425
    %v5614 = vpack.c.b16 %v5430, %v5428
    %v5615 = vpack.c.b16 %v5431, %v5429
    %v5616 = vpack.c.b16 %v5434, %v5432
    %v5617 = vpack.c.b16 %v5435, %v5433
    %v5618 = vpack.c.b16 %v5438, %v5436
    %v5619 = vpack.c.b16 %v5439, %v5437
    %v5620 = vpack.c.b16 %v5442, %v5440
    %v5621 = vpack.c.b16 %v5443, %v5441
    %v5622 = vpack.c.b16 %v5446, %v5444
    %v5623 = vpack.c.b16 %v5447, %v5445
    %v5624 = vpack.c.b16 %v5450, %v5448
    %v5625 = vpack.c.b16 %v5451, %v5449
    %v5626 = vpack.c.b16 %v5454, %v5452
    %v5627 = vpack.c.b16 %v5455, %v5453
    %v5628 = vpack.c.b16 %v5458, %v5456
    %v5629 = vpack.c.b16 %v5459, %v5457
    %v5630 = vpack.c.b16 %v5462, %v5460
    %v5631 = vpack.c.b16 %v5463, %v5461
    %v5632 = vpack.c.b16 %v5466, %v5464
    %v5633 = vpack.c.b16 %v5467, %v5465
    %v5634 = vpack.c.b16 %v5470, %v5468
    %v5635 = vpack.c.b16 %v5471, %v5469
    %v5636 = vpack.c.b16 %v5474, %v5472
    %v5637 = vpack.c.b16 %v5475, %v5473
    %v5638 = vpack.c.b16 %v5478, %v5476
    %v5639 = vpack.c.b16 %v5479, %v5477
    %v5640 = vpack.c.b16 %v5482, %v5480
    %v5641 = vpack.c.b16 %v5483, %v5481
    %v5642 = vpack.c.b16 %v5486, %v5484
    %v5643 = vpack.c.b16 %v5487, %v5485
    %v5644 = vpack.c.b16 %v5490, %v5488
    %v5645 = vpack.c.b16 %v5491, %v5489
    %v5646 = vpack.c.b16 %v5494, %v5492
    %v5647 = vpack.c.b16 %v5495, %v5493
    %v5648 = vpack.c.b16 %v5498, %v5496
    %v5649 = vpack.c.b16 %v5499, %v5497
    %v5650 = vpack.c.b16 %v5502, %v5500
    %v5651 = vpack.c.b16 %v5503, %v5501
    %v5652 = vpack.c.b16 %v5506, %v5504
    %v5653 = vpack.c.b16 %v5507, %v5505
    %v5654 = vpack.c.b16 %v5510, %v5508
    %v5655 = vpack.c.b16 %v5511, %v5509
    %v5656 = vpack.c.b16 %v5514, %v5512
    %v5657 = vpack.c.b16 %v5515, %v5513
    %v5658 = vpack.c.b16 %v5518, %v5516
    %v5659 = vpack.c.b16 %v5519, %v5517
    %v5660 = vpack.c.b16 %v5522, %v5520
    %v5661 = vpack.c.b16 %v5523, %v5521
    %v5662 = vpack.c.b16 %v5526, %v5524
    %v5663 = vpack.c.b16 %v5527, %v5525
    %v5664 = vpack.c.b16 %v5530, %v5528
    %v5665 = vpack.c.b16 %v5531, %v5529
    %v5666 = vpack.c.b16 %v5534, %v5532
    %v5667 = vpack.c.b16 %v5535, %v5533
    %v5668 = vpack.c.b16 %v5538, %v5536
    %v5669 = vpack.c.b16 %v5539, %v5537
    %v5670 = vpack.c.b16 %v5542, %v5540
    %v5671 = vpack.c.b16 %v5543, %v5541
    %v5672 = vpack.c.b16 %v5546, %v5544
    %v5673 = vpack.c.b16 %v5547, %v5545
    %v5674 = vpack.c.b16 %v5550, %v5548
    %v5675 = vpack.c.b16 %v5551, %v5549
    %v5676 = vpack.c.b16 %v5554, %v5552
    %v5677 = vpack.c.b16 %v5555, %v5553
    %v5678 = vpack.c.b16 %v5558, %v5556
    %v5679 = vpack.c.b16 %v5559, %v5557
    %v5680 = vpack.c.b16 %v5562, %v5560
    %v5681 = vpack.c.b16 %v5563, %v5561
    %v5682 = vpack.c.b16 %v5566, %v5564
    %v5683 = vpack.c.b16 %v5567, %v5565
    %v5684 = vpack.c.b16 %v5570, %v5568
    %v5685 = vpack.c.b16 %v5571, %v5569
    %v5686 = vpack.c.b16 %v5574, %v5572
    %v5687 = vpack.c.b16 %v5575, %v5573
    %v5688 = vpack.c.b16 %v5578, %v5576
    %v5689 = vpack.c.b16 %v5579, %v5577
    %v5690 = vpack.c.b16 %v5582, %v5580
    %v5691 = vpack.c.b16 %v5583, %v5581
    %v5692 = vpack.c.b16 %v5586, %v5584
    %v5693 = vpack.c.b16 %v5587, %v5585
    %v5694 = vpack.c.b16 %v5590, %v5588
    %v5695 = vpack.c.b16 %v5591, %v5589
    %v5696 = vpack.c.b16 %v5594, %v5592
    %v5697 = vpack.c.b16 %v5595, %v5593
    %v5698 = vpack.c.b16 %v5598, %v5596
    %v5699 = vpack.c.b16 %v5599, %v5597
    %v5700 = vpack.c.b16 %v5602, %v5600
    %v5701 = vpack.c.b16 %v5603, %v5601
    %v5702 = vpack.c.b16 %v5606, %v5604
    %v5703 = vpack.c.b16 %v5607, %v5605
    %5800 = vmatprep.subr.bf16.mxu0 %v5623
    %5801 = vmatpush1.bf16.msra.mxu0 %v5622
    %5802 = vmatprep.subr.bf16.mxu0 %v5621
    %5803 = vmatpush1.bf16.msra.mxu0 %v5620
    %5804 = vmatprep.subr.bf16.mxu0 %v5619
    %5805 = vmatpush1.bf16.msra.mxu0 %v5618
    %5806 = vmatprep.subr.bf16.mxu0 %v5617
    %5807 = vmatpush1.bf16.msra.mxu0 %v5616
    %5808 = vmatprep.subr.bf16.mxu0 %v5615
    %5809 = vmatpush1.bf16.msra.mxu0 %v5614
    %5810 = vmatprep.subr.bf16.mxu0 %v5613
    %5811 = vmatpush1.bf16.msra.mxu0 %v5612
    %5812 = vmatprep.subr.bf16.mxu0 %v5611
    %5813 = vmatpush1.bf16.msra.mxu0 %v5610
    %5814 = vmatprep.subr.bf16.mxu0 %v5609
    %5815 = vmatpush1.bf16.msra.mxu0 %v5608
    %5816 = vmatprep.subr.bf16.mxu0 %v5639
    %5817 = vmatpush2.bf16.msra.mxu0 %v5638
    %5818 = vmatprep.subr.bf16.mxu0 %v5637
    %5819 = vmatpush2.bf16.msra.mxu0 %v5636
    %5820 = vmatprep.subr.bf16.mxu0 %v5635
    %5821 = vmatpush2.bf16.msra.mxu0 %v5634
    %5822 = vmatprep.subr.bf16.mxu0 %v5633
    %5823 = vmatpush2.bf16.msra.mxu0 %v5632
    %5824 = vmatprep.subr.bf16.mxu0 %v5631
    %5825 = vmatpush2.bf16.msra.mxu0 %v5630
    %5826 = vmatprep.subr.bf16.mxu0 %v5629
    %5827 = vmatpush2.bf16.msra.mxu0 %v5628
    %5828 = vmatprep.subr.bf16.mxu0 %v5627
    %5829 = vmatpush2.bf16.msra.mxu0 %v5626
    %5830 = vmatprep.subr.bf16.mxu0 %v5625
    %5831 = vmatpush2.bf16.msra.mxu0 %v5624
    %5832 = vmatprep.mubr.bf16.mxu0 %v4609
    %5833 = vmatmul.mubr.bf16.gmra.mxu0 %v4608
    %v5834 = vpop.f32.mrf.mxu0
    %v5835 = vadd.f32 0.0, %v5834
    %v5836 = vpop.f32.mrf.mxu0
    %v5837 = vadd.f32 0.0, %v5836
    %v5838 = vpop.f32.mrf.mxu0
    %v5839 = vpop.f32.mrf.mxu0
    %5840 = vdwg.mxu0
    %5841 = vmatprep.subr.bf16.mxu0 %v5655
    %5842 = vmatpush1.bf16.msra.mxu0 %v5654
    %5843 = vmatprep.subr.bf16.mxu0 %v5653
    %5844 = vmatpush1.bf16.msra.mxu0 %v5652
    %5845 = vmatprep.subr.bf16.mxu0 %v5651
    %5846 = vmatpush1.bf16.msra.mxu0 %v5650
    %5847 = vmatprep.subr.bf16.mxu0 %v5649
    %5848 = vmatpush1.bf16.msra.mxu0 %v5648
    %5849 = vmatprep.subr.bf16.mxu0 %v5647
    %5850 = vmatpush1.bf16.msra.mxu0 %v5646
    %5851 = vmatprep.subr.bf16.mxu0 %v5645
    %5852 = vmatpush1.bf16.msra.mxu0 %v5644
    %5853 = vmatprep.subr.bf16.mxu0 %v5643
    %5854 = vmatpush1.bf16.msra.mxu0 %v5642
    %5855 = vmatprep.subr.bf16.mxu0 %v5641
    %5856 = vmatpush1.bf16.msra.mxu0 %v5640
    %5857 = vmatprep.subr.bf16.mxu0 %v5671
    %5858 = vmatpush2.bf16.msra.mxu0 %v5670
    %5859 = vmatprep.subr.bf16.mxu0 %v5669
    %5860 = vmatpush2.bf16.msra.mxu0 %v5668
    %5861 = vmatprep.subr.bf16.mxu0 %v5667
    %5862 = vmatpush2.bf16.msra.mxu0 %v5666
    %5863 = vmatprep.subr.bf16.mxu0 %v5665
    %5864 = vmatpush2.bf16.msra.mxu0 %v5664
    %5865 = vmatprep.subr.bf16.mxu0 %v5663
    %5866 = vmatpush2.bf16.msra.mxu0 %v5662
    %5867 = vmatprep.subr.bf16.mxu0 %v5661
    %5868 = vmatpush2.bf16.msra.mxu0 %v5660
    %5869 = vmatprep.subr.bf16.mxu0 %v5659
    %5870 = vmatpush2.bf16.msra.mxu0 %v5658
    %5871 = vmatprep.subr.bf16.mxu0 %v5657
    %5872 = vmatpush2.bf16.msra.mxu0 %v5656
    %5873 = vmatprep.mubr.bf16.mxu0 %v4611
    %5874 = vmatmul.mubr.bf16.gmra.mxu0 %v4610
    %v5875 = vpop.f32.mrf.mxu0
    %v5876 = vadd.f32 %v5835, %v5875
    %v5877 = vpop.f32.mrf.mxu0
    %v5878 = vadd.f32 %v5837, %v5877
    %v5879 = vpop.f32.mrf.mxu0
    %v5880 = vpop.f32.mrf.mxu0
    %5881 = vdwg.mxu0
    %5882 = vmatprep.subr.bf16.mxu0 %v5687
    %5883 = vmatpush1.bf16.msra.mxu0 %v5686
    %5884 = vmatprep.subr.bf16.mxu0 %v5685
    %5885 = vmatpush1.bf16.msra.mxu0 %v5684
    %5886 = vmatprep.subr.bf16.mxu0 %v5683
    %5887 = vmatpush1.bf16.msra.mxu0 %v5682
    %5888 = vmatprep.subr.bf16.mxu0 %v5681
    %5889 = vmatpush1.bf16.msra.mxu0 %v5680
    %5890 = vmatprep.subr.bf16.mxu0 %v5679
    %5891 = vmatpush1.bf16.msra.mxu0 %v5678
    %5892 = vmatprep.subr.bf16.mxu0 %v5677
    %5893 = vmatpush1.bf16.msra.mxu0 %v5676
    %5894 = vmatprep.subr.bf16.mxu0 %v5675
    %5895 = vmatpush1.bf16.msra.mxu0 %v5674
    %5896 = vmatprep.subr.bf16.mxu0 %v5673
    %5897 = vmatpush1.bf16.msra.mxu0 %v5672
    %5898 = vmatprep.subr.bf16.mxu0 %v5703
    %5899 = vmatpush2.bf16.msra.mxu0 %v5702
    %5900 = vmatprep.subr.bf16.mxu0 %v5701
    %5901 = vmatpush2.bf16.msra.mxu0 %v5700
    %5902 = vmatprep.subr.bf16.mxu0 %v5699
    %5903 = vmatpush2.bf16.msra.mxu0 %v5698
    %5904 = vmatprep.subr.bf16.mxu0 %v5697
    %5905 = vmatpush2.bf16.msra.mxu0 %v5696
    %5906 = vmatprep.subr.bf16.mxu0 %v5695
    %5907 = vmatpush2.bf16.msra.mxu0 %v5694
    %5908 = vmatprep.subr.bf16.mxu0 %v5693
    %5909 = vmatpush2.bf16.msra.mxu0 %v5692
    %5910 = vmatprep.subr.bf16.mxu0 %v5691
    %5911 = vmatpush2.bf16.msra.mxu0 %v5690
    %5912 = vmatprep.subr.bf16.mxu0 %v5689
    %5913 = vmatpush2.bf16.msra.mxu0 %v5688
    %5914 = vmatprep.mubr.bf16.mxu0 %v4613
    %5915 = vmatmul.mubr.bf16.gmra.mxu0 %v4612
    %v5916 = vpop.f32.mrf.mxu0
    %v5917 = vadd.f32 %v5876, %v5916
    %v5918 = vpop.f32.mrf.mxu0
    %v5919 = vadd.f32 %v5878, %v5918
    %v5920 = vpop.f32.mrf.mxu0
    %v5921 = vpop.f32.mrf.mxu0
    %5922 = vdwg.mxu0
    %v5923 = vmax.f32 %v5917, %v5919
    %v5924 = vmax.f32 %v5223, %v5923
    %v5925 = vld [vmem:[%s4] sm:$0x1]
    %v5927 = vlaneseq
    %v5928 = vshrl.u32 %v5927, 7
    %v5929 = vsub.s32 0, %v5928
    %v5930 = vrot.slane %v5925, %v5929
    %v5932 = vadd.f32 %v5924, %v5930
    %v5933 = vmax.f32 %v5932, 0.0
    %v5934 = vpack.c.bf16 %v5933, %v5933
    %5935 = vst [vmem:[#allocation3] sm:$0xf] %v5934
    %v5936 = vld [vmem:[#allocation2 + $0x8] sm:$0xff]
    %v5937 = vld [vmem:[#allocation2 + $0x10] sm:$0xff]
    %v5938 = vld [vmem:[#allocation2 + $0x18] sm:$0xff]
    %v5939 = vld [vmem:[#allocation4] sm:$0xff]
    %v5940 = vld [vmem:[#allocation4 + $0x10] sm:$0xff]
    %v5941 = vld [vmem:[#allocation4 + $0x20] sm:$0xff]
    %v5942 = vld [vmem:[#allocation4 + $0x30] sm:$0xff]
    %v5943 = vld [vmem:[#allocation4 + $0x40] sm:$0xff]
    %v5944 = vld [vmem:[#allocation4 + $0x50] sm:$0xff]
    %v5945 = vld [vmem:[#allocation4 + $0x60] sm:$0xff]
    %v5946 = vld [vmem:[#allocation4 + $0x70] sm:$0xff]
    %v5947 = vld [vmem:[#allocation4 + $0x80] sm:$0xff]
    %v5948 = vld [vmem:[#allocation4 + $0x90] sm:$0xff]
    %v5949 = vld [vmem:[#allocation4 + $0xa0] sm:$0xff]
    %v5950 = vld [vmem:[#allocation4 + $0xb0] sm:$0xff]
    %v5951 = vld [vmem:[#allocation4 + $0xc0] sm:$0xff]
    %v5952 = vld [vmem:[#allocation4 + $0xd0] sm:$0xff]
    %v5953 = vld [vmem:[#allocation4 + $0xe0] sm:$0xff]
    %v5954 = vld [vmem:[#allocation4 + $0xf0] sm:$0xff]
    %v5955 = vld [vmem:[#allocation4 + $0x100] sm:$0xff]
    %v5956 = vld [vmem:[#allocation4 + $0x110] sm:$0xff]
    %v5957 = vld [vmem:[#allocation4 + $0x120] sm:$0xff]
    %v5958 = vld [vmem:[#allocation4 + $0x130] sm:$0xff]
    %v5959 = vld [vmem:[#allocation4 + $0x140] sm:$0xff]
    %v5960 = vld [vmem:[#allocation4 + $0x150] sm:$0xff]
    %v5961 = vld [vmem:[#allocation4 + $0x160] sm:$0xff]
    %v5962 = vld [vmem:[#allocation4 + $0x170] sm:$0xff]
    %v5963 = vld [vmem:[#allocation4 + $0x180] sm:$0xff]
    %v5964 = vld [vmem:[#allocation4 + $0x190] sm:$0xff]
    %v5965 = vld [vmem:[#allocation4 + $0x1a0] sm:$0xff]
    %v5966 = vld [vmem:[#allocation4 + $0x1b0] sm:$0xff]
    %v5967 = vld [vmem:[#allocation4 + $0x1c0] sm:$0xff]
    %v5968 = vld [vmem:[#allocation4 + $0x1d0] sm:$0xff]
    %v5969 = vld [vmem:[#allocation4 + $0x1e0] sm:$0xff]
    %v5970 = vld [vmem:[#allocation4 + $0x1f0] sm:$0xff]
    %v5971 = vld [vmem:[#allocation4 + $0x200] sm:$0xff]
    %v5972 = vld [vmem:[#allocation4 + $0x210] sm:$0xff]
    %v5973 = vld [vmem:[#allocation4 + $0x220] sm:$0xff]
    %v5974 = vld [vmem:[#allocation4 + $0x230] sm:$0xff]
    %v5975 = vld [vmem:[#allocation4 + $0x240] sm:$0xff]
    %v5976 = vld [vmem:[#allocation4 + $0x250] sm:$0xff]
    %v5977 = vld [vmem:[#allocation4 + $0x260] sm:$0xff]
    %v5978 = vld [vmem:[#allocation4 + $0x270] sm:$0xff]
    %v5979 = vld [vmem:[#allocation4 + $0x280] sm:$0xff]
    %v5980 = vld [vmem:[#allocation4 + $0x290] sm:$0xff]
    %v5981 = vld [vmem:[#allocation4 + $0x2a0] sm:$0xff]
    %v5982 = vld [vmem:[#allocation4 + $0x2b0] sm:$0xff]
    %v5983 = vld [vmem:[#allocation4 + $0x2c0] sm:$0xff]
    %v5984 = vld [vmem:[#allocation4 + $0x2d0] sm:$0xff]
    %v5985 = vld [vmem:[#allocation4 + $0x2e0] sm:$0xff]
    %v5986 = vld [vmem:[#allocation4 + $0x2f0] sm:$0xff]
    %v5987 = vld [vmem:[#allocation4 + $0x300] sm:$0xff]
    %v5988 = vld [vmem:[#allocation4 + $0x310] sm:$0xff]
    %v5989 = vld [vmem:[#allocation4 + $0x320] sm:$0xff]
    %v5990 = vld [vmem:[#allocation4 + $0x330] sm:$0xff]
    %v5991 = vld [vmem:[#allocation4 + $0x340] sm:$0xff]
    %v5992 = vld [vmem:[#allocation4 + $0x350] sm:$0xff]
    %v5993 = vld [vmem:[#allocation4 + $0x360] sm:$0xff]
    %v5994 = vld [vmem:[#allocation4 + $0x370] sm:$0xff]
    %v5995 = vld [vmem:[#allocation4 + $0x380] sm:$0xff]
    %v5996 = vld [vmem:[#allocation4 + $0x390] sm:$0xff]
    %v5997 = vld [vmem:[#allocation4 + $0x3a0] sm:$0xff]
    %v5998 = vld [vmem:[#allocation4 + $0x3b0] sm:$0xff]
    %v5999 = vld [vmem:[#allocation4 + $0x3c0] sm:$0xff]
    %v6000 = vld [vmem:[#allocation4 + $0x3d0] sm:$0xff]
    %v6001 = vld [vmem:[#allocation4 + $0x3e0] sm:$0xff]
    %v6002 = vld [vmem:[#allocation4 + $0x3f0] sm:$0xff]
    %v6003 = vld [vmem:[#allocation4 + $0x400] sm:$0xff]
    %v6004 = vld [vmem:[#allocation4 + $0x410] sm:$0xff]
    %v6005 = vld [vmem:[#allocation4 + $0x420] sm:$0xff]
    %v6006 = vld [vmem:[#allocation4 + $0x430] sm:$0xff]
    %v6007 = vld [vmem:[#allocation4 + $0x440] sm:$0xff]
    %v6008 = vld [vmem:[#allocation4 + $0x450] sm:$0xff]
    %v6009 = vld [vmem:[#allocation4 + $0x460] sm:$0xff]
    %v6010 = vld [vmem:[#allocation4 + $0x470] sm:$0xff]
    %v6011 = vld [vmem:[#allocation4 + $0x480] sm:$0xff]
    %v6012 = vld [vmem:[#allocation4 + $0x490] sm:$0xff]
    %v6013 = vld [vmem:[#allocation4 + $0x4a0] sm:$0xff]
    %v6014 = vld [vmem:[#allocation4 + $0x4b0] sm:$0xff]
    %v6015 = vld [vmem:[#allocation4 + $0x4c0] sm:$0xff]
    %v6016 = vld [vmem:[#allocation4 + $0x4d0] sm:$0xff]
    %v6017 = vld [vmem:[#allocation4 + $0x4e0] sm:$0xff]
    %v6018 = vld [vmem:[#allocation4 + $0x4f0] sm:$0xff]
    %v6019 = vld [vmem:[#allocation4 + $0x500] sm:$0xff]
    %v6020 = vld [vmem:[#allocation4 + $0x510] sm:$0xff]
    %v6021 = vld [vmem:[#allocation4 + $0x520] sm:$0xff]
    %v6022 = vld [vmem:[#allocation4 + $0x530] sm:$0xff]
    %v6023 = vld [vmem:[#allocation4 + $0x540] sm:$0xff]
    %v6024 = vld [vmem:[#allocation4 + $0x550] sm:$0xff]
    %v6025 = vld [vmem:[#allocation4 + $0x560] sm:$0xff]
    %v6026 = vld [vmem:[#allocation4 + $0x570] sm:$0xff]
    %v6027 = vld [vmem:[#allocation4 + $0x580] sm:$0xff]
    %v6028 = vld [vmem:[#allocation4 + $0x590] sm:$0xff]
    %v6029 = vld [vmem:[#allocation4 + $0x5a0] sm:$0xff]
    %v6030 = vld [vmem:[#allocation4 + $0x5b0] sm:$0xff]
    %v6031 = vld [vmem:[#allocation4 + $0x5c0] sm:$0xff]
    %v6032 = vld [vmem:[#allocation4 + $0x5d0] sm:$0xff]
    %v6033 = vld [vmem:[#allocation4 + $0x5e0] sm:$0xff]
    %v6034 = vld [vmem:[#allocation4 + $0x5f0] sm:$0xff]
    %v6038 = vunpack.c.l.b16 %v5936
    %v6039 = vunpack.c.h.b16 %v5936
    %v6040 = vunpack.c.l.b16 %v5937
    %v6041 = vunpack.c.h.b16 %v5937
    %v6042 = vunpack.c.l.b16 %v5938
    %v6043 = vunpack.c.h.b16 %v5938
    %v6044 = vpack.c.b16 %v6038, %v6038
    %v6045 = vpack.c.b16 %v6039, %v6039
    %v6046 = vpack.c.b16 %v6040, %v6040
    %v6047 = vpack.c.b16 %v6041, %v6041
    %v6048 = vpack.c.b16 %v6042, %v6042
    %v6049 = vpack.c.b16 %v6043, %v6043
    %v6152 = vunpack.c.l.b16 %v5939
    %v6153 = vunpack.c.h.b16 %v5939
    %v6154 = vunpack.c.l.b16 %v5940
    %v6155 = vunpack.c.h.b16 %v5940
    %v6156 = vunpack.c.l.b16 %v5941
    %v6157 = vunpack.c.h.b16 %v5941
    %v6158 = vunpack.c.l.b16 %v5942
    %v6159 = vunpack.c.h.b16 %v5942
    %v6160 = vunpack.c.l.b16 %v5943
    %v6161 = vunpack.c.h.b16 %v5943
    %v6162 = vunpack.c.l.b16 %v5944
    %v6163 = vunpack.c.h.b16 %v5944
    %v6164 = vunpack.c.l.b16 %v5945
    %v6165 = vunpack.c.h.b16 %v5945
    %v6166 = vunpack.c.l.b16 %v5946
    %v6167 = vunpack.c.h.b16 %v5946
    %v6168 = vunpack.c.l.b16 %v5947
    %v6169 = vunpack.c.h.b16 %v5947
    %v6170 = vunpack.c.l.b16 %v5948
    %v6171 = vunpack.c.h.b16 %v5948
    %v6172 = vunpack.c.l.b16 %v5949
    %v6173 = vunpack.c.h.b16 %v5949
    %v6174 = vunpack.c.l.b16 %v5950
    %v6175 = vunpack.c.h.b16 %v5950
    %v6176 = vunpack.c.l.b16 %v5951
    %v6177 = vunpack.c.h.b16 %v5951
    %v6178 = vunpack.c.l.b16 %v5952
    %v6179 = vunpack.c.h.b16 %v5952
    %v6180 = vunpack.c.l.b16 %v5953
    %v6181 = vunpack.c.h.b16 %v5953
    %v6182 = vunpack.c.l.b16 %v5954
    %v6183 = vunpack.c.h.b16 %v5954
    %v6184 = vunpack.c.l.b16 %v5955
    %v6185 = vunpack.c.h.b16 %v5955
    %v6186 = vunpack.c.l.b16 %v5956
    %v6187 = vunpack.c.h.b16 %v5956
    %v6188 = vunpack.c.l.b16 %v5957
    %v6189 = vunpack.c.h.b16 %v5957
    %v6190 = vunpack.c.l.b16 %v5958
    %v6191 = vunpack.c.h.b16 %v5958
    %v6192 = vunpack.c.l.b16 %v5959
    %v6193 = vunpack.c.h.b16 %v5959
    %v6194 = vunpack.c.l.b16 %v5960
    %v6195 = vunpack.c.h.b16 %v5960
    %v6196 = vunpack.c.l.b16 %v5961
    %v6197 = vunpack.c.h.b16 %v5961
    %v6198 = vunpack.c.l.b16 %v5962
    %v6199 = vunpack.c.h.b16 %v5962
    %v6200 = vunpack.c.l.b16 %v5963
    %v6201 = vunpack.c.h.b16 %v5963
    %v6202 = vunpack.c.l.b16 %v5964
    %v6203 = vunpack.c.h.b16 %v5964
    %v6204 = vunpack.c.l.b16 %v5965
    %v6205 = vunpack.c.h.b16 %v5965
    %v6206 = vunpack.c.l.b16 %v5966
    %v6207 = vunpack.c.h.b16 %v5966
    %v6208 = vunpack.c.l.b16 %v5967
    %v6209 = vunpack.c.h.b16 %v5967
    %v6210 = vunpack.c.l.b16 %v5968
    %v6211 = vunpack.c.h.b16 %v5968
    %v6212 = vunpack.c.l.b16 %v5969
    %v6213 = vunpack.c.h.b16 %v5969
    %v6214 = vunpack.c.l.b16 %v5970
    %v6215 = vunpack.c.h.b16 %v5970
    %v6216 = vunpack.c.l.b16 %v5971
    %v6217 = vunpack.c.h.b16 %v5971
    %v6218 = vunpack.c.l.b16 %v5972
    %v6219 = vunpack.c.h.b16 %v5972
    %v6220 = vunpack.c.l.b16 %v5973
    %v6221 = vunpack.c.h.b16 %v5973
    %v6222 = vunpack.c.l.b16 %v5974
    %v6223 = vunpack.c.h.b16 %v5974
    %v6224 = vunpack.c.l.b16 %v5975
    %v6225 = vunpack.c.h.b16 %v5975
    %v6226 = vunpack.c.l.b16 %v5976
    %v6227 = vunpack.c.h.b16 %v5976
    %v6228 = vunpack.c.l.b16 %v5977
    %v6229 = vunpack.c.h.b16 %v5977
    %v6230 = vunpack.c.l.b16 %v5978
    %v6231 = vunpack.c.h.b16 %v5978
    %v6232 = vunpack.c.l.b16 %v5979
    %v6233 = vunpack.c.h.b16 %v5979
    %v6234 = vunpack.c.l.b16 %v5980
    %v6235 = vunpack.c.h.b16 %v5980
    %v6236 = vunpack.c.l.b16 %v5981
    %v6237 = vunpack.c.h.b16 %v5981
    %v6238 = vunpack.c.l.b16 %v5982
    %v6239 = vunpack.c.h.b16 %v5982
    %v6240 = vunpack.c.l.b16 %v5983
    %v6241 = vunpack.c.h.b16 %v5983
    %v6242 = vunpack.c.l.b16 %v5984
    %v6243 = vunpack.c.h.b16 %v5984
    %v6244 = vunpack.c.l.b16 %v5985
    %v6245 = vunpack.c.h.b16 %v5985
    %v6246 = vunpack.c.l.b16 %v5986
    %v6247 = vunpack.c.h.b16 %v5986
    %v6248 = vunpack.c.l.b16 %v5987
    %v6249 = vunpack.c.h.b16 %v5987
    %v6250 = vunpack.c.l.b16 %v5988
    %v6251 = vunpack.c.h.b16 %v5988
    %v6252 = vunpack.c.l.b16 %v5989
    %v6253 = vunpack.c.h.b16 %v5989
    %v6254 = vunpack.c.l.b16 %v5990
    %v6255 = vunpack.c.h.b16 %v5990
    %v6256 = vunpack.c.l.b16 %v5991
    %v6257 = vunpack.c.h.b16 %v5991
    %v6258 = vunpack.c.l.b16 %v5992
    %v6259 = vunpack.c.h.b16 %v5992
    %v6260 = vunpack.c.l.b16 %v5993
    %v6261 = vunpack.c.h.b16 %v5993
    %v6262 = vunpack.c.l.b16 %v5994
    %v6263 = vunpack.c.h.b16 %v5994
    %v6264 = vunpack.c.l.b16 %v5995
    %v6265 = vunpack.c.h.b16 %v5995
    %v6266 = vunpack.c.l.b16 %v5996
    %v6267 = vunpack.c.h.b16 %v5996
    %v6268 = vunpack.c.l.b16 %v5997
    %v6269 = vunpack.c.h.b16 %v5997
    %v6270 = vunpack.c.l.b16 %v5998
    %v6271 = vunpack.c.h.b16 %v5998
    %v6272 = vunpack.c.l.b16 %v5999
    %v6273 = vunpack.c.h.b16 %v5999
    %v6274 = vunpack.c.l.b16 %v6000
    %v6275 = vunpack.c.h.b16 %v6000
    %v6276 = vunpack.c.l.b16 %v6001
    %v6277 = vunpack.c.h.b16 %v6001
    %v6278 = vunpack.c.l.b16 %v6002
    %v6279 = vunpack.c.h.b16 %v6002
    %v6280 = vunpack.c.l.b16 %v6003
    %v6281 = vunpack.c.h.b16 %v6003
    %v6282 = vunpack.c.l.b16 %v6004
    %v6283 = vunpack.c.h.b16 %v6004
    %v6284 = vunpack.c.l.b16 %v6005
    %v6285 = vunpack.c.h.b16 %v6005
    %v6286 = vunpack.c.l.b16 %v6006
    %v6287 = vunpack.c.h.b16 %v6006
    %v6288 = vunpack.c.l.b16 %v6007
    %v6289 = vunpack.c.h.b16 %v6007
    %v6290 = vunpack.c.l.b16 %v6008
    %v6291 = vunpack.c.h.b16 %v6008
    %v6292 = vunpack.c.l.b16 %v6009
    %v6293 = vunpack.c.h.b16 %v6009
    %v6294 = vunpack.c.l.b16 %v6010
    %v6295 = vunpack.c.h.b16 %v6010
    %v6296 = vunpack.c.l.b16 %v6011
    %v6297 = vunpack.c.h.b16 %v6011
    %v6298 = vunpack.c.l.b16 %v6012
    %v6299 = vunpack.c.h.b16 %v6012
    %v6300 = vunpack.c.l.b16 %v6013
    %v6301 = vunpack.c.h.b16 %v6013
    %v6302 = vunpack.c.l.b16 %v6014
    %v6303 = vunpack.c.h.b16 %v6014
    %v6304 = vunpack.c.l.b16 %v6015
    %v6305 = vunpack.c.h.b16 %v6015
    %v6306 = vunpack.c.l.b16 %v6016
    %v6307 = vunpack.c.h.b16 %v6016
    %v6308 = vunpack.c.l.b16 %v6017
    %v6309 = vunpack.c.h.b16 %v6017
    %v6310 = vunpack.c.l.b16 %v6018
    %v6311 = vunpack.c.h.b16 %v6018
    %v6312 = vunpack.c.l.b16 %v6019
    %v6313 = vunpack.c.h.b16 %v6019
    %v6314 = vunpack.c.l.b16 %v6020
    %v6315 = vunpack.c.h.b16 %v6020
    %v6316 = vunpack.c.l.b16 %v6021
    %v6317 = vunpack.c.h.b16 %v6021
    %v6318 = vunpack.c.l.b16 %v6022
    %v6319 = vunpack.c.h.b16 %v6022
    %v6320 = vunpack.c.l.b16 %v6023
    %v6321 = vunpack.c.h.b16 %v6023
    %v6322 = vunpack.c.l.b16 %v6024
    %v6323 = vunpack.c.h.b16 %v6024
    %v6324 = vunpack.c.l.b16 %v6025
    %v6325 = vunpack.c.h.b16 %v6025
    %v6326 = vunpack.c.l.b16 %v6026
    %v6327 = vunpack.c.h.b16 %v6026
    %v6328 = vunpack.c.l.b16 %v6027
    %v6329 = vunpack.c.h.b16 %v6027
    %v6330 = vunpack.c.l.b16 %v6028
    %v6331 = vunpack.c.h.b16 %v6028
    %v6332 = vunpack.c.l.b16 %v6029
    %v6333 = vunpack.c.h.b16 %v6029
    %v6334 = vunpack.c.l.b16 %v6030
    %v6335 = vunpack.c.h.b16 %v6030
    %v6336 = vunpack.c.l.b16 %v6031
    %v6337 = vunpack.c.h.b16 %v6031
    %v6338 = vunpack.c.l.b16 %v6032
    %v6339 = vunpack.c.h.b16 %v6032
    %v6340 = vunpack.c.l.b16 %v6033
    %v6341 = vunpack.c.h.b16 %v6033
    %v6342 = vunpack.c.l.b16 %v6034
    %v6343 = vunpack.c.h.b16 %v6034
    %v6344 = vpack.c.b16 %v6154, %v6152
    %v6345 = vpack.c.b16 %v6155, %v6153
    %v6346 = vpack.c.b16 %v6158, %v6156
    %v6347 = vpack.c.b16 %v6159, %v6157
    %v6348 = vpack.c.b16 %v6162, %v6160
    %v6349 = vpack.c.b16 %v6163, %v6161
    %v6350 = vpack.c.b16 %v6166, %v6164
    %v6351 = vpack.c.b16 %v6167, %v6165
    %v6352 = vpack.c.b16 %v6170, %v6168
    %v6353 = vpack.c.b16 %v6171, %v6169
    %v6354 = vpack.c.b16 %v6174, %v6172
    %v6355 = vpack.c.b16 %v6175, %v6173
    %v6356 = vpack.c.b16 %v6178, %v6176
    %v6357 = vpack.c.b16 %v6179, %v6177
    %v6358 = vpack.c.b16 %v6182, %v6180
    %v6359 = vpack.c.b16 %v6183, %v6181
    %v6360 = vpack.c.b16 %v6186, %v6184
    %v6361 = vpack.c.b16 %v6187, %v6185
    %v6362 = vpack.c.b16 %v6190, %v6188
    %v6363 = vpack.c.b16 %v6191, %v6189
    %v6364 = vpack.c.b16 %v6194, %v6192
    %v6365 = vpack.c.b16 %v6195, %v6193
    %v6366 = vpack.c.b16 %v6198, %v6196
    %v6367 = vpack.c.b16 %v6199, %v6197
    %v6368 = vpack.c.b16 %v6202, %v6200
    %v6369 = vpack.c.b16 %v6203, %v6201
    %v6370 = vpack.c.b16 %v6206, %v6204
    %v6371 = vpack.c.b16 %v6207, %v6205
    %v6372 = vpack.c.b16 %v6210, %v6208
    %v6373 = vpack.c.b16 %v6211, %v6209
    %v6374 = vpack.c.b16 %v6214, %v6212
    %v6375 = vpack.c.b16 %v6215, %v6213
    %v6376 = vpack.c.b16 %v6218, %v6216
    %v6377 = vpack.c.b16 %v6219, %v6217
    %v6378 = vpack.c.b16 %v6222, %v6220
    %v6379 = vpack.c.b16 %v6223, %v6221
    %v6380 = vpack.c.b16 %v6226, %v6224
    %v6381 = vpack.c.b16 %v6227, %v6225
    %v6382 = vpack.c.b16 %v6230, %v6228
    %v6383 = vpack.c.b16 %v6231, %v6229
    %v6384 = vpack.c.b16 %v6234, %v6232
    %v6385 = vpack.c.b16 %v6235, %v6233
    %v6386 = vpack.c.b16 %v6238, %v6236
    %v6387 = vpack.c.b16 %v6239, %v6237
    %v6388 = vpack.c.b16 %v6242, %v6240
    %v6389 = vpack.c.b16 %v6243, %v6241
    %v6390 = vpack.c.b16 %v6246, %v6244
    %v6391 = vpack.c.b16 %v6247, %v6245
    %v6392 = vpack.c.b16 %v6250, %v6248
    %v6393 = vpack.c.b16 %v6251, %v6249
    %v6394 = vpack.c.b16 %v6254, %v6252
    %v6395 = vpack.c.b16 %v6255, %v6253
    %v6396 = vpack.c.b16 %v6258, %v6256
    %v6397 = vpack.c.b16 %v6259, %v6257
    %v6398 = vpack.c.b16 %v6262, %v6260
    %v6399 = vpack.c.b16 %v6263, %v6261
    %v6400 = vpack.c.b16 %v6266, %v6264
    %v6401 = vpack.c.b16 %v6267, %v6265
    %v6402 = vpack.c.b16 %v6270, %v6268
    %v6403 = vpack.c.b16 %v6271, %v6269
    %v6404 = vpack.c.b16 %v6274, %v6272
    %v6405 = vpack.c.b16 %v6275, %v6273
    %v6406 = vpack.c.b16 %v6278, %v6276
    %v6407 = vpack.c.b16 %v6279, %v6277
    %v6408 = vpack.c.b16 %v6282, %v6280
    %v6409 = vpack.c.b16 %v6283, %v6281
    %v6410 = vpack.c.b16 %v6286, %v6284
    %v6411 = vpack.c.b16 %v6287, %v6285
    %v6412 = vpack.c.b16 %v6290, %v6288
    %v6413 = vpack.c.b16 %v6291, %v6289
    %v6414 = vpack.c.b16 %v6294, %v6292
    %v6415 = vpack.c.b16 %v6295, %v6293
    %v6416 = vpack.c.b16 %v6298, %v6296
    %v6417 = vpack.c.b16 %v6299, %v6297
    %v6418 = vpack.c.b16 %v6302, %v6300
    %v6419 = vpack.c.b16 %v6303, %v6301
    %v6420 = vpack.c.b16 %v6306, %v6304
    %v6421 = vpack.c.b16 %v6307, %v6305
    %v6422 = vpack.c.b16 %v6310, %v6308
    %v6423 = vpack.c.b16 %v6311, %v6309
    %v6424 = vpack.c.b16 %v6314, %v6312
    %v6425 = vpack.c.b16 %v6315, %v6313
    %v6426 = vpack.c.b16 %v6318, %v6316
    %v6427 = vpack.c.b16 %v6319, %v6317
    %v6428 = vpack.c.b16 %v6322, %v6320
    %v6429 = vpack.c.b16 %v6323, %v6321
    %v6430 = vpack.c.b16 %v6326, %v6324
    %v6431 = vpack.c.b16 %v6327, %v6325
    %v6432 = vpack.c.b16 %v6330, %v6328
    %v6433 = vpack.c.b16 %v6331, %v6329
    %v6434 = vpack.c.b16 %v6334, %v6332
    %v6435 = vpack.c.b16 %v6335, %v6333
    %v6436 = vpack.c.b16 %v6338, %v6336
    %v6437 = vpack.c.b16 %v6339, %v6337
    %v6438 = vpack.c.b16 %v6342, %v6340
    %v6439 = vpack.c.b16 %v6343, %v6341
    %6536 = vmatprep.subr.bf16.mxu0 %v6359
    %6537 = vmatpush1.bf16.msra.mxu0 %v6358
    %6538 = vmatprep.subr.bf16.mxu0 %v6357
    %6539 = vmatpush1.bf16.msra.mxu0 %v6356
    %6540 = vmatprep.subr.bf16.mxu0 %v6355
    %6541 = vmatpush1.bf16.msra.mxu0 %v6354
    %6542 = vmatprep.subr.bf16.mxu0 %v6353
    %6543 = vmatpush1.bf16.msra.mxu0 %v6352
    %6544 = vmatprep.subr.bf16.mxu0 %v6351
    %6545 = vmatpush1.bf16.msra.mxu0 %v6350
    %6546 = vmatprep.subr.bf16.mxu0 %v6349
    %6547 = vmatpush1.bf16.msra.mxu0 %v6348
    %6548 = vmatprep.subr.bf16.mxu0 %v6347
    %6549 = vmatpush1.bf16.msra.mxu0 %v6346
    %6550 = vmatprep.subr.bf16.mxu0 %v6345
    %6551 = vmatpush1.bf16.msra.mxu0 %v6344
    %6552 = vmatprep.subr.bf16.mxu0 %v6375
    %6553 = vmatpush2.bf16.msra.mxu0 %v6374
    %6554 = vmatprep.subr.bf16.mxu0 %v6373
    %6555 = vmatpush2.bf16.msra.mxu0 %v6372
    %6556 = vmatprep.subr.bf16.mxu0 %v6371
    %6557 = vmatpush2.bf16.msra.mxu0 %v6370
    %6558 = vmatprep.subr.bf16.mxu0 %v6369
    %6559 = vmatpush2.bf16.msra.mxu0 %v6368
    %6560 = vmatprep.subr.bf16.mxu0 %v6367
    %6561 = vmatpush2.bf16.msra.mxu0 %v6366
    %6562 = vmatprep.subr.bf16.mxu0 %v6365
    %6563 = vmatpush2.bf16.msra.mxu0 %v6364
    %6564 = vmatprep.subr.bf16.mxu0 %v6363
    %6565 = vmatpush2.bf16.msra.mxu0 %v6362
    %6566 = vmatprep.subr.bf16.mxu0 %v6361
    %6567 = vmatpush2.bf16.msra.mxu0 %v6360
    %6568 = vmatprep.mubr.bf16.mxu0 %v6045
    %6569 = vmatmul.mubr.bf16.gmra.mxu0 %v6044
    %v6570 = vpop.f32.mrf.mxu0
    %v6571 = vadd.f32 0.0, %v6570
    %v6572 = vpop.f32.mrf.mxu0
    %v6573 = vadd.f32 0.0, %v6572
    %v6574 = vpop.f32.mrf.mxu0
    %v6575 = vpop.f32.mrf.mxu0
    %6576 = vdwg.mxu0
    %6577 = vmatprep.subr.bf16.mxu0 %v6391
    %6578 = vmatpush1.bf16.msra.mxu0 %v6390
    %6579 = vmatprep.subr.bf16.mxu0 %v6389
    %6580 = vmatpush1.bf16.msra.mxu0 %v6388
    %6581 = vmatprep.subr.bf16.mxu0 %v6387
    %6582 = vmatpush1.bf16.msra.mxu0 %v6386
    %6583 = vmatprep.subr.bf16.mxu0 %v6385
    %6584 = vmatpush1.bf16.msra.mxu0 %v6384
    %6585 = vmatprep.subr.bf16.mxu0 %v6383
    %6586 = vmatpush1.bf16.msra.mxu0 %v6382
    %6587 = vmatprep.subr.bf16.mxu0 %v6381
    %6588 = vmatpush1.bf16.msra.mxu0 %v6380
    %6589 = vmatprep.subr.bf16.mxu0 %v6379
    %6590 = vmatpush1.bf16.msra.mxu0 %v6378
    %6591 = vmatprep.subr.bf16.mxu0 %v6377
    %6592 = vmatpush1.bf16.msra.mxu0 %v6376
    %6593 = vmatprep.subr.bf16.mxu0 %v6407
    %6594 = vmatpush2.bf16.msra.mxu0 %v6406
    %6595 = vmatprep.subr.bf16.mxu0 %v6405
    %6596 = vmatpush2.bf16.msra.mxu0 %v6404
    %6597 = vmatprep.subr.bf16.mxu0 %v6403
    %6598 = vmatpush2.bf16.msra.mxu0 %v6402
    %6599 = vmatprep.subr.bf16.mxu0 %v6401
    %6600 = vmatpush2.bf16.msra.mxu0 %v6400
    %6601 = vmatprep.subr.bf16.mxu0 %v6399
    %6602 = vmatpush2.bf16.msra.mxu0 %v6398
    %6603 = vmatprep.subr.bf16.mxu0 %v6397
    %6604 = vmatpush2.bf16.msra.mxu0 %v6396
    %6605 = vmatprep.subr.bf16.mxu0 %v6395
    %6606 = vmatpush2.bf16.msra.mxu0 %v6394
    %6607 = vmatprep.subr.bf16.mxu0 %v6393
    %6608 = vmatpush2.bf16.msra.mxu0 %v6392
    %6609 = vmatprep.mubr.bf16.mxu0 %v6047
    %6610 = vmatmul.mubr.bf16.gmra.mxu0 %v6046
    %v6611 = vpop.f32.mrf.mxu0
    %v6612 = vadd.f32 %v6571, %v6611
    %v6613 = vpop.f32.mrf.mxu0
    %v6614 = vadd.f32 %v6573, %v6613
    %v6615 = vpop.f32.mrf.mxu0
    %v6616 = vpop.f32.mrf.mxu0
    %6617 = vdwg.mxu0
    %6618 = vmatprep.subr.bf16.mxu0 %v6423
    %6619 = vmatpush1.bf16.msra.mxu0 %v6422
    %6620 = vmatprep.subr.bf16.mxu0 %v6421
    %6621 = vmatpush1.bf16.msra.mxu0 %v6420
    %6622 = vmatprep.subr.bf16.mxu0 %v6419
    %6623 = vmatpush1.bf16.msra.mxu0 %v6418
    %6624 = vmatprep.subr.bf16.mxu0 %v6417
    %6625 = vmatpush1.bf16.msra.mxu0 %v6416
    %6626 = vmatprep.subr.bf16.mxu0 %v6415
    %6627 = vmatpush1.bf16.msra.mxu0 %v6414
    %6628 = vmatprep.subr.bf16.mxu0 %v6413
    %6629 = vmatpush1.bf16.msra.mxu0 %v6412
    %6630 = vmatprep.subr.bf16.mxu0 %v6411
    %6631 = vmatpush1.bf16.msra.mxu0 %v6410
    %6632 = vmatprep.subr.bf16.mxu0 %v6409
    %6633 = vmatpush1.bf16.msra.mxu0 %v6408
    %6634 = vmatprep.subr.bf16.mxu0 %v6439
    %6635 = vmatpush2.bf16.msra.mxu0 %v6438
    %6636 = vmatprep.subr.bf16.mxu0 %v6437
    %6637 = vmatpush2.bf16.msra.mxu0 %v6436
    %6638 = vmatprep.subr.bf16.mxu0 %v6435
    %6639 = vmatpush2.bf16.msra.mxu0 %v6434
    %6640 = vmatprep.subr.bf16.mxu0 %v6433
    %6641 = vmatpush2.bf16.msra.mxu0 %v6432
    %6642 = vmatprep.subr.bf16.mxu0 %v6431
    %6643 = vmatpush2.bf16.msra.mxu0 %v6430
    %6644 = vmatprep.subr.bf16.mxu0 %v6429
    %6645 = vmatpush2.bf16.msra.mxu0 %v6428
    %6646 = vmatprep.subr.bf16.mxu0 %v6427
    %6647 = vmatpush2.bf16.msra.mxu0 %v6426
    %6648 = vmatprep.subr.bf16.mxu0 %v6425
    %6649 = vmatpush2.bf16.msra.mxu0 %v6424
    %6650 = vmatprep.mubr.bf16.mxu0 %v6049
    %6651 = vmatmul.mubr.bf16.gmra.mxu0 %v6048
    %v6652 = vpop.f32.mrf.mxu0
    %v6653 = vadd.f32 %v6612, %v6652
    %v6654 = vpop.f32.mrf.mxu0
    %v6655 = vadd.f32 %v6614, %v6654
    %v6656 = vpop.f32.mrf.mxu0
    %v6657 = vpop.f32.mrf.mxu0
    %6658 = vdwg.mxu0
    %v6659 = vmax.f32 %v6653, %v6655
    %v6660 = vld [vmem:[#allocation4 + $0x8] sm:$0xff]
    %v6661 = vld [vmem:[#allocation4 + $0x18] sm:$0xff]
    %v6662 = vld [vmem:[#allocation4 + $0x28] sm:$0xff]
    %v6663 = vld [vmem:[#allocation4 + $0x38] sm:$0xff]
    %v6664 = vld [vmem:[#allocation4 + $0x48] sm:$0xff]
    %v6665 = vld [vmem:[#allocation4 + $0x58] sm:$0xff]
    %v6666 = vld [vmem:[#allocation4 + $0x68] sm:$0xff]
    %v6667 = vld [vmem:[#allocation4 + $0x78] sm:$0xff]
    %v6668 = vld [vmem:[#allocation4 + $0x88] sm:$0xff]
    %v6669 = vld [vmem:[#allocation4 + $0x98] sm:$0xff]
    %v6670 = vld [vmem:[#allocation4 + $0xa8] sm:$0xff]
    %v6671 = vld [vmem:[#allocation4 + $0xb8] sm:$0xff]
    %v6672 = vld [vmem:[#allocation4 + $0xc8] sm:$0xff]
    %v6673 = vld [vmem:[#allocation4 + $0xd8] sm:$0xff]
    %v6674 = vld [vmem:[#allocation4 + $0xe8] sm:$0xff]
    %v6675 = vld [vmem:[#allocation4 + $0xf8] sm:$0xff]
    %v6676 = vld [vmem:[#allocation4 + $0x108] sm:$0xff]
    %v6677 = vld [vmem:[#allocation4 + $0x118] sm:$0xff]
    %v6678 = vld [vmem:[#allocation4 + $0x128] sm:$0xff]
    %v6679 = vld [vmem:[#allocation4 + $0x138] sm:$0xff]
    %v6680 = vld [vmem:[#allocation4 + $0x148] sm:$0xff]
    %v6681 = vld [vmem:[#allocation4 + $0x158] sm:$0xff]
    %v6682 = vld [vmem:[#allocation4 + $0x168] sm:$0xff]
    %v6683 = vld [vmem:[#allocation4 + $0x178] sm:$0xff]
    %v6684 = vld [vmem:[#allocation4 + $0x188] sm:$0xff]
    %v6685 = vld [vmem:[#allocation4 + $0x198] sm:$0xff]
    %v6686 = vld [vmem:[#allocation4 + $0x1a8] sm:$0xff]
    %v6687 = vld [vmem:[#allocation4 + $0x1b8] sm:$0xff]
    %v6688 = vld [vmem:[#allocation4 + $0x1c8] sm:$0xff]
    %v6689 = vld [vmem:[#allocation4 + $0x1d8] sm:$0xff]
    %v6690 = vld [vmem:[#allocation4 + $0x1e8] sm:$0xff]
    %v6691 = vld [vmem:[#allocation4 + $0x1f8] sm:$0xff]
    %v6692 = vld [vmem:[#allocation4 + $0x208] sm:$0xff]
    %v6693 = vld [vmem:[#allocation4 + $0x218] sm:$0xff]
    %v6694 = vld [vmem:[#allocation4 + $0x228] sm:$0xff]
    %v6695 = vld [vmem:[#allocation4 + $0x238] sm:$0xff]
    %v6696 = vld [vmem:[#allocation4 + $0x248] sm:$0xff]
    %v6697 = vld [vmem:[#allocation4 + $0x258] sm:$0xff]
    %v6698 = vld [vmem:[#allocation4 + $0x268] sm:$0xff]
    %v6699 = vld [vmem:[#allocation4 + $0x278] sm:$0xff]
    %v6700 = vld [vmem:[#allocation4 + $0x288] sm:$0xff]
    %v6701 = vld [vmem:[#allocation4 + $0x298] sm:$0xff]
    %v6702 = vld [vmem:[#allocation4 + $0x2a8] sm:$0xff]
    %v6703 = vld [vmem:[#allocation4 + $0x2b8] sm:$0xff]
    %v6704 = vld [vmem:[#allocation4 + $0x2c8] sm:$0xff]
    %v6705 = vld [vmem:[#allocation4 + $0x2d8] sm:$0xff]
    %v6706 = vld [vmem:[#allocation4 + $0x2e8] sm:$0xff]
    %v6707 = vld [vmem:[#allocation4 + $0x2f8] sm:$0xff]
    %v6708 = vld [vmem:[#allocation4 + $0x308] sm:$0xff]
    %v6709 = vld [vmem:[#allocation4 + $0x318] sm:$0xff]
    %v6710 = vld [vmem:[#allocation4 + $0x328] sm:$0xff]
    %v6711 = vld [vmem:[#allocation4 + $0x338] sm:$0xff]
    %v6712 = vld [vmem:[#allocation4 + $0x348] sm:$0xff]
    %v6713 = vld [vmem:[#allocation4 + $0x358] sm:$0xff]
    %v6714 = vld [vmem:[#allocation4 + $0x368] sm:$0xff]
    %v6715 = vld [vmem:[#allocation4 + $0x378] sm:$0xff]
    %v6716 = vld [vmem:[#allocation4 + $0x388] sm:$0xff]
    %v6717 = vld [vmem:[#allocation4 + $0x398] sm:$0xff]
    %v6718 = vld [vmem:[#allocation4 + $0x3a8] sm:$0xff]
    %v6719 = vld [vmem:[#allocation4 + $0x3b8] sm:$0xff]
    %v6720 = vld [vmem:[#allocation4 + $0x3c8] sm:$0xff]
    %v6721 = vld [vmem:[#allocation4 + $0x3d8] sm:$0xff]
    %v6722 = vld [vmem:[#allocation4 + $0x3e8] sm:$0xff]
    %v6723 = vld [vmem:[#allocation4 + $0x3f8] sm:$0xff]
    %v6724 = vld [vmem:[#allocation4 + $0x408] sm:$0xff]
    %v6725 = vld [vmem:[#allocation4 + $0x418] sm:$0xff]
    %v6726 = vld [vmem:[#allocation4 + $0x428] sm:$0xff]
    %v6727 = vld [vmem:[#allocation4 + $0x438] sm:$0xff]
    %v6728 = vld [vmem:[#allocation4 + $0x448] sm:$0xff]
    %v6729 = vld [vmem:[#allocation4 + $0x458] sm:$0xff]
    %v6730 = vld [vmem:[#allocation4 + $0x468] sm:$0xff]
    %v6731 = vld [vmem:[#allocation4 + $0x478] sm:$0xff]
    %v6732 = vld [vmem:[#allocation4 + $0x488] sm:$0xff]
    %v6733 = vld [vmem:[#allocation4 + $0x498] sm:$0xff]
    %v6734 = vld [vmem:[#allocation4 + $0x4a8] sm:$0xff]
    %v6735 = vld [vmem:[#allocation4 + $0x4b8] sm:$0xff]
    %v6736 = vld [vmem:[#allocation4 + $0x4c8] sm:$0xff]
    %v6737 = vld [vmem:[#allocation4 + $0x4d8] sm:$0xff]
    %v6738 = vld [vmem:[#allocation4 + $0x4e8] sm:$0xff]
    %v6739 = vld [vmem:[#allocation4 + $0x4f8] sm:$0xff]
    %v6740 = vld [vmem:[#allocation4 + $0x508] sm:$0xff]
    %v6741 = vld [vmem:[#allocation4 + $0x518] sm:$0xff]
    %v6742 = vld [vmem:[#allocation4 + $0x528] sm:$0xff]
    %v6743 = vld [vmem:[#allocation4 + $0x538] sm:$0xff]
    %v6744 = vld [vmem:[#allocation4 + $0x548] sm:$0xff]
    %v6745 = vld [vmem:[#allocation4 + $0x558] sm:$0xff]
    %v6746 = vld [vmem:[#allocation4 + $0x568] sm:$0xff]
    %v6747 = vld [vmem:[#allocation4 + $0x578] sm:$0xff]
    %v6748 = vld [vmem:[#allocation4 + $0x588] sm:$0xff]
    %v6749 = vld [vmem:[#allocation4 + $0x598] sm:$0xff]
    %v6750 = vld [vmem:[#allocation4 + $0x5a8] sm:$0xff]
    %v6751 = vld [vmem:[#allocation4 + $0x5b8] sm:$0xff]
    %v6752 = vld [vmem:[#allocation4 + $0x5c8] sm:$0xff]
    %v6753 = vld [vmem:[#allocation4 + $0x5d8] sm:$0xff]
    %v6754 = vld [vmem:[#allocation4 + $0x5e8] sm:$0xff]
    %v6755 = vld [vmem:[#allocation4 + $0x5f8] sm:$0xff]
    %v6852 = vunpack.c.l.b16 %v6660
    %v6853 = vunpack.c.h.b16 %v6660
    %v6854 = vunpack.c.l.b16 %v6661
    %v6855 = vunpack.c.h.b16 %v6661
    %v6856 = vunpack.c.l.b16 %v6662
    %v6857 = vunpack.c.h.b16 %v6662
    %v6858 = vunpack.c.l.b16 %v6663
    %v6859 = vunpack.c.h.b16 %v6663
    %v6860 = vunpack.c.l.b16 %v6664
    %v6861 = vunpack.c.h.b16 %v6664
    %v6862 = vunpack.c.l.b16 %v6665
    %v6863 = vunpack.c.h.b16 %v6665
    %v6864 = vunpack.c.l.b16 %v6666
    %v6865 = vunpack.c.h.b16 %v6666
    %v6866 = vunpack.c.l.b16 %v6667
    %v6867 = vunpack.c.h.b16 %v6667
    %v6868 = vunpack.c.l.b16 %v6668
    %v6869 = vunpack.c.h.b16 %v6668
    %v6870 = vunpack.c.l.b16 %v6669
    %v6871 = vunpack.c.h.b16 %v6669
    %v6872 = vunpack.c.l.b16 %v6670
    %v6873 = vunpack.c.h.b16 %v6670
    %v6874 = vunpack.c.l.b16 %v6671
    %v6875 = vunpack.c.h.b16 %v6671
    %v6876 = vunpack.c.l.b16 %v6672
    %v6877 = vunpack.c.h.b16 %v6672
    %v6878 = vunpack.c.l.b16 %v6673
    %v6879 = vunpack.c.h.b16 %v6673
    %v6880 = vunpack.c.l.b16 %v6674
    %v6881 = vunpack.c.h.b16 %v6674
    %v6882 = vunpack.c.l.b16 %v6675
    %v6883 = vunpack.c.h.b16 %v6675
    %v6884 = vunpack.c.l.b16 %v6676
    %v6885 = vunpack.c.h.b16 %v6676
    %v6886 = vunpack.c.l.b16 %v6677
    %v6887 = vunpack.c.h.b16 %v6677
    %v6888 = vunpack.c.l.b16 %v6678
    %v6889 = vunpack.c.h.b16 %v6678
    %v6890 = vunpack.c.l.b16 %v6679
    %v6891 = vunpack.c.h.b16 %v6679
    %v6892 = vunpack.c.l.b16 %v6680
    %v6893 = vunpack.c.h.b16 %v6680
    %v6894 = vunpack.c.l.b16 %v6681
    %v6895 = vunpack.c.h.b16 %v6681
    %v6896 = vunpack.c.l.b16 %v6682
    %v6897 = vunpack.c.h.b16 %v6682
    %v6898 = vunpack.c.l.b16 %v6683
    %v6899 = vunpack.c.h.b16 %v6683
    %v6900 = vunpack.c.l.b16 %v6684
    %v6901 = vunpack.c.h.b16 %v6684
    %v6902 = vunpack.c.l.b16 %v6685
    %v6903 = vunpack.c.h.b16 %v6685
    %v6904 = vunpack.c.l.b16 %v6686
    %v6905 = vunpack.c.h.b16 %v6686
    %v6906 = vunpack.c.l.b16 %v6687
    %v6907 = vunpack.c.h.b16 %v6687
    %v6908 = vunpack.c.l.b16 %v6688
    %v6909 = vunpack.c.h.b16 %v6688
    %v6910 = vunpack.c.l.b16 %v6689
    %v6911 = vunpack.c.h.b16 %v6689
    %v6912 = vunpack.c.l.b16 %v6690
    %v6913 = vunpack.c.h.b16 %v6690
    %v6914 = vunpack.c.l.b16 %v6691
    %v6915 = vunpack.c.h.b16 %v6691
    %v6916 = vunpack.c.l.b16 %v6692
    %v6917 = vunpack.c.h.b16 %v6692
    %v6918 = vunpack.c.l.b16 %v6693
    %v6919 = vunpack.c.h.b16 %v6693
    %v6920 = vunpack.c.l.b16 %v6694
    %v6921 = vunpack.c.h.b16 %v6694
    %v6922 = vunpack.c.l.b16 %v6695
    %v6923 = vunpack.c.h.b16 %v6695
    %v6924 = vunpack.c.l.b16 %v6696
    %v6925 = vunpack.c.h.b16 %v6696
    %v6926 = vunpack.c.l.b16 %v6697
    %v6927 = vunpack.c.h.b16 %v6697
    %v6928 = vunpack.c.l.b16 %v6698
    %v6929 = vunpack.c.h.b16 %v6698
    %v6930 = vunpack.c.l.b16 %v6699
    %v6931 = vunpack.c.h.b16 %v6699
    %v6932 = vunpack.c.l.b16 %v6700
    %v6933 = vunpack.c.h.b16 %v6700
    %v6934 = vunpack.c.l.b16 %v6701
    %v6935 = vunpack.c.h.b16 %v6701
    %v6936 = vunpack.c.l.b16 %v6702
    %v6937 = vunpack.c.h.b16 %v6702
    %v6938 = vunpack.c.l.b16 %v6703
    %v6939 = vunpack.c.h.b16 %v6703
    %v6940 = vunpack.c.l.b16 %v6704
    %v6941 = vunpack.c.h.b16 %v6704
    %v6942 = vunpack.c.l.b16 %v6705
    %v6943 = vunpack.c.h.b16 %v6705
    %v6944 = vunpack.c.l.b16 %v6706
    %v6945 = vunpack.c.h.b16 %v6706
    %v6946 = vunpack.c.l.b16 %v6707
    %v6947 = vunpack.c.h.b16 %v6707
    %v6948 = vunpack.c.l.b16 %v6708
    %v6949 = vunpack.c.h.b16 %v6708
    %v6950 = vunpack.c.l.b16 %v6709
    %v6951 = vunpack.c.h.b16 %v6709
    %v6952 = vunpack.c.l.b16 %v6710
    %v6953 = vunpack.c.h.b16 %v6710
    %v6954 = vunpack.c.l.b16 %v6711
    %v6955 = vunpack.c.h.b16 %v6711
    %v6956 = vunpack.c.l.b16 %v6712
    %v6957 = vunpack.c.h.b16 %v6712
    %v6958 = vunpack.c.l.b16 %v6713
    %v6959 = vunpack.c.h.b16 %v6713
    %v6960 = vunpack.c.l.b16 %v6714
    %v6961 = vunpack.c.h.b16 %v6714
    %v6962 = vunpack.c.l.b16 %v6715
    %v6963 = vunpack.c.h.b16 %v6715
    %v6964 = vunpack.c.l.b16 %v6716
    %v6965 = vunpack.c.h.b16 %v6716
    %v6966 = vunpack.c.l.b16 %v6717
    %v6967 = vunpack.c.h.b16 %v6717
    %v6968 = vunpack.c.l.b16 %v6718
    %v6969 = vunpack.c.h.b16 %v6718
    %v6970 = vunpack.c.l.b16 %v6719
    %v6971 = vunpack.c.h.b16 %v6719
    %v6972 = vunpack.c.l.b16 %v6720
    %v6973 = vunpack.c.h.b16 %v6720
    %v6974 = vunpack.c.l.b16 %v6721
    %v6975 = vunpack.c.h.b16 %v6721
    %v6976 = vunpack.c.l.b16 %v6722
    %v6977 = vunpack.c.h.b16 %v6722
    %v6978 = vunpack.c.l.b16 %v6723
    %v6979 = vunpack.c.h.b16 %v6723
    %v6980 = vunpack.c.l.b16 %v6724
    %v6981 = vunpack.c.h.b16 %v6724
    %v6982 = vunpack.c.l.b16 %v6725
    %v6983 = vunpack.c.h.b16 %v6725
    %v6984 = vunpack.c.l.b16 %v6726
    %v6985 = vunpack.c.h.b16 %v6726
    %v6986 = vunpack.c.l.b16 %v6727
    %v6987 = vunpack.c.h.b16 %v6727
    %v6988 = vunpack.c.l.b16 %v6728
    %v6989 = vunpack.c.h.b16 %v6728
    %v6990 = vunpack.c.l.b16 %v6729
    %v6991 = vunpack.c.h.b16 %v6729
    %v6992 = vunpack.c.l.b16 %v6730
    %v6993 = vunpack.c.h.b16 %v6730
    %v6994 = vunpack.c.l.b16 %v6731
    %v6995 = vunpack.c.h.b16 %v6731
    %v6996 = vunpack.c.l.b16 %v6732
    %v6997 = vunpack.c.h.b16 %v6732
    %v6998 = vunpack.c.l.b16 %v6733
    %v6999 = vunpack.c.h.b16 %v6733
    %v7000 = vunpack.c.l.b16 %v6734
    %v7001 = vunpack.c.h.b16 %v6734
    %v7002 = vunpack.c.l.b16 %v6735
    %v7003 = vunpack.c.h.b16 %v6735
    %v7004 = vunpack.c.l.b16 %v6736
    %v7005 = vunpack.c.h.b16 %v6736
    %v7006 = vunpack.c.l.b16 %v6737
    %v7007 = vunpack.c.h.b16 %v6737
    %v7008 = vunpack.c.l.b16 %v6738
    %v7009 = vunpack.c.h.b16 %v6738
    %v7010 = vunpack.c.l.b16 %v6739
    %v7011 = vunpack.c.h.b16 %v6739
    %v7012 = vunpack.c.l.b16 %v6740
    %v7013 = vunpack.c.h.b16 %v6740
    %v7014 = vunpack.c.l.b16 %v6741
    %v7015 = vunpack.c.h.b16 %v6741
    %v7016 = vunpack.c.l.b16 %v6742
    %v7017 = vunpack.c.h.b16 %v6742
    %v7018 = vunpack.c.l.b16 %v6743
    %v7019 = vunpack.c.h.b16 %v6743
    %v7020 = vunpack.c.l.b16 %v6744
    %v7021 = vunpack.c.h.b16 %v6744
    %v7022 = vunpack.c.l.b16 %v6745
    %v7023 = vunpack.c.h.b16 %v6745
    %v7024 = vunpack.c.l.b16 %v6746
    %v7025 = vunpack.c.h.b16 %v6746
    %v7026 = vunpack.c.l.b16 %v6747
    %v7027 = vunpack.c.h.b16 %v6747
    %v7028 = vunpack.c.l.b16 %v6748
    %v7029 = vunpack.c.h.b16 %v6748
    %v7030 = vunpack.c.l.b16 %v6749
    %v7031 = vunpack.c.h.b16 %v6749
    %v7032 = vunpack.c.l.b16 %v6750
    %v7033 = vunpack.c.h.b16 %v6750
    %v7034 = vunpack.c.l.b16 %v6751
    %v7035 = vunpack.c.h.b16 %v6751
    %v7036 = vunpack.c.l.b16 %v6752
    %v7037 = vunpack.c.h.b16 %v6752
    %v7038 = vunpack.c.l.b16 %v6753
    %v7039 = vunpack.c.h.b16 %v6753
    %v7040 = vunpack.c.l.b16 %v6754
    %v7041 = vunpack.c.h.b16 %v6754
    %v7042 = vunpack.c.l.b16 %v6755
    %v7043 = vunpack.c.h.b16 %v6755
    %v7044 = vpack.c.b16 %v6854, %v6852
    %v7045 = vpack.c.b16 %v6855, %v6853
    %v7046 = vpack.c.b16 %v6858, %v6856
    %v7047 = vpack.c.b16 %v6859, %v6857
    %v7048 = vpack.c.b16 %v6862, %v6860
    %v7049 = vpack.c.b16 %v6863, %v6861
    %v7050 = vpack.c.b16 %v6866, %v6864
    %v7051 = vpack.c.b16 %v6867, %v6865
    %v7052 = vpack.c.b16 %v6870, %v6868
    %v7053 = vpack.c.b16 %v6871, %v6869
    %v7054 = vpack.c.b16 %v6874, %v6872
    %v7055 = vpack.c.b16 %v6875, %v6873
    %v7056 = vpack.c.b16 %v6878, %v6876
    %v7057 = vpack.c.b16 %v6879, %v6877
    %v7058 = vpack.c.b16 %v6882, %v6880
    %v7059 = vpack.c.b16 %v6883, %v6881
    %v7060 = vpack.c.b16 %v6886, %v6884
    %v7061 = vpack.c.b16 %v6887, %v6885
    %v7062 = vpack.c.b16 %v6890, %v6888
    %v7063 = vpack.c.b16 %v6891, %v6889
    %v7064 = vpack.c.b16 %v6894, %v6892
    %v7065 = vpack.c.b16 %v6895, %v6893
    %v7066 = vpack.c.b16 %v6898, %v6896
    %v7067 = vpack.c.b16 %v6899, %v6897
    %v7068 = vpack.c.b16 %v6902, %v6900
    %v7069 = vpack.c.b16 %v6903, %v6901
    %v7070 = vpack.c.b16 %v6906, %v6904
    %v7071 = vpack.c.b16 %v6907, %v6905
    %v7072 = vpack.c.b16 %v6910, %v6908
    %v7073 = vpack.c.b16 %v6911, %v6909
    %v7074 = vpack.c.b16 %v6914, %v6912
    %v7075 = vpack.c.b16 %v6915, %v6913
    %v7076 = vpack.c.b16 %v6918, %v6916
    %v7077 = vpack.c.b16 %v6919, %v6917
    %v7078 = vpack.c.b16 %v6922, %v6920
    %v7079 = vpack.c.b16 %v6923, %v6921
    %v7080 = vpack.c.b16 %v6926, %v6924
    %v7081 = vpack.c.b16 %v6927, %v6925
    %v7082 = vpack.c.b16 %v6930, %v6928
    %v7083 = vpack.c.b16 %v6931, %v6929
    %v7084 = vpack.c.b16 %v6934, %v6932
    %v7085 = vpack.c.b16 %v6935, %v6933
    %v7086 = vpack.c.b16 %v6938, %v6936
    %v7087 = vpack.c.b16 %v6939, %v6937
    %v7088 = vpack.c.b16 %v6942, %v6940
    %v7089 = vpack.c.b16 %v6943, %v6941
    %v7090 = vpack.c.b16 %v6946, %v6944
    %v7091 = vpack.c.b16 %v6947, %v6945
    %v7092 = vpack.c.b16 %v6950, %v6948
    %v7093 = vpack.c.b16 %v6951, %v6949
    %v7094 = vpack.c.b16 %v6954, %v6952
    %v7095 = vpack.c.b16 %v6955, %v6953
    %v7096 = vpack.c.b16 %v6958, %v6956
    %v7097 = vpack.c.b16 %v6959, %v6957
    %v7098 = vpack.c.b16 %v6962, %v6960
    %v7099 = vpack.c.b16 %v6963, %v6961
    %v7100 = vpack.c.b16 %v6966, %v6964
    %v7101 = vpack.c.b16 %v6967, %v6965
    %v7102 = vpack.c.b16 %v6970, %v6968
    %v7103 = vpack.c.b16 %v6971, %v6969
    %v7104 = vpack.c.b16 %v6974, %v6972
    %v7105 = vpack.c.b16 %v6975, %v6973
    %v7106 = vpack.c.b16 %v6978, %v6976
    %v7107 = vpack.c.b16 %v6979, %v6977
    %v7108 = vpack.c.b16 %v6982, %v6980
    %v7109 = vpack.c.b16 %v6983, %v6981
    %v7110 = vpack.c.b16 %v6986, %v6984
    %v7111 = vpack.c.b16 %v6987, %v6985
    %v7112 = vpack.c.b16 %v6990, %v6988
    %v7113 = vpack.c.b16 %v6991, %v6989
    %v7114 = vpack.c.b16 %v6994, %v6992
    %v7115 = vpack.c.b16 %v6995, %v6993
    %v7116 = vpack.c.b16 %v6998, %v6996
    %v7117 = vpack.c.b16 %v6999, %v6997
    %v7118 = vpack.c.b16 %v7002, %v7000
    %v7119 = vpack.c.b16 %v7003, %v7001
    %v7120 = vpack.c.b16 %v7006, %v7004
    %v7121 = vpack.c.b16 %v7007, %v7005
    %v7122 = vpack.c.b16 %v7010, %v7008
    %v7123 = vpack.c.b16 %v7011, %v7009
    %v7124 = vpack.c.b16 %v7014, %v7012
    %v7125 = vpack.c.b16 %v7015, %v7013
    %v7126 = vpack.c.b16 %v7018, %v7016
    %v7127 = vpack.c.b16 %v7019, %v7017
    %v7128 = vpack.c.b16 %v7022, %v7020
    %v7129 = vpack.c.b16 %v7023, %v7021
    %v7130 = vpack.c.b16 %v7026, %v7024
    %v7131 = vpack.c.b16 %v7027, %v7025
    %v7132 = vpack.c.b16 %v7030, %v7028
    %v7133 = vpack.c.b16 %v7031, %v7029
    %v7134 = vpack.c.b16 %v7034, %v7032
    %v7135 = vpack.c.b16 %v7035, %v7033
    %v7136 = vpack.c.b16 %v7038, %v7036
    %v7137 = vpack.c.b16 %v7039, %v7037
    %v7138 = vpack.c.b16 %v7042, %v7040
    %v7139 = vpack.c.b16 %v7043, %v7041
    %7236 = vmatprep.subr.bf16.mxu0 %v7059
    %7237 = vmatpush1.bf16.msra.mxu0 %v7058
    %7238 = vmatprep.subr.bf16.mxu0 %v7057
    %7239 = vmatpush1.bf16.msra.mxu0 %v7056
    %7240 = vmatprep.subr.bf16.mxu0 %v7055
    %7241 = vmatpush1.bf16.msra.mxu0 %v7054
    %7242 = vmatprep.subr.bf16.mxu0 %v7053
    %7243 = vmatpush1.bf16.msra.mxu0 %v7052
    %7244 = vmatprep.subr.bf16.mxu0 %v7051
    %7245 = vmatpush1.bf16.msra.mxu0 %v7050
    %7246 = vmatprep.subr.bf16.mxu0 %v7049
    %7247 = vmatpush1.bf16.msra.mxu0 %v7048
    %7248 = vmatprep.subr.bf16.mxu0 %v7047
    %7249 = vmatpush1.bf16.msra.mxu0 %v7046
    %7250 = vmatprep.subr.bf16.mxu0 %v7045
    %7251 = vmatpush1.bf16.msra.mxu0 %v7044
    %7252 = vmatprep.subr.bf16.mxu0 %v7075
    %7253 = vmatpush2.bf16.msra.mxu0 %v7074
    %7254 = vmatprep.subr.bf16.mxu0 %v7073
    %7255 = vmatpush2.bf16.msra.mxu0 %v7072
    %7256 = vmatprep.subr.bf16.mxu0 %v7071
    %7257 = vmatpush2.bf16.msra.mxu0 %v7070
    %7258 = vmatprep.subr.bf16.mxu0 %v7069
    %7259 = vmatpush2.bf16.msra.mxu0 %v7068
    %7260 = vmatprep.subr.bf16.mxu0 %v7067
    %7261 = vmatpush2.bf16.msra.mxu0 %v7066
    %7262 = vmatprep.subr.bf16.mxu0 %v7065
    %7263 = vmatpush2.bf16.msra.mxu0 %v7064
    %7264 = vmatprep.subr.bf16.mxu0 %v7063
    %7265 = vmatpush2.bf16.msra.mxu0 %v7062
    %7266 = vmatprep.subr.bf16.mxu0 %v7061
    %7267 = vmatpush2.bf16.msra.mxu0 %v7060
    %7268 = vmatprep.mubr.bf16.mxu0 %v6045
    %7269 = vmatmul.mubr.bf16.gmra.mxu0 %v6044
    %v7270 = vpop.f32.mrf.mxu0
    %v7271 = vadd.f32 0.0, %v7270
    %v7272 = vpop.f32.mrf.mxu0
    %v7273 = vadd.f32 0.0, %v7272
    %v7274 = vpop.f32.mrf.mxu0
    %v7275 = vpop.f32.mrf.mxu0
    %7276 = vdwg.mxu0
    %7277 = vmatprep.subr.bf16.mxu0 %v7091
    %7278 = vmatpush1.bf16.msra.mxu0 %v7090
    %7279 = vmatprep.subr.bf16.mxu0 %v7089
    %7280 = vmatpush1.bf16.msra.mxu0 %v7088
    %7281 = vmatprep.subr.bf16.mxu0 %v7087
    %7282 = vmatpush1.bf16.msra.mxu0 %v7086
    %7283 = vmatprep.subr.bf16.mxu0 %v7085
    %7284 = vmatpush1.bf16.msra.mxu0 %v7084
    %7285 = vmatprep.subr.bf16.mxu0 %v7083
    %7286 = vmatpush1.bf16.msra.mxu0 %v7082
    %7287 = vmatprep.subr.bf16.mxu0 %v7081
    %7288 = vmatpush1.bf16.msra.mxu0 %v7080
    %7289 = vmatprep.subr.bf16.mxu0 %v7079
    %7290 = vmatpush1.bf16.msra.mxu0 %v7078
    %7291 = vmatprep.subr.bf16.mxu0 %v7077
    %7292 = vmatpush1.bf16.msra.mxu0 %v7076
    %7293 = vmatprep.subr.bf16.mxu0 %v7107
    %7294 = vmatpush2.bf16.msra.mxu0 %v7106
    %7295 = vmatprep.subr.bf16.mxu0 %v7105
    %7296 = vmatpush2.bf16.msra.mxu0 %v7104
    %7297 = vmatprep.subr.bf16.mxu0 %v7103
    %7298 = vmatpush2.bf16.msra.mxu0 %v7102
    %7299 = vmatprep.subr.bf16.mxu0 %v7101
    %7300 = vmatpush2.bf16.msra.mxu0 %v7100
    %7301 = vmatprep.subr.bf16.mxu0 %v7099
    %7302 = vmatpush2.bf16.msra.mxu0 %v7098
    %7303 = vmatprep.subr.bf16.mxu0 %v7097
    %7304 = vmatpush2.bf16.msra.mxu0 %v7096
    %7305 = vmatprep.subr.bf16.mxu0 %v7095
    %7306 = vmatpush2.bf16.msra.mxu0 %v7094
    %7307 = vmatprep.subr.bf16.mxu0 %v7093
    %7308 = vmatpush2.bf16.msra.mxu0 %v7092
    %7309 = vmatprep.mubr.bf16.mxu0 %v6047
    %7310 = vmatmul.mubr.bf16.gmra.mxu0 %v6046
    %v7311 = vpop.f32.mrf.mxu0
    %v7312 = vadd.f32 %v7271, %v7311
    %v7313 = vpop.f32.mrf.mxu0
    %v7314 = vadd.f32 %v7273, %v7313
    %v7315 = vpop.f32.mrf.mxu0
    %v7316 = vpop.f32.mrf.mxu0
    %7317 = vdwg.mxu0
    %7318 = vmatprep.subr.bf16.mxu0 %v7123
    %7319 = vmatpush1.bf16.msra.mxu0 %v7122
    %7320 = vmatprep.subr.bf16.mxu0 %v7121
    %7321 = vmatpush1.bf16.msra.mxu0 %v7120
    %7322 = vmatprep.subr.bf16.mxu0 %v7119
    %7323 = vmatpush1.bf16.msra.mxu0 %v7118
    %7324 = vmatprep.subr.bf16.mxu0 %v7117
    %7325 = vmatpush1.bf16.msra.mxu0 %v7116
    %7326 = vmatprep.subr.bf16.mxu0 %v7115
    %7327 = vmatpush1.bf16.msra.mxu0 %v7114
    %7328 = vmatprep.subr.bf16.mxu0 %v7113
    %7329 = vmatpush1.bf16.msra.mxu0 %v7112
    %7330 = vmatprep.subr.bf16.mxu0 %v7111
    %7331 = vmatpush1.bf16.msra.mxu0 %v7110
    %7332 = vmatprep.subr.bf16.mxu0 %v7109
    %7333 = vmatpush1.bf16.msra.mxu0 %v7108
    %7334 = vmatprep.subr.bf16.mxu0 %v7139
    %7335 = vmatpush2.bf16.msra.mxu0 %v7138
    %7336 = vmatprep.subr.bf16.mxu0 %v7137
    %7337 = vmatpush2.bf16.msra.mxu0 %v7136
    %7338 = vmatprep.subr.bf16.mxu0 %v7135
    %7339 = vmatpush2.bf16.msra.mxu0 %v7134
    %7340 = vmatprep.subr.bf16.mxu0 %v7133
    %7341 = vmatpush2.bf16.msra.mxu0 %v7132
    %7342 = vmatprep.subr.bf16.mxu0 %v7131
    %7343 = vmatpush2.bf16.msra.mxu0 %v7130
    %7344 = vmatprep.subr.bf16.mxu0 %v7129
    %7345 = vmatpush2.bf16.msra.mxu0 %v7128
    %7346 = vmatprep.subr.bf16.mxu0 %v7127
    %7347 = vmatpush2.bf16.msra.mxu0 %v7126
    %7348 = vmatprep.subr.bf16.mxu0 %v7125
    %7349 = vmatpush2.bf16.msra.mxu0 %v7124
    %7350 = vmatprep.mubr.bf16.mxu0 %v6049
    %7351 = vmatmul.mubr.bf16.gmra.mxu0 %v6048
    %v7352 = vpop.f32.mrf.mxu0
    %v7353 = vadd.f32 %v7312, %v7352
    %v7354 = vpop.f32.mrf.mxu0
    %v7355 = vadd.f32 %v7314, %v7354
    %v7356 = vpop.f32.mrf.mxu0
    %v7357 = vpop.f32.mrf.mxu0
    %7358 = vdwg.mxu0
    %v7359 = vmax.f32 %v7353, %v7355
    %v7360 = vmax.f32 %v6659, %v7359
    %v7361 = vld [vmem:[%s4] sm:$0x1]
    %v7363 = vlaneseq
    %v7364 = vshrl.u32 %v7363, 7
    %v7365 = vsub.s32 0, %v7364
    %v7366 = vrot.slane %v7361, %v7365
    %v7368 = vadd.f32 %v7360, %v7366
    %v7369 = vmax.f32 %v7368, 0.0
    %v7370 = vpack.c.bf16 %v7369, %v7369
    %7371 = vst [vmem:[#allocation3 + $0x4] sm:$0xf] %v7370
    %v7372 = vld [vmem:[#allocation2 + $0x10] sm:$0xff]
    %v7373 = vld [vmem:[#allocation2 + $0x18] sm:$0xff]
    %v7374 = vld [vmem:[#allocation2 + $0x20] sm:$0xff]
    %v7375 = vld [vmem:[#allocation4] sm:$0xff]
    %v7376 = vld [vmem:[#allocation4 + $0x10] sm:$0xff]
    %v7377 = vld [vmem:[#allocation4 + $0x20] sm:$0xff]
    %v7378 = vld [vmem:[#allocation4 + $0x30] sm:$0xff]
    %v7379 = vld [vmem:[#allocation4 + $0x40] sm:$0xff]
    %v7380 = vld [vmem:[#allocation4 + $0x50] sm:$0xff]
    %v7381 = vld [vmem:[#allocation4 + $0x60] sm:$0xff]
    %v7382 = vld [vmem:[#allocation4 + $0x70] sm:$0xff]
    %v7383 = vld [vmem:[#allocation4 + $0x80] sm:$0xff]
    %v7384 = vld [vmem:[#allocation4 + $0x90] sm:$0xff]
    %v7385 = vld [vmem:[#allocation4 + $0xa0] sm:$0xff]
    %v7386 = vld [vmem:[#allocation4 + $0xb0] sm:$0xff]
    %v7387 = vld [vmem:[#allocation4 + $0xc0] sm:$0xff]
    %v7388 = vld [vmem:[#allocation4 + $0xd0] sm:$0xff]
    %v7389 = vld [vmem:[#allocation4 + $0xe0] sm:$0xff]
    %v7390 = vld [vmem:[#allocation4 + $0xf0] sm:$0xff]
    %v7391 = vld [vmem:[#allocation4 + $0x100] sm:$0xff]
    %v7392 = vld [vmem:[#allocation4 + $0x110] sm:$0xff]
    %v7393 = vld [vmem:[#allocation4 + $0x120] sm:$0xff]
    %v7394 = vld [vmem:[#allocation4 + $0x130] sm:$0xff]
    %v7395 = vld [vmem:[#allocation4 + $0x140] sm:$0xff]
    %v7396 = vld [vmem:[#allocation4 + $0x150] sm:$0xff]
    %v7397 = vld [vmem:[#allocation4 + $0x160] sm:$0xff]
    %v7398 = vld [vmem:[#allocation4 + $0x170] sm:$0xff]
    %v7399 = vld [vmem:[#allocation4 + $0x180] sm:$0xff]
    %v7400 = vld [vmem:[#allocation4 + $0x190] sm:$0xff]
    %v7401 = vld [vmem:[#allocation4 + $0x1a0] sm:$0xff]
    %v7402 = vld [vmem:[#allocation4 + $0x1b0] sm:$0xff]
    %v7403 = vld [vmem:[#allocation4 + $0x1c0] sm:$0xff]
    %v7404 = vld [vmem:[#allocation4 + $0x1d0] sm:$0xff]
    %v7405 = vld [vmem:[#allocation4 + $0x1e0] sm:$0xff]
    %v7406 = vld [vmem:[#allocation4 + $0x1f0] sm:$0xff]
    %v7407 = vld [vmem:[#allocation4 + $0x200] sm:$0xff]
    %v7408 = vld [vmem:[#allocation4 + $0x210] sm:$0xff]
    %v7409 = vld [vmem:[#allocation4 + $0x220] sm:$0xff]
    %v7410 = vld [vmem:[#allocation4 + $0x230] sm:$0xff]
    %v7411 = vld [vmem:[#allocation4 + $0x240] sm:$0xff]
    %v7412 = vld [vmem:[#allocation4 + $0x250] sm:$0xff]
    %v7413 = vld [vmem:[#allocation4 + $0x260] sm:$0xff]
    %v7414 = vld [vmem:[#allocation4 + $0x270] sm:$0xff]
    %v7415 = vld [vmem:[#allocation4 + $0x280] sm:$0xff]
    %v7416 = vld [vmem:[#allocation4 + $0x290] sm:$0xff]
    %v7417 = vld [vmem:[#allocation4 + $0x2a0] sm:$0xff]
    %v7418 = vld [vmem:[#allocation4 + $0x2b0] sm:$0xff]
    %v7419 = vld [vmem:[#allocation4 + $0x2c0] sm:$0xff]
    %v7420 = vld [vmem:[#allocation4 + $0x2d0] sm:$0xff]
    %v7421 = vld [vmem:[#allocation4 + $0x2e0] sm:$0xff]
    %v7422 = vld [vmem:[#allocation4 + $0x2f0] sm:$0xff]
    %v7423 = vld [vmem:[#allocation4 + $0x300] sm:$0xff]
    %v7424 = vld [vmem:[#allocation4 + $0x310] sm:$0xff]
    %v7425 = vld [vmem:[#allocation4 + $0x320] sm:$0xff]
    %v7426 = vld [vmem:[#allocation4 + $0x330] sm:$0xff]
    %v7427 = vld [vmem:[#allocation4 + $0x340] sm:$0xff]
    %v7428 = vld [vmem:[#allocation4 + $0x350] sm:$0xff]
    %v7429 = vld [vmem:[#allocation4 + $0x360] sm:$0xff]
    %v7430 = vld [vmem:[#allocation4 + $0x370] sm:$0xff]
    %v7431 = vld [vmem:[#allocation4 + $0x380] sm:$0xff]
    %v7432 = vld [vmem:[#allocation4 + $0x390] sm:$0xff]
    %v7433 = vld [vmem:[#allocation4 + $0x3a0] sm:$0xff]
    %v7434 = vld [vmem:[#allocation4 + $0x3b0] sm:$0xff]
    %v7435 = vld [vmem:[#allocation4 + $0x3c0] sm:$0xff]
    %v7436 = vld [vmem:[#allocation4 + $0x3d0] sm:$0xff]
    %v7437 = vld [vmem:[#allocation4 + $0x3e0] sm:$0xff]
    %v7438 = vld [vmem:[#allocation4 + $0x3f0] sm:$0xff]
    %v7439 = vld [vmem:[#allocation4 + $0x400] sm:$0xff]
    %v7440 = vld [vmem:[#allocation4 + $0x410] sm:$0xff]
    %v7441 = vld [vmem:[#allocation4 + $0x420] sm:$0xff]
    %v7442 = vld [vmem:[#allocation4 + $0x430] sm:$0xff]
    %v7443 = vld [vmem:[#allocation4 + $0x440] sm:$0xff]
    %v7444 = vld [vmem:[#allocation4 + $0x450] sm:$0xff]
    %v7445 = vld [vmem:[#allocation4 + $0x460] sm:$0xff]
    %v7446 = vld [vmem:[#allocation4 + $0x470] sm:$0xff]
    %v7447 = vld [vmem:[#allocation4 + $0x480] sm:$0xff]
    %v7448 = vld [vmem:[#allocation4 + $0x490] sm:$0xff]
    %v7449 = vld [vmem:[#allocation4 + $0x4a0] sm:$0xff]
    %v7450 = vld [vmem:[#allocation4 + $0x4b0] sm:$0xff]
    %v7451 = vld [vmem:[#allocation4 + $0x4c0] sm:$0xff]
    %v7452 = vld [vmem:[#allocation4 + $0x4d0] sm:$0xff]
    %v7453 = vld [vmem:[#allocation4 + $0x4e0] sm:$0xff]
    %v7454 = vld [vmem:[#allocation4 + $0x4f0] sm:$0xff]
    %v7455 = vld [vmem:[#allocation4 + $0x500] sm:$0xff]
    %v7456 = vld [vmem:[#allocation4 + $0x510] sm:$0xff]
    %v7457 = vld [vmem:[#allocation4 + $0x520] sm:$0xff]
    %v7458 = vld [vmem:[#allocation4 + $0x530] sm:$0xff]
    %v7459 = vld [vmem:[#allocation4 + $0x540] sm:$0xff]
    %v7460 = vld [vmem:[#allocation4 + $0x550] sm:$0xff]
    %v7461 = vld [vmem:[#allocation4 + $0x560] sm:$0xff]
    %v7462 = vld [vmem:[#allocation4 + $0x570] sm:$0xff]
    %v7463 = vld [vmem:[#allocation4 + $0x580] sm:$0xff]
    %v7464 = vld [vmem:[#allocation4 + $0x590] sm:$0xff]
    %v7465 = vld [vmem:[#allocation4 + $0x5a0] sm:$0xff]
    %v7466 = vld [vmem:[#allocation4 + $0x5b0] sm:$0xff]
    %v7467 = vld [vmem:[#allocation4 + $0x5c0] sm:$0xff]
    %v7468 = vld [vmem:[#allocation4 + $0x5d0] sm:$0xff]
    %v7469 = vld [vmem:[#allocation4 + $0x5e0] sm:$0xff]
    %v7470 = vld [vmem:[#allocation4 + $0x5f0] sm:$0xff]
    %v7474 = vunpack.c.l.b16 %v7372
    %v7475 = vunpack.c.h.b16 %v7372
    %v7476 = vunpack.c.l.b16 %v7373
    %v7477 = vunpack.c.h.b16 %v7373
    %v7478 = vunpack.c.l.b16 %v7374
    %v7479 = vunpack.c.h.b16 %v7374
    %v7480 = vpack.c.b16 %v7474, %v7474
    %v7481 = vpack.c.b16 %v7475, %v7475
    %v7482 = vpack.c.b16 %v7476, %v7476
    %v7483 = vpack.c.b16 %v7477, %v7477
    %v7484 = vpack.c.b16 %v7478, %v7478
    %v7485 = vpack.c.b16 %v7479, %v7479
    %v7588 = vunpack.c.l.b16 %v7375
    %v7589 = vunpack.c.h.b16 %v7375
    %v7590 = vunpack.c.l.b16 %v7376
    %v7591 = vunpack.c.h.b16 %v7376
    %v7592 = vunpack.c.l.b16 %v7377
    %v7593 = vunpack.c.h.b16 %v7377
    %v7594 = vunpack.c.l.b16 %v7378
    %v7595 = vunpack.c.h.b16 %v7378
    %v7596 = vunpack.c.l.b16 %v7379
    %v7597 = vunpack.c.h.b16 %v7379
    %v7598 = vunpack.c.l.b16 %v7380
    %v7599 = vunpack.c.h.b16 %v7380
    %v7600 = vunpack.c.l.b16 %v7381
    %v7601 = vunpack.c.h.b16 %v7381
    %v7602 = vunpack.c.l.b16 %v7382
    %v7603 = vunpack.c.h.b16 %v7382
    %v7604 = vunpack.c.l.b16 %v7383
    %v7605 = vunpack.c.h.b16 %v7383
    %v7606 = vunpack.c.l.b16 %v7384
    %v7607 = vunpack.c.h.b16 %v7384
    %v7608 = vunpack.c.l.b16 %v7385
    %v7609 = vunpack.c.h.b16 %v7385
    %v7610 = vunpack.c.l.b16 %v7386
    %v7611 = vunpack.c.h.b16 %v7386
    %v7612 = vunpack.c.l.b16 %v7387
    %v7613 = vunpack.c.h.b16 %v7387
    %v7614 = vunpack.c.l.b16 %v7388
    %v7615 = vunpack.c.h.b16 %v7388
    %v7616 = vunpack.c.l.b16 %v7389
    %v7617 = vunpack.c.h.b16 %v7389
    %v7618 = vunpack.c.l.b16 %v7390
    %v7619 = vunpack.c.h.b16 %v7390
    %v7620 = vunpack.c.l.b16 %v7391
    %v7621 = vunpack.c.h.b16 %v7391
    %v7622 = vunpack.c.l.b16 %v7392
    %v7623 = vunpack.c.h.b16 %v7392
    %v7624 = vunpack.c.l.b16 %v7393
    %v7625 = vunpack.c.h.b16 %v7393
    %v7626 = vunpack.c.l.b16 %v7394
    %v7627 = vunpack.c.h.b16 %v7394
    %v7628 = vunpack.c.l.b16 %v7395
    %v7629 = vunpack.c.h.b16 %v7395
    %v7630 = vunpack.c.l.b16 %v7396
    %v7631 = vunpack.c.h.b16 %v7396
    %v7632 = vunpack.c.l.b16 %v7397
    %v7633 = vunpack.c.h.b16 %v7397
    %v7634 = vunpack.c.l.b16 %v7398
    %v7635 = vunpack.c.h.b16 %v7398
    %v7636 = vunpack.c.l.b16 %v7399
    %v7637 = vunpack.c.h.b16 %v7399
    %v7638 = vunpack.c.l.b16 %v7400
    %v7639 = vunpack.c.h.b16 %v7400
    %v7640 = vunpack.c.l.b16 %v7401
    %v7641 = vunpack.c.h.b16 %v7401
    %v7642 = vunpack.c.l.b16 %v7402
    %v7643 = vunpack.c.h.b16 %v7402
    %v7644 = vunpack.c.l.b16 %v7403
    %v7645 = vunpack.c.h.b16 %v7403
    %v7646 = vunpack.c.l.b16 %v7404
    %v7647 = vunpack.c.h.b16 %v7404
    %v7648 = vunpack.c.l.b16 %v7405
    %v7649 = vunpack.c.h.b16 %v7405
    %v7650 = vunpack.c.l.b16 %v7406
    %v7651 = vunpack.c.h.b16 %v7406
    %v7652 = vunpack.c.l.b16 %v7407
    %v7653 = vunpack.c.h.b16 %v7407
    %v7654 = vunpack.c.l.b16 %v7408
    %v7655 = vunpack.c.h.b16 %v7408
    %v7656 = vunpack.c.l.b16 %v7409
    %v7657 = vunpack.c.h.b16 %v7409
    %v7658 = vunpack.c.l.b16 %v7410
    %v7659 = vunpack.c.h.b16 %v7410
    %v7660 = vunpack.c.l.b16 %v7411
    %v7661 = vunpack.c.h.b16 %v7411
    %v7662 = vunpack.c.l.b16 %v7412
    %v7663 = vunpack.c.h.b16 %v7412
    %v7664 = vunpack.c.l.b16 %v7413
    %v7665 = vunpack.c.h.b16 %v7413
    %v7666 = vunpack.c.l.b16 %v7414
    %v7667 = vunpack.c.h.b16 %v7414
    %v7668 = vunpack.c.l.b16 %v7415
    %v7669 = vunpack.c.h.b16 %v7415
    %v7670 = vunpack.c.l.b16 %v7416
    %v7671 = vunpack.c.h.b16 %v7416
    %v7672 = vunpack.c.l.b16 %v7417
    %v7673 = vunpack.c.h.b16 %v7417
    %v7674 = vunpack.c.l.b16 %v7418
    %v7675 = vunpack.c.h.b16 %v7418
    %v7676 = vunpack.c.l.b16 %v7419
    %v7677 = vunpack.c.h.b16 %v7419
    %v7678 = vunpack.c.l.b16 %v7420
    %v7679 = vunpack.c.h.b16 %v7420
    %v7680 = vunpack.c.l.b16 %v7421
    %v7681 = vunpack.c.h.b16 %v7421
    %v7682 = vunpack.c.l.b16 %v7422
    %v7683 = vunpack.c.h.b16 %v7422
    %v7684 = vunpack.c.l.b16 %v7423
    %v7685 = vunpack.c.h.b16 %v7423
    %v7686 = vunpack.c.l.b16 %v7424
    %v7687 = vunpack.c.h.b16 %v7424
    %v7688 = vunpack.c.l.b16 %v7425
    %v7689 = vunpack.c.h.b16 %v7425
    %v7690 = vunpack.c.l.b16 %v7426
    %v7691 = vunpack.c.h.b16 %v7426
    %v7692 = vunpack.c.l.b16 %v7427
    %v7693 = vunpack.c.h.b16 %v7427
    %v7694 = vunpack.c.l.b16 %v7428
    %v7695 = vunpack.c.h.b16 %v7428
    %v7696 = vunpack.c.l.b16 %v7429
    %v7697 = vunpack.c.h.b16 %v7429
    %v7698 = vunpack.c.l.b16 %v7430
    %v7699 = vunpack.c.h.b16 %v7430
    %v7700 = vunpack.c.l.b16 %v7431
    %v7701 = vunpack.c.h.b16 %v7431
    %v7702 = vunpack.c.l.b16 %v7432
    %v7703 = vunpack.c.h.b16 %v7432
    %v7704 = vunpack.c.l.b16 %v7433
    %v7705 = vunpack.c.h.b16 %v7433
    %v7706 = vunpack.c.l.b16 %v7434
    %v7707 = vunpack.c.h.b16 %v7434
    %v7708 = vunpack.c.l.b16 %v7435
    %v7709 = vunpack.c.h.b16 %v7435
    %v7710 = vunpack.c.l.b16 %v7436
    %v7711 = vunpack.c.h.b16 %v7436
    %v7712 = vunpack.c.l.b16 %v7437
    %v7713 = vunpack.c.h.b16 %v7437
    %v7714 = vunpack.c.l.b16 %v7438
    %v7715 = vunpack.c.h.b16 %v7438
    %v7716 = vunpack.c.l.b16 %v7439
    %v7717 = vunpack.c.h.b16 %v7439
    %v7718 = vunpack.c.l.b16 %v7440
    %v7719 = vunpack.c.h.b16 %v7440
    %v7720 = vunpack.c.l.b16 %v7441
    %v7721 = vunpack.c.h.b16 %v7441
    %v7722 = vunpack.c.l.b16 %v7442
    %v7723 = vunpack.c.h.b16 %v7442
    %v7724 = vunpack.c.l.b16 %v7443
    %v7725 = vunpack.c.h.b16 %v7443
    %v7726 = vunpack.c.l.b16 %v7444
    %v7727 = vunpack.c.h.b16 %v7444
    %v7728 = vunpack.c.l.b16 %v7445
    %v7729 = vunpack.c.h.b16 %v7445
    %v7730 = vunpack.c.l.b16 %v7446
    %v7731 = vunpack.c.h.b16 %v7446
    %v7732 = vunpack.c.l.b16 %v7447
    %v7733 = vunpack.c.h.b16 %v7447
    %v7734 = vunpack.c.l.b16 %v7448
    %v7735 = vunpack.c.h.b16 %v7448
    %v7736 = vunpack.c.l.b16 %v7449
    %v7737 = vunpack.c.h.b16 %v7449
    %v7738 = vunpack.c.l.b16 %v7450
    %v7739 = vunpack.c.h.b16 %v7450
    %v7740 = vunpack.c.l.b16 %v7451
    %v7741 = vunpack.c.h.b16 %v7451
    %v7742 = vunpack.c.l.b16 %v7452
    %v7743 = vunpack.c.h.b16 %v7452
    %v7744 = vunpack.c.l.b16 %v7453
    %v7745 = vunpack.c.h.b16 %v7453
    %v7746 = vunpack.c.l.b16 %v7454
    %v7747 = vunpack.c.h.b16 %v7454
    %v7748 = vunpack.c.l.b16 %v7455
    %v7749 = vunpack.c.h.b16 %v7455
    %v7750 = vunpack.c.l.b16 %v7456
    %v7751 = vunpack.c.h.b16 %v7456
    %v7752 = vunpack.c.l.b16 %v7457
    %v7753 = vunpack.c.h.b16 %v7457
    %v7754 = vunpack.c.l.b16 %v7458
    %v7755 = vunpack.c.h.b16 %v7458
    %v7756 = vunpack.c.l.b16 %v7459
    %v7757 = vunpack.c.h.b16 %v7459
    %v7758 = vunpack.c.l.b16 %v7460
    %v7759 = vunpack.c.h.b16 %v7460
    %v7760 = vunpack.c.l.b16 %v7461
    %v7761 = vunpack.c.h.b16 %v7461
    %v7762 = vunpack.c.l.b16 %v7462
    %v7763 = vunpack.c.h.b16 %v7462
    %v7764 = vunpack.c.l.b16 %v7463
    %v7765 = vunpack.c.h.b16 %v7463
    %v7766 = vunpack.c.l.b16 %v7464
    %v7767 = vunpack.c.h.b16 %v7464
    %v7768 = vunpack.c.l.b16 %v7465
    %v7769 = vunpack.c.h.b16 %v7465
    %v7770 = vunpack.c.l.b16 %v7466
    %v7771 = vunpack.c.h.b16 %v7466
    %v7772 = vunpack.c.l.b16 %v7467
    %v7773 = vunpack.c.h.b16 %v7467
    %v7774 = vunpack.c.l.b16 %v7468
    %v7775 = vunpack.c.h.b16 %v7468
    %v7776 = vunpack.c.l.b16 %v7469
    %v7777 = vunpack.c.h.b16 %v7469
    %v7778 = vunpack.c.l.b16 %v7470
    %v7779 = vunpack.c.h.b16 %v7470
    %v7780 = vpack.c.b16 %v7590, %v7588
    %v7781 = vpack.c.b16 %v7591, %v7589
    %v7782 = vpack.c.b16 %v7594, %v7592
    %v7783 = vpack.c.b16 %v7595, %v7593
    %v7784 = vpack.c.b16 %v7598, %v7596
    %v7785 = vpack.c.b16 %v7599, %v7597
    %v7786 = vpack.c.b16 %v7602, %v7600
    %v7787 = vpack.c.b16 %v7603, %v7601
    %v7788 = vpack.c.b16 %v7606, %v7604
    %v7789 = vpack.c.b16 %v7607, %v7605
    %v7790 = vpack.c.b16 %v7610, %v7608
    %v7791 = vpack.c.b16 %v7611, %v7609
    %v7792 = vpack.c.b16 %v7614, %v7612
    %v7793 = vpack.c.b16 %v7615, %v7613
    %v7794 = vpack.c.b16 %v7618, %v7616
    %v7795 = vpack.c.b16 %v7619, %v7617
    %v7796 = vpack.c.b16 %v7622, %v7620
    %v7797 = vpack.c.b16 %v7623, %v7621
    %v7798 = vpack.c.b16 %v7626, %v7624
    %v7799 = vpack.c.b16 %v7627, %v7625
    %v7800 = vpack.c.b16 %v7630, %v7628
    %v7801 = vpack.c.b16 %v7631, %v7629
    %v7802 = vpack.c.b16 %v7634, %v7632
    %v7803 = vpack.c.b16 %v7635, %v7633
    %v7804 = vpack.c.b16 %v7638, %v7636
    %v7805 = vpack.c.b16 %v7639, %v7637
    %v7806 = vpack.c.b16 %v7642, %v7640
    %v7807 = vpack.c.b16 %v7643, %v7641
    %v7808 = vpack.c.b16 %v7646, %v7644
    %v7809 = vpack.c.b16 %v7647, %v7645
    %v7810 = vpack.c.b16 %v7650, %v7648
    %v7811 = vpack.c.b16 %v7651, %v7649
    %v7812 = vpack.c.b16 %v7654, %v7652
    %v7813 = vpack.c.b16 %v7655, %v7653
    %v7814 = vpack.c.b16 %v7658, %v7656
    %v7815 = vpack.c.b16 %v7659, %v7657
    %v7816 = vpack.c.b16 %v7662, %v7660
    %v7817 = vpack.c.b16 %v7663, %v7661
    %v7818 = vpack.c.b16 %v7666, %v7664
    %v7819 = vpack.c.b16 %v7667, %v7665
    %v7820 = vpack.c.b16 %v7670, %v7668
    %v7821 = vpack.c.b16 %v7671, %v7669
    %v7822 = vpack.c.b16 %v7674, %v7672
    %v7823 = vpack.c.b16 %v7675, %v7673
    %v7824 = vpack.c.b16 %v7678, %v7676
    %v7825 = vpack.c.b16 %v7679, %v7677
    %v7826 = vpack.c.b16 %v7682, %v7680
    %v7827 = vpack.c.b16 %v7683, %v7681
    %v7828 = vpack.c.b16 %v7686, %v7684
    %v7829 = vpack.c.b16 %v7687, %v7685
    %v7830 = vpack.c.b16 %v7690, %v7688
    %v7831 = vpack.c.b16 %v7691, %v7689
    %v7832 = vpack.c.b16 %v7694, %v7692
    %v7833 = vpack.c.b16 %v7695, %v7693
    %v7834 = vpack.c.b16 %v7698, %v7696
    %v7835 = vpack.c.b16 %v7699, %v7697
    %v7836 = vpack.c.b16 %v7702, %v7700
    %v7837 = vpack.c.b16 %v7703, %v7701
    %v7838 = vpack.c.b16 %v7706, %v7704
    %v7839 = vpack.c.b16 %v7707, %v7705
    %v7840 = vpack.c.b16 %v7710, %v7708
    %v7841 = vpack.c.b16 %v7711, %v7709
    %v7842 = vpack.c.b16 %v7714, %v7712
    %v7843 = vpack.c.b16 %v7715, %v7713
    %v7844 = vpack.c.b16 %v7718, %v7716
    %v7845 = vpack.c.b16 %v7719, %v7717
    %v7846 = vpack.c.b16 %v7722, %v7720
    %v7847 = vpack.c.b16 %v7723, %v7721
    %v7848 = vpack.c.b16 %v7726, %v7724
    %v7849 = vpack.c.b16 %v7727, %v7725
    %v7850 = vpack.c.b16 %v7730, %v7728
    %v7851 = vpack.c.b16 %v7731, %v7729
    %v7852 = vpack.c.b16 %v7734, %v7732
    %v7853 = vpack.c.b16 %v7735, %v7733
    %v7854 = vpack.c.b16 %v7738, %v7736
    %v7855 = vpack.c.b16 %v7739, %v7737
    %v7856 = vpack.c.b16 %v7742, %v7740
    %v7857 = vpack.c.b16 %v7743, %v7741
    %v7858 = vpack.c.b16 %v7746, %v7744
    %v7859 = vpack.c.b16 %v7747, %v7745
    %v7860 = vpack.c.b16 %v7750, %v7748
    %v7861 = vpack.c.b16 %v7751, %v7749
    %v7862 = vpack.c.b16 %v7754, %v7752
    %v7863 = vpack.c.b16 %v7755, %v7753
    %v7864 = vpack.c.b16 %v7758, %v7756
    %v7865 = vpack.c.b16 %v7759, %v7757
    %v7866 = vpack.c.b16 %v7762, %v7760
    %v7867 = vpack.c.b16 %v7763, %v7761
    %v7868 = vpack.c.b16 %v7766, %v7764
    %v7869 = vpack.c.b16 %v7767, %v7765
    %v7870 = vpack.c.b16 %v7770, %v7768
    %v7871 = vpack.c.b16 %v7771, %v7769
    %v7872 = vpack.c.b16 %v7774, %v7772
    %v7873 = vpack.c.b16 %v7775, %v7773
    %v7874 = vpack.c.b16 %v7778, %v7776
    %v7875 = vpack.c.b16 %v7779, %v7777
    %7972 = vmatprep.subr.bf16.mxu0 %v7795
    %7973 = vmatpush1.bf16.msra.mxu0 %v7794
    %7974 = vmatprep.subr.bf16.mxu0 %v7793
    %7975 = vmatpush1.bf16.msra.mxu0 %v7792
    %7976 = vmatprep.subr.bf16.mxu0 %v7791
    %7977 = vmatpush1.bf16.msra.mxu0 %v7790
    %7978 = vmatprep.subr.bf16.mxu0 %v7789
    %7979 = vmatpush1.bf16.msra.mxu0 %v7788
    %7980 = vmatprep.subr.bf16.mxu0 %v7787
    %7981 = vmatpush1.bf16.msra.mxu0 %v7786
    %7982 = vmatprep.subr.bf16.mxu0 %v7785
    %7983 = vmatpush1.bf16.msra.mxu0 %v7784
    %7984 = vmatprep.subr.bf16.mxu0 %v7783
    %7985 = vmatpush1.bf16.msra.mxu0 %v7782
    %7986 = vmatprep.subr.bf16.mxu0 %v7781
    %7987 = vmatpush1.bf16.msra.mxu0 %v7780
    %7988 = vmatprep.subr.bf16.mxu0 %v7811
    %7989 = vmatpush2.bf16.msra.mxu0 %v7810
    %7990 = vmatprep.subr.bf16.mxu0 %v7809
    %7991 = vmatpush2.bf16.msra.mxu0 %v7808
    %7992 = vmatprep.subr.bf16.mxu0 %v7807
    %7993 = vmatpush2.bf16.msra.mxu0 %v7806
    %7994 = vmatprep.subr.bf16.mxu0 %v7805
    %7995 = vmatpush2.bf16.msra.mxu0 %v7804
    %7996 = vmatprep.subr.bf16.mxu0 %v7803
    %7997 = vmatpush2.bf16.msra.mxu0 %v7802
    %7998 = vmatprep.subr.bf16.mxu0 %v7801
    %7999 = vmatpush2.bf16.msra.mxu0 %v7800
    %8000 = vmatprep.subr.bf16.mxu0 %v7799
    %8001 = vmatpush2.bf16.msra.mxu0 %v7798
    %8002 = vmatprep.subr.bf16.mxu0 %v7797
    %8003 = vmatpush2.bf16.msra.mxu0 %v7796
    %8004 = vmatprep.mubr.bf16.mxu0 %v7481
    %8005 = vmatmul.mubr.bf16.gmra.mxu0 %v7480
    %v8006 = vpop.f32.mrf.mxu0
    %v8007 = vadd.f32 0.0, %v8006
    %v8008 = vpop.f32.mrf.mxu0
    %v8009 = vadd.f32 0.0, %v8008
    %v8010 = vpop.f32.mrf.mxu0
    %v8011 = vpop.f32.mrf.mxu0
    %8012 = vdwg.mxu0
    %8013 = vmatprep.subr.bf16.mxu0 %v7827
    %8014 = vmatpush1.bf16.msra.mxu0 %v7826
    %8015 = vmatprep.subr.bf16.mxu0 %v7825
    %8016 = vmatpush1.bf16.msra.mxu0 %v7824
    %8017 = vmatprep.subr.bf16.mxu0 %v7823
    %8018 = vmatpush1.bf16.msra.mxu0 %v7822
    %8019 = vmatprep.subr.bf16.mxu0 %v7821
    %8020 = vmatpush1.bf16.msra.mxu0 %v7820
    %8021 = vmatprep.subr.bf16.mxu0 %v7819
    %8022 = vmatpush1.bf16.msra.mxu0 %v7818
    %8023 = vmatprep.subr.bf16.mxu0 %v7817
    %8024 = vmatpush1.bf16.msra.mxu0 %v7816
    %8025 = vmatprep.subr.bf16.mxu0 %v7815
    %8026 = vmatpush1.bf16.msra.mxu0 %v7814
    %8027 = vmatprep.subr.bf16.mxu0 %v7813
    %8028 = vmatpush1.bf16.msra.mxu0 %v7812
    %8029 = vmatprep.subr.bf16.mxu0 %v7843
    %8030 = vmatpush2.bf16.msra.mxu0 %v7842
    %8031 = vmatprep.subr.bf16.mxu0 %v7841
    %8032 = vmatpush2.bf16.msra.mxu0 %v7840
    %8033 = vmatprep.subr.bf16.mxu0 %v7839
    %8034 = vmatpush2.bf16.msra.mxu0 %v7838
    %8035 = vmatprep.subr.bf16.mxu0 %v7837
    %8036 = vmatpush2.bf16.msra.mxu0 %v7836
    %8037 = vmatprep.subr.bf16.mxu0 %v7835
    %8038 = vmatpush2.bf16.msra.mxu0 %v7834
    %8039 = vmatprep.subr.bf16.mxu0 %v7833
    %8040 = vmatpush2.bf16.msra.mxu0 %v7832
    %8041 = vmatprep.subr.bf16.mxu0 %v7831
    %8042 = vmatpush2.bf16.msra.mxu0 %v7830
    %8043 = vmatprep.subr.bf16.mxu0 %v7829
    %8044 = vmatpush2.bf16.msra.mxu0 %v7828
    %8045 = vmatprep.mubr.bf16.mxu0 %v7483
    %8046 = vmatmul.mubr.bf16.gmra.mxu0 %v7482
    %v8047 = vpop.f32.mrf.mxu0
    %v8048 = vadd.f32 %v8007, %v8047
    %v8049 = vpop.f32.mrf.mxu0
    %v8050 = vadd.f32 %v8009, %v8049
    %v8051 = vpop.f32.mrf.mxu0
    %v8052 = vpop.f32.mrf.mxu0
    %8053 = vdwg.mxu0
    %8054 = vmatprep.subr.bf16.mxu0 %v7859
    %8055 = vmatpush1.bf16.msra.mxu0 %v7858
    %8056 = vmatprep.subr.bf16.mxu0 %v7857
    %8057 = vmatpush1.bf16.msra.mxu0 %v7856
    %8058 = vmatprep.subr.bf16.mxu0 %v7855
    %8059 = vmatpush1.bf16.msra.mxu0 %v7854
    %8060 = vmatprep.subr.bf16.mxu0 %v7853
    %8061 = vmatpush1.bf16.msra.mxu0 %v7852
    %8062 = vmatprep.subr.bf16.mxu0 %v7851
    %8063 = vmatpush1.bf16.msra.mxu0 %v7850
    %8064 = vmatprep.subr.bf16.mxu0 %v7849
    %8065 = vmatpush1.bf16.msra.mxu0 %v7848
    %8066 = vmatprep.subr.bf16.mxu0 %v7847
    %8067 = vmatpush1.bf16.msra.mxu0 %v7846
    %8068 = vmatprep.subr.bf16.mxu0 %v7845
    %8069 = vmatpush1.bf16.msra.mxu0 %v7844
    %8070 = vmatprep.subr.bf16.mxu0 %v7875
    %8071 = vmatpush2.bf16.msra.mxu0 %v7874
    %8072 = vmatprep.subr.bf16.mxu0 %v7873
    %8073 = vmatpush2.bf16.msra.mxu0 %v7872
    %8074 = vmatprep.subr.bf16.mxu0 %v7871
    %8075 = vmatpush2.bf16.msra.mxu0 %v7870
    %8076 = vmatprep.subr.bf16.mxu0 %v7869
    %8077 = vmatpush2.bf16.msra.mxu0 %v7868
    %8078 = vmatprep.subr.bf16.mxu0 %v7867
    %8079 = vmatpush2.bf16.msra.mxu0 %v7866
    %8080 = vmatprep.subr.bf16.mxu0 %v7865
    %8081 = vmatpush2.bf16.msra.mxu0 %v7864
    %8082 = vmatprep.subr.bf16.mxu0 %v7863
    %8083 = vmatpush2.bf16.msra.mxu0 %v7862
    %8084 = vmatprep.subr.bf16.mxu0 %v7861
    %8085 = vmatpush2.bf16.msra.mxu0 %v7860
    %8086 = vmatprep.mubr.bf16.mxu0 %v7485
    %8087 = vmatmul.mubr.bf16.gmra.mxu0 %v7484
    %v8088 = vpop.f32.mrf.mxu0
    %v8089 = vadd.f32 %v8048, %v8088
    %v8090 = vpop.f32.mrf.mxu0
    %v8091 = vadd.f32 %v8050, %v8090
    %v8092 = vpop.f32.mrf.mxu0
    %v8093 = vpop.f32.mrf.mxu0
    %8094 = vdwg.mxu0
    %v8095 = vmax.f32 %v8089, %v8091
    %v8096 = vld [vmem:[#allocation4 + $0x8] sm:$0xff]
    %v8097 = vld [vmem:[#allocation4 + $0x18] sm:$0xff]
    %v8098 = vld [vmem:[#allocation4 + $0x28] sm:$0xff]
    %v8099 = vld [vmem:[#allocation4 + $0x38] sm:$0xff]
    %v8100 = vld [vmem:[#allocation4 + $0x48] sm:$0xff]
    %v8101 = vld [vmem:[#allocation4 + $0x58] sm:$0xff]
    %v8102 = vld [vmem:[#allocation4 + $0x68] sm:$0xff]
    %v8103 = vld [vmem:[#allocation4 + $0x78] sm:$0xff]
    %v8104 = vld [vmem:[#allocation4 + $0x88] sm:$0xff]
    %v8105 = vld [vmem:[#allocation4 + $0x98] sm:$0xff]
    %v8106 = vld [vmem:[#allocation4 + $0xa8] sm:$0xff]
    %v8107 = vld [vmem:[#allocation4 + $0xb8] sm:$0xff]
    %v8108 = vld [vmem:[#allocation4 + $0xc8] sm:$0xff]
    %v8109 = vld [vmem:[#allocation4 + $0xd8] sm:$0xff]
    %v8110 = vld [vmem:[#allocation4 + $0xe8] sm:$0xff]
    %v8111 = vld [vmem:[#allocation4 + $0xf8] sm:$0xff]
    %v8112 = vld [vmem:[#allocation4 + $0x108] sm:$0xff]
    %v8113 = vld [vmem:[#allocation4 + $0x118] sm:$0xff]
    %v8114 = vld [vmem:[#allocation4 + $0x128] sm:$0xff]
    %v8115 = vld [vmem:[#allocation4 + $0x138] sm:$0xff]
    %v8116 = vld [vmem:[#allocation4 + $0x148] sm:$0xff]
    %v8117 = vld [vmem:[#allocation4 + $0x158] sm:$0xff]
    %v8118 = vld [vmem:[#allocation4 + $0x168] sm:$0xff]
    %v8119 = vld [vmem:[#allocation4 + $0x178] sm:$0xff]
    %v8120 = vld [vmem:[#allocation4 + $0x188] sm:$0xff]
    %v8121 = vld [vmem:[#allocation4 + $0x198] sm:$0xff]
    %v8122 = vld [vmem:[#allocation4 + $0x1a8] sm:$0xff]
    %v8123 = vld [vmem:[#allocation4 + $0x1b8] sm:$0xff]
    %v8124 = vld [vmem:[#allocation4 + $0x1c8] sm:$0xff]
    %v8125 = vld [vmem:[#allocation4 + $0x1d8] sm:$0xff]
    %v8126 = vld [vmem:[#allocation4 + $0x1e8] sm:$0xff]
    %v8127 = vld [vmem:[#allocation4 + $0x1f8] sm:$0xff]
    %v8128 = vld [vmem:[#allocation4 + $0x208] sm:$0xff]
    %v8129 = vld [vmem:[#allocation4 + $0x218] sm:$0xff]
    %v8130 = vld [vmem:[#allocation4 + $0x228] sm:$0xff]
    %v8131 = vld [vmem:[#allocation4 + $0x238] sm:$0xff]
    %v8132 = vld [vmem:[#allocation4 + $0x248] sm:$0xff]
    %v8133 = vld [vmem:[#allocation4 + $0x258] sm:$0xff]
    %v8134 = vld [vmem:[#allocation4 + $0x268] sm:$0xff]
    %v8135 = vld [vmem:[#allocation4 + $0x278] sm:$0xff]
    %v8136 = vld [vmem:[#allocation4 + $0x288] sm:$0xff]
    %v8137 = vld [vmem:[#allocation4 + $0x298] sm:$0xff]
    %v8138 = vld [vmem:[#allocation4 + $0x2a8] sm:$0xff]
    %v8139 = vld [vmem:[#allocation4 + $0x2b8] sm:$0xff]
    %v8140 = vld [vmem:[#allocation4 + $0x2c8] sm:$0xff]
    %v8141 = vld [vmem:[#allocation4 + $0x2d8] sm:$0xff]
    %v8142 = vld [vmem:[#allocation4 + $0x2e8] sm:$0xff]
    %v8143 = vld [vmem:[#allocation4 + $0x2f8] sm:$0xff]
    %v8144 = vld [vmem:[#allocation4 + $0x308] sm:$0xff]
    %v8145 = vld [vmem:[#allocation4 + $0x318] sm:$0xff]
    %v8146 = vld [vmem:[#allocation4 + $0x328] sm:$0xff]
    %v8147 = vld [vmem:[#allocation4 + $0x338] sm:$0xff]
    %v8148 = vld [vmem:[#allocation4 + $0x348] sm:$0xff]
    %v8149 = vld [vmem:[#allocation4 + $0x358] sm:$0xff]
    %v8150 = vld [vmem:[#allocation4 + $0x368] sm:$0xff]
    %v8151 = vld [vmem:[#allocation4 + $0x378] sm:$0xff]
    %v8152 = vld [vmem:[#allocation4 + $0x388] sm:$0xff]
    %v8153 = vld [vmem:[#allocation4 + $0x398] sm:$0xff]
    %v8154 = vld [vmem:[#allocation4 + $0x3a8] sm:$0xff]
    %v8155 = vld [vmem:[#allocation4 + $0x3b8] sm:$0xff]
    %v8156 = vld [vmem:[#allocation4 + $0x3c8] sm:$0xff]
    %v8157 = vld [vmem:[#allocation4 + $0x3d8] sm:$0xff]
    %v8158 = vld [vmem:[#allocation4 + $0x3e8] sm:$0xff]
    %v8159 = vld [vmem:[#allocation4 + $0x3f8] sm:$0xff]
    %v8160 = vld [vmem:[#allocation4 + $0x408] sm:$0xff]
    %v8161 = vld [vmem:[#allocation4 + $0x418] sm:$0xff]
    %v8162 = vld [vmem:[#allocation4 + $0x428] sm:$0xff]
    %v8163 = vld [vmem:[#allocation4 + $0x438] sm:$0xff]
    %v8164 = vld [vmem:[#allocation4 + $0x448] sm:$0xff]
    %v8165 = vld [vmem:[#allocation4 + $0x458] sm:$0xff]
    %v8166 = vld [vmem:[#allocation4 + $0x468] sm:$0xff]
    %v8167 = vld [vmem:[#allocation4 + $0x478] sm:$0xff]
    %v8168 = vld [vmem:[#allocation4 + $0x488] sm:$0xff]
    %v8169 = vld [vmem:[#allocation4 + $0x498] sm:$0xff]
    %v8170 = vld [vmem:[#allocation4 + $0x4a8] sm:$0xff]
    %v8171 = vld [vmem:[#allocation4 + $0x4b8] sm:$0xff]
    %v8172 = vld [vmem:[#allocation4 + $0x4c8] sm:$0xff]
    %v8173 = vld [vmem:[#allocation4 + $0x4d8] sm:$0xff]
    %v8174 = vld [vmem:[#allocation4 + $0x4e8] sm:$0xff]
    %v8175 = vld [vmem:[#allocation4 + $0x4f8] sm:$0xff]
    %v8176 = vld [vmem:[#allocation4 + $0x508] sm:$0xff]
    %v8177 = vld [vmem:[#allocation4 + $0x518] sm:$0xff]
    %v8178 = vld [vmem:[#allocation4 + $0x528] sm:$0xff]
    %v8179 = vld [vmem:[#allocation4 + $0x538] sm:$0xff]
    %v8180 = vld [vmem:[#allocation4 + $0x548] sm:$0xff]
    %v8181 = vld [vmem:[#allocation4 + $0x558] sm:$0xff]
    %v8182 = vld [vmem:[#allocation4 + $0x568] sm:$0xff]
    %v8183 = vld [vmem:[#allocation4 + $0x578] sm:$0xff]
    %v8184 = vld [vmem:[#allocation4 + $0x588] sm:$0xff]
    %v8185 = vld [vmem:[#allocation4 + $0x598] sm:$0xff]
    %v8186 = vld [vmem:[#allocation4 + $0x5a8] sm:$0xff]
    %v8187 = vld [vmem:[#allocation4 + $0x5b8] sm:$0xff]
    %v8188 = vld [vmem:[#allocation4 + $0x5c8] sm:$0xff]
    %v8189 = vld [vmem:[#allocation4 + $0x5d8] sm:$0xff]
    %v8190 = vld [vmem:[#allocation4 + $0x5e8] sm:$0xff]
    %v8191 = vld [vmem:[#allocation4 + $0x5f8] sm:$0xff]
    %v8288 = vunpack.c.l.b16 %v8096
    %v8289 = vunpack.c.h.b16 %v8096
    %v8290 = vunpack.c.l.b16 %v8097
    %v8291 = vunpack.c.h.b16 %v8097
    %v8292 = vunpack.c.l.b16 %v8098
    %v8293 = vunpack.c.h.b16 %v8098
    %v8294 = vunpack.c.l.b16 %v8099
    %v8295 = vunpack.c.h.b16 %v8099
    %v8296 = vunpack.c.l.b16 %v8100
    %v8297 = vunpack.c.h.b16 %v8100
    %v8298 = vunpack.c.l.b16 %v8101
    %v8299 = vunpack.c.h.b16 %v8101
    %v8300 = vunpack.c.l.b16 %v8102
    %v8301 = vunpack.c.h.b16 %v8102
    %v8302 = vunpack.c.l.b16 %v8103
    %v8303 = vunpack.c.h.b16 %v8103
    %v8304 = vunpack.c.l.b16 %v8104
    %v8305 = vunpack.c.h.b16 %v8104
    %v8306 = vunpack.c.l.b16 %v8105
    %v8307 = vunpack.c.h.b16 %v8105
    %v8308 = vunpack.c.l.b16 %v8106
    %v8309 = vunpack.c.h.b16 %v8106
    %v8310 = vunpack.c.l.b16 %v8107
    %v8311 = vunpack.c.h.b16 %v8107
    %v8312 = vunpack.c.l.b16 %v8108
    %v8313 = vunpack.c.h.b16 %v8108
    %v8314 = vunpack.c.l.b16 %v8109
    %v8315 = vunpack.c.h.b16 %v8109
    %v8316 = vunpack.c.l.b16 %v8110
    %v8317 = vunpack.c.h.b16 %v8110
    %v8318 = vunpack.c.l.b16 %v8111
    %v8319 = vunpack.c.h.b16 %v8111
    %v8320 = vunpack.c.l.b16 %v8112
    %v8321 = vunpack.c.h.b16 %v8112
    %v8322 = vunpack.c.l.b16 %v8113
    %v8323 = vunpack.c.h.b16 %v8113
    %v8324 = vunpack.c.l.b16 %v8114
    %v8325 = vunpack.c.h.b16 %v8114
    %v8326 = vunpack.c.l.b16 %v8115
    %v8327 = vunpack.c.h.b16 %v8115
    %v8328 = vunpack.c.l.b16 %v8116
    %v8329 = vunpack.c.h.b16 %v8116
    %v8330 = vunpack.c.l.b16 %v8117
    %v8331 = vunpack.c.h.b16 %v8117
    %v8332 = vunpack.c.l.b16 %v8118
    %v8333 = vunpack.c.h.b16 %v8118
    %v8334 = vunpack.c.l.b16 %v8119
    %v8335 = vunpack.c.h.b16 %v8119
    %v8336 = vunpack.c.l.b16 %v8120
    %v8337 = vunpack.c.h.b16 %v8120
    %v8338 = vunpack.c.l.b16 %v8121
    %v8339 = vunpack.c.h.b16 %v8121
    %v8340 = vunpack.c.l.b16 %v8122
    %v8341 = vunpack.c.h.b16 %v8122
    %v8342 = vunpack.c.l.b16 %v8123
    %v8343 = vunpack.c.h.b16 %v8123
    %v8344 = vunpack.c.l.b16 %v8124
    %v8345 = vunpack.c.h.b16 %v8124
    %v8346 = vunpack.c.l.b16 %v8125
    %v8347 = vunpack.c.h.b16 %v8125
    %v8348 = vunpack.c.l.b16 %v8126
    %v8349 = vunpack.c.h.b16 %v8126
    %v8350 = vunpack.c.l.b16 %v8127
    %v8351 = vunpack.c.h.b16 %v8127
    %v8352 = vunpack.c.l.b16 %v8128
    %v8353 = vunpack.c.h.b16 %v8128
    %v8354 = vunpack.c.l.b16 %v8129
    %v8355 = vunpack.c.h.b16 %v8129
    %v8356 = vunpack.c.l.b16 %v8130
    %v8357 = vunpack.c.h.b16 %v8130
    %v8358 = vunpack.c.l.b16 %v8131
    %v8359 = vunpack.c.h.b16 %v8131
    %v8360 = vunpack.c.l.b16 %v8132
    %v8361 = vunpack.c.h.b16 %v8132
    %v8362 = vunpack.c.l.b16 %v8133
    %v8363 = vunpack.c.h.b16 %v8133
    %v8364 = vunpack.c.l.b16 %v8134
    %v8365 = vunpack.c.h.b16 %v8134
    %v8366 = vunpack.c.l.b16 %v8135
    %v8367 = vunpack.c.h.b16 %v8135
    %v8368 = vunpack.c.l.b16 %v8136
    %v8369 = vunpack.c.h.b16 %v8136
    %v8370 = vunpack.c.l.b16 %v8137
    %v8371 = vunpack.c.h.b16 %v8137
    %v8372 = vunpack.c.l.b16 %v8138
    %v8373 = vunpack.c.h.b16 %v8138
    %v8374 = vunpack.c.l.b16 %v8139
    %v8375 = vunpack.c.h.b16 %v8139
    %v8376 = vunpack.c.l.b16 %v8140
    %v8377 = vunpack.c.h.b16 %v8140
    %v8378 = vunpack.c.l.b16 %v8141
    %v8379 = vunpack.c.h.b16 %v8141
    %v8380 = vunpack.c.l.b16 %v8142
    %v8381 = vunpack.c.h.b16 %v8142
    %v8382 = vunpack.c.l.b16 %v8143
    %v8383 = vunpack.c.h.b16 %v8143
    %v8384 = vunpack.c.l.b16 %v8144
    %v8385 = vunpack.c.h.b16 %v8144
    %v8386 = vunpack.c.l.b16 %v8145
    %v8387 = vunpack.c.h.b16 %v8145
    %v8388 = vunpack.c.l.b16 %v8146
    %v8389 = vunpack.c.h.b16 %v8146
    %v8390 = vunpack.c.l.b16 %v8147
    %v8391 = vunpack.c.h.b16 %v8147
    %v8392 = vunpack.c.l.b16 %v8148
    %v8393 = vunpack.c.h.b16 %v8148
    %v8394 = vunpack.c.l.b16 %v8149
    %v8395 = vunpack.c.h.b16 %v8149
    %v8396 = vunpack.c.l.b16 %v8150
    %v8397 = vunpack.c.h.b16 %v8150
    %v8398 = vunpack.c.l.b16 %v8151
    %v8399 = vunpack.c.h.b16 %v8151
    %v8400 = vunpack.c.l.b16 %v8152
    %v8401 = vunpack.c.h.b16 %v8152
    %v8402 = vunpack.c.l.b16 %v8153
    %v8403 = vunpack.c.h.b16 %v8153
    %v8404 = vunpack.c.l.b16 %v8154
    %v8405 = vunpack.c.h.b16 %v8154
    %v8406 = vunpack.c.l.b16 %v8155
    %v8407 = vunpack.c.h.b16 %v8155
    %v8408 = vunpack.c.l.b16 %v8156
    %v8409 = vunpack.c.h.b16 %v8156
    %v8410 = vunpack.c.l.b16 %v8157
    %v8411 = vunpack.c.h.b16 %v8157
    %v8412 = vunpack.c.l.b16 %v8158
    %v8413 = vunpack.c.h.b16 %v8158
    %v8414 = vunpack.c.l.b16 %v8159
    %v8415 = vunpack.c.h.b16 %v8159
    %v8416 = vunpack.c.l.b16 %v8160
    %v8417 = vunpack.c.h.b16 %v8160
    %v8418 = vunpack.c.l.b16 %v8161
    %v8419 = vunpack.c.h.b16 %v8161
    %v8420 = vunpack.c.l.b16 %v8162
    %v8421 = vunpack.c.h.b16 %v8162
    %v8422 = vunpack.c.l.b16 %v8163
    %v8423 = vunpack.c.h.b16 %v8163
    %v8424 = vunpack.c.l.b16 %v8164
    %v8425 = vunpack.c.h.b16 %v8164
    %v8426 = vunpack.c.l.b16 %v8165
    %v8427 = vunpack.c.h.b16 %v8165
    %v8428 = vunpack.c.l.b16 %v8166
    %v8429 = vunpack.c.h.b16 %v8166
    %v8430 = vunpack.c.l.b16 %v8167
    %v8431 = vunpack.c.h.b16 %v8167
    %v8432 = vunpack.c.l.b16 %v8168
    %v8433 = vunpack.c.h.b16 %v8168
    %v8434 = vunpack.c.l.b16 %v8169
    %v8435 = vunpack.c.h.b16 %v8169
    %v8436 = vunpack.c.l.b16 %v8170
    %v8437 = vunpack.c.h.b16 %v8170
    %v8438 = vunpack.c.l.b16 %v8171
    %v8439 = vunpack.c.h.b16 %v8171
    %v8440 = vunpack.c.l.b16 %v8172
    %v8441 = vunpack.c.h.b16 %v8172
    %v8442 = vunpack.c.l.b16 %v8173
    %v8443 = vunpack.c.h.b16 %v8173
    %v8444 = vunpack.c.l.b16 %v8174
    %v8445 = vunpack.c.h.b16 %v8174
    %v8446 = vunpack.c.l.b16 %v8175
    %v8447 = vunpack.c.h.b16 %v8175
    %v8448 = vunpack.c.l.b16 %v8176
    %v8449 = vunpack.c.h.b16 %v8176
    %v8450 = vunpack.c.l.b16 %v8177
    %v8451 = vunpack.c.h.b16 %v8177
    %v8452 = vunpack.c.l.b16 %v8178
    %v8453 = vunpack.c.h.b16 %v8178
    %v8454 = vunpack.c.l.b16 %v8179
    %v8455 = vunpack.c.h.b16 %v8179
    %v8456 = vunpack.c.l.b16 %v8180
    %v8457 = vunpack.c.h.b16 %v8180
    %v8458 = vunpack.c.l.b16 %v8181
    %v8459 = vunpack.c.h.b16 %v8181
    %v8460 = vunpack.c.l.b16 %v8182
    %v8461 = vunpack.c.h.b16 %v8182
    %v8462 = vunpack.c.l.b16 %v8183
    %v8463 = vunpack.c.h.b16 %v8183
    %v8464 = vunpack.c.l.b16 %v8184
    %v8465 = vunpack.c.h.b16 %v8184
    %v8466 = vunpack.c.l.b16 %v8185
    %v8467 = vunpack.c.h.b16 %v8185
    %v8468 = vunpack.c.l.b16 %v8186
    %v8469 = vunpack.c.h.b16 %v8186
    %v8470 = vunpack.c.l.b16 %v8187
    %v8471 = vunpack.c.h.b16 %v8187
    %v8472 = vunpack.c.l.b16 %v8188
    %v8473 = vunpack.c.h.b16 %v8188
    %v8474 = vunpack.c.l.b16 %v8189
    %v8475 = vunpack.c.h.b16 %v8189
    %v8476 = vunpack.c.l.b16 %v8190
    %v8477 = vunpack.c.h.b16 %v8190
    %v8478 = vunpack.c.l.b16 %v8191
    %v8479 = vunpack.c.h.b16 %v8191
    %v8480 = vpack.c.b16 %v8290, %v8288
    %v8481 = vpack.c.b16 %v8291, %v8289
    %v8482 = vpack.c.b16 %v8294, %v8292
    %v8483 = vpack.c.b16 %v8295, %v8293
    %v8484 = vpack.c.b16 %v8298, %v8296
    %v8485 = vpack.c.b16 %v8299, %v8297
    %v8486 = vpack.c.b16 %v8302, %v8300
    %v8487 = vpack.c.b16 %v8303, %v8301
    %v8488 = vpack.c.b16 %v8306, %v8304
    %v8489 = vpack.c.b16 %v8307, %v8305
    %v8490 = vpack.c.b16 %v8310, %v8308
    %v8491 = vpack.c.b16 %v8311, %v8309
    %v8492 = vpack.c.b16 %v8314, %v8312
    %v8493 = vpack.c.b16 %v8315, %v8313
    %v8494 = vpack.c.b16 %v8318, %v8316
    %v8495 = vpack.c.b16 %v8319, %v8317
    %v8496 = vpack.c.b16 %v8322, %v8320
    %v8497 = vpack.c.b16 %v8323, %v8321
    %v8498 = vpack.c.b16 %v8326, %v8324
    %v8499 = vpack.c.b16 %v8327, %v8325
    %v8500 = vpack.c.b16 %v8330, %v8328
    %v8501 = vpack.c.b16 %v8331, %v8329
    %v8502 = vpack.c.b16 %v8334, %v8332
    %v8503 = vpack.c.b16 %v8335, %v8333
    %v8504 = vpack.c.b16 %v8338, %v8336
    %v8505 = vpack.c.b16 %v8339, %v8337
    %v8506 = vpack.c.b16 %v8342, %v8340
    %v8507 = vpack.c.b16 %v8343, %v8341
    %v8508 = vpack.c.b16 %v8346, %v8344
    %v8509 = vpack.c.b16 %v8347, %v8345
    %v8510 = vpack.c.b16 %v8350, %v8348
    %v8511 = vpack.c.b16 %v8351, %v8349
    %v8512 = vpack.c.b16 %v8354, %v8352
    %v8513 = vpack.c.b16 %v8355, %v8353
    %v8514 = vpack.c.b16 %v8358, %v8356
    %v8515 = vpack.c.b16 %v8359, %v8357
    %v8516 = vpack.c.b16 %v8362, %v8360
    %v8517 = vpack.c.b16 %v8363, %v8361
    %v8518 = vpack.c.b16 %v8366, %v8364
    %v8519 = vpack.c.b16 %v8367, %v8365
    %v8520 = vpack.c.b16 %v8370, %v8368
    %v8521 = vpack.c.b16 %v8371, %v8369
    %v8522 = vpack.c.b16 %v8374, %v8372
    %v8523 = vpack.c.b16 %v8375, %v8373
    %v8524 = vpack.c.b16 %v8378, %v8376
    %v8525 = vpack.c.b16 %v8379, %v8377
    %v8526 = vpack.c.b16 %v8382, %v8380
    %v8527 = vpack.c.b16 %v8383, %v8381
    %v8528 = vpack.c.b16 %v8386, %v8384
    %v8529 = vpack.c.b16 %v8387, %v8385
    %v8530 = vpack.c.b16 %v8390, %v8388
    %v8531 = vpack.c.b16 %v8391, %v8389
    %v8532 = vpack.c.b16 %v8394, %v8392
    %v8533 = vpack.c.b16 %v8395, %v8393
    %v8534 = vpack.c.b16 %v8398, %v8396
    %v8535 = vpack.c.b16 %v8399, %v8397
    %v8536 = vpack.c.b16 %v8402, %v8400
    %v8537 = vpack.c.b16 %v8403, %v8401
    %v8538 = vpack.c.b16 %v8406, %v8404
    %v8539 = vpack.c.b16 %v8407, %v8405
    %v8540 = vpack.c.b16 %v8410, %v8408
    %v8541 = vpack.c.b16 %v8411, %v8409
    %v8542 = vpack.c.b16 %v8414, %v8412
    %v8543 = vpack.c.b16 %v8415, %v8413
    %v8544 = vpack.c.b16 %v8418, %v8416
    %v8545 = vpack.c.b16 %v8419, %v8417
    %v8546 = vpack.c.b16 %v8422, %v8420
    %v8547 = vpack.c.b16 %v8423, %v8421
    %v8548 = vpack.c.b16 %v8426, %v8424
    %v8549 = vpack.c.b16 %v8427, %v8425
    %v8550 = vpack.c.b16 %v8430, %v8428
    %v8551 = vpack.c.b16 %v8431, %v8429
    %v8552 = vpack.c.b16 %v8434, %v8432
    %v8553 = vpack.c.b16 %v8435, %v8433
    %v8554 = vpack.c.b16 %v8438, %v8436
    %v8555 = vpack.c.b16 %v8439, %v8437
    %v8556 = vpack.c.b16 %v8442, %v8440
    %v8557 = vpack.c.b16 %v8443, %v8441
    %v8558 = vpack.c.b16 %v8446, %v8444
    %v8559 = vpack.c.b16 %v8447, %v8445
    %v8560 = vpack.c.b16 %v8450, %v8448
    %v8561 = vpack.c.b16 %v8451, %v8449
    %v8562 = vpack.c.b16 %v8454, %v8452
    %v8563 = vpack.c.b16 %v8455, %v8453
    %v8564 = vpack.c.b16 %v8458, %v8456
    %v8565 = vpack.c.b16 %v8459, %v8457
    %v8566 = vpack.c.b16 %v8462, %v8460
    %v8567 = vpack.c.b16 %v8463, %v8461
    %v8568 = vpack.c.b16 %v8466, %v8464
    %v8569 = vpack.c.b16 %v8467, %v8465
    %v8570 = vpack.c.b16 %v8470, %v8468
    %v8571 = vpack.c.b16 %v8471, %v8469
    %v8572 = vpack.c.b16 %v8474, %v8472
    %v8573 = vpack.c.b16 %v8475, %v8473
    %v8574 = vpack.c.b16 %v8478, %v8476
    %v8575 = vpack.c.b16 %v8479, %v8477
    %8672 = vmatprep.subr.bf16.mxu0 %v8495
    %8673 = vmatpush1.bf16.msra.mxu0 %v8494
    %8674 = vmatprep.subr.bf16.mxu0 %v8493
    %8675 = vmatpush1.bf16.msra.mxu0 %v8492
    %8676 = vmatprep.subr.bf16.mxu0 %v8491
    %8677 = vmatpush1.bf16.msra.mxu0 %v8490
    %8678 = vmatprep.subr.bf16.mxu0 %v8489
    %8679 = vmatpush1.bf16.msra.mxu0 %v8488
    %8680 = vmatprep.subr.bf16.mxu0 %v8487
    %8681 = vmatpush1.bf16.msra.mxu0 %v8486
    %8682 = vmatprep.subr.bf16.mxu0 %v8485
    %8683 = vmatpush1.bf16.msra.mxu0 %v8484
    %8684 = vmatprep.subr.bf16.mxu0 %v8483
    %8685 = vmatpush1.bf16.msra.mxu0 %v8482
    %8686 = vmatprep.subr.bf16.mxu0 %v8481
    %8687 = vmatpush1.bf16.msra.mxu0 %v8480
    %8688 = vmatprep.subr.bf16.mxu0 %v8511
    %8689 = vmatpush2.bf16.msra.mxu0 %v8510
    %8690 = vmatprep.subr.bf16.mxu0 %v8509
    %8691 = vmatpush2.bf16.msra.mxu0 %v8508
    %8692 = vmatprep.subr.bf16.mxu0 %v8507
    %8693 = vmatpush2.bf16.msra.mxu0 %v8506
    %8694 = vmatprep.subr.bf16.mxu0 %v8505
    %8695 = vmatpush2.bf16.msra.mxu0 %v8504
    %8696 = vmatprep.subr.bf16.mxu0 %v8503
    %8697 = vmatpush2.bf16.msra.mxu0 %v8502
    %8698 = vmatprep.subr.bf16.mxu0 %v8501
    %8699 = vmatpush2.bf16.msra.mxu0 %v8500
    %8700 = vmatprep.subr.bf16.mxu0 %v8499
    %8701 = vmatpush2.bf16.msra.mxu0 %v8498
    %8702 = vmatprep.subr.bf16.mxu0 %v8497
    %8703 = vmatpush2.bf16.msra.mxu0 %v8496
    %8704 = vmatprep.mubr.bf16.mxu0 %v7481
    %8705 = vmatmul.mubr.bf16.gmra.mxu0 %v7480
    %v8706 = vpop.f32.mrf.mxu0
    %v8707 = vadd.f32 0.0, %v8706
    %v8708 = vpop.f32.mrf.mxu0
    %v8709 = vadd.f32 0.0, %v8708
    %v8710 = vpop.f32.mrf.mxu0
    %v8711 = vpop.f32.mrf.mxu0
    %8712 = vdwg.mxu0
    %8713 = vmatprep.subr.bf16.mxu0 %v8527
    %8714 = vmatpush1.bf16.msra.mxu0 %v8526
    %8715 = vmatprep.subr.bf16.mxu0 %v8525
    %8716 = vmatpush1.bf16.msra.mxu0 %v8524
    %8717 = vmatprep.subr.bf16.mxu0 %v8523
    %8718 = vmatpush1.bf16.msra.mxu0 %v8522
    %8719 = vmatprep.subr.bf16.mxu0 %v8521
    %8720 = vmatpush1.bf16.msra.mxu0 %v8520
    %8721 = vmatprep.subr.bf16.mxu0 %v8519
    %8722 = vmatpush1.bf16.msra.mxu0 %v8518
    %8723 = vmatprep.subr.bf16.mxu0 %v8517
    %8724 = vmatpush1.bf16.msra.mxu0 %v8516
    %8725 = vmatprep.subr.bf16.mxu0 %v8515
    %8726 = vmatpush1.bf16.msra.mxu0 %v8514
    %8727 = vmatprep.subr.bf16.mxu0 %v8513
    %8728 = vmatpush1.bf16.msra.mxu0 %v8512
    %8729 = vmatprep.subr.bf16.mxu0 %v8543
    %8730 = vmatpush2.bf16.msra.mxu0 %v8542
    %8731 = vmatprep.subr.bf16.mxu0 %v8541
    %8732 = vmatpush2.bf16.msra.mxu0 %v8540
    %8733 = vmatprep.subr.bf16.mxu0 %v8539
    %8734 = vmatpush2.bf16.msra.mxu0 %v8538
    %8735 = vmatprep.subr.bf16.mxu0 %v8537
    %8736 = vmatpush2.bf16.msra.mxu0 %v8536
    %8737 = vmatprep.subr.bf16.mxu0 %v8535
    %8738 = vmatpush2.bf16.msra.mxu0 %v8534
    %8739 = vmatprep.subr.bf16.mxu0 %v8533
    %8740 = vmatpush2.bf16.msra.mxu0 %v8532
    %8741 = vmatprep.subr.bf16.mxu0 %v8531
    %8742 = vmatpush2.bf16.msra.mxu0 %v8530
    %8743 = vmatprep.subr.bf16.mxu0 %v8529
    %8744 = vmatpush2.bf16.msra.mxu0 %v8528
    %8745 = vmatprep.mubr.bf16.mxu0 %v7483
    %8746 = vmatmul.mubr.bf16.gmra.mxu0 %v7482
    %v8747 = vpop.f32.mrf.mxu0
    %v8748 = vadd.f32 %v8707, %v8747
    %v8749 = vpop.f32.mrf.mxu0
    %v8750 = vadd.f32 %v8709, %v8749
    %v8751 = vpop.f32.mrf.mxu0
    %v8752 = vpop.f32.mrf.mxu0
    %8753 = vdwg.mxu0
    %8754 = vmatprep.subr.bf16.mxu0 %v8559
    %8755 = vmatpush1.bf16.msra.mxu0 %v8558
    %8756 = vmatprep.subr.bf16.mxu0 %v8557
    %8757 = vmatpush1.bf16.msra.mxu0 %v8556
    %8758 = vmatprep.subr.bf16.mxu0 %v8555
    %8759 = vmatpush1.bf16.msra.mxu0 %v8554
    %8760 = vmatprep.subr.bf16.mxu0 %v8553
    %8761 = vmatpush1.bf16.msra.mxu0 %v8552
    %8762 = vmatprep.subr.bf16.mxu0 %v8551
    %8763 = vmatpush1.bf16.msra.mxu0 %v8550
    %8764 = vmatprep.subr.bf16.mxu0 %v8549
    %8765 = vmatpush1.bf16.msra.mxu0 %v8548
    %8766 = vmatprep.subr.bf16.mxu0 %v8547
    %8767 = vmatpush1.bf16.msra.mxu0 %v8546
    %8768 = vmatprep.subr.bf16.mxu0 %v8545
    %8769 = vmatpush1.bf16.msra.mxu0 %v8544
    %8770 = vmatprep.subr.bf16.mxu0 %v8575
    %8771 = vmatpush2.bf16.msra.mxu0 %v8574
    %8772 = vmatprep.subr.bf16.mxu0 %v8573
    %8773 = vmatpush2.bf16.msra.mxu0 %v8572
    %8774 = vmatprep.subr.bf16.mxu0 %v8571
    %8775 = vmatpush2.bf16.msra.mxu0 %v8570
    %8776 = vmatprep.subr.bf16.mxu0 %v8569
    %8777 = vmatpush2.bf16.msra.mxu0 %v8568
    %8778 = vmatprep.subr.bf16.mxu0 %v8567
    %8779 = vmatpush2.bf16.msra.mxu0 %v8566
    %8780 = vmatprep.subr.bf16.mxu0 %v8565
    %8781 = vmatpush2.bf16.msra.mxu0 %v8564
    %8782 = vmatprep.subr.bf16.mxu0 %v8563
    %8783 = vmatpush2.bf16.msra.mxu0 %v8562
    %8784 = vmatprep.subr.bf16.mxu0 %v8561
    %8785 = vmatpush2.bf16.msra.mxu0 %v8560
    %8786 = vmatprep.mubr.bf16.mxu0 %v7485
    %8787 = vmatmul.mubr.bf16.gmra.mxu0 %v7484
    %v8788 = vpop.f32.mrf.mxu0
    %v8789 = vadd.f32 %v8748, %v8788
    %v8790 = vpop.f32.mrf.mxu0
    %v8791 = vadd.f32 %v8750, %v8790
    %v8792 = vpop.f32.mrf.mxu0
    %v8793 = vpop.f32.mrf.mxu0
    %8794 = vdwg.mxu0
    %v8795 = vmax.f32 %v8789, %v8791
    %v8796 = vmax.f32 %v8095, %v8795
    %v8797 = vld [vmem:[%s4] sm:$0x1]
    %v8799 = vlaneseq
    %v8800 = vshrl.u32 %v8799, 7
    %v8801 = vsub.s32 0, %v8800
    %v8802 = vrot.slane %v8797, %v8801
    %v8804 = vadd.f32 %v8796, %v8802
    %v8805 = vmax.f32 %v8804, 0.0
    %v8806 = vpack.c.bf16 %v8805, %v8805
    %8807 = vst [vmem:[#allocation3 + $0x8] sm:$0xf] %v8806
    %v8808 = vld [vmem:[#allocation2 + $0x18] sm:$0xff]
    %v8809 = vld [vmem:[#allocation2 + $0x20] sm:$0xff]
    %v8810 = vld [vmem:[#allocation2 + $0x28] sm:$0xff]
    %v8811 = vld [vmem:[#allocation4] sm:$0xff]
    %v8812 = vld [vmem:[#allocation4 + $0x10] sm:$0xff]
    %v8813 = vld [vmem:[#allocation4 + $0x20] sm:$0xff]
    %v8814 = vld [vmem:[#allocation4 + $0x30] sm:$0xff]
    %v8815 = vld [vmem:[#allocation4 + $0x40] sm:$0xff]
    %v8816 = vld [vmem:[#allocation4 + $0x50] sm:$0xff]
    %v8817 = vld [vmem:[#allocation4 + $0x60] sm:$0xff]
    %v8818 = vld [vmem:[#allocation4 + $0x70] sm:$0xff]
    %v8819 = vld [vmem:[#allocation4 + $0x80] sm:$0xff]
    %v8820 = vld [vmem:[#allocation4 + $0x90] sm:$0xff]
    %v8821 = vld [vmem:[#allocation4 + $0xa0] sm:$0xff]
    %v8822 = vld [vmem:[#allocation4 + $0xb0] sm:$0xff]
    %v8823 = vld [vmem:[#allocation4 + $0xc0] sm:$0xff]
    %v8824 = vld [vmem:[#allocation4 + $0xd0] sm:$0xff]
    %v8825 = vld [vmem:[#allocation4 + $0xe0] sm:$0xff]
    %v8826 = vld [vmem:[#allocation4 + $0xf0] sm:$0xff]
    %v8827 = vld [vmem:[#allocation4 + $0x100] sm:$0xff]
    %v8828 = vld [vmem:[#allocation4 + $0x110] sm:$0xff]
    %v8829 = vld [vmem:[#allocation4 + $0x120] sm:$0xff]
    %v8830 = vld [vmem:[#allocation4 + $0x130] sm:$0xff]
    %v8831 = vld [vmem:[#allocation4 + $0x140] sm:$0xff]
    %v8832 = vld [vmem:[#allocation4 + $0x150] sm:$0xff]
    %v8833 = vld [vmem:[#allocation4 + $0x160] sm:$0xff]
    %v8834 = vld [vmem:[#allocation4 + $0x170] sm:$0xff]
    %v8835 = vld [vmem:[#allocation4 + $0x180] sm:$0xff]
    %v8836 = vld [vmem:[#allocation4 + $0x190] sm:$0xff]
    %v8837 = vld [vmem:[#allocation4 + $0x1a0] sm:$0xff]
    %v8838 = vld [vmem:[#allocation4 + $0x1b0] sm:$0xff]
    %v8839 = vld [vmem:[#allocation4 + $0x1c0] sm:$0xff]
    %v8840 = vld [vmem:[#allocation4 + $0x1d0] sm:$0xff]
    %v8841 = vld [vmem:[#allocation4 + $0x1e0] sm:$0xff]
    %v8842 = vld [vmem:[#allocation4 + $0x1f0] sm:$0xff]
    %v8843 = vld [vmem:[#allocation4 + $0x200] sm:$0xff]
    %v8844 = vld [vmem:[#allocation4 + $0x210] sm:$0xff]
    %v8845 = vld [vmem:[#allocation4 + $0x220] sm:$0xff]
    %v8846 = vld [vmem:[#allocation4 + $0x230] sm:$0xff]
    %v8847 = vld [vmem:[#allocation4 + $0x240] sm:$0xff]
    %v8848 = vld [vmem:[#allocation4 + $0x250] sm:$0xff]
    %v8849 = vld [vmem:[#allocation4 + $0x260] sm:$0xff]
    %v8850 = vld [vmem:[#allocation4 + $0x270] sm:$0xff]
    %v8851 = vld [vmem:[#allocation4 + $0x280] sm:$0xff]
    %v8852 = vld [vmem:[#allocation4 + $0x290] sm:$0xff]
    %v8853 = vld [vmem:[#allocation4 + $0x2a0] sm:$0xff]
    %v8854 = vld [vmem:[#allocation4 + $0x2b0] sm:$0xff]
    %v8855 = vld [vmem:[#allocation4 + $0x2c0] sm:$0xff]
    %v8856 = vld [vmem:[#allocation4 + $0x2d0] sm:$0xff]
    %v8857 = vld [vmem:[#allocation4 + $0x2e0] sm:$0xff]
    %v8858 = vld [vmem:[#allocation4 + $0x2f0] sm:$0xff]
    %v8859 = vld [vmem:[#allocation4 + $0x300] sm:$0xff]
    %v8860 = vld [vmem:[#allocation4 + $0x310] sm:$0xff]
    %v8861 = vld [vmem:[#allocation4 + $0x320] sm:$0xff]
    %v8862 = vld [vmem:[#allocation4 + $0x330] sm:$0xff]
    %v8863 = vld [vmem:[#allocation4 + $0x340] sm:$0xff]
    %v8864 = vld [vmem:[#allocation4 + $0x350] sm:$0xff]
    %v8865 = vld [vmem:[#allocation4 + $0x360] sm:$0xff]
    %v8866 = vld [vmem:[#allocation4 + $0x370] sm:$0xff]
    %v8867 = vld [vmem:[#allocation4 + $0x380] sm:$0xff]
    %v8868 = vld [vmem:[#allocation4 + $0x390] sm:$0xff]
    %v8869 = vld [vmem:[#allocation4 + $0x3a0] sm:$0xff]
    %v8870 = vld [vmem:[#allocation4 + $0x3b0] sm:$0xff]
    %v8871 = vld [vmem:[#allocation4 + $0x3c0] sm:$0xff]
    %v8872 = vld [vmem:[#allocation4 + $0x3d0] sm:$0xff]
    %v8873 = vld [vmem:[#allocation4 + $0x3e0] sm:$0xff]
    %v8874 = vld [vmem:[#allocation4 + $0x3f0] sm:$0xff]
    %v8875 = vld [vmem:[#allocation4 + $0x400] sm:$0xff]
    %v8876 = vld [vmem:[#allocation4 + $0x410] sm:$0xff]
    %v8877 = vld [vmem:[#allocation4 + $0x420] sm:$0xff]
    %v8878 = vld [vmem:[#allocation4 + $0x430] sm:$0xff]
    %v8879 = vld [vmem:[#allocation4 + $0x440] sm:$0xff]
    %v8880 = vld [vmem:[#allocation4 + $0x450] sm:$0xff]
    %v8881 = vld [vmem:[#allocation4 + $0x460] sm:$0xff]
    %v8882 = vld [vmem:[#allocation4 + $0x470] sm:$0xff]
    %v8883 = vld [vmem:[#allocation4 + $0x480] sm:$0xff]
    %v8884 = vld [vmem:[#allocation4 + $0x490] sm:$0xff]
    %v8885 = vld [vmem:[#allocation4 + $0x4a0] sm:$0xff]
    %v8886 = vld [vmem:[#allocation4 + $0x4b0] sm:$0xff]
    %v8887 = vld [vmem:[#allocation4 + $0x4c0] sm:$0xff]
    %v8888 = vld [vmem:[#allocation4 + $0x4d0] sm:$0xff]
    %v8889 = vld [vmem:[#allocation4 + $0x4e0] sm:$0xff]
    %v8890 = vld [vmem:[#allocation4 + $0x4f0] sm:$0xff]
    %v8891 = vld [vmem:[#allocation4 + $0x500] sm:$0xff]
    %v8892 = vld [vmem:[#allocation4 + $0x510] sm:$0xff]
    %v8893 = vld [vmem:[#allocation4 + $0x520] sm:$0xff]
    %v8894 = vld [vmem:[#allocation4 + $0x530] sm:$0xff]
    %v8895 = vld [vmem:[#allocation4 + $0x540] sm:$0xff]
    %v8896 = vld [vmem:[#allocation4 + $0x550] sm:$0xff]
    %v8897 = vld [vmem:[#allocation4 + $0x560] sm:$0xff]
    %v8898 = vld [vmem:[#allocation4 + $0x570] sm:$0xff]
    %v8899 = vld [vmem:[#allocation4 + $0x580] sm:$0xff]
    %v8900 = vld [vmem:[#allocation4 + $0x590] sm:$0xff]
    %v8901 = vld [vmem:[#allocation4 + $0x5a0] sm:$0xff]
    %v8902 = vld [vmem:[#allocation4 + $0x5b0] sm:$0xff]
    %v8903 = vld [vmem:[#allocation4 + $0x5c0] sm:$0xff]
    %v8904 = vld [vmem:[#allocation4 + $0x5d0] sm:$0xff]
    %v8905 = vld [vmem:[#allocation4 + $0x5e0] sm:$0xff]
    %v8906 = vld [vmem:[#allocation4 + $0x5f0] sm:$0xff]
    %v8910 = vunpack.c.l.b16 %v8808
    %v8911 = vunpack.c.h.b16 %v8808
    %v8912 = vunpack.c.l.b16 %v8809
    %v8913 = vunpack.c.h.b16 %v8809
    %v8914 = vunpack.c.l.b16 %v8810
    %v8915 = vunpack.c.h.b16 %v8810
    %v8916 = vpack.c.b16 %v8910, %v8910
    %v8917 = vpack.c.b16 %v8911, %v8911
    %v8918 = vpack.c.b16 %v8912, %v8912
    %v8919 = vpack.c.b16 %v8913, %v8913
    %v8920 = vpack.c.b16 %v8914, %v8914
    %v8921 = vpack.c.b16 %v8915, %v8915
    %v9024 = vunpack.c.l.b16 %v8811
    %v9025 = vunpack.c.h.b16 %v8811
    %v9026 = vunpack.c.l.b16 %v8812
    %v9027 = vunpack.c.h.b16 %v8812
    %v9028 = vunpack.c.l.b16 %v8813
    %v9029 = vunpack.c.h.b16 %v8813
    %v9030 = vunpack.c.l.b16 %v8814
    %v9031 = vunpack.c.h.b16 %v8814
    %v9032 = vunpack.c.l.b16 %v8815
    %v9033 = vunpack.c.h.b16 %v8815
    %v9034 = vunpack.c.l.b16 %v8816
    %v9035 = vunpack.c.h.b16 %v8816
    %v9036 = vunpack.c.l.b16 %v8817
    %v9037 = vunpack.c.h.b16 %v8817
    %v9038 = vunpack.c.l.b16 %v8818
    %v9039 = vunpack.c.h.b16 %v8818
    %v9040 = vunpack.c.l.b16 %v8819
    %v9041 = vunpack.c.h.b16 %v8819
    %v9042 = vunpack.c.l.b16 %v8820
    %v9043 = vunpack.c.h.b16 %v8820
    %v9044 = vunpack.c.l.b16 %v8821
    %v9045 = vunpack.c.h.b16 %v8821
    %v9046 = vunpack.c.l.b16 %v8822
    %v9047 = vunpack.c.h.b16 %v8822
    %v9048 = vunpack.c.l.b16 %v8823
    %v9049 = vunpack.c.h.b16 %v8823
    %v9050 = vunpack.c.l.b16 %v8824
    %v9051 = vunpack.c.h.b16 %v8824
    %v9052 = vunpack.c.l.b16 %v8825
    %v9053 = vunpack.c.h.b16 %v8825
    %v9054 = vunpack.c.l.b16 %v8826
    %v9055 = vunpack.c.h.b16 %v8826
    %v9056 = vunpack.c.l.b16 %v8827
    %v9057 = vunpack.c.h.b16 %v8827
    %v9058 = vunpack.c.l.b16 %v8828
    %v9059 = vunpack.c.h.b16 %v8828
    %v9060 = vunpack.c.l.b16 %v8829
    %v9061 = vunpack.c.h.b16 %v8829
    %v9062 = vunpack.c.l.b16 %v8830
    %v9063 = vunpack.c.h.b16 %v8830
    %v9064 = vunpack.c.l.b16 %v8831
    %v9065 = vunpack.c.h.b16 %v8831
    %v9066 = vunpack.c.l.b16 %v8832
    %v9067 = vunpack.c.h.b16 %v8832
    %v9068 = vunpack.c.l.b16 %v8833
    %v9069 = vunpack.c.h.b16 %v8833
    %v9070 = vunpack.c.l.b16 %v8834
    %v9071 = vunpack.c.h.b16 %v8834
    %v9072 = vunpack.c.l.b16 %v8835
    %v9073 = vunpack.c.h.b16 %v8835
    %v9074 = vunpack.c.l.b16 %v8836
    %v9075 = vunpack.c.h.b16 %v8836
    %v9076 = vunpack.c.l.b16 %v8837
    %v9077 = vunpack.c.h.b16 %v8837
    %v9078 = vunpack.c.l.b16 %v8838
    %v9079 = vunpack.c.h.b16 %v8838
    %v9080 = vunpack.c.l.b16 %v8839
    %v9081 = vunpack.c.h.b16 %v8839
    %v9082 = vunpack.c.l.b16 %v8840
    %v9083 = vunpack.c.h.b16 %v8840
    %v9084 = vunpack.c.l.b16 %v8841
    %v9085 = vunpack.c.h.b16 %v8841
    %v9086 = vunpack.c.l.b16 %v8842
    %v9087 = vunpack.c.h.b16 %v8842
    %v9088 = vunpack.c.l.b16 %v8843
    %v9089 = vunpack.c.h.b16 %v8843
    %v9090 = vunpack.c.l.b16 %v8844
    %v9091 = vunpack.c.h.b16 %v8844
    %v9092 = vunpack.c.l.b16 %v8845
    %v9093 = vunpack.c.h.b16 %v8845
    %v9094 = vunpack.c.l.b16 %v8846
    %v9095 = vunpack.c.h.b16 %v8846
    %v9096 = vunpack.c.l.b16 %v8847
    %v9097 = vunpack.c.h.b16 %v8847
    %v9098 = vunpack.c.l.b16 %v8848
    %v9099 = vunpack.c.h.b16 %v8848
    %v9100 = vunpack.c.l.b16 %v8849
    %v9101 = vunpack.c.h.b16 %v8849
    %v9102 = vunpack.c.l.b16 %v8850
    %v9103 = vunpack.c.h.b16 %v8850
    %v9104 = vunpack.c.l.b16 %v8851
    %v9105 = vunpack.c.h.b16 %v8851
    %v9106 = vunpack.c.l.b16 %v8852
    %v9107 = vunpack.c.h.b16 %v8852
    %v9108 = vunpack.c.l.b16 %v8853
    %v9109 = vunpack.c.h.b16 %v8853
    %v9110 = vunpack.c.l.b16 %v8854
    %v9111 = vunpack.c.h.b16 %v8854
    %v9112 = vunpack.c.l.b16 %v8855
    %v9113 = vunpack.c.h.b16 %v8855
    %v9114 = vunpack.c.l.b16 %v8856
    %v9115 = vunpack.c.h.b16 %v8856
    %v9116 = vunpack.c.l.b16 %v8857
    %v9117 = vunpack.c.h.b16 %v8857
    %v9118 = vunpack.c.l.b16 %v8858
    %v9119 = vunpack.c.h.b16 %v8858
    %v9120 = vunpack.c.l.b16 %v8859
    %v9121 = vunpack.c.h.b16 %v8859
    %v9122 = vunpack.c.l.b16 %v8860
    %v9123 = vunpack.c.h.b16 %v8860
    %v9124 = vunpack.c.l.b16 %v8861
    %v9125 = vunpack.c.h.b16 %v8861
    %v9126 = vunpack.c.l.b16 %v8862
    %v9127 = vunpack.c.h.b16 %v8862
    %v9128 = vunpack.c.l.b16 %v8863
    %v9129 = vunpack.c.h.b16 %v8863
    %v9130 = vunpack.c.l.b16 %v8864
    %v9131 = vunpack.c.h.b16 %v8864
    %v9132 = vunpack.c.l.b16 %v8865
    %v9133 = vunpack.c.h.b16 %v8865
    %v9134 = vunpack.c.l.b16 %v8866
    %v9135 = vunpack.c.h.b16 %v8866
    %v9136 = vunpack.c.l.b16 %v8867
    %v9137 = vunpack.c.h.b16 %v8867
    %v9138 = vunpack.c.l.b16 %v8868
    %v9139 = vunpack.c.h.b16 %v8868
    %v9140 = vunpack.c.l.b16 %v8869
    %v9141 = vunpack.c.h.b16 %v8869
    %v9142 = vunpack.c.l.b16 %v8870
    %v9143 = vunpack.c.h.b16 %v8870
    %v9144 = vunpack.c.l.b16 %v8871
    %v9145 = vunpack.c.h.b16 %v8871
    %v9146 = vunpack.c.l.b16 %v8872
    %v9147 = vunpack.c.h.b16 %v8872
    %v9148 = vunpack.c.l.b16 %v8873
    %v9149 = vunpack.c.h.b16 %v8873
    %v9150 = vunpack.c.l.b16 %v8874
    %v9151 = vunpack.c.h.b16 %v8874
    %v9152 = vunpack.c.l.b16 %v8875
    %v9153 = vunpack.c.h.b16 %v8875
    %v9154 = vunpack.c.l.b16 %v8876
    %v9155 = vunpack.c.h.b16 %v8876
    %v9156 = vunpack.c.l.b16 %v8877
    %v9157 = vunpack.c.h.b16 %v8877
    %v9158 = vunpack.c.l.b16 %v8878
    %v9159 = vunpack.c.h.b16 %v8878
    %v9160 = vunpack.c.l.b16 %v8879
    %v9161 = vunpack.c.h.b16 %v8879
    %v9162 = vunpack.c.l.b16 %v8880
    %v9163 = vunpack.c.h.b16 %v8880
    %v9164 = vunpack.c.l.b16 %v8881
    %v9165 = vunpack.c.h.b16 %v8881
    %v9166 = vunpack.c.l.b16 %v8882
    %v9167 = vunpack.c.h.b16 %v8882
    %v9168 = vunpack.c.l.b16 %v8883
    %v9169 = vunpack.c.h.b16 %v8883
    %v9170 = vunpack.c.l.b16 %v8884
    %v9171 = vunpack.c.h.b16 %v8884
    %v9172 = vunpack.c.l.b16 %v8885
    %v9173 = vunpack.c.h.b16 %v8885
    %v9174 = vunpack.c.l.b16 %v8886
    %v9175 = vunpack.c.h.b16 %v8886
    %v9176 = vunpack.c.l.b16 %v8887
    %v9177 = vunpack.c.h.b16 %v8887
    %v9178 = vunpack.c.l.b16 %v8888
    %v9179 = vunpack.c.h.b16 %v8888
    %v9180 = vunpack.c.l.b16 %v8889
    %v9181 = vunpack.c.h.b16 %v8889
    %v9182 = vunpack.c.l.b16 %v8890
    %v9183 = vunpack.c.h.b16 %v8890
    %v9184 = vunpack.c.l.b16 %v8891
    %v9185 = vunpack.c.h.b16 %v8891
    %v9186 = vunpack.c.l.b16 %v8892
    %v9187 = vunpack.c.h.b16 %v8892
    %v9188 = vunpack.c.l.b16 %v8893
    %v9189 = vunpack.c.h.b16 %v8893
    %v9190 = vunpack.c.l.b16 %v8894
    %v9191 = vunpack.c.h.b16 %v8894
    %v9192 = vunpack.c.l.b16 %v8895
    %v9193 = vunpack.c.h.b16 %v8895
    %v9194 = vunpack.c.l.b16 %v8896
    %v9195 = vunpack.c.h.b16 %v8896
    %v9196 = vunpack.c.l.b16 %v8897
    %v9197 = vunpack.c.h.b16 %v8897
    %v9198 = vunpack.c.l.b16 %v8898
    %v9199 = vunpack.c.h.b16 %v8898
    %v9200 = vunpack.c.l.b16 %v8899
    %v9201 = vunpack.c.h.b16 %v8899
    %v9202 = vunpack.c.l.b16 %v8900
    %v9203 = vunpack.c.h.b16 %v8900
    %v9204 = vunpack.c.l.b16 %v8901
    %v9205 = vunpack.c.h.b16 %v8901
    %v9206 = vunpack.c.l.b16 %v8902
    %v9207 = vunpack.c.h.b16 %v8902
    %v9208 = vunpack.c.l.b16 %v8903
    %v9209 = vunpack.c.h.b16 %v8903
    %v9210 = vunpack.c.l.b16 %v8904
    %v9211 = vunpack.c.h.b16 %v8904
    %v9212 = vunpack.c.l.b16 %v8905
    %v9213 = vunpack.c.h.b16 %v8905
    %v9214 = vunpack.c.l.b16 %v8906
    %v9215 = vunpack.c.h.b16 %v8906
    %v9216 = vpack.c.b16 %v9026, %v9024
    %v9217 = vpack.c.b16 %v9027, %v9025
    %v9218 = vpack.c.b16 %v9030, %v9028
    %v9219 = vpack.c.b16 %v9031, %v9029
    %v9220 = vpack.c.b16 %v9034, %v9032
    %v9221 = vpack.c.b16 %v9035, %v9033
    %v9222 = vpack.c.b16 %v9038, %v9036
    %v9223 = vpack.c.b16 %v9039, %v9037
    %v9224 = vpack.c.b16 %v9042, %v9040
    %v9225 = vpack.c.b16 %v9043, %v9041
    %v9226 = vpack.c.b16 %v9046, %v9044
    %v9227 = vpack.c.b16 %v9047, %v9045
    %v9228 = vpack.c.b16 %v9050, %v9048
    %v9229 = vpack.c.b16 %v9051, %v9049
    %v9230 = vpack.c.b16 %v9054, %v9052
    %v9231 = vpack.c.b16 %v9055, %v9053
    %v9232 = vpack.c.b16 %v9058, %v9056
    %v9233 = vpack.c.b16 %v9059, %v9057
    %v9234 = vpack.c.b16 %v9062, %v9060
    %v9235 = vpack.c.b16 %v9063, %v9061
    %v9236 = vpack.c.b16 %v9066, %v9064
    %v9237 = vpack.c.b16 %v9067, %v9065
    %v9238 = vpack.c.b16 %v9070, %v9068
    %v9239 = vpack.c.b16 %v9071, %v9069
    %v9240 = vpack.c.b16 %v9074, %v9072
    %v9241 = vpack.c.b16 %v9075, %v9073
    %v9242 = vpack.c.b16 %v9078, %v9076
    %v9243 = vpack.c.b16 %v9079, %v9077
    %v9244 = vpack.c.b16 %v9082, %v9080
    %v9245 = vpack.c.b16 %v9083, %v9081
    %v9246 = vpack.c.b16 %v9086, %v9084
    %v9247 = vpack.c.b16 %v9087, %v9085
    %v9248 = vpack.c.b16 %v9090, %v9088
    %v9249 = vpack.c.b16 %v9091, %v9089
    %v9250 = vpack.c.b16 %v9094, %v9092
    %v9251 = vpack.c.b16 %v9095, %v9093
    %v9252 = vpack.c.b16 %v9098, %v9096
    %v9253 = vpack.c.b16 %v9099, %v9097
    %v9254 = vpack.c.b16 %v9102, %v9100
    %v9255 = vpack.c.b16 %v9103, %v9101
    %v9256 = vpack.c.b16 %v9106, %v9104
    %v9257 = vpack.c.b16 %v9107, %v9105
    %v9258 = vpack.c.b16 %v9110, %v9108
    %v9259 = vpack.c.b16 %v9111, %v9109
    %v9260 = vpack.c.b16 %v9114, %v9112
    %v9261 = vpack.c.b16 %v9115, %v9113
    %v9262 = vpack.c.b16 %v9118, %v9116
    %v9263 = vpack.c.b16 %v9119, %v9117
    %v9264 = vpack.c.b16 %v9122, %v9120
    %v9265 = vpack.c.b16 %v9123, %v9121
    %v9266 = vpack.c.b16 %v9126, %v9124
    %v9267 = vpack.c.b16 %v9127, %v9125
    %v9268 = vpack.c.b16 %v9130, %v9128
    %v9269 = vpack.c.b16 %v9131, %v9129
    %v9270 = vpack.c.b16 %v9134, %v9132
    %v9271 = vpack.c.b16 %v9135, %v9133
    %v9272 = vpack.c.b16 %v9138, %v9136
    %v9273 = vpack.c.b16 %v9139, %v9137
    %v9274 = vpack.c.b16 %v9142, %v9140
    %v9275 = vpack.c.b16 %v9143, %v9141
    %v9276 = vpack.c.b16 %v9146, %v9144
    %v9277 = vpack.c.b16 %v9147, %v9145
    %v9278 = vpack.c.b16 %v9150, %v9148
    %v9279 = vpack.c.b16 %v9151, %v9149
    %v9280 = vpack.c.b16 %v9154, %v9152
    %v9281 = vpack.c.b16 %v9155, %v9153
    %v9282 = vpack.c.b16 %v9158, %v9156
    %v9283 = vpack.c.b16 %v9159, %v9157
    %v9284 = vpack.c.b16 %v9162, %v9160
    %v9285 = vpack.c.b16 %v9163, %v9161
    %v9286 = vpack.c.b16 %v9166, %v9164
    %v9287 = vpack.c.b16 %v9167, %v9165
    %v9288 = vpack.c.b16 %v9170, %v9168
    %v9289 = vpack.c.b16 %v9171, %v9169
    %v9290 = vpack.c.b16 %v9174, %v9172
    %v9291 = vpack.c.b16 %v9175, %v9173
    %v9292 = vpack.c.b16 %v9178, %v9176
    %v9293 = vpack.c.b16 %v9179, %v9177
    %v9294 = vpack.c.b16 %v9182, %v9180
    %v9295 = vpack.c.b16 %v9183, %v9181
    %v9296 = vpack.c.b16 %v9186, %v9184
    %v9297 = vpack.c.b16 %v9187, %v9185
    %v9298 = vpack.c.b16 %v9190, %v9188
    %v9299 = vpack.c.b16 %v9191, %v9189
    %v9300 = vpack.c.b16 %v9194, %v9192
    %v9301 = vpack.c.b16 %v9195, %v9193
    %v9302 = vpack.c.b16 %v9198, %v9196
    %v9303 = vpack.c.b16 %v9199, %v9197
    %v9304 = vpack.c.b16 %v9202, %v9200
    %v9305 = vpack.c.b16 %v9203, %v9201
    %v9306 = vpack.c.b16 %v9206, %v9204
    %v9307 = vpack.c.b16 %v9207, %v9205
    %v9308 = vpack.c.b16 %v9210, %v9208
    %v9309 = vpack.c.b16 %v9211, %v9209
    %v9310 = vpack.c.b16 %v9214, %v9212
    %v9311 = vpack.c.b16 %v9215, %v9213
    %9408 = vmatprep.subr.bf16.mxu0 %v9231
    %9409 = vmatpush1.bf16.msra.mxu0 %v9230
    %9410 = vmatprep.subr.bf16.mxu0 %v9229
    %9411 = vmatpush1.bf16.msra.mxu0 %v9228
    %9412 = vmatprep.subr.bf16.mxu0 %v9227
    %9413 = vmatpush1.bf16.msra.mxu0 %v9226
    %9414 = vmatprep.subr.bf16.mxu0 %v9225
    %9415 = vmatpush1.bf16.msra.mxu0 %v9224
    %9416 = vmatprep.subr.bf16.mxu0 %v9223
    %9417 = vmatpush1.bf16.msra.mxu0 %v9222
    %9418 = vmatprep.subr.bf16.mxu0 %v9221
    %9419 = vmatpush1.bf16.msra.mxu0 %v9220
    %9420 = vmatprep.subr.bf16.mxu0 %v9219
    %9421 = vmatpush1.bf16.msra.mxu0 %v9218
    %9422 = vmatprep.subr.bf16.mxu0 %v9217
    %9423 = vmatpush1.bf16.msra.mxu0 %v9216
    %9424 = vmatprep.subr.bf16.mxu0 %v9247
    %9425 = vmatpush2.bf16.msra.mxu0 %v9246
    %9426 = vmatprep.subr.bf16.mxu0 %v9245
    %9427 = vmatpush2.bf16.msra.mxu0 %v9244
    %9428 = vmatprep.subr.bf16.mxu0 %v9243
    %9429 = vmatpush2.bf16.msra.mxu0 %v9242
    %9430 = vmatprep.subr.bf16.mxu0 %v9241
    %9431 = vmatpush2.bf16.msra.mxu0 %v9240
    %9432 = vmatprep.subr.bf16.mxu0 %v9239
    %9433 = vmatpush2.bf16.msra.mxu0 %v9238
    %9434 = vmatprep.subr.bf16.mxu0 %v9237
    %9435 = vmatpush2.bf16.msra.mxu0 %v9236
    %9436 = vmatprep.subr.bf16.mxu0 %v9235
    %9437 = vmatpush2.bf16.msra.mxu0 %v9234
    %9438 = vmatprep.subr.bf16.mxu0 %v9233
    %9439 = vmatpush2.bf16.msra.mxu0 %v9232
    %9440 = vmatprep.mubr.bf16.mxu0 %v8917
    %9441 = vmatmul.mubr.bf16.gmra.mxu0 %v8916
    %v9442 = vpop.f32.mrf.mxu0
    %v9443 = vadd.f32 0.0, %v9442
    %v9444 = vpop.f32.mrf.mxu0
    %v9445 = vadd.f32 0.0, %v9444
    %v9446 = vpop.f32.mrf.mxu0
    %v9447 = vpop.f32.mrf.mxu0
    %9448 = vdwg.mxu0
    %9449 = vmatprep.subr.bf16.mxu0 %v9263
    %9450 = vmatpush1.bf16.msra.mxu0 %v9262
    %9451 = vmatprep.subr.bf16.mxu0 %v9261
    %9452 = vmatpush1.bf16.msra.mxu0 %v9260
    %9453 = vmatprep.subr.bf16.mxu0 %v9259
    %9454 = vmatpush1.bf16.msra.mxu0 %v9258
    %9455 = vmatprep.subr.bf16.mxu0 %v9257
    %9456 = vmatpush1.bf16.msra.mxu0 %v9256
    %9457 = vmatprep.subr.bf16.mxu0 %v9255
    %9458 = vmatpush1.bf16.msra.mxu0 %v9254
    %9459 = vmatprep.subr.bf16.mxu0 %v9253
    %9460 = vmatpush1.bf16.msra.mxu0 %v9252
    %9461 = vmatprep.subr.bf16.mxu0 %v9251
    %9462 = vmatpush1.bf16.msra.mxu0 %v9250
    %9463 = vmatprep.subr.bf16.mxu0 %v9249
    %9464 = vmatpush1.bf16.msra.mxu0 %v9248
    %9465 = vmatprep.subr.bf16.mxu0 %v9279
    %9466 = vmatpush2.bf16.msra.mxu0 %v9278
    %9467 = vmatprep.subr.bf16.mxu0 %v9277
    %9468 = vmatpush2.bf16.msra.mxu0 %v9276
    %9469 = vmatprep.subr.bf16.mxu0 %v9275
    %9470 = vmatpush2.bf16.msra.mxu0 %v9274
    %9471 = vmatprep.subr.bf16.mxu0 %v9273
    %9472 = vmatpush2.bf16.msra.mxu0 %v9272
    %9473 = vmatprep.subr.bf16.mxu0 %v9271
    %9474 = vmatpush2.bf16.msra.mxu0 %v9270
    %9475 = vmatprep.subr.bf16.mxu0 %v9269
    %9476 = vmatpush2.bf16.msra.mxu0 %v9268
    %9477 = vmatprep.subr.bf16.mxu0 %v9267
    %9478 = vmatpush2.bf16.msra.mxu0 %v9266
    %9479 = vmatprep.subr.bf16.mxu0 %v9265
    %9480 = vmatpush2.bf16.msra.mxu0 %v9264
    %9481 = vmatprep.mubr.bf16.mxu0 %v8919
    %9482 = vmatmul.mubr.bf16.gmra.mxu0 %v8918
    %v9483 = vpop.f32.mrf.mxu0
    %v9484 = vadd.f32 %v9443, %v9483
    %v9485 = vpop.f32.mrf.mxu0
    %v9486 = vadd.f32 %v9445, %v9485
    %v9487 = vpop.f32.mrf.mxu0
    %v9488 = vpop.f32.mrf.mxu0
    %9489 = vdwg.mxu0
    %9490 = vmatprep.subr.bf16.mxu0 %v9295
    %9491 = vmatpush1.bf16.msra.mxu0 %v9294
    %9492 = vmatprep.subr.bf16.mxu0 %v9293
    %9493 = vmatpush1.bf16.msra.mxu0 %v9292
    %9494 = vmatprep.subr.bf16.mxu0 %v9291
    %9495 = vmatpush1.bf16.msra.mxu0 %v9290
    %9496 = vmatprep.subr.bf16.mxu0 %v9289
    %9497 = vmatpush1.bf16.msra.mxu0 %v9288
    %9498 = vmatprep.subr.bf16.mxu0 %v9287
    %9499 = vmatpush1.bf16.msra.mxu0 %v9286
    %9500 = vmatprep.subr.bf16.mxu0 %v9285
    %9501 = vmatpush1.bf16.msra.mxu0 %v9284
    %9502 = vmatprep.subr.bf16.mxu0 %v9283
    %9503 = vmatpush1.bf16.msra.mxu0 %v9282
    %9504 = vmatprep.subr.bf16.mxu0 %v9281
    %9505 = vmatpush1.bf16.msra.mxu0 %v9280
    %9506 = vmatprep.subr.bf16.mxu0 %v9311
    %9507 = vmatpush2.bf16.msra.mxu0 %v9310
    %9508 = vmatprep.subr.bf16.mxu0 %v9309
    %9509 = vmatpush2.bf16.msra.mxu0 %v9308
    %9510 = vmatprep.subr.bf16.mxu0 %v9307
    %9511 = vmatpush2.bf16.msra.mxu0 %v9306
    %9512 = vmatprep.subr.bf16.mxu0 %v9305
    %9513 = vmatpush2.bf16.msra.mxu0 %v9304
    %9514 = vmatprep.subr.bf16.mxu0 %v9303
    %9515 = vmatpush2.bf16.msra.mxu0 %v9302
    %9516 = vmatprep.subr.bf16.mxu0 %v9301
    %9517 = vmatpush2.bf16.msra.mxu0 %v9300
    %9518 = vmatprep.subr.bf16.mxu0 %v9299
    %9519 = vmatpush2.bf16.msra.mxu0 %v9298
    %9520 = vmatprep.subr.bf16.mxu0 %v9297
    %9521 = vmatpush2.bf16.msra.mxu0 %v9296
    %9522 = vmatprep.mubr.bf16.mxu0 %v8921
    %9523 = vmatmul.mubr.bf16.gmra.mxu0 %v8920
    %v9524 = vpop.f32.mrf.mxu0
    %v9525 = vadd.f32 %v9484, %v9524
    %v9526 = vpop.f32.mrf.mxu0
    %v9527 = vadd.f32 %v9486, %v9526
    %v9528 = vpop.f32.mrf.mxu0
    %v9529 = vpop.f32.mrf.mxu0
    %9530 = vdwg.mxu0
    %v9531 = vmax.f32 %v9525, %v9527
    %v9532 = vld [vmem:[#allocation4 + $0x8] sm:$0xff]
    %v9533 = vld [vmem:[#allocation4 + $0x18] sm:$0xff]
    %v9534 = vld [vmem:[#allocation4 + $0x28] sm:$0xff]
    %v9535 = vld [vmem:[#allocation4 + $0x38] sm:$0xff]
    %v9536 = vld [vmem:[#allocation4 + $0x48] sm:$0xff]
    %v9537 = vld [vmem:[#allocation4 + $0x58] sm:$0xff]
    %v9538 = vld [vmem:[#allocation4 + $0x68] sm:$0xff]
    %v9539 = vld [vmem:[#allocation4 + $0x78] sm:$0xff]
    %v9540 = vld [vmem:[#allocation4 + $0x88] sm:$0xff]
    %v9541 = vld [vmem:[#allocation4 + $0x98] sm:$0xff]
    %v9542 = vld [vmem:[#allocation4 + $0xa8] sm:$0xff]
    %v9543 = vld [vmem:[#allocation4 + $0xb8] sm:$0xff]
    %v9544 = vld [vmem:[#allocation4 + $0xc8] sm:$0xff]
    %v9545 = vld [vmem:[#allocation4 + $0xd8] sm:$0xff]
    %v9546 = vld [vmem:[#allocation4 + $0xe8] sm:$0xff]
    %v9547 = vld [vmem:[#allocation4 + $0xf8] sm:$0xff]
    %v9548 = vld [vmem:[#allocation4 + $0x108] sm:$0xff]
    %v9549 = vld [vmem:[#allocation4 + $0x118] sm:$0xff]
    %v9550 = vld [vmem:[#allocation4 + $0x128] sm:$0xff]
    %v9551 = vld [vmem:[#allocation4 + $0x138] sm:$0xff]
    %v9552 = vld [vmem:[#allocation4 + $0x148] sm:$0xff]
    %v9553 = vld [vmem:[#allocation4 + $0x158] sm:$0xff]
    %v9554 = vld [vmem:[#allocation4 + $0x168] sm:$0xff]
    %v9555 = vld [vmem:[#allocation4 + $0x178] sm:$0xff]
    %v9556 = vld [vmem:[#allocation4 + $0x188] sm:$0xff]
    %v9557 = vld [vmem:[#allocation4 + $0x198] sm:$0xff]
    %v9558 = vld [vmem:[#allocation4 + $0x1a8] sm:$0xff]
    %v9559 = vld [vmem:[#allocation4 + $0x1b8] sm:$0xff]
    %v9560 = vld [vmem:[#allocation4 + $0x1c8] sm:$0xff]
    %v9561 = vld [vmem:[#allocation4 + $0x1d8] sm:$0xff]
    %v9562 = vld [vmem:[#allocation4 + $0x1e8] sm:$0xff]
    %v9563 = vld [vmem:[#allocation4 + $0x1f8] sm:$0xff]
    %v9564 = vld [vmem:[#allocation4 + $0x208] sm:$0xff]
    %v9565 = vld [vmem:[#allocation4 + $0x218] sm:$0xff]
    %v9566 = vld [vmem:[#allocation4 + $0x228] sm:$0xff]
    %v9567 = vld [vmem:[#allocation4 + $0x238] sm:$0xff]
    %v9568 = vld [vmem:[#allocation4 + $0x248] sm:$0xff]
    %v9569 = vld [vmem:[#allocation4 + $0x258] sm:$0xff]
    %v9570 = vld [vmem:[#allocation4 + $0x268] sm:$0xff]
    %v9571 = vld [vmem:[#allocation4 + $0x278] sm:$0xff]
    %v9572 = vld [vmem:[#allocation4 + $0x288] sm:$0xff]
    %v9573 = vld [vmem:[#allocation4 + $0x298] sm:$0xff]
    %v9574 = vld [vmem:[#allocation4 + $0x2a8] sm:$0xff]
    %v9575 = vld [vmem:[#allocation4 + $0x2b8] sm:$0xff]
    %v9576 = vld [vmem:[#allocation4 + $0x2c8] sm:$0xff]
    %v9577 = vld [vmem:[#allocation4 + $0x2d8] sm:$0xff]
    %v9578 = vld [vmem:[#allocation4 + $0x2e8] sm:$0xff]
    %v9579 = vld [vmem:[#allocation4 + $0x2f8] sm:$0xff]
    %v9580 = vld [vmem:[#allocation4 + $0x308] sm:$0xff]
    %v9581 = vld [vmem:[#allocation4 + $0x318] sm:$0xff]
    %v9582 = vld [vmem:[#allocation4 + $0x328] sm:$0xff]
    %v9583 = vld [vmem:[#allocation4 + $0x338] sm:$0xff]
    %v9584 = vld [vmem:[#allocation4 + $0x348] sm:$0xff]
    %v9585 = vld [vmem:[#allocation4 + $0x358] sm:$0xff]
    %v9586 = vld [vmem:[#allocation4 + $0x368] sm:$0xff]
    %v9587 = vld [vmem:[#allocation4 + $0x378] sm:$0xff]
    %v9588 = vld [vmem:[#allocation4 + $0x388] sm:$0xff]
    %v9589 = vld [vmem:[#allocation4 + $0x398] sm:$0xff]
    %v9590 = vld [vmem:[#allocation4 + $0x3a8] sm:$0xff]
    %v9591 = vld [vmem:[#allocation4 + $0x3b8] sm:$0xff]
    %v9592 = vld [vmem:[#allocation4 + $0x3c8] sm:$0xff]
    %v9593 = vld [vmem:[#allocation4 + $0x3d8] sm:$0xff]
    %v9594 = vld [vmem:[#allocation4 + $0x3e8] sm:$0xff]
    %v9595 = vld [vmem:[#allocation4 + $0x3f8] sm:$0xff]
    %v9596 = vld [vmem:[#allocation4 + $0x408] sm:$0xff]
    %v9597 = vld [vmem:[#allocation4 + $0x418] sm:$0xff]
    %v9598 = vld [vmem:[#allocation4 + $0x428] sm:$0xff]
    %v9599 = vld [vmem:[#allocation4 + $0x438] sm:$0xff]
    %v9600 = vld [vmem:[#allocation4 + $0x448] sm:$0xff]
    %v9601 = vld [vmem:[#allocation4 + $0x458] sm:$0xff]
    %v9602 = vld [vmem:[#allocation4 + $0x468] sm:$0xff]
    %v9603 = vld [vmem:[#allocation4 + $0x478] sm:$0xff]
    %v9604 = vld [vmem:[#allocation4 + $0x488] sm:$0xff]
    %v9605 = vld [vmem:[#allocation4 + $0x498] sm:$0xff]
    %v9606 = vld [vmem:[#allocation4 + $0x4a8] sm:$0xff]
    %v9607 = vld [vmem:[#allocation4 + $0x4b8] sm:$0xff]
    %v9608 = vld [vmem:[#allocation4 + $0x4c8] sm:$0xff]
    %v9609 = vld [vmem:[#allocation4 + $0x4d8] sm:$0xff]
    %v9610 = vld [vmem:[#allocation4 + $0x4e8] sm:$0xff]
    %v9611 = vld [vmem:[#allocation4 + $0x4f8] sm:$0xff]
    %v9612 = vld [vmem:[#allocation4 + $0x508] sm:$0xff]
    %v9613 = vld [vmem:[#allocation4 + $0x518] sm:$0xff]
    %v9614 = vld [vmem:[#allocation4 + $0x528] sm:$0xff]
    %v9615 = vld [vmem:[#allocation4 + $0x538] sm:$0xff]
    %v9616 = vld [vmem:[#allocation4 + $0x548] sm:$0xff]
    %v9617 = vld [vmem:[#allocation4 + $0x558] sm:$0xff]
    %v9618 = vld [vmem:[#allocation4 + $0x568] sm:$0xff]
    %v9619 = vld [vmem:[#allocation4 + $0x578] sm:$0xff]
    %v9620 = vld [vmem:[#allocation4 + $0x588] sm:$0xff]
    %v9621 = vld [vmem:[#allocation4 + $0x598] sm:$0xff]
    %v9622 = vld [vmem:[#allocation4 + $0x5a8] sm:$0xff]
    %v9623 = vld [vmem:[#allocation4 + $0x5b8] sm:$0xff]
    %v9624 = vld [vmem:[#allocation4 + $0x5c8] sm:$0xff]
    %v9625 = vld [vmem:[#allocation4 + $0x5d8] sm:$0xff]
    %v9626 = vld [vmem:[#allocation4 + $0x5e8] sm:$0xff]
    %v9627 = vld [vmem:[#allocation4 + $0x5f8] sm:$0xff]
    %v9724 = vunpack.c.l.b16 %v9532
    %v9725 = vunpack.c.h.b16 %v9532
    %v9726 = vunpack.c.l.b16 %v9533
    %v9727 = vunpack.c.h.b16 %v9533
    %v9728 = vunpack.c.l.b16 %v9534
    %v9729 = vunpack.c.h.b16 %v9534
    %v9730 = vunpack.c.l.b16 %v9535
    %v9731 = vunpack.c.h.b16 %v9535
    %v9732 = vunpack.c.l.b16 %v9536
    %v9733 = vunpack.c.h.b16 %v9536
    %v9734 = vunpack.c.l.b16 %v9537
    %v9735 = vunpack.c.h.b16 %v9537
    %v9736 = vunpack.c.l.b16 %v9538
    %v9737 = vunpack.c.h.b16 %v9538
    %v9738 = vunpack.c.l.b16 %v9539
    %v9739 = vunpack.c.h.b16 %v9539
    %v9740 = vunpack.c.l.b16 %v9540
    %v9741 = vunpack.c.h.b16 %v9540
    %v9742 = vunpack.c.l.b16 %v9541
    %v9743 = vunpack.c.h.b16 %v9541
    %v9744 = vunpack.c.l.b16 %v9542
    %v9745 = vunpack.c.h.b16 %v9542
    %v9746 = vunpack.c.l.b16 %v9543
    %v9747 = vunpack.c.h.b16 %v9543
    %v9748 = vunpack.c.l.b16 %v9544
    %v9749 = vunpack.c.h.b16 %v9544
    %v9750 = vunpack.c.l.b16 %v9545
    %v9751 = vunpack.c.h.b16 %v9545
    %v9752 = vunpack.c.l.b16 %v9546
    %v9753 = vunpack.c.h.b16 %v9546
    %v9754 = vunpack.c.l.b16 %v9547
    %v9755 = vunpack.c.h.b16 %v9547
    %v9756 = vunpack.c.l.b16 %v9548
    %v9757 = vunpack.c.h.b16 %v9548
    %v9758 = vunpack.c.l.b16 %v9549
    %v9759 = vunpack.c.h.b16 %v9549
    %v9760 = vunpack.c.l.b16 %v9550
    %v9761 = vunpack.c.h.b16 %v9550
    %v9762 = vunpack.c.l.b16 %v9551
    %v9763 = vunpack.c.h.b16 %v9551
    %v9764 = vunpack.c.l.b16 %v9552
    %v9765 = vunpack.c.h.b16 %v9552
    %v9766 = vunpack.c.l.b16 %v9553
    %v9767 = vunpack.c.h.b16 %v9553
    %v9768 = vunpack.c.l.b16 %v9554
    %v9769 = vunpack.c.h.b16 %v9554
    %v9770 = vunpack.c.l.b16 %v9555
    %v9771 = vunpack.c.h.b16 %v9555
    %v9772 = vunpack.c.l.b16 %v9556
    %v9773 = vunpack.c.h.b16 %v9556
    %v9774 = vunpack.c.l.b16 %v9557
    %v9775 = vunpack.c.h.b16 %v9557
    %v9776 = vunpack.c.l.b16 %v9558
    %v9777 = vunpack.c.h.b16 %v9558
    %v9778 = vunpack.c.l.b16 %v9559
    %v9779 = vunpack.c.h.b16 %v9559
    %v9780 = vunpack.c.l.b16 %v9560
    %v9781 = vunpack.c.h.b16 %v9560
    %v9782 = vunpack.c.l.b16 %v9561
    %v9783 = vunpack.c.h.b16 %v9561
    %v9784 = vunpack.c.l.b16 %v9562
    %v9785 = vunpack.c.h.b16 %v9562
    %v9786 = vunpack.c.l.b16 %v9563
    %v9787 = vunpack.c.h.b16 %v9563
    %v9788 = vunpack.c.l.b16 %v9564
    %v9789 = vunpack.c.h.b16 %v9564
    %v9790 = vunpack.c.l.b16 %v9565
    %v9791 = vunpack.c.h.b16 %v9565
    %v9792 = vunpack.c.l.b16 %v9566
    %v9793 = vunpack.c.h.b16 %v9566
    %v9794 = vunpack.c.l.b16 %v9567
    %v9795 = vunpack.c.h.b16 %v9567
    %v9796 = vunpack.c.l.b16 %v9568
    %v9797 = vunpack.c.h.b16 %v9568
    %v9798 = vunpack.c.l.b16 %v9569
    %v9799 = vunpack.c.h.b16 %v9569
    %v9800 = vunpack.c.l.b16 %v9570
    %v9801 = vunpack.c.h.b16 %v9570
    %v9802 = vunpack.c.l.b16 %v9571
    %v9803 = vunpack.c.h.b16 %v9571
    %v9804 = vunpack.c.l.b16 %v9572
    %v9805 = vunpack.c.h.b16 %v9572
    %v9806 = vunpack.c.l.b16 %v9573
    %v9807 = vunpack.c.h.b16 %v9573
    %v9808 = vunpack.c.l.b16 %v9574
    %v9809 = vunpack.c.h.b16 %v9574
    %v9810 = vunpack.c.l.b16 %v9575
    %v9811 = vunpack.c.h.b16 %v9575
    %v9812 = vunpack.c.l.b16 %v9576
    %v9813 = vunpack.c.h.b16 %v9576
    %v9814 = vunpack.c.l.b16 %v9577
    %v9815 = vunpack.c.h.b16 %v9577
    %v9816 = vunpack.c.l.b16 %v9578
    %v9817 = vunpack.c.h.b16 %v9578
    %v9818 = vunpack.c.l.b16 %v9579
    %v9819 = vunpack.c.h.b16 %v9579
    %v9820 = vunpack.c.l.b16 %v9580
    %v9821 = vunpack.c.h.b16 %v9580
    %v9822 = vunpack.c.l.b16 %v9581
    %v9823 = vunpack.c.h.b16 %v9581
    %v9824 = vunpack.c.l.b16 %v9582
    %v9825 = vunpack.c.h.b16 %v9582
    %v9826 = vunpack.c.l.b16 %v9583
    %v9827 = vunpack.c.h.b16 %v9583
    %v9828 = vunpack.c.l.b16 %v9584
    %v9829 = vunpack.c.h.b16 %v9584
    %v9830 = vunpack.c.l.b16 %v9585
    %v9831 = vunpack.c.h.b16 %v9585
    %v9832 = vunpack.c.l.b16 %v9586
    %v9833 = vunpack.c.h.b16 %v9586
    %v9834 = vunpack.c.l.b16 %v9587
    %v9835 = vunpack.c.h.b16 %v9587
    %v9836 = vunpack.c.l.b16 %v9588
    %v9837 = vunpack.c.h.b16 %v9588
    %v9838 = vunpack.c.l.b16 %v9589
    %v9839 = vunpack.c.h.b16 %v9589
    %v9840 = vunpack.c.l.b16 %v9590
    %v9841 = vunpack.c.h.b16 %v9590
    %v9842 = vunpack.c.l.b16 %v9591
    %v9843 = vunpack.c.h.b16 %v9591
    %v9844 = vunpack.c.l.b16 %v9592
    %v9845 = vunpack.c.h.b16 %v9592
    %v9846 = vunpack.c.l.b16 %v9593
    %v9847 = vunpack.c.h.b16 %v9593
    %v9848 = vunpack.c.l.b16 %v9594
    %v9849 = vunpack.c.h.b16 %v9594
    %v9850 = vunpack.c.l.b16 %v9595
    %v9851 = vunpack.c.h.b16 %v9595
    %v9852 = vunpack.c.l.b16 %v9596
    %v9853 = vunpack.c.h.b16 %v9596
    %v9854 = vunpack.c.l.b16 %v9597
    %v9855 = vunpack.c.h.b16 %v9597
    %v9856 = vunpack.c.l.b16 %v9598
    %v9857 = vunpack.c.h.b16 %v9598
    %v9858 = vunpack.c.l.b16 %v9599
    %v9859 = vunpack.c.h.b16 %v9599
    %v9860 = vunpack.c.l.b16 %v9600
    %v9861 = vunpack.c.h.b16 %v9600
    %v9862 = vunpack.c.l.b16 %v9601
    %v9863 = vunpack.c.h.b16 %v9601
    %v9864 = vunpack.c.l.b16 %v9602
    %v9865 = vunpack.c.h.b16 %v9602
    %v9866 = vunpack.c.l.b16 %v9603
    %v9867 = vunpack.c.h.b16 %v9603
    %v9868 = vunpack.c.l.b16 %v9604
    %v9869 = vunpack.c.h.b16 %v9604
    %v9870 = vunpack.c.l.b16 %v9605
    %v9871 = vunpack.c.h.b16 %v9605
    %v9872 = vunpack.c.l.b16 %v9606
    %v9873 = vunpack.c.h.b16 %v9606
    %v9874 = vunpack.c.l.b16 %v9607
    %v9875 = vunpack.c.h.b16 %v9607
    %v9876 = vunpack.c.l.b16 %v9608
    %v9877 = vunpack.c.h.b16 %v9608
    %v9878 = vunpack.c.l.b16 %v9609
    %v9879 = vunpack.c.h.b16 %v9609
    %v9880 = vunpack.c.l.b16 %v9610
    %v9881 = vunpack.c.h.b16 %v9610
    %v9882 = vunpack.c.l.b16 %v9611
    %v9883 = vunpack.c.h.b16 %v9611
    %v9884 = vunpack.c.l.b16 %v9612
    %v9885 = vunpack.c.h.b16 %v9612
    %v9886 = vunpack.c.l.b16 %v9613
    %v9887 = vunpack.c.h.b16 %v9613
    %v9888 = vunpack.c.l.b16 %v9614
    %v9889 = vunpack.c.h.b16 %v9614
    %v9890 = vunpack.c.l.b16 %v9615
    %v9891 = vunpack.c.h.b16 %v9615
    %v9892 = vunpack.c.l.b16 %v9616
    %v9893 = vunpack.c.h.b16 %v9616
    %v9894 = vunpack.c.l.b16 %v9617
    %v9895 = vunpack.c.h.b16 %v9617
    %v9896 = vunpack.c.l.b16 %v9618
    %v9897 = vunpack.c.h.b16 %v9618
    %v9898 = vunpack.c.l.b16 %v9619
    %v9899 = vunpack.c.h.b16 %v9619
    %v9900 = vunpack.c.l.b16 %v9620
    %v9901 = vunpack.c.h.b16 %v9620
    %v9902 = vunpack.c.l.b16 %v9621
    %v9903 = vunpack.c.h.b16 %v9621
    %v9904 = vunpack.c.l.b16 %v9622
    %v9905 = vunpack.c.h.b16 %v9622
    %v9906 = vunpack.c.l.b16 %v9623
    %v9907 = vunpack.c.h.b16 %v9623
    %v9908 = vunpack.c.l.b16 %v9624
    %v9909 = vunpack.c.h.b16 %v9624
    %v9910 = vunpack.c.l.b16 %v9625
    %v9911 = vunpack.c.h.b16 %v9625
    %v9912 = vunpack.c.l.b16 %v9626
    %v9913 = vunpack.c.h.b16 %v9626
    %v9914 = vunpack.c.l.b16 %v9627
    %v9915 = vunpack.c.h.b16 %v9627
    %v9916 = vpack.c.b16 %v9726, %v9724
    %v9917 = vpack.c.b16 %v9727, %v9725
    %v9918 = vpack.c.b16 %v9730, %v9728
    %v9919 = vpack.c.b16 %v9731, %v9729
    %v9920 = vpack.c.b16 %v9734, %v9732
    %v9921 = vpack.c.b16 %v9735, %v9733
    %v9922 = vpack.c.b16 %v9738, %v9736
    %v9923 = vpack.c.b16 %v9739, %v9737
    %v9924 = vpack.c.b16 %v9742, %v9740
    %v9925 = vpack.c.b16 %v9743, %v9741
    %v9926 = vpack.c.b16 %v9746, %v9744
    %v9927 = vpack.c.b16 %v9747, %v9745
    %v9928 = vpack.c.b16 %v9750, %v9748
    %v9929 = vpack.c.b16 %v9751, %v9749
    %v9930 = vpack.c.b16 %v9754, %v9752
    %v9931 = vpack.c.b16 %v9755, %v9753
    %v9932 = vpack.c.b16 %v9758, %v9756
    %v9933 = vpack.c.b16 %v9759, %v9757
    %v9934 = vpack.c.b16 %v9762, %v9760
    %v9935 = vpack.c.b16 %v9763, %v9761
    %v9936 = vpack.c.b16 %v9766, %v9764
    %v9937 = vpack.c.b16 %v9767, %v9765
    %v9938 = vpack.c.b16 %v9770, %v9768
    %v9939 = vpack.c.b16 %v9771, %v9769
    %v9940 = vpack.c.b16 %v9774, %v9772
    %v9941 = vpack.c.b16 %v9775, %v9773
    %v9942 = vpack.c.b16 %v9778, %v9776
    %v9943 = vpack.c.b16 %v9779, %v9777
    %v9944 = vpack.c.b16 %v9782, %v9780
    %v9945 = vpack.c.b16 %v9783, %v9781
    %v9946 = vpack.c.b16 %v9786, %v9784
    %v9947 = vpack.c.b16 %v9787, %v9785
    %v9948 = vpack.c.b16 %v9790, %v9788
    %v9949 = vpack.c.b16 %v9791, %v9789
    %v9950 = vpack.c.b16 %v9794, %v9792
    %v9951 = vpack.c.b16 %v9795, %v9793
    %v9952 = vpack.c.b16 %v9798, %v9796
    %v9953 = vpack.c.b16 %v9799, %v9797
    %v9954 = vpack.c.b16 %v9802, %v9800
    %v9955 = vpack.c.b16 %v9803, %v9801
    %v9956 = vpack.c.b16 %v9806, %v9804
    %v9957 = vpack.c.b16 %v9807, %v9805
    %v9958 = vpack.c.b16 %v9810, %v9808
    %v9959 = vpack.c.b16 %v9811, %v9809
    %v9960 = vpack.c.b16 %v9814, %v9812
    %v9961 = vpack.c.b16 %v9815, %v9813
    %v9962 = vpack.c.b16 %v9818, %v9816
    %v9963 = vpack.c.b16 %v9819, %v9817
    %v9964 = vpack.c.b16 %v9822, %v9820
    %v9965 = vpack.c.b16 %v9823, %v9821
    %v9966 = vpack.c.b16 %v9826, %v9824
    %v9967 = vpack.c.b16 %v9827, %v9825
    %v9968 = vpack.c.b16 %v9830, %v9828
    %v9969 = vpack.c.b16 %v9831, %v9829
    %v9970 = vpack.c.b16 %v9834, %v9832
    %v9971 = vpack.c.b16 %v9835, %v9833
    %v9972 = vpack.c.b16 %v9838, %v9836
    %v9973 = vpack.c.b16 %v9839, %v9837
    %v9974 = vpack.c.b16 %v9842, %v9840
    %v9975 = vpack.c.b16 %v9843, %v9841
    %v9976 = vpack.c.b16 %v9846, %v9844
    %v9977 = vpack.c.b16 %v9847, %v9845
    %v9978 = vpack.c.b16 %v9850, %v9848
    %v9979 = vpack.c.b16 %v9851, %v9849
    %v9980 = vpack.c.b16 %v9854, %v9852
    %v9981 = vpack.c.b16 %v9855, %v9853
    %v9982 = vpack.c.b16 %v9858, %v9856
    %v9983 = vpack.c.b16 %v9859, %v9857
    %v9984 = vpack.c.b16 %v9862, %v9860
    %v9985 = vpack.c.b16 %v9863, %v9861
    %v9986 = vpack.c.b16 %v9866, %v9864
    %v9987 = vpack.c.b16 %v9867, %v9865
    %v9988 = vpack.c.b16 %v9870, %v9868
    %v9989 = vpack.c.b16 %v9871, %v9869
    %v9990 = vpack.c.b16 %v9874, %v9872
    %v9991 = vpack.c.b16 %v9875, %v9873
    %v9992 = vpack.c.b16 %v9878, %v9876
    %v9993 = vpack.c.b16 %v9879, %v9877
    %v9994 = vpack.c.b16 %v9882, %v9880
    %v9995 = vpack.c.b16 %v9883, %v9881
    %v9996 = vpack.c.b16 %v9886, %v9884
    %v9997 = vpack.c.b16 %v9887, %v9885
    %v9998 = vpack.c.b16 %v9890, %v9888
    %v9999 = vpack.c.b16 %v9891, %v9889
    %v10000 = vpack.c.b16 %v9894, %v9892
    %v10001 = vpack.c.b16 %v9895, %v9893
    %v10002 = vpack.c.b16 %v9898, %v9896
    %v10003 = vpack.c.b16 %v9899, %v9897
    %v10004 = vpack.c.b16 %v9902, %v9900
    %v10005 = vpack.c.b16 %v9903, %v9901
    %v10006 = vpack.c.b16 %v9906, %v9904
    %v10007 = vpack.c.b16 %v9907, %v9905
    %v10008 = vpack.c.b16 %v9910, %v9908
    %v10009 = vpack.c.b16 %v9911, %v9909
    %v10010 = vpack.c.b16 %v9914, %v9912
    %v10011 = vpack.c.b16 %v9915, %v9913
    %10108 = vmatprep.subr.bf16.mxu0 %v9931
    %10109 = vmatpush1.bf16.msra.mxu0 %v9930
    %10110 = vmatprep.subr.bf16.mxu0 %v9929
    %10111 = vmatpush1.bf16.msra.mxu0 %v9928
    %10112 = vmatprep.subr.bf16.mxu0 %v9927
    %10113 = vmatpush1.bf16.msra.mxu0 %v9926
    %10114 = vmatprep.subr.bf16.mxu0 %v9925
    %10115 = vmatpush1.bf16.msra.mxu0 %v9924
    %10116 = vmatprep.subr.bf16.mxu0 %v9923
    %10117 = vmatpush1.bf16.msra.mxu0 %v9922
    %10118 = vmatprep.subr.bf16.mxu0 %v9921
    %10119 = vmatpush1.bf16.msra.mxu0 %v9920
    %10120 = vmatprep.subr.bf16.mxu0 %v9919
    %10121 = vmatpush1.bf16.msra.mxu0 %v9918
    %10122 = vmatprep.subr.bf16.mxu0 %v9917
    %10123 = vmatpush1.bf16.msra.mxu0 %v9916
    %10124 = vmatprep.subr.bf16.mxu0 %v9947
    %10125 = vmatpush2.bf16.msra.mxu0 %v9946
    %10126 = vmatprep.subr.bf16.mxu0 %v9945
    %10127 = vmatpush2.bf16.msra.mxu0 %v9944
    %10128 = vmatprep.subr.bf16.mxu0 %v9943
    %10129 = vmatpush2.bf16.msra.mxu0 %v9942
    %10130 = vmatprep.subr.bf16.mxu0 %v9941
    %10131 = vmatpush2.bf16.msra.mxu0 %v9940
    %10132 = vmatprep.subr.bf16.mxu0 %v9939
    %10133 = vmatpush2.bf16.msra.mxu0 %v9938
    %10134 = vmatprep.subr.bf16.mxu0 %v9937
    %10135 = vmatpush2.bf16.msra.mxu0 %v9936
    %10136 = vmatprep.subr.bf16.mxu0 %v9935
    %10137 = vmatpush2.bf16.msra.mxu0 %v9934
    %10138 = vmatprep.subr.bf16.mxu0 %v9933
    %10139 = vmatpush2.bf16.msra.mxu0 %v9932
    %10140 = vmatprep.mubr.bf16.mxu0 %v8917
    %10141 = vmatmul.mubr.bf16.gmra.mxu0 %v8916
    %v10142 = vpop.f32.mrf.mxu0
    %v10143 = vadd.f32 0.0, %v10142
    %v10144 = vpop.f32.mrf.mxu0
    %v10145 = vadd.f32 0.0, %v10144
    %v10146 = vpop.f32.mrf.mxu0
    %v10147 = vpop.f32.mrf.mxu0
    %10148 = vdwg.mxu0
    %10149 = vmatprep.subr.bf16.mxu0 %v9963
    %10150 = vmatpush1.bf16.msra.mxu0 %v9962
    %10151 = vmatprep.subr.bf16.mxu0 %v9961
    %10152 = vmatpush1.bf16.msra.mxu0 %v9960
    %10153 = vmatprep.subr.bf16.mxu0 %v9959
    %10154 = vmatpush1.bf16.msra.mxu0 %v9958
    %10155 = vmatprep.subr.bf16.mxu0 %v9957
    %10156 = vmatpush1.bf16.msra.mxu0 %v9956
    %10157 = vmatprep.subr.bf16.mxu0 %v9955
    %10158 = vmatpush1.bf16.msra.mxu0 %v9954
    %10159 = vmatprep.subr.bf16.mxu0 %v9953
    %10160 = vmatpush1.bf16.msra.mxu0 %v9952
    %10161 = vmatprep.subr.bf16.mxu0 %v9951
    %10162 = vmatpush1.bf16.msra.mxu0 %v9950
    %10163 = vmatprep.subr.bf16.mxu0 %v9949
    %10164 = vmatpush1.bf16.msra.mxu0 %v9948
    %10165 = vmatprep.subr.bf16.mxu0 %v9979
    %10166 = vmatpush2.bf16.msra.mxu0 %v9978
    %10167 = vmatprep.subr.bf16.mxu0 %v9977
    %10168 = vmatpush2.bf16.msra.mxu0 %v9976
    %10169 = vmatprep.subr.bf16.mxu0 %v9975
    %10170 = vmatpush2.bf16.msra.mxu0 %v9974
    %10171 = vmatprep.subr.bf16.mxu0 %v9973
    %10172 = vmatpush2.bf16.msra.mxu0 %v9972
    %10173 = vmatprep.subr.bf16.mxu0 %v9971
    %10174 = vmatpush2.bf16.msra.mxu0 %v9970
    %10175 = vmatprep.subr.bf16.mxu0 %v9969
    %10176 = vmatpush2.bf16.msra.mxu0 %v9968
    %10177 = vmatprep.subr.bf16.mxu0 %v9967
    %10178 = vmatpush2.bf16.msra.mxu0 %v9966
    %10179 = vmatprep.subr.bf16.mxu0 %v9965
    %10180 = vmatpush2.bf16.msra.mxu0 %v9964
    %10181 = vmatprep.mubr.bf16.mxu0 %v8919
    %10182 = vmatmul.mubr.bf16.gmra.mxu0 %v8918
    %v10183 = vpop.f32.mrf.mxu0
    %v10184 = vadd.f32 %v10143, %v10183
    %v10185 = vpop.f32.mrf.mxu0
    %v10186 = vadd.f32 %v10145, %v10185
    %v10187 = vpop.f32.mrf.mxu0
    %v10188 = vpop.f32.mrf.mxu0
    %10189 = vdwg.mxu0
    %10190 = vmatprep.subr.bf16.mxu0 %v9995
    %10191 = vmatpush1.bf16.msra.mxu0 %v9994
    %10192 = vmatprep.subr.bf16.mxu0 %v9993
    %10193 = vmatpush1.bf16.msra.mxu0 %v9992
    %10194 = vmatprep.subr.bf16.mxu0 %v9991
    %10195 = vmatpush1.bf16.msra.mxu0 %v9990
    %10196 = vmatprep.subr.bf16.mxu0 %v9989
    %10197 = vmatpush1.bf16.msra.mxu0 %v9988
    %10198 = vmatprep.subr.bf16.mxu0 %v9987
    %10199 = vmatpush1.bf16.msra.mxu0 %v9986
    %10200 = vmatprep.subr.bf16.mxu0 %v9985
    %10201 = vmatpush1.bf16.msra.mxu0 %v9984
    %10202 = vmatprep.subr.bf16.mxu0 %v9983
    %10203 = vmatpush1.bf16.msra.mxu0 %v9982
    %10204 = vmatprep.subr.bf16.mxu0 %v9981
    %10205 = vmatpush1.bf16.msra.mxu0 %v9980
    %10206 = vmatprep.subr.bf16.mxu0 %v10011
    %10207 = vmatpush2.bf16.msra.mxu0 %v10010
    %10208 = vmatprep.subr.bf16.mxu0 %v10009
    %10209 = vmatpush2.bf16.msra.mxu0 %v10008
    %10210 = vmatprep.subr.bf16.mxu0 %v10007
    %10211 = vmatpush2.bf16.msra.mxu0 %v10006
    %10212 = vmatprep.subr.bf16.mxu0 %v10005
    %10213 = vmatpush2.bf16.msra.mxu0 %v10004
    %10214 = vmatprep.subr.bf16.mxu0 %v10003
    %10215 = vmatpush2.bf16.msra.mxu0 %v10002
    %10216 = vmatprep.subr.bf16.mxu0 %v10001
    %10217 = vmatpush2.bf16.msra.mxu0 %v10000
    %10218 = vmatprep.subr.bf16.mxu0 %v9999
    %10219 = vmatpush2.bf16.msra.mxu0 %v9998
    %10220 = vmatprep.subr.bf16.mxu0 %v9997
    %10221 = vmatpush2.bf16.msra.mxu0 %v9996
    %10222 = vmatprep.mubr.bf16.mxu0 %v8921
    %10223 = vmatmul.mubr.bf16.gmra.mxu0 %v8920
    %v10224 = vpop.f32.mrf.mxu0
    %v10225 = vadd.f32 %v10184, %v10224
    %v10226 = vpop.f32.mrf.mxu0
    %v10227 = vadd.f32 %v10186, %v10226
    %v10228 = vpop.f32.mrf.mxu0
    %v10229 = vpop.f32.mrf.mxu0
    %10230 = vdwg.mxu0
    %v10231 = vmax.f32 %v10225, %v10227
    %v10232 = vmax.f32 %v9531, %v10231
    %v10233 = vld [vmem:[%s4] sm:$0x1]
    %v10235 = vlaneseq
    %v10236 = vshrl.u32 %v10235, 7
    %v10237 = vsub.s32 0, %v10236
    %v10238 = vrot.slane %v10233, %v10237
    %v10240 = vadd.f32 %v10232, %v10238
    %v10241 = vmax.f32 %v10240, 0.0
    %v10242 = vpack.c.bf16 %v10241, %v10241
    %10243 = vst [vmem:[#allocation3 + $0xc] sm:$0xf] %v10242
    %v10244 = vld [vmem:[#allocation3] sm:$0xff]
    %v10245 = vld [vmem:[#allocation3 + $0x8] sm:$0xff]
    %v10246 = vld [vmem:[%s5] sm:$0xf]
    %v10247 = vld [vmem:[%s5 + $0x4] sm:$0xf]
    %v10248 = vld [vmem:[%s5 + $0x8] sm:$0xf]
    %v10249 = vld [vmem:[%s5 + $0xc] sm:$0xf]
    %v10250 = vld [vmem:[%s5 + $0x10] sm:$0xf]
    %v10251 = vld [vmem:[%s5 + $0x14] sm:$0xf]
    %v10252 = vld [vmem:[%s5 + $0x18] sm:$0xf]
    %v10253 = vld [vmem:[%s5 + $0x1c] sm:$0xf]
    %v10254 = vld [vmem:[%s5 + $0x20] sm:$0xf]
    %v10255 = vld [vmem:[%s5 + $0x24] sm:$0xf]
    %v10256 = vld [vmem:[%s5 + $0x28] sm:$0xf]
    %v10257 = vld [vmem:[%s5 + $0x2c] sm:$0xf]
    %v10258 = vld [vmem:[%s5 + $0x30] sm:$0xf]
    %v10259 = vld [vmem:[%s5 + $0x34] sm:$0xf]
    %v10260 = vld [vmem:[%s5 + $0x38] sm:$0xf]
    %v10261 = vld [vmem:[%s5 + $0x3c] sm:$0xf]
    %v10262 = vld [vmem:[%s5 + $0x40] sm:$0xf]
    %v10263 = vld [vmem:[%s5 + $0x44] sm:$0xf]
    %v10264 = vld [vmem:[%s5 + $0x48] sm:$0xf]
    %v10265 = vld [vmem:[%s5 + $0x4c] sm:$0xf]
    %v10266 = vld [vmem:[%s5 + $0x50] sm:$0xf]
    %v10267 = vld [vmem:[%s5 + $0x54] sm:$0xf]
    %v10268 = vld [vmem:[%s5 + $0x58] sm:$0xf]
    %v10269 = vld [vmem:[%s5 + $0x5c] sm:$0xf]
    %v10270 = vld [vmem:[%s5 + $0x60] sm:$0xf]
    %v10271 = vld [vmem:[%s5 + $0x64] sm:$0xf]
    %v10272 = vld [vmem:[%s5 + $0x68] sm:$0xf]
    %v10273 = vld [vmem:[%s5 + $0x6c] sm:$0xf]
    %v10274 = vld [vmem:[%s5 + $0x70] sm:$0xf]
    %v10275 = vld [vmem:[%s5 + $0x74] sm:$0xf]
    %v10276 = vld [vmem:[%s5 + $0x78] sm:$0xf]
    %v10277 = vld [vmem:[%s5 + $0x7c] sm:$0xf]
    %v10278 = vld [vmem:[%s5 + $0x80] sm:$0xf]
    %v10279 = vld [vmem:[%s5 + $0x84] sm:$0xf]
    %v10280 = vld [vmem:[%s5 + $0x88] sm:$0xf]
    %v10281 = vld [vmem:[%s5 + $0x8c] sm:$0xf]
    %v10282 = vld [vmem:[%s5 + $0x90] sm:$0xf]
    %v10283 = vld [vmem:[%s5 + $0x94] sm:$0xf]
    %v10284 = vld [vmem:[%s5 + $0x98] sm:$0xf]
    %v10285 = vld [vmem:[%s5 + $0x9c] sm:$0xf]
    %v10286 = vld [vmem:[%s5 + $0xa0] sm:$0xf]
    %v10287 = vld [vmem:[%s5 + $0xa4] sm:$0xf]
    %v10288 = vld [vmem:[%s5 + $0xa8] sm:$0xf]
    %v10289 = vld [vmem:[%s5 + $0xac] sm:$0xf]
    %v10290 = vld [vmem:[%s5 + $0xb0] sm:$0xf]
    %v10291 = vld [vmem:[%s5 + $0xb4] sm:$0xf]
    %v10292 = vld [vmem:[%s5 + $0xb8] sm:$0xf]
    %v10293 = vld [vmem:[%s5 + $0xbc] sm:$0xf]
    %v10294 = vld [vmem:[%s5 + $0xc0] sm:$0xf]
    %v10295 = vld [vmem:[%s5 + $0xc4] sm:$0xf]
    %v10296 = vld [vmem:[%s5 + $0xc8] sm:$0xf]
    %v10297 = vld [vmem:[%s5 + $0xcc] sm:$0xf]
    %v10298 = vld [vmem:[%s5 + $0xd0] sm:$0xf]
    %v10299 = vld [vmem:[%s5 + $0xd4] sm:$0xf]
    %v10300 = vld [vmem:[%s5 + $0xd8] sm:$0xf]
    %v10301 = vld [vmem:[%s5 + $0xdc] sm:$0xf]
    %v10302 = vld [vmem:[%s5 + $0xe0] sm:$0xf]
    %v10303 = vld [vmem:[%s5 + $0xe4] sm:$0xf]
    %v10304 = vld [vmem:[%s5 + $0xe8] sm:$0xf]
    %v10305 = vld [vmem:[%s5 + $0xec] sm:$0xf]
    %v10306 = vld [vmem:[%s5 + $0xf0] sm:$0xf]
    %v10307 = vld [vmem:[%s5 + $0xf4] sm:$0xf]
    %v10308 = vld [vmem:[%s5 + $0xf8] sm:$0xf]
    %v10309 = vld [vmem:[%s5 + $0xfc] sm:$0xf]
    %v10310 = vld [vmem:[%s6] sm:$0x1]
    %v10312 = vlaneseq
    %v10313 = vshrl.u32 %v10312, 7
    %v10314 = vsub.s32 0, %v10313
    %v10315 = vrot.slane %v10310, %v10314
    %v10319 = vunpack.c.l.b16 %v10244
    %v10320 = vunpack.c.h.b16 %v10244
    %v10321 = vunpack.c.l.b16 %v10245
    %v10322 = vunpack.c.h.b16 %v10245
    %v10323 = vpack.c.b16 %v10319, %v10319
    %v10324 = vpack.c.b16 %v10320, %v10320
    %v10325 = vpack.c.b16 %v10321, %v10321
    %v10326 = vpack.c.b16 %v10322, %v10322
    %v10395 = vunpack.c.l.b16 %v10246
    %v10396 = vunpack.c.l.b16 %v10247
    %v10397 = vunpack.c.l.b16 %v10248
    %v10398 = vunpack.c.l.b16 %v10249
    %v10399 = vunpack.c.l.b16 %v10250
    %v10400 = vunpack.c.l.b16 %v10251
    %v10401 = vunpack.c.l.b16 %v10252
    %v10402 = vunpack.c.l.b16 %v10253
    %v10403 = vunpack.c.l.b16 %v10254
    %v10404 = vunpack.c.l.b16 %v10255
    %v10405 = vunpack.c.l.b16 %v10256
    %v10406 = vunpack.c.l.b16 %v10257
    %v10407 = vunpack.c.l.b16 %v10258
    %v10408 = vunpack.c.l.b16 %v10259
    %v10409 = vunpack.c.l.b16 %v10260
    %v10410 = vunpack.c.l.b16 %v10261
    %v10411 = vunpack.c.l.b16 %v10262
    %v10412 = vunpack.c.l.b16 %v10263
    %v10413 = vunpack.c.l.b16 %v10264
    %v10414 = vunpack.c.l.b16 %v10265
    %v10415 = vunpack.c.l.b16 %v10266
    %v10416 = vunpack.c.l.b16 %v10267
    %v10417 = vunpack.c.l.b16 %v10268
    %v10418 = vunpack.c.l.b16 %v10269
    %v10419 = vunpack.c.l.b16 %v10270
    %v10420 = vunpack.c.l.b16 %v10271
    %v10421 = vunpack.c.l.b16 %v10272
    %v10422 = vunpack.c.l.b16 %v10273
    %v10423 = vunpack.c.l.b16 %v10274
    %v10424 = vunpack.c.l.b16 %v10275
    %v10425 = vunpack.c.l.b16 %v10276
    %v10426 = vunpack.c.l.b16 %v10277
    %v10427 = vunpack.c.l.b16 %v10278
    %v10428 = vunpack.c.l.b16 %v10279
    %v10429 = vunpack.c.l.b16 %v10280
    %v10430 = vunpack.c.l.b16 %v10281
    %v10431 = vunpack.c.l.b16 %v10282
    %v10432 = vunpack.c.l.b16 %v10283
    %v10433 = vunpack.c.l.b16 %v10284
    %v10434 = vunpack.c.l.b16 %v10285
    %v10435 = vunpack.c.l.b16 %v10286
    %v10436 = vunpack.c.l.b16 %v10287
    %v10437 = vunpack.c.l.b16 %v10288
    %v10438 = vunpack.c.l.b16 %v10289
    %v10439 = vunpack.c.l.b16 %v10290
    %v10440 = vunpack.c.l.b16 %v10291
    %v10441 = vunpack.c.l.b16 %v10292
    %v10442 = vunpack.c.l.b16 %v10293
    %v10443 = vunpack.c.l.b16 %v10294
    %v10444 = vunpack.c.l.b16 %v10295
    %v10445 = vunpack.c.l.b16 %v10296
    %v10446 = vunpack.c.l.b16 %v10297
    %v10447 = vunpack.c.l.b16 %v10298
    %v10448 = vunpack.c.l.b16 %v10299
    %v10449 = vunpack.c.l.b16 %v10300
    %v10450 = vunpack.c.l.b16 %v10301
    %v10451 = vunpack.c.l.b16 %v10302
    %v10452 = vunpack.c.l.b16 %v10303
    %v10453 = vunpack.c.l.b16 %v10304
    %v10454 = vunpack.c.l.b16 %v10305
    %v10455 = vunpack.c.l.b16 %v10306
    %v10456 = vunpack.c.l.b16 %v10307
    %v10457 = vunpack.c.l.b16 %v10308
    %v10458 = vunpack.c.l.b16 %v10309
    %v10459 = vpack.c.b16 %v10396, %v10395
    %v10460 = vpack.c.b16 %v10398, %v10397
    %v10461 = vpack.c.b16 %v10400, %v10399
    %v10462 = vpack.c.b16 %v10402, %v10401
    %v10463 = vpack.c.b16 %v10404, %v10403
    %v10464 = vpack.c.b16 %v10406, %v10405
    %v10465 = vpack.c.b16 %v10408, %v10407
    %v10466 = vpack.c.b16 %v10410, %v10409
    %v10467 = vpack.c.b16 %v10412, %v10411
    %v10468 = vpack.c.b16 %v10414, %v10413
    %v10469 = vpack.c.b16 %v10416, %v10415
    %v10470 = vpack.c.b16 %v10418, %v10417
    %v10471 = vpack.c.b16 %v10420, %v10419
    %v10472 = vpack.c.b16 %v10422, %v10421
    %v10473 = vpack.c.b16 %v10424, %v10423
    %v10474 = vpack.c.b16 %v10426, %v10425
    %v10475 = vpack.c.b16 %v10428, %v10427
    %v10476 = vpack.c.b16 %v10430, %v10429
    %v10477 = vpack.c.b16 %v10432, %v10431
    %v10478 = vpack.c.b16 %v10434, %v10433
    %v10479 = vpack.c.b16 %v10436, %v10435
    %v10480 = vpack.c.b16 %v10438, %v10437
    %v10481 = vpack.c.b16 %v10440, %v10439
    %v10482 = vpack.c.b16 %v10442, %v10441
    %v10483 = vpack.c.b16 %v10444, %v10443
    %v10484 = vpack.c.b16 %v10446, %v10445
    %v10485 = vpack.c.b16 %v10448, %v10447
    %v10486 = vpack.c.b16 %v10450, %v10449
    %v10487 = vpack.c.b16 %v10452, %v10451
    %v10488 = vpack.c.b16 %v10454, %v10453
    %v10489 = vpack.c.b16 %v10456, %v10455
    %v10490 = vpack.c.b16 %v10458, %v10457
    %10523 = vmatprep.subr.bf16.mxu0 0
    %10524 = vmatpush1.bf16.msra.mxu0 %v10466
    %10525 = vmatprep.subr.bf16.mxu0 0
    %10526 = vmatpush1.bf16.msra.mxu0 %v10465
    %10527 = vmatprep.subr.bf16.mxu0 0
    %10528 = vmatpush1.bf16.msra.mxu0 %v10464
    %10529 = vmatprep.subr.bf16.mxu0 0
    %10530 = vmatpush1.bf16.msra.mxu0 %v10463
    %10531 = vmatprep.subr.bf16.mxu0 0
    %10532 = vmatpush1.bf16.msra.mxu0 %v10462
    %10533 = vmatprep.subr.bf16.mxu0 0
    %10534 = vmatpush1.bf16.msra.mxu0 %v10461
    %10535 = vmatprep.subr.bf16.mxu0 0
    %10536 = vmatpush1.bf16.msra.mxu0 %v10460
    %10537 = vmatprep.subr.bf16.mxu0 0
    %10538 = vmatpush1.bf16.msra.mxu0 %v10459
    %10539 = vmatprep.subr.bf16.mxu0 0
    %10540 = vmatpush2.bf16.msra.mxu0 %v10474
    %10541 = vmatprep.subr.bf16.mxu0 0
    %10542 = vmatpush2.bf16.msra.mxu0 %v10473
    %10543 = vmatprep.subr.bf16.mxu0 0
    %10544 = vmatpush2.bf16.msra.mxu0 %v10472
    %10545 = vmatprep.subr.bf16.mxu0 0
    %10546 = vmatpush2.bf16.msra.mxu0 %v10471
    %10547 = vmatprep.subr.bf16.mxu0 0
    %10548 = vmatpush2.bf16.msra.mxu0 %v10470
    %10549 = vmatprep.subr.bf16.mxu0 0
    %10550 = vmatpush2.bf16.msra.mxu0 %v10469
    %10551 = vmatprep.subr.bf16.mxu0 0
    %10552 = vmatpush2.bf16.msra.mxu0 %v10468
    %10553 = vmatprep.subr.bf16.mxu0 0
    %10554 = vmatpush2.bf16.msra.mxu0 %v10467
    %10555 = vmatprep.mubr.bf16.mxu0 %v10324
    %10556 = vmatmul.mubr.bf16.gmra.mxu0 %v10323
    %v10557 = vpop.f32.mrf.mxu0
    %v10558 = vadd.f32 %v10315, %v10557
    %v10559 = vpop.f32.mrf.mxu0
    %v10560 = vpop.f32.mrf.mxu0
    %v10561 = vpop.f32.mrf.mxu0
    %10562 = vdwg.mxu0
    %10563 = vmatprep.subr.bf16.mxu0 0
    %10564 = vmatpush1.bf16.msra.mxu0 %v10482
    %10565 = vmatprep.subr.bf16.mxu0 0
    %10566 = vmatpush1.bf16.msra.mxu0 %v10481
    %10567 = vmatprep.subr.bf16.mxu0 0
    %10568 = vmatpush1.bf16.msra.mxu0 %v10480
    %10569 = vmatprep.subr.bf16.mxu0 0
    %10570 = vmatpush1.bf16.msra.mxu0 %v10479
    %10571 = vmatprep.subr.bf16.mxu0 0
    %10572 = vmatpush1.bf16.msra.mxu0 %v10478
    %10573 = vmatprep.subr.bf16.mxu0 0
    %10574 = vmatpush1.bf16.msra.mxu0 %v10477
    %10575 = vmatprep.subr.bf16.mxu0 0
    %10576 = vmatpush1.bf16.msra.mxu0 %v10476
    %10577 = vmatprep.subr.bf16.mxu0 0
    %10578 = vmatpush1.bf16.msra.mxu0 %v10475
    %10579 = vmatprep.subr.bf16.mxu0 0
    %10580 = vmatpush2.bf16.msra.mxu0 %v10490
    %10581 = vmatprep.subr.bf16.mxu0 0
    %10582 = vmatpush2.bf16.msra.mxu0 %v10489
    %10583 = vmatprep.subr.bf16.mxu0 0
    %10584 = vmatpush2.bf16.msra.mxu0 %v10488
    %10585 = vmatprep.subr.bf16.mxu0 0
    %10586 = vmatpush2.bf16.msra.mxu0 %v10487
    %10587 = vmatprep.subr.bf16.mxu0 0
    %10588 = vmatpush2.bf16.msra.mxu0 %v10486
    %10589 = vmatprep.subr.bf16.mxu0 0
    %10590 = vmatpush2.bf16.msra.mxu0 %v10485
    %10591 = vmatprep.subr.bf16.mxu0 0
    %10592 = vmatpush2.bf16.msra.mxu0 %v10484
    %10593 = vmatprep.subr.bf16.mxu0 0
    %10594 = vmatpush2.bf16.msra.mxu0 %v10483
    %10595 = vmatprep.mubr.bf16.mxu0 %v10326
    %10596 = vmatmul.mubr.bf16.gmra.mxu0 %v10325
    %v10597 = vpop.f32.mrf.mxu0
    %v10598 = vadd.f32 %v10558, %v10597
    %v10599 = vpop.f32.mrf.mxu0
    %v10600 = vpop.f32.mrf.mxu0
    %v10601 = vpop.f32.mrf.mxu0
    %10602 = vdwg.mxu0
    %v10603 = vmax.f32 %v10598, 0.0
    %v10604 = vpack.c.bf16 %v10603, %v10603
    %v10605 = vld [vmem:[%s7] sm:$0xf]
    %v10606 = vld [vmem:[%s7 + $0x4] sm:$0xf]
    %v10607 = vld [vmem:[%s7 + $0x8] sm:$0xf]
    %v10608 = vld [vmem:[%s7 + $0xc] sm:$0xf]
    %v10609 = vld [vmem:[%s7 + $0x10] sm:$0xf]
    %v10610 = vld [vmem:[%s7 + $0x14] sm:$0xf]
    %v10611 = vld [vmem:[%s7 + $0x18] sm:$0xf]
    %v10612 = vld [vmem:[%s7 + $0x1c] sm:$0xf]
    %v10613 = vld [vmem:[%s7 + $0x20] sm:$0xf]
    %v10614 = vld [vmem:[%s7 + $0x24] sm:$0xf]
    %v10615 = vld [vmem:[%s7 + $0x28] sm:$0xf]
    %v10616 = vld [vmem:[%s7 + $0x2c] sm:$0xf]
    %v10617 = vld [vmem:[%s7 + $0x30] sm:$0xf]
    %v10618 = vld [vmem:[%s7 + $0x34] sm:$0xf]
    %v10619 = vld [vmem:[%s7 + $0x38] sm:$0xf]
    %v10620 = vld [vmem:[%s7 + $0x3c] sm:$0xf]
    %v10621 = vld [vmem:[%s8] sm:$0x1]
    %v10623 = vlaneseq
    %v10624 = vshrl.u32 %v10623, 7
    %v10625 = vsub.s32 0, %v10624
    %v10626 = vrot.slane %v10621, %v10625
    %v10644 = vunpack.c.l.b16 %v10605
    %v10645 = vunpack.c.l.b16 %v10606
    %v10646 = vunpack.c.l.b16 %v10607
    %v10647 = vunpack.c.l.b16 %v10608
    %v10648 = vunpack.c.l.b16 %v10609
    %v10649 = vunpack.c.l.b16 %v10610
    %v10650 = vunpack.c.l.b16 %v10611
    %v10651 = vunpack.c.l.b16 %v10612
    %v10652 = vunpack.c.l.b16 %v10613
    %v10653 = vunpack.c.l.b16 %v10614
    %v10654 = vunpack.c.l.b16 %v10615
    %v10655 = vunpack.c.l.b16 %v10616
    %v10656 = vunpack.c.l.b16 %v10617
    %v10657 = vunpack.c.l.b16 %v10618
    %v10658 = vunpack.c.l.b16 %v10619
    %v10659 = vunpack.c.l.b16 %v10620
    %v10660 = vpack.c.b16 %v10645, %v10644
    %v10661 = vpack.c.b16 %v10647, %v10646
    %v10662 = vpack.c.b16 %v10649, %v10648
    %v10663 = vpack.c.b16 %v10651, %v10650
    %v10664 = vpack.c.b16 %v10653, %v10652
    %v10665 = vpack.c.b16 %v10655, %v10654
    %v10666 = vpack.c.b16 %v10657, %v10656
    %v10667 = vpack.c.b16 %v10659, %v10658
    %10676 = vmatprep.subr.bf16.mxu0 0
    %10677 = vmatpush1.bf16.msra.mxu0 %v10667
    %10678 = vmatprep.subr.bf16.mxu0 0
    %10679 = vmatpush1.bf16.msra.mxu0 %v10666
    %10680 = vmatprep.subr.bf16.mxu0 0
    %10681 = vmatpush1.bf16.msra.mxu0 %v10665
    %10682 = vmatprep.subr.bf16.mxu0 0
    %10683 = vmatpush1.bf16.msra.mxu0 %v10664
    %10684 = vmatprep.subr.bf16.mxu0 0
    %10685 = vmatpush1.bf16.msra.mxu0 %v10663
    %10686 = vmatprep.subr.bf16.mxu0 0
    %10687 = vmatpush1.bf16.msra.mxu0 %v10662
    %10688 = vmatprep.subr.bf16.mxu0 0
    %10689 = vmatpush1.bf16.msra.mxu0 %v10661
    %10690 = vmatprep.subr.bf16.mxu0 0
    %10691 = vmatpush1.bf16.msra.mxu0 %v10660
    %10692 = vmatprep.subr.bf16.mxu0 0
    %10693 = vmatpush2.bf16.msra.mxu0 0
    %10694 = vmatprep.subr.bf16.mxu0 0
    %10695 = vmatpush2.bf16.msra.mxu0 0
    %10696 = vmatprep.subr.bf16.mxu0 0
    %10697 = vmatpush2.bf16.msra.mxu0 0
    %10698 = vmatprep.subr.bf16.mxu0 0
    %10699 = vmatpush2.bf16.msra.mxu0 0
    %10700 = vmatprep.subr.bf16.mxu0 0
    %10701 = vmatpush2.bf16.msra.mxu0 0
    %10702 = vmatprep.subr.bf16.mxu0 0
    %10703 = vmatpush2.bf16.msra.mxu0 0
    %10704 = vmatprep.subr.bf16.mxu0 0
    %10705 = vmatpush2.bf16.msra.mxu0 0
    %10706 = vmatprep.subr.bf16.mxu0 0
    %10707 = vmatpush2.bf16.msra.mxu0 0
    %10708 = vmatprep.mubr.bf16.mxu0 0
    %10709 = vmatmul.mubr.bf16.gmra.mxu0 %v10604
    %v10710 = vpop.f32.mrf.mxu0
    %v10711 = vadd.f32 %v10626, %v10710
    %v10712 = vpop.f32.mrf.mxu0
    %v10713 = vpop.f32.mrf.mxu0
    %v10714 = vpop.f32.mrf.mxu0
    %10715 = vdwg.mxu0
    %10716 = vst [vmem:[%s9] sm:$0xff] %v10711
    // Predicated region
    $region42: #{cnn_mnist_forward.1} parent=1 // pred_check
      _
    $region43: #{cnn_mnist_forward.1} parent=1 // pred_check_branch
      %10718 = sbr.rel (0) target = $region45
    $region44: #{cnn_mnist_forward.1} parent=1 // pred_region
      _
    $region45: #{cnn_mnist_forward.1} parent=1 // pred_fallthru
      _
    // Predicated region
    $region46: #{cnn_mnist_forward.1} parent=1 // pred_check
      _
    $region47: #{cnn_mnist_forward.1} parent=1 // pred_check_branch
      %10720 = sbr.rel (0) target = $region49
    $region48: #{cnn_mnist_forward.1} parent=1 // pred_region
      _
    $region49: #{cnn_mnist_forward.1} parent=1 // pred_fallthru
      _
    %10721 = vsyncpa [#allocation5], 1

</llo_original>
